<compile_context>
chip_gen: v6e
topology: v6e:2x2x1
jax: 0.10.0
libtpu: 0.0.40
codegen_flags: <defaults>
</compile_context>

<pallas_src>
import numpy as np

import jax
import jax.numpy as jnp
from jax import lax
from jax.experimental import pallas as pl
from jax.experimental.pallas import tpu as pltpu

EPS = 1e-5
LANE = 128
_VMEM = pl.BlockSpec(memory_space=pltpu.MemorySpace.VMEM)
_ANY = pl.BlockSpec(memory_space=pl.ANY)


def _cpad(c):
    """Pad a channel count up to a multiple of 128 (lane-dense layout)."""
    return max(LANE, ((c + LANE - 1) // LANE) * LANE)


# --------------------------- in-kernel helpers ------------------------------ #

def _bn_train(y, g, b):
    """Training-mode BatchNorm over rows (one-pass stats, biased var, eps=1e-5)."""
    inv_n = 1.0 / float(y.shape[0])
    s1 = jnp.sum(y, axis=0, keepdims=True)
    s2 = jnp.sum(y * y, axis=0, keepdims=True)
    mean = s1 * inv_n
    var = s2 * inv_n - mean * mean
    scale = g * lax.rsqrt(var + EPS)
    return y * scale + (b - mean * scale)


def _sample_pos(m, c, seq):
    """(m, c) int32 within-sample position of each row (rows grouped per sample)."""
    pos = lax.broadcasted_iota(jnp.int32, (m, c), 0)
    if seq & (seq - 1) == 0:                     # power of two -> cheap bit mask
        return pos & (seq - 1)
    return pos % seq


def _shift_prev(buf, x, seq):
    """x[i-1] within each length-`seq` sample (zero at each sample's first row)."""
    m, c = x.shape
    buf[pl.ds(1, m), pl.ds(0, c)] = x
    prev_rows = buf[pl.ds(0, m), pl.ds(0, c)]
    return jnp.where(_sample_pos(m, c, seq) == 0, 0.0, prev_rows)


def _shift_both(buf, x, seq):
    """(x[i-1], x[i+1]) within each length-`seq` sample, zero-fill at boundaries."""
    m, c = x.shape
    buf[pl.ds(1, m), pl.ds(0, c)] = x
    prev_rows = buf[pl.ds(0, m), pl.ds(0, c)]
    next_rows = buf[pl.ds(2, m), pl.ds(0, c)]
    pos = _sample_pos(m, c, seq)
    prev_rows = jnp.where(pos == 0, 0.0, prev_rows)
    next_rows = jnp.where(pos == seq - 1, 0.0, next_rows)
    return prev_rows, next_rows


def _conv3_s1(buf, x, w, seq):
    """3-tap / stride-1 / pad-1 conv as ONE long-K bf16 MXU matmul."""
    prev_rows, next_rows = _shift_both(buf, x, seq)
    slab = jnp.concatenate([prev_rows.astype(jnp.bfloat16),
                            x.astype(jnp.bfloat16),
                            next_rows.astype(jnp.bfloat16)], axis=1)
    return jnp.dot(slab, w, preferred_element_type=jnp.float32)


# ------------------------------ fused kernel -------------------------------- #

def _make_fused_kernel(meta):
    n_in = meta['n_inputs']
    blocks = meta['blocks']
    l_pool = meta['l_pool']
    i_w1 = meta['prefetch_w1_idx']
    i_w2 = meta['prefetch_w2_idx']
    last = len(blocks) - 1

    def kernel(*refs):
        assert len(refs) == n_in + 5
        irefs = refs[:n_in]
        out_ref = refs[n_in]
        buf = refs[n_in + 1]          # f32 shift scratch
        w1_land = refs[n_in + 2]      # last block conv1(+down) weight landing buf
        w2_land = refs[n_in + 3]      # last block conv2 weight landing buf
        sem = refs[n_in + 4]

        # Prefetch the last block's (largest) weights HBM -> VMEM; overlaps the
        # stem and blocks 1..n-1 compute below.
        cp_w1 = pltpu.make_async_copy(irefs[i_w1], w1_land, sem.at[0])
        cp_w2 = pltpu.make_async_copy(irefs[i_w2], w2_land, sem.at[1])
        cp_w1.start()
        cp_w2.start()

        cursor = [5]

        def nxt():
            r = irefs[cursor[0]]
            cursor[0] += 1
            return r

        # ---- stem: conv1(k7,s2,Cin=1) + BN + ReLU + maxpool(k3,s2,p1) ----
        pe, po = irefs[0], irefs[1]
        sw, sg, sb = irefs[2], irefs[3], irefs[4]
        ye = jnp.dot(pe[...], sw[...], preferred_element_type=jnp.float32)
        yo = jnp.dot(po[...], sw[...], preferred_element_type=jnp.float32)
        inv_n = 1.0 / (2.0 * ye.shape[0])
        s1 = jnp.sum(ye, axis=0, keepdims=True) + jnp.sum(yo, axis=0, keepdims=True)
        s2 = (jnp.sum(ye * ye, axis=0, keepdims=True)
              + jnp.sum(yo * yo, axis=0, keepdims=True))
        mean = s1 * inv_n
        var = s2 * inv_n - mean * mean
        scale = sg[...] * lax.rsqrt(var + EPS)
        shift = sb[...] - mean * scale
        ye = jnp.maximum(ye * scale + shift, 0.0)
        yo = jnp.maximum(yo * scale + shift, 0.0)
        # maxpool: out[j] = max(y[2j-1], y[2j], y[2j+1]); post-ReLU => 0-fill exact.
        yo_prev = _shift_prev(buf, yo, l_pool)
        x = jnp.maximum(jnp.maximum(yo_prev, ye), yo)        # (B*l_pool, 128) f32

        # ---- residual blocks (Python loop unrolled at trace time) ----
        for bi, bm in enumerate(blocks):
            is_last = bi == last
            seq = bm['l_out']
            coutp = bm['cout_p']
            if bm['stride'] == 1:
                w1 = nxt(); g1 = nxt(); b1 = nxt()
                w2 = nxt(); g2 = nxt(); b2 = nxt()
                if is_last:
                    cp_w1.wait()
                    cp_w2.wait()
                    w1v, w2v = w1_land[...], w2_land[...]
                else:
                    w1v, w2v = w1[...], w2[...]
                a1 = _conv3_s1(buf, x, w1v, seq)
                h = jnp.maximum(_bn_train(a1, g1[...], b1[...]), 0.0)
                a2 = _conv3_s1(buf, h, w2v, seq)
                x = jnp.maximum(_bn_train(a2, g2[...], b2[...]) + x, 0.0)
            else:
                e = nxt(); o = nxt(); w1d = nxt(); g1 = nxt(); b1 = nxt()
                gd = nxt(); bd = nxt(); w2 = nxt(); g2 = nxt(); b2 = nxt()
                if is_last:
                    cp_w1.wait()
                    cp_w2.wait()
                    w1v, w2v = w1_land[...], w2_land[...]
                else:
                    w1v, w2v = w1d[...], w2[...]
                xb = x.astype(jnp.bfloat16)
                xe = jnp.dot(e[...], xb, preferred_element_type=jnp.float32)   # x[2j]
                xo = jnp.dot(o[...], xb, preferred_element_type=jnp.float32)   # x[2j+1]
                xm = _shift_prev(buf, xo, seq)                                 # x[2j-1]
                slab = jnp.concatenate([xm.astype(jnp.bfloat16),
                                        xe.astype(jnp.bfloat16),
                                        xo.astype(jnp.bfloat16)], axis=1)
                # conv1 (stride 2) and the 1x1 downsample in a single matmul.
                r = jnp.dot(slab, w1v, preferred_element_type=jnp.float32)
                a1 = r[:, :coutp]
                dwn = r[:, coutp:]
                h = jnp.maximum(_bn_train(a1, g1[...], b1[...]), 0.0)
                ident = _bn_train(dwn, gd[...], bd[...])
                a2 = _conv3_s1(buf, h, w2v, seq)
                x = jnp.maximum(_bn_train(a2, g2[...], b2[...]) + ident, 0.0)

        # ---- head: global average pool + fc (fused epilogue) ----
        pool = nxt(); fcw = nxt(); fcb = nxt()
        feat = jnp.dot(pool[...], x, preferred_element_type=jnp.float32)       # (B, 512)
        out_ref[...] = (jnp.dot(feat, fcw[...], preferred_element_type=jnp.float32)
                        + fcb[...])

    return kernel


# ------------------------------- JAX glue ----------------------------------- #

def _stem_patches(x_ncl, l_conv):
    """(B,1,L) -> even/odd conv-position patches (B*l_conv/2, 8); Cin=1,K=7,s=2,p=3."""
    batch, cin, length = x_ncl.shape
    assert cin == 1
    xp = jnp.pad(x_ncl[:, 0, :], ((0, 0), (3, 3)))
    half = l_conv // 2
    j = np.arange(half)
    k = np.arange(7)
    idx_e = j[:, None] * 4 + k[None, :]
    idx_o = j[:, None] * 4 + 2 + k[None, :]
    pe = jnp.pad(xp[:, idx_e], ((0, 0), (0, 0), (0, 1))).reshape(batch * half, 8)
    po = jnp.pad(xp[:, idx_o], ((0, 0), (0, 0), (0, 1))).reshape(batch * half, 8)
    return pe, po


def build_forward(meta, num_classes):
    """Build the (jittable) forward function for a fixed geometry."""
    kernel = _make_fused_kernel(meta)
    n_in = meta['n_inputs']
    in_specs = [_VMEM] * n_in
    in_specs[meta['prefetch_w1_idx']] = _ANY
    in_specs[meta['prefetch_w2_idx']] = _ANY
    batch = meta['batch']

    fused = pl.pallas_call(
        kernel,
        out_shape=jax.ShapeDtypeStruct((batch, LANE), jnp.float32),
        in_specs=in_specs,
        out_specs=_VMEM,
        scratch_shapes=[
            pltpu.VMEM((meta['buf_rows'], meta['buf_cols']), jnp.float32),
            pltpu.VMEM(meta['prefetch_w1_shape'], jnp.bfloat16),
            pltpu.VMEM(meta['prefetch_w2_shape'], jnp.bfloat16),
            pltpu.SemaphoreType.DMA((2,)),
        ],
        compiler_params=pltpu.CompilerParams(vmem_limit_bytes=32 * 1024 * 1024),
    )

    def forward(x_ncl, weights):
        assert x_ncl.shape == (meta['batch'], 1, meta['length'])
        pe, po = _stem_patches(x_ncl, meta['l_conv'])
        out = fused(pe, po, *weights)
        return out[:, :num_classes]

    return forward


# ------------------------ parameters & packing ------------------------------ #

def make_params(key, layers=(1, 1, 1, 1), num_classes=10):
    """Raw PyTorch-layout parameters (same init scheme as the nn.Module)."""
    keys = iter(jax.random.split(key, 64))

    def conv_w(k, cout, cin, ksize):
        std = (2.0 / (cout * ksize)) ** 0.5               # kaiming fan_out, relu
        return std * jax.random.normal(k, (cout, cin, ksize), jnp.float32)

    params = {
        'conv1_w': conv_w(next(keys), 64, 1, 7),
        'bn1_g': jnp.ones((64,), jnp.float32),
        'bn1_b': jnp.zeros((64,), jnp.float32),
    }
    inplanes = 64
    all_layers = []
    for planes, nblocks, stride in zip((64, 128, 256, 512), layers, (1, 2, 2, 2)):
        blocks = []
        for bi in range(nblocks):
            s = stride if bi == 0 else 1
            blk = {
                'stride': s,
                'conv1_w': conv_w(next(keys), planes, inplanes, 3),
                'bn1_g': jnp.ones((planes,), jnp.float32),
                'bn1_b': jnp.zeros((planes,), jnp.float32),
                'conv2_w': conv_w(next(keys), planes, planes, 3),
                'bn2_g': jnp.ones((planes,), jnp.float32),
                'bn2_b': jnp.zeros((planes,), jnp.float32),
            }
            if s != 1 or inplanes != planes:
                blk['down_w'] = conv_w(next(keys), planes, inplanes, 1)
                blk['down_g'] = jnp.ones((planes,), jnp.float32)
                blk['down_b'] = jnp.zeros((planes,), jnp.float32)
            blocks.append(blk)
            inplanes = planes
        all_layers.append(blocks)
    params['layers'] = all_layers

    kw, kb = jax.random.split(next(keys))
    bound = 1.0 / (512.0 ** 0.5)
    params['fc_w'] = jax.random.uniform(kw, (num_classes, 512), jnp.float32, -bound, bound)
    params['fc_b'] = jax.random.uniform(kb, (num_classes,), jnp.float32, -bound, bound)
    return params


def _pack_bn(g, b):
    c = g.shape[0]
    cp = _cpad(c)
    gp = jnp.zeros((1, cp), jnp.float32).at[0, :c].set(g)
    bp = jnp.zeros((1, cp), jnp.float32).at[0, :c].set(b)
    return gp, bp


def _pack_conv3(w):
    """(Cout, Cin, 3) -> single (3*Cin_pad, Cout_pad) bf16 slab (taps along K)."""
    cout, cin, k = w.shape
    assert k == 3
    cinp, coutp = _cpad(cin), _cpad(cout)
    m = jnp.zeros((3 * cinp, coutp), jnp.float32)
    for t in range(3):
        m = m.at[t * cinp:t * cinp + cin, :cout].set(w[:, :, t].T)
    return m.astype(jnp.bfloat16)


def _pack_conv3_with_down(w, wd):
    """conv3 taps along K plus the 1x1 downsample folded along N:
       (3*Cin_pad, 2*Cout_pad); the downsample only sees the centre-tap (x[2j]) rows."""
    cout, cin, _ = w.shape
    cinp, coutp = _cpad(cin), _cpad(cout)
    m = jnp.zeros((3 * cinp, 2 * coutp), jnp.float32)
    for t in range(3):
        m = m.at[t * cinp:t * cinp + cin, :cout].set(w[:, :, t].T)
    m = m.at[cinp:cinp + cin, coutp:coutp + cout].set(wd[:, :, 0].T)
    return m.astype(jnp.bfloat16)


def _phase_mats(batch, l_in):
    """0/1 selection matrices (bf16) picking the even/odd rows of each sample."""
    l_out = l_in // 2
    e = np.zeros((batch * l_out, batch * l_in), np.float32)
    o = np.zeros((batch * l_out, batch * l_in), np.float32)
    for b in range(batch):
        for j in range(l_out):
            e[b * l_out + j, b * l_in + 2 * j] = 1.0
            o[b * l_out + j, b * l_in + 2 * j + 1] = 1.0
    return jnp.asarray(e, jnp.bfloat16), jnp.asarray(o, jnp.bfloat16)


def _pool_mat(batch, length):
    """(B, B*L) f32 matrix computing the per-sample mean over L."""
    p = np.zeros((batch, batch * length), np.float32)
    for b in range(batch):
        p[b, b * length:(b + 1) * length] = 1.0 / length
    return jnp.asarray(p)


def pack_params(raw, batch, length):
    """One-time repack of all weights + geometry constants into kernel inputs."""
    assert length % 4 == 0
    l_conv = (length + 2 * 3 - 7) // 2 + 1
    assert l_conv % 2 == 0
    l_pool = l_conv // 2

    weights = []
    # stem
    w1 = raw['conv1_w']                                    # (64, 1, 7)
    stem_w = jnp.zeros((8, LANE), jnp.float32).at[:7, :64].set(w1[:, 0, :].T)
    sg, sb = _pack_bn(raw['bn1_g'], raw['bn1_b'])
    weights += [stem_w, sg, sb]

    blocks_meta = []
    cur_len = l_pool
    flat_blocks = [blk for layer in raw['layers'] for blk in layer]
    w1_idx = w2_idx = None
    w1_shape = w2_shape = None
    for blk in flat_blocks:
        stride = blk['stride']
        assert ('down_w' in blk) == (stride != 1), "only stride-2 downsample supported"
        cout, cin, _ = blk['conv1_w'].shape
        cinp, coutp = _cpad(cin), _cpad(cout)
        if stride != 1:
            assert cur_len % 2 == 0
        l_out = cur_len // stride
        g1, b1 = _pack_bn(blk['bn1_g'], blk['bn1_b'])
        g2, b2 = _pack_bn(blk['bn2_g'], blk['bn2_b'])
        w2p = _pack_conv3(blk['conv2_w'])
        if stride == 1:
            w1p = _pack_conv3(blk['conv1_w'])
            w1_idx = 2 + len(weights)          # +2 for pe/po at arg slots 0, 1
            w1_shape = w1p.shape
            weights += [w1p, g1, b1]
            w2_idx = 2 + len(weights)
            w2_shape = w2p.shape
            weights += [w2p, g2, b2]
        else:
            e, o = _phase_mats(batch, cur_len)
            w1p = _pack_conv3_with_down(blk['conv1_w'], blk['down_w'])
            gd, bd = _pack_bn(blk['down_g'], blk['down_b'])
            weights += [e, o]
            w1_idx = 2 + len(weights)
            w1_shape = w1p.shape
            weights += [w1p, g1, b1, gd, bd]
            w2_idx = 2 + len(weights)
            w2_shape = w2p.shape
            weights += [w2p, g2, b2]
        blocks_meta.append(dict(stride=stride, l_in=cur_len, l_out=l_out,
                                cin_p=cinp, cout_p=coutp))
        cur_len = l_out

    # head
    ncls, feat = raw['fc_w'].shape
    fc_w = jnp.zeros((_cpad(feat), LANE), jnp.float32).at[:feat, :ncls].set(raw['fc_w'].T)
    fc_b = jnp.zeros((1, LANE), jnp.float32).at[0, :ncls].set(raw['fc_b'])
    weights += [_pool_mat(batch, cur_len), fc_w, fc_b]

    buf_rows = 2 + max([batch * l_pool] + [batch * bm['l_out'] for bm in blocks_meta])
    buf_cols = max([LANE] + [bm['cout_p'] for bm in blocks_meta]
                   + [bm['cin_p'] for bm in blocks_meta])

    meta = dict(batch=batch, length=length, l_conv=l_conv, l_pool=l_pool,
                blocks=blocks_meta, n_inputs=2 + len(weights),
                prefetch_w1_idx=w1_idx, prefetch_w2_idx=w2_idx,
                prefetch_w1_shape=tuple(w1_shape), prefetch_w2_shape=tuple(w2_shape),
                buf_rows=buf_rows, buf_cols=buf_cols)
    return tuple(weights), meta


# ---------------------------------- main ------------------------------------ #

if __name__ == "__main__":
    key = jax.random.PRNGKey(0)
    k_param, k_input = jax.random.split(key)

    batch, length, num_classes = 2, 64, 10
    raw_params = make_params(k_param, layers=(1, 1, 1, 1), num_classes=num_classes)
    weights, meta = pack_params(raw_params, batch=batch, length=length)

    fwd = jax.jit(build_forward(meta, num_classes=num_classes))

    x = jax.random.normal(k_input, (batch, 1, length), jnp.float32)  # (B, C=1, L)
    out = fwd(x, weights)
    jax.block_until_ready(out)

    assert out.shape == (batch, num_classes) and out.dtype == jnp.float32
    print("KERNEL_OK")
</pallas_src>

<mosaic_0001>
module attributes {stable_mosaic.version = 11 : i64} {
  func.func @kernel(%arg0: memref<32x8xf32, #tpu.memory_space<vmem>>, %arg1: memref<32x8xf32, #tpu.memory_space<vmem>>, %arg2: memref<8x128xf32, #tpu.memory_space<vmem>>, %arg3: memref<1x128xf32, #tpu.memory_space<vmem>>, %arg4: memref<1x128xf32, #tpu.memory_space<vmem>>, %arg5: memref<384x128xbf16, #tpu.memory_space<vmem>>, %arg6: memref<1x128xf32, #tpu.memory_space<vmem>>, %arg7: memref<1x128xf32, #tpu.memory_space<vmem>>, %arg8: memref<384x128xbf16, #tpu.memory_space<vmem>>, %arg9: memref<1x128xf32, #tpu.memory_space<vmem>>, %arg10: memref<1x128xf32, #tpu.memory_space<vmem>>, %arg11: memref<16x32xbf16, #tpu.memory_space<vmem>>, %arg12: memref<16x32xbf16, #tpu.memory_space<vmem>>, %arg13: memref<384x256xbf16, #tpu.memory_space<vmem>>, %arg14: memref<1x128xf32, #tpu.memory_space<vmem>>, %arg15: memref<1x128xf32, #tpu.memory_space<vmem>>, %arg16: memref<1x128xf32, #tpu.memory_space<vmem>>, %arg17: memref<1x128xf32, #tpu.memory_space<vmem>>, %arg18: memref<384x128xbf16, #tpu.memory_space<vmem>>, %arg19: memref<1x128xf32, #tpu.memory_space<vmem>>, %arg20: memref<1x128xf32, #tpu.memory_space<vmem>>, %arg21: memref<8x16xbf16, #tpu.memory_space<vmem>>, %arg22: memref<8x16xbf16, #tpu.memory_space<vmem>>, %arg23: memref<384x512xbf16, #tpu.memory_space<vmem>>, %arg24: memref<1x256xf32, #tpu.memory_space<vmem>>, %arg25: memref<1x256xf32, #tpu.memory_space<vmem>>, %arg26: memref<1x256xf32, #tpu.memory_space<vmem>>, %arg27: memref<1x256xf32, #tpu.memory_space<vmem>>, %arg28: memref<768x256xbf16, #tpu.memory_space<vmem>>, %arg29: memref<1x256xf32, #tpu.memory_space<vmem>>, %arg30: memref<1x256xf32, #tpu.memory_space<vmem>>, %arg31: memref<4x8xbf16, #tpu.memory_space<vmem>>, %arg32: memref<4x8xbf16, #tpu.memory_space<vmem>>, %arg33: memref<768x1024xbf16, #tpu.memory_space<any>>, %arg34: memref<1x512xf32, #tpu.memory_space<vmem>>, %arg35: memref<1x512xf32, #tpu.memory_space<vmem>>, %arg36: memref<1x512xf32, #tpu.memory_space<vmem>>, %arg37: memref<1x512xf32, #tpu.memory_space<vmem>>, %arg38: memref<1536x512xbf16, #tpu.memory_space<any>>, %arg39: memref<1x512xf32, #tpu.memory_space<vmem>>, %arg40: memref<1x512xf32, #tpu.memory_space<vmem>>, %arg41: memref<2x4xf32, #tpu.memory_space<vmem>>, %arg42: memref<512x128xf32, #tpu.memory_space<vmem>>, %arg43: memref<1x128xf32, #tpu.memory_space<vmem>>, %arg44: memref<2x128xf32, #tpu.memory_space<vmem>>, %arg45: memref<34x512xf32, #tpu.memory_space<vmem>>, %arg46: memref<768x1024xbf16, #tpu.memory_space<vmem>>, %arg47: memref<1536x512xbf16, #tpu.memory_space<vmem>>, %arg48: memref<2x!tpu.dma_semaphore, #tpu.memory_space<semaphore_mem>>) attributes {dimension_semantics = [], scalar_prefetch = 0 : i64, scratch_operands = 4 : i64, tpu.core_type = #tpu.core_type<tc>} {
    %c0_i32 = arith.constant 0 : i32
    %0 = tpu.memref_slice %arg48[%c0_i32] : memref<2x!tpu.dma_semaphore, #tpu.memory_space<semaphore_mem>> -> memref<1x!tpu.dma_semaphore, #tpu.memory_space<semaphore_mem>>
    %1 = tpu.memref_squeeze %0 : memref<1x!tpu.dma_semaphore, #tpu.memory_space<semaphore_mem>> -> memref<!tpu.dma_semaphore, #tpu.memory_space<semaphore_mem>>
    tpu.enqueue_dma source(%arg33 : memref<768x1024xbf16, #tpu.memory_space<any>>) target(%arg46 : memref<768x1024xbf16, #tpu.memory_space<vmem>>) target_semaphore(%1 : memref<!tpu.dma_semaphore, #tpu.memory_space<semaphore_mem>>)
    %c1_i32 = arith.constant 1 : i32
    %2 = tpu.memref_slice %arg48[%c1_i32] : memref<2x!tpu.dma_semaphore, #tpu.memory_space<semaphore_mem>> -> memref<1x!tpu.dma_semaphore, #tpu.memory_space<semaphore_mem>>
    %3 = tpu.memref_squeeze %2 : memref<1x!tpu.dma_semaphore, #tpu.memory_space<semaphore_mem>> -> memref<!tpu.dma_semaphore, #tpu.memory_space<semaphore_mem>>
    tpu.enqueue_dma source(%arg38 : memref<1536x512xbf16, #tpu.memory_space<any>>) target(%arg47 : memref<1536x512xbf16, #tpu.memory_space<vmem>>) target_semaphore(%3 : memref<!tpu.dma_semaphore, #tpu.memory_space<semaphore_mem>>)
    %c0 = arith.constant 0 : index
    %c0_0 = arith.constant 0 : index
    %4 = vector.load %arg0[%c0, %c0_0] : memref<32x8xf32, #tpu.memory_space<vmem>>, vector<32x8xf32>
    %c0_1 = arith.constant 0 : index
    %c0_2 = arith.constant 0 : index
    %5 = vector.load %arg2[%c0_1, %c0_2] : memref<8x128xf32, #tpu.memory_space<vmem>>, vector<8x128xf32>
    %cst = arith.constant dense<0.000000e+00> : vector<32x128xf32>
    %6 = tpu.matmul %4, %5, %cst {dimension_numbers = #tpu.dot_dimension_numbers<[1], [0], [0], [1], [0, 0, 1, 1], [], []>} : vector<32x8xf32>, vector<8x128xf32>, vector<32x128xf32> -> vector<32x128xf32>
    %c0_3 = arith.constant 0 : index
    %c0_4 = arith.constant 0 : index
    %7 = vector.load %arg1[%c0_3, %c0_4] : memref<32x8xf32, #tpu.memory_space<vmem>>, vector<32x8xf32>
    %c0_5 = arith.constant 0 : index
    %c0_6 = arith.constant 0 : index
    %8 = vector.load %arg2[%c0_5, %c0_6] : memref<8x128xf32, #tpu.memory_space<vmem>>, vector<8x128xf32>
    %cst_7 = arith.constant dense<0.000000e+00> : vector<32x128xf32>
    %9 = tpu.matmul %7, %8, %cst_7 {dimension_numbers = #tpu.dot_dimension_numbers<[1], [0], [0], [1], [0, 0, 1, 1], [], []>} : vector<32x8xf32>, vector<8x128xf32>, vector<32x128xf32> -> vector<32x128xf32>
    %cst_8 = arith.constant dense<0.000000e+00> : vector<128xf32>
    %10 = vector.multi_reduction <add>, %6, %cst_8 [0] : vector<32x128xf32> to vector<128xf32>
    %11 = vector.shape_cast %10 : vector<128xf32> to vector<1x128xf32>
    %cst_9 = arith.constant dense<0.000000e+00> : vector<128xf32>
    %12 = vector.multi_reduction <add>, %9, %cst_9 [0] : vector<32x128xf32> to vector<128xf32>
    %13 = vector.shape_cast %12 : vector<128xf32> to vector<1x128xf32>
    %14 = arith.addf %11, %13 : vector<1x128xf32>
    %15 = arith.mulf %6, %6 : vector<32x128xf32>
    %cst_10 = arith.constant dense<0.000000e+00> : vector<128xf32>
    %16 = vector.multi_reduction <add>, %15, %cst_10 [0] : vector<32x128xf32> to vector<128xf32>
    %17 = vector.shape_cast %16 : vector<128xf32> to vector<1x128xf32>
    %18 = arith.mulf %9, %9 : vector<32x128xf32>
    %cst_11 = arith.constant dense<0.000000e+00> : vector<128xf32>
    %19 = vector.multi_reduction <add>, %18, %cst_11 [0] : vector<32x128xf32> to vector<128xf32>
    %20 = vector.shape_cast %19 : vector<128xf32> to vector<1x128xf32>
    %21 = arith.addf %17, %20 : vector<1x128xf32>
    %cst_12 = arith.constant 1.562500e-02 : f32
    %22 = vector.broadcast %cst_12 : f32 to vector<1x128xf32>
    %23 = arith.mulf %14, %22 : vector<1x128xf32>
    %cst_13 = arith.constant 1.562500e-02 : f32
    %24 = vector.broadcast %cst_13 : f32 to vector<1x128xf32>
    %25 = arith.mulf %21, %24 : vector<1x128xf32>
    %26 = arith.mulf %23, %23 : vector<1x128xf32>
    %27 = arith.subf %25, %26 : vector<1x128xf32>
    %c0_14 = arith.constant 0 : index
    %c0_15 = arith.constant 0 : index
    %28 = vector.load %arg3[%c0_14, %c0_15] : memref<1x128xf32, #tpu.memory_space<vmem>>, vector<1x128xf32>
    %cst_16 = arith.constant 9.99999974E-6 : f32
    %29 = vector.broadcast %cst_16 : f32 to vector<1x128xf32>
    %30 = arith.addf %27, %29 : vector<1x128xf32>
    %31 = math.rsqrt %30 : vector<1x128xf32>
    %32 = arith.mulf %28, %31 : vector<1x128xf32>
    %c0_17 = arith.constant 0 : index
    %c0_18 = arith.constant 0 : index
    %33 = vector.load %arg4[%c0_17, %c0_18] : memref<1x128xf32, #tpu.memory_space<vmem>>, vector<1x128xf32>
    %34 = arith.mulf %23, %32 : vector<1x128xf32>
    %35 = arith.subf %33, %34 : vector<1x128xf32>
    %36 = vector.broadcast %32 : vector<1x128xf32> to vector<32x128xf32>
    %37 = arith.mulf %6, %36 : vector<32x128xf32>
    %38 = vector.broadcast %35 : vector<1x128xf32> to vector<32x128xf32>
    %39 = arith.addf %37, %38 : vector<32x128xf32>
    %cst_19 = arith.constant 0.000000e+00 : f32
    %40 = vector.broadcast %cst_19 : f32 to vector<32x128xf32>
    %41 = arith.maximumf %39, %40 : vector<32x128xf32>
    %42 = vector.broadcast %32 : vector<1x128xf32> to vector<32x128xf32>
    %43 = arith.mulf %9, %42 : vector<32x128xf32>
    %44 = vector.broadcast %35 : vector<1x128xf32> to vector<32x128xf32>
    %45 = arith.addf %43, %44 : vector<32x128xf32>
    %cst_20 = arith.constant 0.000000e+00 : f32
    %46 = vector.broadcast %cst_20 : f32 to vector<32x128xf32>
    %47 = arith.maximumf %45, %46 : vector<32x128xf32>
    %c1 = arith.constant 1 : index
    %c0_21 = arith.constant 0 : index
    %48 = vector.load %arg45[%c1, %c0_21] : memref<34x512xf32, #tpu.memory_space<vmem>>, vector<32x128xf32>
    tpu.vector_store %arg45[%c1, %c0_21], %47 {strides = array<i32>} : memref<34x512xf32, #tpu.memory_space<vmem>>, vector<32x128xf32>,
    %c0_22 = arith.constant 0 : index
    %c0_23 = arith.constant 0 : index
    %49 = vector.load %arg45[%c0_22, %c0_23] : memref<34x512xf32, #tpu.memory_space<vmem>>, vector<32x128xf32>
    %50 = tpu.iota {dimensions = array<i32: 0>} : vector<32x128xi32>
    %c15_i32 = arith.constant 15 : i32
    %51 = vector.broadcast %c15_i32 : i32 to vector<32x128xi32>
    %52 = arith.andi %50, %51 : vector<32x128xi32>
    %c0_i32_24 = arith.constant 0 : i32
    %53 = vector.broadcast %c0_i32_24 : i32 to vector<32x128xi32>
    %54 = arith.cmpi eq, %52, %53 : vector<32x128xi32>
    %cst_25 = arith.constant 0.000000e+00 : f32
    %55 = vector.broadcast %cst_25 : f32 to vector<32x128xf32>
    %56 = arith.select %54, %55, %49 : vector<32x128xi1>, vector<32x128xf32>
    %57 = arith.maximumf %56, %41 : vector<32x128xf32>
    %58 = arith.maximumf %57, %47 : vector<32x128xf32>
    %c0_26 = arith.constant 0 : index
    %c0_27 = arith.constant 0 : index
    %59 = vector.load %arg5[%c0_26, %c0_27] : memref<384x128xbf16, #tpu.memory_space<vmem>>, vector<384x128xbf16>
    %c0_28 = arith.constant 0 : index
    %c0_29 = arith.constant 0 : index
    %60 = vector.load %arg8[%c0_28, %c0_29] : memref<384x128xbf16, #tpu.memory_space<vmem>>, vector<384x128xbf16>
    %c1_30 = arith.constant 1 : index
    %c0_31 = arith.constant 0 : index
    %61 = vector.load %arg45[%c1_30, %c0_31] : memref<34x512xf32, #tpu.memory_space<vmem>>, vector<32x128xf32>
    tpu.vector_store %arg45[%c1_30, %c0_31], %58 {strides = array<i32>} : memref<34x512xf32, #tpu.memory_space<vmem>>, vector<32x128xf32>,
    %c0_32 = arith.constant 0 : index
    %c0_33 = arith.constant 0 : index
    %62 = vector.load %arg45[%c0_32, %c0_33] : memref<34x512xf32, #tpu.memory_space<vmem>>, vector<32x128xf32>
    %c2 = arith.constant 2 : index
    %c0_34 = arith.constant 0 : index
    %63 = vector.load %arg45[%c2, %c0_34] : memref<34x512xf32, #tpu.memory_space<vmem>>, vector<32x128xf32>
    %64 = tpu.iota {dimensions = array<i32: 0>} : vector<32x128xi32>
    %c15_i32_35 = arith.constant 15 : i32
    %65 = vector.broadcast %c15_i32_35 : i32 to vector<32x128xi32>
    %66 = arith.andi %64, %65 : vector<32x128xi32>
    %c0_i32_36 = arith.constant 0 : i32
    %67 = vector.broadcast %c0_i32_36 : i32 to vector<32x128xi32>
    %68 = arith.cmpi eq, %66, %67 : vector<32x128xi32>
    %cst_37 = arith.constant 0.000000e+00 : f32
    %69 = vector.broadcast %cst_37 : f32 to vector<32x128xf32>
    %70 = arith.select %68, %69, %62 : vector<32x128xi1>, vector<32x128xf32>
    %c15_i32_38 = arith.constant 15 : i32
    %71 = vector.broadcast %c15_i32_38 : i32 to vector<32x128xi32>
    %72 = arith.cmpi eq, %66, %71 : vector<32x128xi32>
    %cst_39 = arith.constant 0.000000e+00 : f32
    %73 = vector.broadcast %cst_39 : f32 to vector<32x128xf32>
    %74 = arith.select %72, %73, %63 : vector<32x128xi1>, vector<32x128xf32>
    %75 = arith.truncf %70 : vector<32x128xf32> to vector<32x128xbf16>
    %76 = arith.truncf %58 : vector<32x128xf32> to vector<32x128xbf16>
    %77 = arith.truncf %74 : vector<32x128xf32> to vector<32x128xbf16>
    %78 = tpu.concatenate %75, %76, %77 in 1 : vector<32x128xbf16>, vector<32x128xbf16>, vector<32x128xbf16> -> vector<32x384xbf16>
    %cst_40 = arith.constant dense<0.000000e+00> : vector<32x128xf32>
    %79 = tpu.matmul %78, %59, %cst_40 {dimension_numbers = #tpu.dot_dimension_numbers<[1], [0], [0], [1], [0, 0, 1, 1], [], []>} : vector<32x384xbf16>, vector<384x128xbf16>, vector<32x128xf32> -> vector<32x128xf32>
    %c0_41 = arith.constant 0 : index
    %c0_42 = arith.constant 0 : index
    %80 = vector.load %arg6[%c0_41, %c0_42] : memref<1x128xf32, #tpu.memory_space<vmem>>, vector<1x128xf32>
    %c0_43 = arith.constant 0 : index
    %c0_44 = arith.constant 0 : index
    %81 = vector.load %arg7[%c0_43, %c0_44] : memref<1x128xf32, #tpu.memory_space<vmem>>, vector<1x128xf32>
    %cst_45 = arith.constant dense<0.000000e+00> : vector<128xf32>
    %82 = vector.multi_reduction <add>, %79, %cst_45 [0] : vector<32x128xf32> to vector<128xf32>
    %83 = vector.shape_cast %82 : vector<128xf32> to vector<1x128xf32>
    %84 = arith.mulf %79, %79 : vector<32x128xf32>
    %cst_46 = arith.constant dense<0.000000e+00> : vector<128xf32>
    %85 = vector.multi_reduction <add>, %84, %cst_46 [0] : vector<32x128xf32> to vector<128xf32>
    %86 = vector.shape_cast %85 : vector<128xf32> to vector<1x128xf32>
    %cst_47 = arith.constant 3.125000e-02 : f32
    %87 = vector.broadcast %cst_47 : f32 to vector<1x128xf32>
    %88 = arith.mulf %83, %87 : vector<1x128xf32>
    %cst_48 = arith.constant 3.125000e-02 : f32
    %89 = vector.broadcast %cst_48 : f32 to vector<1x128xf32>
    %90 = arith.mulf %86, %89 : vector<1x128xf32>
    %91 = arith.mulf %88, %88 : vector<1x128xf32>
    %92 = arith.subf %90, %91 : vector<1x128xf32>
    %cst_49 = arith.constant 9.99999974E-6 : f32
    %93 = vector.broadcast %cst_49 : f32 to vector<1x128xf32>
    %94 = arith.addf %92, %93 : vector<1x128xf32>
    %95 = math.rsqrt %94 : vector<1x128xf32>
    %96 = arith.mulf %80, %95 : vector<1x128xf32>
    %97 = vector.broadcast %96 : vector<1x128xf32> to vector<32x128xf32>
    %98 = arith.mulf %79, %97 : vector<32x128xf32>
    %99 = arith.mulf %88, %96 : vector<1x128xf32>
    %100 = arith.subf %81, %99 : vector<1x128xf32>
    %101 = vector.broadcast %100 : vector<1x128xf32> to vector<32x128xf32>
    %102 = arith.addf %98, %101 : vector<32x128xf32>
    %cst_50 = arith.constant 0.000000e+00 : f32
    %103 = vector.broadcast %cst_50 : f32 to vector<32x128xf32>
    %104 = arith.maximumf %102, %103 : vector<32x128xf32>
    %c1_51 = arith.constant 1 : index
    %c0_52 = arith.constant 0 : index
    %105 = vector.load %arg45[%c1_51, %c0_52] : memref<34x512xf32, #tpu.memory_space<vmem>>, vector<32x128xf32>
    tpu.vector_store %arg45[%c1_51, %c0_52], %104 {strides = array<i32>} : memref<34x512xf32, #tpu.memory_space<vmem>>, vector<32x128xf32>,
    %c0_53 = arith.constant 0 : index
    %c0_54 = arith.constant 0 : index
    %106 = vector.load %arg45[%c0_53, %c0_54] : memref<34x512xf32, #tpu.memory_space<vmem>>, vector<32x128xf32>
    %c2_55 = arith.constant 2 : index
    %c0_56 = arith.constant 0 : index
    %107 = vector.load %arg45[%c2_55, %c0_56] : memref<34x512xf32, #tpu.memory_space<vmem>>, vector<32x128xf32>
    %108 = tpu.iota {dimensions = array<i32: 0>} : vector<32x128xi32>
    %c15_i32_57 = arith.constant 15 : i32
    %109 = vector.broadcast %c15_i32_57 : i32 to vector<32x128xi32>
    %110 = arith.andi %108, %109 : vector<32x128xi32>
    %c0_i32_58 = arith.constant 0 : i32
    %111 = vector.broadcast %c0_i32_58 : i32 to vector<32x128xi32>
    %112 = arith.cmpi eq, %110, %111 : vector<32x128xi32>
    %cst_59 = arith.constant 0.000000e+00 : f32
    %113 = vector.broadcast %cst_59 : f32 to vector<32x128xf32>
    %114 = arith.select %112, %113, %106 : vector<32x128xi1>, vector<32x128xf32>
    %c15_i32_60 = arith.constant 15 : i32
    %115 = vector.broadcast %c15_i32_60 : i32 to vector<32x128xi32>
    %116 = arith.cmpi eq, %110, %115 : vector<32x128xi32>
    %cst_61 = arith.constant 0.000000e+00 : f32
    %117 = vector.broadcast %cst_61 : f32 to vector<32x128xf32>
    %118 = arith.select %116, %117, %107 : vector<32x128xi1>, vector<32x128xf32>
    %119 = arith.truncf %114 : vector<32x128xf32> to vector<32x128xbf16>
    %120 = arith.truncf %104 : vector<32x128xf32> to vector<32x128xbf16>
    %121 = arith.truncf %118 : vector<32x128xf32> to vector<32x128xbf16>
    %122 = tpu.concatenate %119, %120, %121 in 1 : vector<32x128xbf16>, vector<32x128xbf16>, vector<32x128xbf16> -> vector<32x384xbf16>
    %cst_62 = arith.constant dense<0.000000e+00> : vector<32x128xf32>
    %123 = tpu.matmul %122, %60, %cst_62 {dimension_numbers = #tpu.dot_dimension_numbers<[1], [0], [0], [1], [0, 0, 1, 1], [], []>} : vector<32x384xbf16>, vector<384x128xbf16>, vector<32x128xf32> -> vector<32x128xf32>
    %c0_63 = arith.constant 0 : index
    %c0_64 = arith.constant 0 : index
    %124 = vector.load %arg9[%c0_63, %c0_64] : memref<1x128xf32, #tpu.memory_space<vmem>>, vector<1x128xf32>
    %c0_65 = arith.constant 0 : index
    %c0_66 = arith.constant 0 : index
    %125 = vector.load %arg10[%c0_65, %c0_66] : memref<1x128xf32, #tpu.memory_space<vmem>>, vector<1x128xf32>
    %cst_67 = arith.constant dense<0.000000e+00> : vector<128xf32>
    %126 = vector.multi_reduction <add>, %123, %cst_67 [0] : vector<32x128xf32> to vector<128xf32>
    %127 = vector.shape_cast %126 : vector<128xf32> to vector<1x128xf32>
    %128 = arith.mulf %123, %123 : vector<32x128xf32>
    %cst_68 = arith.constant dense<0.000000e+00> : vector<128xf32>
    %129 = vector.multi_reduction <add>, %128, %cst_68 [0] : vector<32x128xf32> to vector<128xf32>
    %130 = vector.shape_cast %129 : vector<128xf32> to vector<1x128xf32>
    %cst_69 = arith.constant 3.125000e-02 : f32
    %131 = vector.broadcast %cst_69 : f32 to vector<1x128xf32>
    %132 = arith.mulf %127, %131 : vector<1x128xf32>
    %cst_70 = arith.constant 3.125000e-02 : f32
    %133 = vector.broadcast %cst_70 : f32 to vector<1x128xf32>
    %134 = arith.mulf %130, %133 : vector<1x128xf32>
    %135 = arith.mulf %132, %132 : vector<1x128xf32>
    %136 = arith.subf %134, %135 : vector<1x128xf32>
    %cst_71 = arith.constant 9.99999974E-6 : f32
    %137 = vector.broadcast %cst_71 : f32 to vector<1x128xf32>
    %138 = arith.addf %136, %137 : vector<1x128xf32>
    %139 = math.rsqrt %138 : vector<1x128xf32>
    %140 = arith.mulf %124, %139 : vector<1x128xf32>
    %141 = vector.broadcast %140 : vector<1x128xf32> to vector<32x128xf32>
    %142 = arith.mulf %123, %141 : vector<32x128xf32>
    %143 = arith.mulf %132, %140 : vector<1x128xf32>
    %144 = arith.subf %125, %143 : vector<1x128xf32>
    %145 = vector.broadcast %144 : vector<1x128xf32> to vector<32x128xf32>
    %146 = arith.addf %142, %145 : vector<32x128xf32>
    %147 = arith.addf %146, %58 : vector<32x128xf32>
    %cst_72 = arith.constant 0.000000e+00 : f32
    %148 = vector.broadcast %cst_72 : f32 to vector<32x128xf32>
    %149 = arith.maximumf %147, %148 : vector<32x128xf32>
    %c0_73 = arith.constant 0 : index
    %c0_74 = arith.constant 0 : index
    %150 = vector.load %arg13[%c0_73, %c0_74] : memref<384x256xbf16, #tpu.memory_space<vmem>>, vector<384x256xbf16>
    %c0_75 = arith.constant 0 : index
    %c0_76 = arith.constant 0 : index
    %151 = vector.load %arg18[%c0_75, %c0_76] : memref<384x128xbf16, #tpu.memory_space<vmem>>, vector<384x128xbf16>
    %152 = arith.truncf %149 : vector<32x128xf32> to vector<32x128xbf16>
    %c0_77 = arith.constant 0 : index
    %c0_78 = arith.constant 0 : index
    %153 = vector.load %arg11[%c0_77, %c0_78] : memref<16x32xbf16, #tpu.memory_space<vmem>>, vector<16x32xbf16>
    %cst_79 = arith.constant dense<0.000000e+00> : vector<16x128xf32>
    %154 = tpu.matmul %153, %152, %cst_79 {dimension_numbers = #tpu.dot_dimension_numbers<[1], [0], [0], [1], [0, 0, 1, 1], [], []>} : vector<16x32xbf16>, vector<32x128xbf16>, vector<16x128xf32> -> vector<16x128xf32>
    %c0_80 = arith.constant 0 : index
    %c0_81 = arith.constant 0 : index
    %155 = vector.load %arg12[%c0_80, %c0_81] : memref<16x32xbf16, #tpu.memory_space<vmem>>, vector<16x32xbf16>
    %cst_82 = arith.constant dense<0.000000e+00> : vector<16x128xf32>
    %156 = tpu.matmul %155, %152, %cst_82 {dimension_numbers = #tpu.dot_dimension_numbers<[1], [0], [0], [1], [0, 0, 1, 1], [], []>} : vector<16x32xbf16>, vector<32x128xbf16>, vector<16x128xf32> -> vector<16x128xf32>
    %c1_83 = arith.constant 1 : index
    %c0_84 = arith.constant 0 : index
    %157 = vector.load %arg45[%c1_83, %c0_84] : memref<34x512xf32, #tpu.memory_space<vmem>>, vector<16x128xf32>
    tpu.vector_store %arg45[%c1_83, %c0_84], %156 {strides = array<i32>} : memref<34x512xf32, #tpu.memory_space<vmem>>, vector<16x128xf32>,
    %c0_85 = arith.constant 0 : index
    %c0_86 = arith.constant 0 : index
    %158 = vector.load %arg45[%c0_85, %c0_86] : memref<34x512xf32, #tpu.memory_space<vmem>>, vector<16x128xf32>
    %159 = tpu.iota {dimensions = array<i32: 0>} : vector<16x128xi32>
    %c7_i32 = arith.constant 7 : i32
    %160 = vector.broadcast %c7_i32 : i32 to vector<16x128xi32>
    %161 = arith.andi %159, %160 : vector<16x128xi32>
    %c0_i32_87 = arith.constant 0 : i32
    %162 = vector.broadcast %c0_i32_87 : i32 to vector<16x128xi32>
    %163 = arith.cmpi eq, %161, %162 : vector<16x128xi32>
    %cst_88 = arith.constant 0.000000e+00 : f32
    %164 = vector.broadcast %cst_88 : f32 to vector<16x128xf32>
    %165 = arith.select %163, %164, %158 : vector<16x128xi1>, vector<16x128xf32>
    %166 = arith.truncf %165 : vector<16x128xf32> to vector<16x128xbf16>
    %167 = arith.truncf %154 : vector<16x128xf32> to vector<16x128xbf16>
    %168 = arith.truncf %156 : vector<16x128xf32> to vector<16x128xbf16>
    %169 = tpu.concatenate %166, %167, %168 in 1 : vector<16x128xbf16>, vector<16x128xbf16>, vector<16x128xbf16> -> vector<16x384xbf16>
    %cst_89 = arith.constant dense<0.000000e+00> : vector<16x256xf32>
    %170 = tpu.matmul %169, %150, %cst_89 {dimension_numbers = #tpu.dot_dimension_numbers<[1], [0], [0], [1], [0, 0, 1, 1], [], []>} : vector<16x384xbf16>, vector<384x256xbf16>, vector<16x256xf32> -> vector<16x256xf32>
    %171 = vector.extract_strided_slice %170 {offsets = [0, 0], sizes = [16, 128], strides = [1, 1]} : vector<16x256xf32> to vector<16x128xf32>
    %172 = vector.extract_strided_slice %170 {offsets = [0, 128], sizes = [16, 128], strides = [1, 1]} : vector<16x256xf32> to vector<16x128xf32>
    %c0_90 = arith.constant 0 : index
    %c0_91 = arith.constant 0 : index
    %173 = vector.load %arg14[%c0_90, %c0_91] : memref<1x128xf32, #tpu.memory_space<vmem>>, vector<1x128xf32>
    %c0_92 = arith.constant 0 : index
    %c0_93 = arith.constant 0 : index
    %174 = vector.load %arg15[%c0_92, %c0_93] : memref<1x128xf32, #tpu.memory_space<vmem>>, vector<1x128xf32>
    %cst_94 = arith.constant dense<0.000000e+00> : vector<128xf32>
    %175 = vector.multi_reduction <add>, %171, %cst_94 [0] : vector<16x128xf32> to vector<128xf32>
    %176 = vector.shape_cast %175 : vector<128xf32> to vector<1x128xf32>
    %177 = arith.mulf %171, %171 : vector<16x128xf32>
    %cst_95 = arith.constant dense<0.000000e+00> : vector<128xf32>
    %178 = vector.multi_reduction <add>, %177, %cst_95 [0] : vector<16x128xf32> to vector<128xf32>
    %179 = vector.shape_cast %178 : vector<128xf32> to vector<1x128xf32>
    %cst_96 = arith.constant 6.250000e-02 : f32
    %180 = vector.broadcast %cst_96 : f32 to vector<1x128xf32>
    %181 = arith.mulf %176, %180 : vector<1x128xf32>
    %cst_97 = arith.constant 6.250000e-02 : f32
    %182 = vector.broadcast %cst_97 : f32 to vector<1x128xf32>
    %183 = arith.mulf %179, %182 : vector<1x128xf32>
    %184 = arith.mulf %181, %181 : vector<1x128xf32>
    %185 = arith.subf %183, %184 : vector<1x128xf32>
    %cst_98 = arith.constant 9.99999974E-6 : f32
    %186 = vector.broadcast %cst_98 : f32 to vector<1x128xf32>
    %187 = arith.addf %185, %186 : vector<1x128xf32>
    %188 = math.rsqrt %187 : vector<1x128xf32>
    %189 = arith.mulf %173, %188 : vector<1x128xf32>
    %190 = vector.broadcast %189 : vector<1x128xf32> to vector<16x128xf32>
    %191 = arith.mulf %171, %190 : vector<16x128xf32>
    %192 = arith.mulf %181, %189 : vector<1x128xf32>
    %193 = arith.subf %174, %192 : vector<1x128xf32>
    %194 = vector.broadcast %193 : vector<1x128xf32> to vector<16x128xf32>
    %195 = arith.addf %191, %194 : vector<16x128xf32>
    %cst_99 = arith.constant 0.000000e+00 : f32
    %196 = vector.broadcast %cst_99 : f32 to vector<16x128xf32>
    %197 = arith.maximumf %195, %196 : vector<16x128xf32>
    %c0_100 = arith.constant 0 : index
    %c0_101 = arith.constant 0 : index
    %198 = vector.load %arg16[%c0_100, %c0_101] : memref<1x128xf32, #tpu.memory_space<vmem>>, vector<1x128xf32>
    %c0_102 = arith.constant 0 : index
    %c0_103 = arith.constant 0 : index
    %199 = vector.load %arg17[%c0_102, %c0_103] : memref<1x128xf32, #tpu.memory_space<vmem>>, vector<1x128xf32>
    %cst_104 = arith.constant dense<0.000000e+00> : vector<128xf32>
    %200 = vector.multi_reduction <add>, %172, %cst_104 [0] : vector<16x128xf32> to vector<128xf32>
    %201 = vector.shape_cast %200 : vector<128xf32> to vector<1x128xf32>
    %202 = arith.mulf %172, %172 : vector<16x128xf32>
    %cst_105 = arith.constant dense<0.000000e+00> : vector<128xf32>
    %203 = vector.multi_reduction <add>, %202, %cst_105 [0] : vector<16x128xf32> to vector<128xf32>
    %204 = vector.shape_cast %203 : vector<128xf32> to vector<1x128xf32>
    %cst_106 = arith.constant 6.250000e-02 : f32
    %205 = vector.broadcast %cst_106 : f32 to vector<1x128xf32>
    %206 = arith.mulf %201, %205 : vector<1x128xf32>
    %cst_107 = arith.constant 6.250000e-02 : f32
    %207 = vector.broadcast %cst_107 : f32 to vector<1x128xf32>
    %208 = arith.mulf %204, %207 : vector<1x128xf32>
    %209 = arith.mulf %206, %206 : vector<1x128xf32>
    %210 = arith.subf %208, %209 : vector<1x128xf32>
    %cst_108 = arith.constant 9.99999974E-6 : f32
    %211 = vector.broadcast %cst_108 : f32 to vector<1x128xf32>
    %212 = arith.addf %210, %211 : vector<1x128xf32>
    %213 = math.rsqrt %212 : vector<1x128xf32>
    %214 = arith.mulf %198, %213 : vector<1x128xf32>
    %215 = vector.broadcast %214 : vector<1x128xf32> to vector<16x128xf32>
    %216 = arith.mulf %172, %215 : vector<16x128xf32>
    %217 = arith.mulf %206, %214 : vector<1x128xf32>
    %218 = arith.subf %199, %217 : vector<1x128xf32>
    %219 = vector.broadcast %218 : vector<1x128xf32> to vector<16x128xf32>
    %220 = arith.addf %216, %219 : vector<16x128xf32>
    %c1_109 = arith.constant 1 : index
    %c0_110 = arith.constant 0 : index
    %221 = vector.load %arg45[%c1_109, %c0_110] : memref<34x512xf32, #tpu.memory_space<vmem>>, vector<16x128xf32>
    tpu.vector_store %arg45[%c1_109, %c0_110], %197 {strides = array<i32>} : memref<34x512xf32, #tpu.memory_space<vmem>>, vector<16x128xf32>,
    %c0_111 = arith.constant 0 : index
    %c0_112 = arith.constant 0 : index
    %222 = vector.load %arg45[%c0_111, %c0_112] : memref<34x512xf32, #tpu.memory_space<vmem>>, vector<16x128xf32>
    %c2_113 = arith.constant 2 : index
    %c0_114 = arith.constant 0 : index
    %223 = vector.load %arg45[%c2_113, %c0_114] : memref<34x512xf32, #tpu.memory_space<vmem>>, vector<16x128xf32>
    %224 = tpu.iota {dimensions = array<i32: 0>} : vector<16x128xi32>
    %c7_i32_115 = arith.constant 7 : i32
    %225 = vector.broadcast %c7_i32_115 : i32 to vector<16x128xi32>
    %226 = arith.andi %224, %225 : vector<16x128xi32>
    %c0_i32_116 = arith.constant 0 : i32
    %227 = vector.broadcast %c0_i32_116 : i32 to vector<16x128xi32>
    %228 = arith.cmpi eq, %226, %227 : vector<16x128xi32>
    %cst_117 = arith.constant 0.000000e+00 : f32
    %229 = vector.broadcast %cst_117 : f32 to vector<16x128xf32>
    %230 = arith.select %228, %229, %222 : vector<16x128xi1>, vector<16x128xf32>
    %c7_i32_118 = arith.constant 7 : i32
    %231 = vector.broadcast %c7_i32_118 : i32 to vector<16x128xi32>
    %232 = arith.cmpi eq, %226, %231 : vector<16x128xi32>
    %cst_119 = arith.constant 0.000000e+00 : f32
    %233 = vector.broadcast %cst_119 : f32 to vector<16x128xf32>
    %234 = arith.select %232, %233, %223 : vector<16x128xi1>, vector<16x128xf32>
    %235 = arith.truncf %230 : vector<16x128xf32> to vector<16x128xbf16>
    %236 = arith.truncf %197 : vector<16x128xf32> to vector<16x128xbf16>
    %237 = arith.truncf %234 : vector<16x128xf32> to vector<16x128xbf16>
    %238 = tpu.concatenate %235, %236, %237 in 1 : vector<16x128xbf16>, vector<16x128xbf16>, vector<16x128xbf16> -> vector<16x384xbf16>
    %cst_120 = arith.constant dense<0.000000e+00> : vector<16x128xf32>
    %239 = tpu.matmul %238, %151, %cst_120 {dimension_numbers = #tpu.dot_dimension_numbers<[1], [0], [0], [1], [0, 0, 1, 1], [], []>} : vector<16x384xbf16>, vector<384x128xbf16>, vector<16x128xf32> -> vector<16x128xf32>
    %c0_121 = arith.constant 0 : index
    %c0_122 = arith.constant 0 : index
    %240 = vector.load %arg19[%c0_121, %c0_122] : memref<1x128xf32, #tpu.memory_space<vmem>>, vector<1x128xf32>
    %c0_123 = arith.constant 0 : index
    %c0_124 = arith.constant 0 : index
    %241 = vector.load %arg20[%c0_123, %c0_124] : memref<1x128xf32, #tpu.memory_space<vmem>>, vector<1x128xf32>
    %cst_125 = arith.constant dense<0.000000e+00> : vector<128xf32>
    %242 = vector.multi_reduction <add>, %239, %cst_125 [0] : vector<16x128xf32> to vector<128xf32>
    %243 = vector.shape_cast %242 : vector<128xf32> to vector<1x128xf32>
    %244 = arith.mulf %239, %239 : vector<16x128xf32>
    %cst_126 = arith.constant dense<0.000000e+00> : vector<128xf32>
    %245 = vector.multi_reduction <add>, %244, %cst_126 [0] : vector<16x128xf32> to vector<128xf32>
    %246 = vector.shape_cast %245 : vector<128xf32> to vector<1x128xf32>
    %cst_127 = arith.constant 6.250000e-02 : f32
    %247 = vector.broadcast %cst_127 : f32 to vector<1x128xf32>
    %248 = arith.mulf %243, %247 : vector<1x128xf32>
    %cst_128 = arith.constant 6.250000e-02 : f32
    %249 = vector.broadcast %cst_128 : f32 to vector<1x128xf32>
    %250 = arith.mulf %246, %249 : vector<1x128xf32>
    %251 = arith.mulf %248, %248 : vector<1x128xf32>
    %252 = arith.subf %250, %251 : vector<1x128xf32>
    %cst_129 = arith.constant 9.99999974E-6 : f32
    %253 = vector.broadcast %cst_129 : f32 to vector<1x128xf32>
    %254 = arith.addf %252, %253 : vector<1x128xf32>
    %255 = math.rsqrt %254 : vector<1x128xf32>
    %256 = arith.mulf %240, %255 : vector<1x128xf32>
    %257 = vector.broadcast %256 : vector<1x128xf32> to vector<16x128xf32>
    %258 = arith.mulf %239, %257 : vector<16x128xf32>
    %259 = arith.mulf %248, %256 : vector<1x128xf32>
    %260 = arith.subf %241, %259 : vector<1x128xf32>
    %261 = vector.broadcast %260 : vector<1x128xf32> to vector<16x128xf32>
    %262 = arith.addf %258, %261 : vector<16x128xf32>
    %263 = arith.addf %262, %220 : vector<16x128xf32>
    %cst_130 = arith.constant 0.000000e+00 : f32
    %264 = vector.broadcast %cst_130 : f32 to vector<16x128xf32>
    %265 = arith.maximumf %263, %264 : vector<16x128xf32>
    %c0_131 = arith.constant 0 : index
    %c0_132 = arith.constant 0 : index
    %266 = vector.load %arg23[%c0_131, %c0_132] : memref<384x512xbf16, #tpu.memory_space<vmem>>, vector<384x512xbf16>
    %c0_133 = arith.constant 0 : index
    %c0_134 = arith.constant 0 : index
    %267 = vector.load %arg28[%c0_133, %c0_134] : memref<768x256xbf16, #tpu.memory_space<vmem>>, vector<768x256xbf16>
    %268 = arith.truncf %265 : vector<16x128xf32> to vector<16x128xbf16>
    %c0_135 = arith.constant 0 : index
    %c0_136 = arith.constant 0 : index
    %269 = vector.load %arg21[%c0_135, %c0_136] : memref<8x16xbf16, #tpu.memory_space<vmem>>, vector<8x16xbf16>
    %cst_137 = arith.constant dense<0.000000e+00> : vector<8x128xf32>
    %270 = tpu.matmul %269, %268, %cst_137 {dimension_numbers = #tpu.dot_dimension_numbers<[1], [0], [0], [1], [0, 0, 1, 1], [], []>} : vector<8x16xbf16>, vector<16x128xbf16>, vector<8x128xf32> -> vector<8x128xf32>
    %c0_138 = arith.constant 0 : index
    %c0_139 = arith.constant 0 : index
    %271 = vector.load %arg22[%c0_138, %c0_139] : memref<8x16xbf16, #tpu.memory_space<vmem>>, vector<8x16xbf16>
    %cst_140 = arith.constant dense<0.000000e+00> : vector<8x128xf32>
    %272 = tpu.matmul %271, %268, %cst_140 {dimension_numbers = #tpu.dot_dimension_numbers<[1], [0], [0], [1], [0, 0, 1, 1], [], []>} : vector<8x16xbf16>, vector<16x128xbf16>, vector<8x128xf32> -> vector<8x128xf32>
    %c1_141 = arith.constant 1 : index
    %c0_142 = arith.constant 0 : index
    %273 = vector.load %arg45[%c1_141, %c0_142] : memref<34x512xf32, #tpu.memory_space<vmem>>, vector<8x128xf32>
    tpu.vector_store %arg45[%c1_141, %c0_142], %272 {strides = array<i32>} : memref<34x512xf32, #tpu.memory_space<vmem>>, vector<8x128xf32>,
    %c0_143 = arith.constant 0 : index
    %c0_144 = arith.constant 0 : index
    %274 = vector.load %arg45[%c0_143, %c0_144] : memref<34x512xf32, #tpu.memory_space<vmem>>, vector<8x128xf32>
    %275 = tpu.iota {dimensions = array<i32: 0>} : vector<8x128xi32>
    %c3_i32 = arith.constant 3 : i32
    %276 = vector.broadcast %c3_i32 : i32 to vector<8x128xi32>
    %277 = arith.andi %275, %276 : vector<8x128xi32>
    %c0_i32_145 = arith.constant 0 : i32
    %278 = vector.broadcast %c0_i32_145 : i32 to vector<8x128xi32>
    %279 = arith.cmpi eq, %277, %278 : vector<8x128xi32>
    %cst_146 = arith.constant 0.000000e+00 : f32
    %280 = vector.broadcast %cst_146 : f32 to vector<8x128xf32>
    %281 = arith.select %279, %280, %274 : vector<8x128xi1>, vector<8x128xf32>
    %282 = arith.truncf %281 : vector<8x128xf32> to vector<8x128xbf16>
    %283 = arith.truncf %270 : vector<8x128xf32> to vector<8x128xbf16>
    %284 = arith.truncf %272 : vector<8x128xf32> to vector<8x128xbf16>
    %285 = tpu.concatenate %282, %283, %284 in 1 : vector<8x128xbf16>, vector<8x128xbf16>, vector<8x128xbf16> -> vector<8x384xbf16>
    %cst_147 = arith.constant dense<0.000000e+00> : vector<8x512xf32>
    %286 = tpu.matmul %285, %266, %cst_147 {dimension_numbers = #tpu.dot_dimension_numbers<[1], [0], [0], [1], [0, 0, 1, 1], [], []>} : vector<8x384xbf16>, vector<384x512xbf16>, vector<8x512xf32> -> vector<8x512xf32>
    %287 = vector.extract_strided_slice %286 {offsets = [0, 0], sizes = [8, 256], strides = [1, 1]} : vector<8x512xf32> to vector<8x256xf32>
    %288 = vector.extract_strided_slice %286 {offsets = [0, 256], sizes = [8, 256], strides = [1, 1]} : vector<8x512xf32> to vector<8x256xf32>
    %c0_148 = arith.constant 0 : index
    %c0_149 = arith.constant 0 : index
    %289 = vector.load %arg24[%c0_148, %c0_149] : memref<1x256xf32, #tpu.memory_space<vmem>>, vector<1x256xf32>
    %c0_150 = arith.constant 0 : index
    %c0_151 = arith.constant 0 : index
    %290 = vector.load %arg25[%c0_150, %c0_151] : memref<1x256xf32, #tpu.memory_space<vmem>>, vector<1x256xf32>
    %cst_152 = arith.constant dense<0.000000e+00> : vector<256xf32>
    %291 = vector.multi_reduction <add>, %287, %cst_152 [0] : vector<8x256xf32> to vector<256xf32>
    %292 = vector.shape_cast %291 : vector<256xf32> to vector<1x256xf32>
    %293 = arith.mulf %287, %287 : vector<8x256xf32>
    %cst_153 = arith.constant dense<0.000000e+00> : vector<256xf32>
    %294 = vector.multi_reduction <add>, %293, %cst_153 [0] : vector<8x256xf32> to vector<256xf32>
    %295 = vector.shape_cast %294 : vector<256xf32> to vector<1x256xf32>
    %cst_154 = arith.constant 1.250000e-01 : f32
    %296 = vector.broadcast %cst_154 : f32 to vector<1x256xf32>
    %297 = arith.mulf %292, %296 : vector<1x256xf32>
    %cst_155 = arith.constant 1.250000e-01 : f32
    %298 = vector.broadcast %cst_155 : f32 to vector<1x256xf32>
    %299 = arith.mulf %295, %298 : vector<1x256xf32>
    %300 = arith.mulf %297, %297 : vector<1x256xf32>
    %301 = arith.subf %299, %300 : vector<1x256xf32>
    %cst_156 = arith.constant 9.99999974E-6 : f32
    %302 = vector.broadcast %cst_156 : f32 to vector<1x256xf32>
    %303 = arith.addf %301, %302 : vector<1x256xf32>
    %304 = math.rsqrt %303 : vector<1x256xf32>
    %305 = arith.mulf %289, %304 : vector<1x256xf32>
    %306 = vector.broadcast %305 : vector<1x256xf32> to vector<8x256xf32>
    %307 = arith.mulf %287, %306 : vector<8x256xf32>
    %308 = arith.mulf %297, %305 : vector<1x256xf32>
    %309 = arith.subf %290, %308 : vector<1x256xf32>
    %310 = vector.broadcast %309 : vector<1x256xf32> to vector<8x256xf32>
    %311 = arith.addf %307, %310 : vector<8x256xf32>
    %cst_157 = arith.constant 0.000000e+00 : f32
    %312 = vector.broadcast %cst_157 : f32 to vector<8x256xf32>
    %313 = arith.maximumf %311, %312 : vector<8x256xf32>
    %c0_158 = arith.constant 0 : index
    %c0_159 = arith.constant 0 : index
    %314 = vector.load %arg26[%c0_158, %c0_159] : memref<1x256xf32, #tpu.memory_space<vmem>>, vector<1x256xf32>
    %c0_160 = arith.constant 0 : index
    %c0_161 = arith.constant 0 : index
    %315 = vector.load %arg27[%c0_160, %c0_161] : memref<1x256xf32, #tpu.memory_space<vmem>>, vector<1x256xf32>
    %cst_162 = arith.constant dense<0.000000e+00> : vector<256xf32>
    %316 = vector.multi_reduction <add>, %288, %cst_162 [0] : vector<8x256xf32> to vector<256xf32>
    %317 = vector.shape_cast %316 : vector<256xf32> to vector<1x256xf32>
    %318 = arith.mulf %288, %288 : vector<8x256xf32>
    %cst_163 = arith.constant dense<0.000000e+00> : vector<256xf32>
    %319 = vector.multi_reduction <add>, %318, %cst_163 [0] : vector<8x256xf32> to vector<256xf32>
    %320 = vector.shape_cast %319 : vector<256xf32> to vector<1x256xf32>
    %cst_164 = arith.constant 1.250000e-01 : f32
    %321 = vector.broadcast %cst_164 : f32 to vector<1x256xf32>
    %322 = arith.mulf %317, %321 : vector<1x256xf32>
    %cst_165 = arith.constant 1.250000e-01 : f32
    %323 = vector.broadcast %cst_165 : f32 to vector<1x256xf32>
    %324 = arith.mulf %320, %323 : vector<1x256xf32>
    %325 = arith.mulf %322, %322 : vector<1x256xf32>
    %326 = arith.subf %324, %325 : vector<1x256xf32>
    %cst_166 = arith.constant 9.99999974E-6 : f32
    %327 = vector.broadcast %cst_166 : f32 to vector<1x256xf32>
    %328 = arith.addf %326, %327 : vector<1x256xf32>
    %329 = math.rsqrt %328 : vector<1x256xf32>
    %330 = arith.mulf %314, %329 : vector<1x256xf32>
    %331 = vector.broadcast %330 : vector<1x256xf32> to vector<8x256xf32>
    %332 = arith.mulf %288, %331 : vector<8x256xf32>
    %333 = arith.mulf %322, %330 : vector<1x256xf32>
    %334 = arith.subf %315, %333 : vector<1x256xf32>
    %335 = vector.broadcast %334 : vector<1x256xf32> to vector<8x256xf32>
    %336 = arith.addf %332, %335 : vector<8x256xf32>
    %c1_167 = arith.constant 1 : index
    %c0_168 = arith.constant 0 : index
    %337 = vector.load %arg45[%c1_167, %c0_168] : memref<34x512xf32, #tpu.memory_space<vmem>>, vector<8x256xf32>
    tpu.vector_store %arg45[%c1_167, %c0_168], %313 {strides = array<i32>} : memref<34x512xf32, #tpu.memory_space<vmem>>, vector<8x256xf32>,
    %c0_169 = arith.constant 0 : index
    %c0_170 = arith.constant 0 : index
    %338 = vector.load %arg45[%c0_169, %c0_170] : memref<34x512xf32, #tpu.memory_space<vmem>>, vector<8x256xf32>
    %c2_171 = arith.constant 2 : index
    %c0_172 = arith.constant 0 : index
    %339 = vector.load %arg45[%c2_171, %c0_172] : memref<34x512xf32, #tpu.memory_space<vmem>>, vector<8x256xf32>
    %340 = tpu.iota {dimensions = array<i32: 0>} : vector<8x256xi32>
    %c3_i32_173 = arith.constant 3 : i32
    %341 = vector.broadcast %c3_i32_173 : i32 to vector<8x256xi32>
    %342 = arith.andi %340, %341 : vector<8x256xi32>
    %c0_i32_174 = arith.constant 0 : i32
    %343 = vector.broadcast %c0_i32_174 : i32 to vector<8x256xi32>
    %344 = arith.cmpi eq, %342, %343 : vector<8x256xi32>
    %cst_175 = arith.constant 0.000000e+00 : f32
    %345 = vector.broadcast %cst_175 : f32 to vector<8x256xf32>
    %346 = arith.select %344, %345, %338 : vector<8x256xi1>, vector<8x256xf32>
    %c3_i32_176 = arith.constant 3 : i32
    %347 = vector.broadcast %c3_i32_176 : i32 to vector<8x256xi32>
    %348 = arith.cmpi eq, %342, %347 : vector<8x256xi32>
    %cst_177 = arith.constant 0.000000e+00 : f32
    %349 = vector.broadcast %cst_177 : f32 to vector<8x256xf32>
    %350 = arith.select %348, %349, %339 : vector<8x256xi1>, vector<8x256xf32>
    %351 = arith.truncf %346 : vector<8x256xf32> to vector<8x256xbf16>
    %352 = arith.truncf %313 : vector<8x256xf32> to vector<8x256xbf16>
    %353 = arith.truncf %350 : vector<8x256xf32> to vector<8x256xbf16>
    %354 = tpu.concatenate %351, %352, %353 in 1 : vector<8x256xbf16>, vector<8x256xbf16>, vector<8x256xbf16> -> vector<8x768xbf16>
    %cst_178 = arith.constant dense<0.000000e+00> : vector<8x256xf32>
    %355 = tpu.matmul %354, %267, %cst_178 {dimension_numbers = #tpu.dot_dimension_numbers<[1], [0], [0], [1], [0, 0, 1, 1], [], []>} : vector<8x768xbf16>, vector<768x256xbf16>, vector<8x256xf32> -> vector<8x256xf32>
    %c0_179 = arith.constant 0 : index
    %c0_180 = arith.constant 0 : index
    %356 = vector.load %arg29[%c0_179, %c0_180] : memref<1x256xf32, #tpu.memory_space<vmem>>, vector<1x256xf32>
    %c0_181 = arith.constant 0 : index
    %c0_182 = arith.constant 0 : index
    %357 = vector.load %arg30[%c0_181, %c0_182] : memref<1x256xf32, #tpu.memory_space<vmem>>, vector<1x256xf32>
    %cst_183 = arith.constant dense<0.000000e+00> : vector<256xf32>
    %358 = vector.multi_reduction <add>, %355, %cst_183 [0] : vector<8x256xf32> to vector<256xf32>
    %359 = vector.shape_cast %358 : vector<256xf32> to vector<1x256xf32>
    %360 = arith.mulf %355, %355 : vector<8x256xf32>
    %cst_184 = arith.constant dense<0.000000e+00> : vector<256xf32>
    %361 = vector.multi_reduction <add>, %360, %cst_184 [0] : vector<8x256xf32> to vector<256xf32>
    %362 = vector.shape_cast %361 : vector<256xf32> to vector<1x256xf32>
    %cst_185 = arith.constant 1.250000e-01 : f32
    %363 = vector.broadcast %cst_185 : f32 to vector<1x256xf32>
    %364 = arith.mulf %359, %363 : vector<1x256xf32>
    %cst_186 = arith.constant 1.250000e-01 : f32
    %365 = vector.broadcast %cst_186 : f32 to vector<1x256xf32>
    %366 = arith.mulf %362, %365 : vector<1x256xf32>
    %367 = arith.mulf %364, %364 : vector<1x256xf32>
    %368 = arith.subf %366, %367 : vector<1x256xf32>
    %cst_187 = arith.constant 9.99999974E-6 : f32
    %369 = vector.broadcast %cst_187 : f32 to vector<1x256xf32>
    %370 = arith.addf %368, %369 : vector<1x256xf32>
    %371 = math.rsqrt %370 : vector<1x256xf32>
    %372 = arith.mulf %356, %371 : vector<1x256xf32>
    %373 = vector.broadcast %372 : vector<1x256xf32> to vector<8x256xf32>
    %374 = arith.mulf %355, %373 : vector<8x256xf32>
    %375 = arith.mulf %364, %372 : vector<1x256xf32>
    %376 = arith.subf %357, %375 : vector<1x256xf32>
    %377 = vector.broadcast %376 : vector<1x256xf32> to vector<8x256xf32>
    %378 = arith.addf %374, %377 : vector<8x256xf32>
    %379 = arith.addf %378, %336 : vector<8x256xf32>
    %cst_188 = arith.constant 0.000000e+00 : f32
    %380 = vector.broadcast %cst_188 : f32 to vector<8x256xf32>
    %381 = arith.maximumf %379, %380 : vector<8x256xf32>
    %c0_i32_189 = arith.constant 0 : i32
    %382 = tpu.memref_slice %arg48[%c0_i32_189] : memref<2x!tpu.dma_semaphore, #tpu.memory_space<semaphore_mem>> -> memref<1x!tpu.dma_semaphore, #tpu.memory_space<semaphore_mem>>
    %383 = tpu.memref_squeeze %382 : memref<1x!tpu.dma_semaphore, #tpu.memory_space<semaphore_mem>> -> memref<!tpu.dma_semaphore, #tpu.memory_space<semaphore_mem>>
    tpu.wait_dma2 semaphore(%383 : memref<!tpu.dma_semaphore, #tpu.memory_space<semaphore_mem>>) src(%arg33 : memref<768x1024xbf16, #tpu.memory_space<any>>) dst(%arg46 : memref<768x1024xbf16, #tpu.memory_space<vmem>>)
    %c1_i32_190 = arith.constant 1 : i32
    %384 = tpu.memref_slice %arg48[%c1_i32_190] : memref<2x!tpu.dma_semaphore, #tpu.memory_space<semaphore_mem>> -> memref<1x!tpu.dma_semaphore, #tpu.memory_space<semaphore_mem>>
    %385 = tpu.memref_squeeze %384 : memref<1x!tpu.dma_semaphore, #tpu.memory_space<semaphore_mem>> -> memref<!tpu.dma_semaphore, #tpu.memory_space<semaphore_mem>>
    tpu.wait_dma2 semaphore(%385 : memref<!tpu.dma_semaphore, #tpu.memory_space<semaphore_mem>>) src(%arg38 : memref<1536x512xbf16, #tpu.memory_space<any>>) dst(%arg47 : memref<1536x512xbf16, #tpu.memory_space<vmem>>)
    %c0_191 = arith.constant 0 : index
    %c0_192 = arith.constant 0 : index
    %386 = vector.load %arg46[%c0_191, %c0_192] : memref<768x1024xbf16, #tpu.memory_space<vmem>>, vector<768x1024xbf16>
    %c0_193 = arith.constant 0 : index
    %c0_194 = arith.constant 0 : index
    %387 = vector.load %arg47[%c0_193, %c0_194] : memref<1536x512xbf16, #tpu.memory_space<vmem>>, vector<1536x512xbf16>
    %388 = arith.truncf %381 : vector<8x256xf32> to vector<8x256xbf16>
    %c0_195 = arith.constant 0 : index
    %c0_196 = arith.constant 0 : index
    %389 = vector.load %arg31[%c0_195, %c0_196] : memref<4x8xbf16, #tpu.memory_space<vmem>>, vector<4x8xbf16>
    %cst_197 = arith.constant dense<0.000000e+00> : vector<4x256xf32>
    %390 = tpu.matmul %389, %388, %cst_197 {dimension_numbers = #tpu.dot_dimension_numbers<[1], [0], [0], [1], [0, 0, 1, 1], [], []>} : vector<4x8xbf16>, vector<8x256xbf16>, vector<4x256xf32> -> vector<4x256xf32>
    %c0_198 = arith.constant 0 : index
    %c0_199 = arith.constant 0 : index
    %391 = vector.load %arg32[%c0_198, %c0_199] : memref<4x8xbf16, #tpu.memory_space<vmem>>, vector<4x8xbf16>
    %cst_200 = arith.constant dense<0.000000e+00> : vector<4x256xf32>
    %392 = tpu.matmul %391, %388, %cst_200 {dimension_numbers = #tpu.dot_dimension_numbers<[1], [0], [0], [1], [0, 0, 1, 1], [], []>} : vector<4x8xbf16>, vector<8x256xbf16>, vector<4x256xf32> -> vector<4x256xf32>
    %c1_201 = arith.constant 1 : index
    %c0_202 = arith.constant 0 : index
    %393 = vector.load %arg45[%c1_201, %c0_202] : memref<34x512xf32, #tpu.memory_space<vmem>>, vector<4x256xf32>
    tpu.vector_store %arg45[%c1_201, %c0_202], %392 {strides = array<i32>} : memref<34x512xf32, #tpu.memory_space<vmem>>, vector<4x256xf32>,
    %c0_203 = arith.constant 0 : index
    %c0_204 = arith.constant 0 : index
    %394 = vector.load %arg45[%c0_203, %c0_204] : memref<34x512xf32, #tpu.memory_space<vmem>>, vector<4x256xf32>
    %395 = tpu.iota {dimensions = array<i32: 0>} : vector<4x256xi32>
    %c1_i32_205 = arith.constant 1 : i32
    %396 = vector.broadcast %c1_i32_205 : i32 to vector<4x256xi32>
    %397 = arith.andi %395, %396 : vector<4x256xi32>
    %c0_i32_206 = arith.constant 0 : i32
    %398 = vector.broadcast %c0_i32_206 : i32 to vector<4x256xi32>
    %399 = arith.cmpi eq, %397, %398 : vector<4x256xi32>
    %cst_207 = arith.constant 0.000000e+00 : f32
    %400 = vector.broadcast %cst_207 : f32 to vector<4x256xf32>
    %401 = arith.select %399, %400, %394 : vector<4x256xi1>, vector<4x256xf32>
    %402 = arith.truncf %401 : vector<4x256xf32> to vector<4x256xbf16>
    %403 = arith.truncf %390 : vector<4x256xf32> to vector<4x256xbf16>
    %404 = arith.truncf %392 : vector<4x256xf32> to vector<4x256xbf16>
    %405 = tpu.concatenate %402, %403, %404 in 1 : vector<4x256xbf16>, vector<4x256xbf16>, vector<4x256xbf16> -> vector<4x768xbf16>
    %cst_208 = arith.constant dense<0.000000e+00> : vector<4x1024xf32>
    %406 = tpu.matmul %405, %386, %cst_208 {dimension_numbers = #tpu.dot_dimension_numbers<[1], [0], [0], [1], [0, 0, 1, 1], [], []>} : vector<4x768xbf16>, vector<768x1024xbf16>, vector<4x1024xf32> -> vector<4x1024xf32>
    %407 = vector.extract_strided_slice %406 {offsets = [0, 0], sizes = [4, 512], strides = [1, 1]} : vector<4x1024xf32> to vector<4x512xf32>
    %408 = vector.extract_strided_slice %406 {offsets = [0, 512], sizes = [4, 512], strides = [1, 1]} : vector<4x1024xf32> to vector<4x512xf32>
    %c0_209 = arith.constant 0 : index
    %c0_210 = arith.constant 0 : index
    %409 = vector.load %arg34[%c0_209, %c0_210] : memref<1x512xf32, #tpu.memory_space<vmem>>, vector<1x512xf32>
    %c0_211 = arith.constant 0 : index
    %c0_212 = arith.constant 0 : index
    %410 = vector.load %arg35[%c0_211, %c0_212] : memref<1x512xf32, #tpu.memory_space<vmem>>, vector<1x512xf32>
    %cst_213 = arith.constant dense<0.000000e+00> : vector<512xf32>
    %411 = vector.multi_reduction <add>, %407, %cst_213 [0] : vector<4x512xf32> to vector<512xf32>
    %412 = vector.shape_cast %411 : vector<512xf32> to vector<1x512xf32>
    %413 = arith.mulf %407, %407 : vector<4x512xf32>
    %cst_214 = arith.constant dense<0.000000e+00> : vector<512xf32>
    %414 = vector.multi_reduction <add>, %413, %cst_214 [0] : vector<4x512xf32> to vector<512xf32>
    %415 = vector.shape_cast %414 : vector<512xf32> to vector<1x512xf32>
    %cst_215 = arith.constant 2.500000e-01 : f32
    %416 = vector.broadcast %cst_215 : f32 to vector<1x512xf32>
    %417 = arith.mulf %412, %416 : vector<1x512xf32>
    %cst_216 = arith.constant 2.500000e-01 : f32
    %418 = vector.broadcast %cst_216 : f32 to vector<1x512xf32>
    %419 = arith.mulf %415, %418 : vector<1x512xf32>
    %420 = arith.mulf %417, %417 : vector<1x512xf32>
    %421 = arith.subf %419, %420 : vector<1x512xf32>
    %cst_217 = arith.constant 9.99999974E-6 : f32
    %422 = vector.broadcast %cst_217 : f32 to vector<1x512xf32>
    %423 = arith.addf %421, %422 : vector<1x512xf32>
    %424 = math.rsqrt %423 : vector<1x512xf32>
    %425 = arith.mulf %409, %424 : vector<1x512xf32>
    %426 = vector.broadcast %425 : vector<1x512xf32> to vector<4x512xf32>
    %427 = arith.mulf %407, %426 : vector<4x512xf32>
    %428 = arith.mulf %417, %425 : vector<1x512xf32>
    %429 = arith.subf %410, %428 : vector<1x512xf32>
    %430 = vector.broadcast %429 : vector<1x512xf32> to vector<4x512xf32>
    %431 = arith.addf %427, %430 : vector<4x512xf32>
    %cst_218 = arith.constant 0.000000e+00 : f32
    %432 = vector.broadcast %cst_218 : f32 to vector<4x512xf32>
    %433 = arith.maximumf %431, %432 : vector<4x512xf32>
    %c0_219 = arith.constant 0 : index
    %c0_220 = arith.constant 0 : index
    %434 = vector.load %arg36[%c0_219, %c0_220] : memref<1x512xf32, #tpu.memory_space<vmem>>, vector<1x512xf32>
    %c0_221 = arith.constant 0 : index
    %c0_222 = arith.constant 0 : index
    %435 = vector.load %arg37[%c0_221, %c0_222] : memref<1x512xf32, #tpu.memory_space<vmem>>, vector<1x512xf32>
    %cst_223 = arith.constant dense<0.000000e+00> : vector<512xf32>
    %436 = vector.multi_reduction <add>, %408, %cst_223 [0] : vector<4x512xf32> to vector<512xf32>
    %437 = vector.shape_cast %436 : vector<512xf32> to vector<1x512xf32>
    %438 = arith.mulf %408, %408 : vector<4x512xf32>
    %cst_224 = arith.constant dense<0.000000e+00> : vector<512xf32>
    %439 = vector.multi_reduction <add>, %438, %cst_224 [0] : vector<4x512xf32> to vector<512xf32>
    %440 = vector.shape_cast %439 : vector<512xf32> to vector<1x512xf32>
    %cst_225 = arith.constant 2.500000e-01 : f32
    %441 = vector.broadcast %cst_225 : f32 to vector<1x512xf32>
    %442 = arith.mulf %437, %441 : vector<1x512xf32>
    %cst_226 = arith.constant 2.500000e-01 : f32
    %443 = vector.broadcast %cst_226 : f32 to vector<1x512xf32>
    %444 = arith.mulf %440, %443 : vector<1x512xf32>
    %445 = arith.mulf %442, %442 : vector<1x512xf32>
    %446 = arith.subf %444, %445 : vector<1x512xf32>
    %cst_227 = arith.constant 9.99999974E-6 : f32
    %447 = vector.broadcast %cst_227 : f32 to vector<1x512xf32>
    %448 = arith.addf %446, %447 : vector<1x512xf32>
    %449 = math.rsqrt %448 : vector<1x512xf32>
    %450 = arith.mulf %434, %449 : vector<1x512xf32>
    %451 = vector.broadcast %450 : vector<1x512xf32> to vector<4x512xf32>
    %452 = arith.mulf %408, %451 : vector<4x512xf32>
    %453 = arith.mulf %442, %450 : vector<1x512xf32>
    %454 = arith.subf %435, %453 : vector<1x512xf32>
    %455 = vector.broadcast %454 : vector<1x512xf32> to vector<4x512xf32>
    %456 = arith.addf %452, %455 : vector<4x512xf32>
    %c1_228 = arith.constant 1 : index
    %c0_229 = arith.constant 0 : index
    %457 = vector.load %arg45[%c1_228, %c0_229] : memref<34x512xf32, #tpu.memory_space<vmem>>, vector<4x512xf32>
    tpu.vector_store %arg45[%c1_228, %c0_229], %433 {strides = array<i32>} : memref<34x512xf32, #tpu.memory_space<vmem>>, vector<4x512xf32>,
    %c0_230 = arith.constant 0 : index
    %c0_231 = arith.constant 0 : index
    %458 = vector.load %arg45[%c0_230, %c0_231] : memref<34x512xf32, #tpu.memory_space<vmem>>, vector<4x512xf32>
    %c2_232 = arith.constant 2 : index
    %c0_233 = arith.constant 0 : index
    %459 = vector.load %arg45[%c2_232, %c0_233] : memref<34x512xf32, #tpu.memory_space<vmem>>, vector<4x512xf32>
    %460 = tpu.iota {dimensions = array<i32: 0>} : vector<4x512xi32>
    %c1_i32_234 = arith.constant 1 : i32
    %461 = vector.broadcast %c1_i32_234 : i32 to vector<4x512xi32>
    %462 = arith.andi %460, %461 : vector<4x512xi32>
    %c0_i32_235 = arith.constant 0 : i32
    %463 = vector.broadcast %c0_i32_235 : i32 to vector<4x512xi32>
    %464 = arith.cmpi eq, %462, %463 : vector<4x512xi32>
    %cst_236 = arith.constant 0.000000e+00 : f32
    %465 = vector.broadcast %cst_236 : f32 to vector<4x512xf32>
    %466 = arith.select %464, %465, %458 : vector<4x512xi1>, vector<4x512xf32>
    %c1_i32_237 = arith.constant 1 : i32
    %467 = vector.broadcast %c1_i32_237 : i32 to vector<4x512xi32>
    %468 = arith.cmpi eq, %462, %467 : vector<4x512xi32>
    %cst_238 = arith.constant 0.000000e+00 : f32
    %469 = vector.broadcast %cst_238 : f32 to vector<4x512xf32>
    %470 = arith.select %468, %469, %459 : vector<4x512xi1>, vector<4x512xf32>
    %471 = arith.truncf %466 : vector<4x512xf32> to vector<4x512xbf16>
    %472 = arith.truncf %433 : vector<4x512xf32> to vector<4x512xbf16>
    %473 = arith.truncf %470 : vector<4x512xf32> to vector<4x512xbf16>
    %474 = tpu.concatenate %471, %472, %473 in 1 : vector<4x512xbf16>, vector<4x512xbf16>, vector<4x512xbf16> -> vector<4x1536xbf16>
    %cst_239 = arith.constant dense<0.000000e+00> : vector<4x512xf32>
    %475 = tpu.matmul %474, %387, %cst_239 {dimension_numbers = #tpu.dot_dimension_numbers<[1], [0], [0], [1], [0, 0, 1, 1], [], []>} : vector<4x1536xbf16>, vector<1536x512xbf16>, vector<4x512xf32> -> vector<4x512xf32>
    %c0_240 = arith.constant 0 : index
    %c0_241 = arith.constant 0 : index
    %476 = vector.load %arg39[%c0_240, %c0_241] : memref<1x512xf32, #tpu.memory_space<vmem>>, vector<1x512xf32>
    %c0_242 = arith.constant 0 : index
    %c0_243 = arith.constant 0 : index
    %477 = vector.load %arg40[%c0_242, %c0_243] : memref<1x512xf32, #tpu.memory_space<vmem>>, vector<1x512xf32>
    %cst_244 = arith.constant dense<0.000000e+00> : vector<512xf32>
    %478 = vector.multi_reduction <add>, %475, %cst_244 [0] : vector<4x512xf32> to vector<512xf32>
    %479 = vector.shape_cast %478 : vector<512xf32> to vector<1x512xf32>
    %480 = arith.mulf %475, %475 : vector<4x512xf32>
    %cst_245 = arith.constant dense<0.000000e+00> : vector<512xf32>
    %481 = vector.multi_reduction <add>, %480, %cst_245 [0] : vector<4x512xf32> to vector<512xf32>
    %482 = vector.shape_cast %481 : vector<512xf32> to vector<1x512xf32>
    %cst_246 = arith.constant 2.500000e-01 : f32
    %483 = vector.broadcast %cst_246 : f32 to vector<1x512xf32>
    %484 = arith.mulf %479, %483 : vector<1x512xf32>
    %cst_247 = arith.constant 2.500000e-01 : f32
    %485 = vector.broadcast %cst_247 : f32 to vector<1x512xf32>
    %486 = arith.mulf %482, %485 : vector<1x512xf32>
    %487 = arith.mulf %484, %484 : vector<1x512xf32>
    %488 = arith.subf %486, %487 : vector<1x512xf32>
    %cst_248 = arith.constant 9.99999974E-6 : f32
    %489 = vector.broadcast %cst_248 : f32 to vector<1x512xf32>
    %490 = arith.addf %488, %489 : vector<1x512xf32>
    %491 = math.rsqrt %490 : vector<1x512xf32>
    %492 = arith.mulf %476, %491 : vector<1x512xf32>
    %493 = vector.broadcast %492 : vector<1x512xf32> to vector<4x512xf32>
    %494 = arith.mulf %475, %493 : vector<4x512xf32>
    %495 = arith.mulf %484, %492 : vector<1x512xf32>
    %496 = arith.subf %477, %495 : vector<1x512xf32>
    %497 = vector.broadcast %496 : vector<1x512xf32> to vector<4x512xf32>
    %498 = arith.addf %494, %497 : vector<4x512xf32>
    %499 = arith.addf %498, %456 : vector<4x512xf32>
    %cst_249 = arith.constant 0.000000e+00 : f32
    %500 = vector.broadcast %cst_249 : f32 to vector<4x512xf32>
    %501 = arith.maximumf %499, %500 : vector<4x512xf32>
    %c0_250 = arith.constant 0 : index
    %c0_251 = arith.constant 0 : index
    %502 = vector.load %arg41[%c0_250, %c0_251] : memref<2x4xf32, #tpu.memory_space<vmem>>, vector<2x4xf32>
    %cst_252 = arith.constant dense<0.000000e+00> : vector<2x512xf32>
    %503 = tpu.matmul %502, %501, %cst_252 {dimension_numbers = #tpu.dot_dimension_numbers<[1], [0], [0], [1], [0, 0, 1, 1], [], []>} : vector<2x4xf32>, vector<4x512xf32>, vector<2x512xf32> -> vector<2x512xf32>
    %c0_253 = arith.constant 0 : index
    %c0_254 = arith.constant 0 : index
    %504 = vector.load %arg42[%c0_253, %c0_254] : memref<512x128xf32, #tpu.memory_space<vmem>>, vector<512x128xf32>
    %cst_255 = arith.constant dense<0.000000e+00> : vector<2x128xf32>
    %505 = tpu.matmul %503, %504, %cst_255 {dimension_numbers = #tpu.dot_dimension_numbers<[1], [0], [0], [1], [0, 0, 1, 1], [], []>} : vector<2x512xf32>, vector<512x128xf32>, vector<2x128xf32> -> vector<2x128xf32>
    %c0_256 = arith.constant 0 : index
    %c0_257 = arith.constant 0 : index
    %506 = vector.load %arg43[%c0_256, %c0_257] : memref<1x128xf32, #tpu.memory_space<vmem>>, vector<1x128xf32>
    %507 = vector.broadcast %506 : vector<1x128xf32> to vector<2x128xf32>
    %508 = arith.addf %505, %507 : vector<2x128xf32>
    %c0_258 = arith.constant 0 : index
    %c0_259 = arith.constant 0 : index
    %509 = vector.load %arg44[%c0_258, %c0_259] : memref<2x128xf32, #tpu.memory_space<vmem>>, vector<2x128xf32>
    tpu.vector_store %arg44[%c0_258, %c0_259], %508 {strides = array<i32>} : memref<2x128xf32, #tpu.memory_space<vmem>>, vector<2x128xf32>,
    return
  }
}

</mosaic_0001>

<llo_original>
// kernel: forward.1
$region0: #{forward.1}
  #allocation0 [shape = 'u32[]', space=smem, size = 0x4, offset = 0x4, fixed_abs, tag = 'smem constant byte address 0x4 - core index']
  #allocation1 [shape = 'u32[144,128]{1,0:T(1,128)}', space=vmem, size = 0x12000, scoped, tag = 'internal scratch']
  #allocation2 [shape = 'f32[34,512]{1,0:T(8,128)}', space=vmem, size = 0x14000, scoped, tag = 'scratch operand']
  #allocation3 [shape = 'bf16[768,1024]{1,0:T(8,128)(2,1)}', space=vmem, size = 0x180000, scoped, tag = 'scratch operand']
  #allocation4 [shape = 'bf16[1536,512]{1,0:T(8,128)(2,1)}', space=vmem, size = 0x180000, scoped, tag = 'scratch operand']
  #allocation5 [shape = 's32[2]{0}', space=sflag, size = 0x8, scoped, tag = 'scratch operand']
  #allocation69 [shape = 's32[]', space=sflag, size = 0x4, offset = 0, fixed_abs, tag = 'sflag constant byte address 0x0 - dummy sync flag']
  #allocation70 [shape = 's32[]', space=sflag, size = 0x4, offset = 0, fixed_abs, tag = 'sflag constant byte address 0x0 - dummy sync flag']
  #allocation71 [shape = 'u32[]', space=smem, size = 0x4, offset = 0x44, fixed_abs, tag = 'smem constant byte address 0x44 - assertion arg 0']
  #allocation72 [shape = 'u32[]', space=smem, size = 0x4, offset = 0x48, fixed_abs, tag = 'smem constant byte address 0x48 - assertion arg 1']
  #allocation73 [shape = 's32[]', space=sflag, size = 0x4, offset = 0, fixed_abs, tag = 'sflag constant byte address 0x0 - dummy sync flag']
  #allocation74 [shape = 's32[]', space=sflag, size = 0x4, offset = 0, fixed_abs, tag = 'sflag constant byte address 0x0 - dummy sync flag']
  %s0 = inlined_call_operand.smem [shape: u32[45], index: -1, kind: input, shape index: {}]
  %s1 = sld [smem:[%s0]]
  %s2 = scalar_lea.smem %s0, 1
  %s3 = sld [smem:[%s2]]
  %s4 = scalar_lea.smem %s0, 2
  %s5 = sld [smem:[%s4]]
  %s6 = scalar_lea.smem %s0, 3
  %s7 = sld [smem:[%s6]]
  %s8 = scalar_lea.smem %s0, 4
  %s9 = sld [smem:[%s8]]
  %s10 = scalar_lea.smem %s0, 5
  %s11 = sld [smem:[%s10]]
  %s12 = scalar_lea.smem %s0, 6
  %s13 = sld [smem:[%s12]]
  %s14 = scalar_lea.smem %s0, 7
  %s15 = sld [smem:[%s14]]
  %s16 = scalar_lea.smem %s0, 8
  %s17 = sld [smem:[%s16]]
  %s18 = scalar_lea.smem %s0, 9
  %s19 = sld [smem:[%s18]]
  %s20 = scalar_lea.smem %s0, 10
  %s21 = sld [smem:[%s20]]
  %s22 = scalar_lea.smem %s0, 11
  %s23 = sld [smem:[%s22]]
  %s24 = scalar_lea.smem %s0, 12
  %s25 = sld [smem:[%s24]]
  %s26 = scalar_lea.smem %s0, 13
  %s27 = sld [smem:[%s26]]
  %s28 = scalar_lea.smem %s0, 14
  %s29 = sld [smem:[%s28]]
  %s30 = scalar_lea.smem %s0, 15
  %s31 = sld [smem:[%s30]]
  %s32 = scalar_lea.smem %s0, 16
  %s33 = sld [smem:[%s32]]
  %s34 = scalar_lea.smem %s0, 17
  %s35 = sld [smem:[%s34]]
  %s36 = scalar_lea.smem %s0, 18
  %s37 = sld [smem:[%s36]]
  %s38 = scalar_lea.smem %s0, 19
  %s39 = sld [smem:[%s38]]
  %s40 = scalar_lea.smem %s0, 20
  %s41 = sld [smem:[%s40]]
  %s42 = scalar_lea.smem %s0, 21
  %s43 = sld [smem:[%s42]]
  %s44 = scalar_lea.smem %s0, 22
  %s45 = sld [smem:[%s44]]
  %s46 = scalar_lea.smem %s0, 23
  %s47 = sld [smem:[%s46]]
  %s48 = scalar_lea.smem %s0, 24
  %s49 = sld [smem:[%s48]]
  %s50 = scalar_lea.smem %s0, 25
  %s51 = sld [smem:[%s50]]
  %s52 = scalar_lea.smem %s0, 26
  %s53 = sld [smem:[%s52]]
  %s54 = scalar_lea.smem %s0, 27
  %s55 = sld [smem:[%s54]]
  %s56 = scalar_lea.smem %s0, 28
  %s57 = sld [smem:[%s56]]
  %s58 = scalar_lea.smem %s0, 29
  %s59 = sld [smem:[%s58]]
  %s60 = scalar_lea.smem %s0, 30
  %s61 = sld [smem:[%s60]]
  %s62 = scalar_lea.smem %s0, 31
  %s63 = sld [smem:[%s62]]
  %s64 = scalar_lea.smem %s0, 32
  %s65 = sld [smem:[%s64]]
  %s66 = scalar_lea.smem %s0, 33
  %s67 = sld [smem:[%s66]]
  %s68 = scalar_lea.smem %s0, 34
  %s69 = sld [smem:[%s68]]
  %s70 = scalar_lea.smem %s0, 35
  %s71 = sld [smem:[%s70]]
  %s72 = scalar_lea.smem %s0, 36
  %s73 = sld [smem:[%s72]]
  %s74 = scalar_lea.smem %s0, 37
  %s75 = sld [smem:[%s74]]
  %s76 = scalar_lea.smem %s0, 38
  %s77 = sld [smem:[%s76]]
  %s78 = scalar_lea.smem %s0, 39
  %s79 = sld [smem:[%s78]]
  %s80 = scalar_lea.smem %s0, 40
  %s81 = sld [smem:[%s80]]
  %s82 = scalar_lea.smem %s0, 41
  %s83 = sld [smem:[%s82]]
  %s84 = scalar_lea.smem %s0, 42
  %s85 = sld [smem:[%s84]]
  %s86 = scalar_lea.smem %s0, 43
  %s87 = sld [smem:[%s86]]
  %s88 = scalar_lea.smem %s0, 44
  %s89 = sld [smem:[%s88]]
  %s90 = sld [smem:[#allocation0]]
  $region346: #{forward.1} parent=0
    _
  %s92 = ssub.s32 1, %s90
  %s93 = scalar_select 0, %s92, %s90
  $region1: #{forward.1} parent=0
    #allocation6 [shape = 'u8[4096]{0}', space=vmem, size = 0x1000, scoped, tag = 'input window, operand 2, single buffered']
    #allocation7 [shape = 's32[1]{0}', space=sflag, size = 0x4, scoped, tag = 'scoped memory for forward.1']
    #allocation8 [shape = 's32[1]{0}', space=sflag, size = 0x4, scoped, tag = 'scoped memory for forward.1']
    #allocation9 [shape = 'u8[512]{0}', space=vmem, size = 0x400, scoped, tag = 'input window, operand 3, single buffered']
    #allocation10 [shape = 's32[1]{0}', space=sflag, size = 0x4, scoped, tag = 'scoped memory for forward.1']
    #allocation11 [shape = 'u8[512]{0}', space=vmem, size = 0x400, scoped, tag = 'input window, operand 4, single buffered']
    #allocation12 [shape = 'u8[98304]{0}', space=vmem, size = 0x18000, scoped, tag = 'input window, operand 5, single buffered']
    #allocation13 [shape = 's32[1]{0}', space=sflag, size = 0x4, scoped, tag = 'scoped memory for forward.1']
    #allocation14 [shape = 'u8[512]{0}', space=vmem, size = 0x400, scoped, tag = 'input window, operand 6, single buffered']
    #allocation15 [shape = 'u8[512]{0}', space=vmem, size = 0x400, scoped, tag = 'input window, operand 7, single buffered']
    #allocation16 [shape = 's32[1]{0}', space=sflag, size = 0x4, scoped, tag = 'scoped memory for forward.1']
    #allocation17 [shape = 'u8[98304]{0}', space=vmem, size = 0x18000, scoped, tag = 'input window, operand 8, single buffered']
    #allocation18 [shape = 'u8[512]{0}', space=vmem, size = 0x400, scoped, tag = 'input window, operand 9, single buffered']
    #allocation19 [shape = 's32[1]{0}', space=sflag, size = 0x4, scoped, tag = 'scoped memory for forward.1']
    #allocation20 [shape = 'u8[512]{0}', space=vmem, size = 0x400, scoped, tag = 'input window, operand 10, single buffered']
    #allocation21 [shape = 'u8[4096]{0}', space=vmem, size = 0x1000, scoped, tag = 'input window, operand 11, single buffered']
    #allocation22 [shape = 's32[1]{0}', space=sflag, size = 0x4, scoped, tag = 'scoped memory for forward.1']
    #allocation23 [shape = 'u8[4096]{0}', space=vmem, size = 0x1000, scoped, tag = 'input window, operand 12, single buffered']
    #allocation24 [shape = 'u8[196608]{0}', space=vmem, size = 0x30000, scoped, tag = 'input window, operand 13, single buffered']
    #allocation25 [shape = 's32[1]{0}', space=sflag, size = 0x4, scoped, tag = 'scoped memory for forward.1']
    #allocation26 [shape = 'u8[512]{0}', space=vmem, size = 0x400, scoped, tag = 'input window, operand 14, single buffered']
    #allocation27 [shape = 'u8[512]{0}', space=vmem, size = 0x400, scoped, tag = 'input window, operand 15, single buffered']
    #allocation28 [shape = 's32[1]{0}', space=sflag, size = 0x4, scoped, tag = 'scoped memory for forward.1']
    #allocation29 [shape = 'u8[512]{0}', space=vmem, size = 0x400, scoped, tag = 'input window, operand 16, single buffered']
    #allocation30 [shape = 'u8[512]{0}', space=vmem, size = 0x400, scoped, tag = 'input window, operand 17, single buffered']
    #allocation31 [shape = 's32[1]{0}', space=sflag, size = 0x4, scoped, tag = 'scoped memory for forward.1']
    #allocation32 [shape = 'u8[98304]{0}', space=vmem, size = 0x18000, scoped, tag = 'input window, operand 18, single buffered']
    #allocation33 [shape = 'u8[512]{0}', space=vmem, size = 0x400, scoped, tag = 'input window, operand 19, single buffered']
    #allocation34 [shape = 's32[1]{0}', space=sflag, size = 0x4, scoped, tag = 'scoped memory for forward.1']
    #allocation35 [shape = 'u8[512]{0}', space=vmem, size = 0x400, scoped, tag = 'input window, operand 20, single buffered']
    #allocation36 [shape = 'u8[2048]{0}', space=vmem, size = 0x800, scoped, tag = 'input window, operand 21, single buffered']
    #allocation37 [shape = 's32[1]{0}', space=sflag, size = 0x4, scoped, tag = 'scoped memory for forward.1']
    #allocation38 [shape = 'u8[2048]{0}', space=vmem, size = 0x800, scoped, tag = 'input window, operand 22, single buffered']
    #allocation39 [shape = 'u8[393216]{0}', space=vmem, size = 0x60000, scoped, tag = 'input window, operand 23, single buffered']
    #allocation40 [shape = 's32[1]{0}', space=sflag, size = 0x4, scoped, tag = 'scoped memory for forward.1']
    #allocation41 [shape = 'u8[1024]{0}', space=vmem, size = 0x400, scoped, tag = 'input window, operand 24, single buffered']
    #allocation42 [shape = 'u8[1024]{0}', space=vmem, size = 0x400, scoped, tag = 'input window, operand 25, single buffered']
    #allocation43 [shape = 's32[1]{0}', space=sflag, size = 0x4, scoped, tag = 'scoped memory for forward.1']
    #allocation44 [shape = 'u8[1024]{0}', space=vmem, size = 0x400, scoped, tag = 'input window, operand 26, single buffered']
    #allocation45 [shape = 'u8[1024]{0}', space=vmem, size = 0x400, scoped, tag = 'input window, operand 27, single buffered']
    #allocation46 [shape = 's32[1]{0}', space=sflag, size = 0x4, scoped, tag = 'scoped memory for forward.1']
    #allocation47 [shape = 'u8[393216]{0}', space=vmem, size = 0x60000, scoped, tag = 'input window, operand 28, single buffered']
    #allocation48 [shape = 'u8[1024]{0}', space=vmem, size = 0x400, scoped, tag = 'input window, operand 29, single buffered']
    #allocation49 [shape = 's32[1]{0}', space=sflag, size = 0x4, scoped, tag = 'scoped memory for forward.1']
    #allocation50 [shape = 'u8[1024]{0}', space=vmem, size = 0x400, scoped, tag = 'input window, operand 30, single buffered']
    #allocation51 [shape = 'u8[1024]{0}', space=vmem, size = 0x400, scoped, tag = 'input window, operand 31, single buffered']
    #allocation52 [shape = 's32[1]{0}', space=sflag, size = 0x4, scoped, tag = 'scoped memory for forward.1']
    #allocation53 [shape = 'u8[1024]{0}', space=vmem, size = 0x400, scoped, tag = 'input window, operand 32, single buffered']
    #allocation54 [shape = 'u8[2048]{0}', space=vmem, size = 0x800, scoped, tag = 'input window, operand 34, single buffered']
    #allocation55 [shape = 's32[1]{0}', space=sflag, size = 0x4, scoped, tag = 'scoped memory for forward.1']
    #allocation56 [shape = 'u8[2048]{0}', space=vmem, size = 0x800, scoped, tag = 'input window, operand 35, single buffered']
    #allocation57 [shape = 'u8[2048]{0}', space=vmem, size = 0x800, scoped, tag = 'input window, operand 36, single buffered']
    #allocation58 [shape = 's32[1]{0}', space=sflag, size = 0x4, scoped, tag = 'scoped memory for forward.1']
    #allocation59 [shape = 'u8[2048]{0}', space=vmem, size = 0x800, scoped, tag = 'input window, operand 37, single buffered']
    #allocation60 [shape = 'u8[2048]{0}', space=vmem, size = 0x800, scoped, tag = 'input window, operand 39, single buffered']
    #allocation61 [shape = 's32[1]{0}', space=sflag, size = 0x4, scoped, tag = 'scoped memory for forward.1']
    #allocation62 [shape = 'u8[2048]{0}', space=vmem, size = 0x800, scoped, tag = 'input window, operand 40, single buffered']
    #allocation63 [shape = 'u8[1024]{0}', space=vmem, size = 0x400, scoped, tag = 'input window, operand 41, single buffered']
    #allocation64 [shape = 's32[1]{0}', space=sflag, size = 0x4, scoped, tag = 'scoped memory for forward.1']
    #allocation65 [shape = 'u8[262144]{0}', space=vmem, size = 0x40000, scoped, tag = 'input window, operand 42, single buffered']
    #allocation66 [shape = 'u8[512]{0}', space=vmem, size = 0x400, scoped, tag = 'input window, operand 43, single buffered']
    #allocation67 [shape = 's32[1]{0}', space=sflag, size = 0x4, scoped, tag = 'scoped memory for forward.1']
    #allocation68 [shape = 'u8[1024]{0}', space=vmem, size = 0x400, scoped, tag = 'output window, operand 0, single buffered']
    %94 = vsyncpa [#allocation7], 0
    %95 = vsyncpa [#allocation10], 0
    %96 = vsyncpa [#allocation13], 0
    %97 = vsyncpa [#allocation16], 0
    %98 = vsyncpa [#allocation19], 0
    %99 = vsyncpa [#allocation22], 0
    %100 = vsyncpa [#allocation25], 0
    %101 = vsyncpa [#allocation28], 0
    %102 = vsyncpa [#allocation31], 0
    %103 = vsyncpa [#allocation34], 0
    %104 = vsyncpa [#allocation37], 0
    %105 = vsyncpa [#allocation40], 0
    %106 = vsyncpa [#allocation43], 0
    %107 = vsyncpa [#allocation46], 0
    %108 = vsyncpa [#allocation49], 0
    %109 = vsyncpa [#allocation52], 0
    %110 = vsyncpa [#allocation55], 0
    %111 = vsyncpa [#allocation58], 0
    %112 = vsyncpa [#allocation61], 0
    %113 = vsyncpa [#allocation64], 0
    %114 = vsyncpa [#allocation67], 0
    %115 = vsyncpa [#allocation8], 0
    // Predicated region
    $region2: #{forward.1} parent=1 // pred_check
      _
    $region3: #{forward.1} parent=1 // pred_check_branch
      %117 = sbr.rel (0) target = $region5
    $region4: #{forward.1} parent=1 // pred_region
      _
    $region5: #{forward.1} parent=1 // pred_fallthru
      _
    // Predicated region
    $region6: #{forward.1} parent=1 // pred_check
      _
    $region7: #{forward.1} parent=1 // pred_check_branch
      %119 = sbr.rel (0) target = $region9
    $region8: #{forward.1} parent=1 // pred_region
      _
    $region9: #{forward.1} parent=1 // pred_fallthru
      _
    // Predicated region
    $region10: #{forward.1} parent=1 // pred_check
      _
    $region11: #{forward.1} parent=1 // pred_check_branch
      %121 = sbr.rel (0) target = $region13
    $region12: #{forward.1} parent=1 // pred_region
      %s123 = ssub.s32 128, 128
      %124 = vsyncadd [#allocation7], %s123
      %s126 = sshll.u32 [#allocation6], 4
      %s127 = int_to_ptr.vmem [resolvable:$true] %s126
      %129 = dma.hbm_to_vmem [thread:$0]  %s5, 128, %s127, [#allocation7]
    $region13: #{forward.1} parent=1 // pred_fallthru
      _
    // Predicated region
    $region14: #{forward.1} parent=1 // pred_check
      _
    $region15: #{forward.1} parent=1 // pred_check_branch
      %131 = sbr.rel (0) target = $region17
    $region16: #{forward.1} parent=1 // pred_region
      %s133 = ssub.s32 16, 16
      %134 = vsyncadd [#allocation10], %s133
      %s136 = sshll.u32 [#allocation9], 4
      %s137 = int_to_ptr.vmem [resolvable:$true] %s136
      %139 = dma.hbm_to_vmem [thread:$0]  %s7, 16, %s137, [#allocation10]
    $region17: #{forward.1} parent=1 // pred_fallthru
      _
    // Predicated region
    $region18: #{forward.1} parent=1 // pred_check
      _
    $region19: #{forward.1} parent=1 // pred_check_branch
      %141 = sbr.rel (0) target = $region21
    $region20: #{forward.1} parent=1 // pred_region
      %s143 = ssub.s32 16, 16
      %144 = vsyncadd [#allocation10], %s143
      %s146 = sshll.u32 [#allocation11], 4
      %s147 = int_to_ptr.vmem [resolvable:$true] %s146
      %149 = dma.hbm_to_vmem [thread:$0]  %s9, 16, %s147, [#allocation10]
    $region21: #{forward.1} parent=1 // pred_fallthru
      _
    // Predicated region
    $region22: #{forward.1} parent=1 // pred_check
      _
    $region23: #{forward.1} parent=1 // pred_check_branch
      %151 = sbr.rel (0) target = $region25
    $region24: #{forward.1} parent=1 // pred_region
      %s153 = ssub.s32 3072, 3072
      %154 = vsyncadd [#allocation13], %s153
      %s155 = sshll.u32 [#allocation12], 4
      %s156 = int_to_ptr.vmem [resolvable:$true] %s155
      %161 = dma.hbm_to_vmem [thread:$0]  %s11, 3072, %s156, [#allocation13], 64, 64, 4
    $region25: #{forward.1} parent=1 // pred_fallthru
      _
    // Predicated region
    $region26: #{forward.1} parent=1 // pred_check
      _
    $region27: #{forward.1} parent=1 // pred_check_branch
      %163 = sbr.rel (0) target = $region29
    $region28: #{forward.1} parent=1 // pred_region
      %s165 = ssub.s32 16, 16
      %166 = vsyncadd [#allocation13], %s165
      %s168 = sshll.u32 [#allocation14], 4
      %s169 = int_to_ptr.vmem [resolvable:$true] %s168
      %171 = dma.hbm_to_vmem [thread:$0]  %s13, 16, %s169, [#allocation13]
    $region29: #{forward.1} parent=1 // pred_fallthru
      _
    // Predicated region
    $region30: #{forward.1} parent=1 // pred_check
      _
    $region31: #{forward.1} parent=1 // pred_check_branch
      %173 = sbr.rel (0) target = $region33
    $region32: #{forward.1} parent=1 // pred_region
      %s175 = ssub.s32 16, 16
      %176 = vsyncadd [#allocation16], %s175
      %s178 = sshll.u32 [#allocation15], 4
      %s179 = int_to_ptr.vmem [resolvable:$true] %s178
      %181 = dma.hbm_to_vmem [thread:$0]  %s15, 16, %s179, [#allocation16]
    $region33: #{forward.1} parent=1 // pred_fallthru
      _
    // Predicated region
    $region34: #{forward.1} parent=1 // pred_check
      _
    $region35: #{forward.1} parent=1 // pred_check_branch
      %183 = sbr.rel (0) target = $region37
    $region36: #{forward.1} parent=1 // pred_region
      %s185 = ssub.s32 3072, 3072
      %186 = vsyncadd [#allocation16], %s185
      %s187 = sshll.u32 [#allocation17], 4
      %s188 = int_to_ptr.vmem [resolvable:$true] %s187
      %193 = dma.hbm_to_vmem [thread:$0]  %s17, 3072, %s188, [#allocation16], 64, 64, 4
    $region37: #{forward.1} parent=1 // pred_fallthru
      _
    // Predicated region
    $region38: #{forward.1} parent=1 // pred_check
      _
    $region39: #{forward.1} parent=1 // pred_check_branch
      %195 = sbr.rel (0) target = $region41
    $region40: #{forward.1} parent=1 // pred_region
      %s197 = ssub.s32 16, 16
      %198 = vsyncadd [#allocation19], %s197
      %s200 = sshll.u32 [#allocation18], 4
      %s201 = int_to_ptr.vmem [resolvable:$true] %s200
      %203 = dma.hbm_to_vmem [thread:$0]  %s19, 16, %s201, [#allocation19]
    $region41: #{forward.1} parent=1 // pred_fallthru
      _
    // Predicated region
    $region42: #{forward.1} parent=1 // pred_check
      _
    $region43: #{forward.1} parent=1 // pred_check_branch
      %205 = sbr.rel (0) target = $region45
    $region44: #{forward.1} parent=1 // pred_region
      %s207 = ssub.s32 16, 16
      %208 = vsyncadd [#allocation19], %s207
      %s210 = sshll.u32 [#allocation20], 4
      %s211 = int_to_ptr.vmem [resolvable:$true] %s210
      %213 = dma.hbm_to_vmem [thread:$0]  %s21, 16, %s211, [#allocation19]
    $region45: #{forward.1} parent=1 // pred_fallthru
      _
    // Predicated region
    $region46: #{forward.1} parent=1 // pred_check
      _
    $region47: #{forward.1} parent=1 // pred_check_branch
      %215 = sbr.rel (0) target = $region49
    $region48: #{forward.1} parent=1 // pred_region
      %s217 = ssub.s32 128, 128
      %218 = vsyncadd [#allocation22], %s217
      %s219 = sshll.u32 [#allocation21], 4
      %s220 = int_to_ptr.vmem [resolvable:$true] %s219
      %225 = dma.hbm_to_vmem [thread:$0]  %s23, 128, %s220, [#allocation22], 64, 64, 4
    $region49: #{forward.1} parent=1 // pred_fallthru
      _
    // Predicated region
    $region50: #{forward.1} parent=1 // pred_check
      _
    $region51: #{forward.1} parent=1 // pred_check_branch
      %227 = sbr.rel (0) target = $region53
    $region52: #{forward.1} parent=1 // pred_region
      %s229 = ssub.s32 128, 128
      %230 = vsyncadd [#allocation22], %s229
      %s231 = sshll.u32 [#allocation23], 4
      %s232 = int_to_ptr.vmem [resolvable:$true] %s231
      %237 = dma.hbm_to_vmem [thread:$0]  %s25, 128, %s232, [#allocation22], 64, 64, 4
    $region53: #{forward.1} parent=1 // pred_fallthru
      _
    // Predicated region
    $region54: #{forward.1} parent=1 // pred_check
      _
    $region55: #{forward.1} parent=1 // pred_check_branch
      %239 = sbr.rel (0) target = $region57
    $region56: #{forward.1} parent=1 // pred_region
      %s241 = ssub.s32 6144, 6144
      %242 = vsyncadd [#allocation25], %s241
      %s243 = sshll.u32 [#allocation24], 4
      %s244 = int_to_ptr.vmem [resolvable:$true] %s243
      %249 = dma.hbm_to_vmem [thread:$0]  %s27, 6144, %s244, [#allocation25], 128, 128, 8
    $region57: #{forward.1} parent=1 // pred_fallthru
      _
    // Predicated region
    $region58: #{forward.1} parent=1 // pred_check
      _
    $region59: #{forward.1} parent=1 // pred_check_branch
      %251 = sbr.rel (0) target = $region61
    $region60: #{forward.1} parent=1 // pred_region
      %s253 = ssub.s32 16, 16
      %254 = vsyncadd [#allocation25], %s253
      %s256 = sshll.u32 [#allocation26], 4
      %s257 = int_to_ptr.vmem [resolvable:$true] %s256
      %259 = dma.hbm_to_vmem [thread:$0]  %s29, 16, %s257, [#allocation25]
    $region61: #{forward.1} parent=1 // pred_fallthru
      _
    // Predicated region
    $region62: #{forward.1} parent=1 // pred_check
      _
    $region63: #{forward.1} parent=1 // pred_check_branch
      %261 = sbr.rel (0) target = $region65
    $region64: #{forward.1} parent=1 // pred_region
      %s263 = ssub.s32 16, 16
      %264 = vsyncadd [#allocation28], %s263
      %s266 = sshll.u32 [#allocation27], 4
      %s267 = int_to_ptr.vmem [resolvable:$true] %s266
      %269 = dma.hbm_to_vmem [thread:$0]  %s31, 16, %s267, [#allocation28]
    $region65: #{forward.1} parent=1 // pred_fallthru
      _
    // Predicated region
    $region66: #{forward.1} parent=1 // pred_check
      _
    $region67: #{forward.1} parent=1 // pred_check_branch
      %271 = sbr.rel (0) target = $region69
    $region68: #{forward.1} parent=1 // pred_region
      %s273 = ssub.s32 16, 16
      %274 = vsyncadd [#allocation28], %s273
      %s276 = sshll.u32 [#allocation29], 4
      %s277 = int_to_ptr.vmem [resolvable:$true] %s276
      %279 = dma.hbm_to_vmem [thread:$0]  %s33, 16, %s277, [#allocation28]
    $region69: #{forward.1} parent=1 // pred_fallthru
      _
    // Predicated region
    $region70: #{forward.1} parent=1 // pred_check
      _
    $region71: #{forward.1} parent=1 // pred_check_branch
      %281 = sbr.rel (0) target = $region73
    $region72: #{forward.1} parent=1 // pred_region
      %s283 = ssub.s32 16, 16
      %284 = vsyncadd [#allocation31], %s283
      %s286 = sshll.u32 [#allocation30], 4
      %s287 = int_to_ptr.vmem [resolvable:$true] %s286
      %289 = dma.hbm_to_vmem [thread:$0]  %s35, 16, %s287, [#allocation31]
    $region73: #{forward.1} parent=1 // pred_fallthru
      _
    // Predicated region
    $region74: #{forward.1} parent=1 // pred_check
      _
    $region75: #{forward.1} parent=1 // pred_check_branch
      %291 = sbr.rel (0) target = $region77
    $region76: #{forward.1} parent=1 // pred_region
      %s293 = ssub.s32 3072, 3072
      %294 = vsyncadd [#allocation31], %s293
      %s295 = sshll.u32 [#allocation32], 4
      %s296 = int_to_ptr.vmem [resolvable:$true] %s295
      %301 = dma.hbm_to_vmem [thread:$0]  %s37, 3072, %s296, [#allocation31], 64, 64, 4
    $region77: #{forward.1} parent=1 // pred_fallthru
      _
    // Predicated region
    $region78: #{forward.1} parent=1 // pred_check
      _
    $region79: #{forward.1} parent=1 // pred_check_branch
      %303 = sbr.rel (0) target = $region81
    $region80: #{forward.1} parent=1 // pred_region
      %s305 = ssub.s32 16, 16
      %306 = vsyncadd [#allocation34], %s305
      %s308 = sshll.u32 [#allocation33], 4
      %s309 = int_to_ptr.vmem [resolvable:$true] %s308
      %311 = dma.hbm_to_vmem [thread:$0]  %s39, 16, %s309, [#allocation34]
    $region81: #{forward.1} parent=1 // pred_fallthru
      _
    // Predicated region
    $region82: #{forward.1} parent=1 // pred_check
      _
    $region83: #{forward.1} parent=1 // pred_check_branch
      %313 = sbr.rel (0) target = $region85
    $region84: #{forward.1} parent=1 // pred_region
      %s315 = ssub.s32 16, 16
      %316 = vsyncadd [#allocation34], %s315
      %s318 = sshll.u32 [#allocation35], 4
      %s319 = int_to_ptr.vmem [resolvable:$true] %s318
      %321 = dma.hbm_to_vmem [thread:$0]  %s41, 16, %s319, [#allocation34]
    $region85: #{forward.1} parent=1 // pred_fallthru
      _
    // Predicated region
    $region86: #{forward.1} parent=1 // pred_check
      _
    $region87: #{forward.1} parent=1 // pred_check_branch
      %323 = sbr.rel (0) target = $region89
    $region88: #{forward.1} parent=1 // pred_region
      %s325 = ssub.s32 64, 64
      %326 = vsyncadd [#allocation37], %s325
      %s328 = sshll.u32 [#allocation36], 4
      %s329 = int_to_ptr.vmem [resolvable:$true] %s328
      %331 = dma.hbm_to_vmem [thread:$0]  %s43, 64, %s329, [#allocation37]
    $region89: #{forward.1} parent=1 // pred_fallthru
      _
    // Predicated region
    $region90: #{forward.1} parent=1 // pred_check
      _
    $region91: #{forward.1} parent=1 // pred_check_branch
      %333 = sbr.rel (0) target = $region93
    $region92: #{forward.1} parent=1 // pred_region
      %s335 = ssub.s32 64, 64
      %336 = vsyncadd [#allocation37], %s335
      %s338 = sshll.u32 [#allocation38], 4
      %s339 = int_to_ptr.vmem [resolvable:$true] %s338
      %341 = dma.hbm_to_vmem [thread:$0]  %s45, 64, %s339, [#allocation37]
    $region93: #{forward.1} parent=1 // pred_fallthru
      _
    // Predicated region
    $region94: #{forward.1} parent=1 // pred_check
      _
    $region95: #{forward.1} parent=1 // pred_check_branch
      %343 = sbr.rel (0) target = $region97
    $region96: #{forward.1} parent=1 // pred_region
      %s345 = ssub.s32 12288, 12288
      %346 = vsyncadd [#allocation40], %s345
      %s347 = sshll.u32 [#allocation39], 4
      %s348 = int_to_ptr.vmem [resolvable:$true] %s347
      %353 = dma.hbm_to_vmem [thread:$0]  %s47, 12288, %s348, [#allocation40], 256, 256, 16
    $region97: #{forward.1} parent=1 // pred_fallthru
      _
    // Predicated region
    $region98: #{forward.1} parent=1 // pred_check
      _
    $region99: #{forward.1} parent=1 // pred_check_branch
      %355 = sbr.rel (0) target = $region101
    $region100: #{forward.1} parent=1 // pred_region
      %s357 = ssub.s32 32, 32
      %358 = vsyncadd [#allocation40], %s357
      %s360 = sshll.u32 [#allocation41], 4
      %s361 = int_to_ptr.vmem [resolvable:$true] %s360
      %363 = dma.hbm_to_vmem [thread:$0]  %s49, 32, %s361, [#allocation40]
    $region101: #{forward.1} parent=1 // pred_fallthru
      _
    // Predicated region
    $region102: #{forward.1} parent=1 // pred_check
      _
    $region103: #{forward.1} parent=1 // pred_check_branch
      %365 = sbr.rel (0) target = $region105
    $region104: #{forward.1} parent=1 // pred_region
      %s367 = ssub.s32 32, 32
      %368 = vsyncadd [#allocation43], %s367
      %s370 = sshll.u32 [#allocation42], 4
      %s371 = int_to_ptr.vmem [resolvable:$true] %s370
      %373 = dma.hbm_to_vmem [thread:$0]  %s51, 32, %s371, [#allocation43]
    $region105: #{forward.1} parent=1 // pred_fallthru
      _
    // Predicated region
    $region106: #{forward.1} parent=1 // pred_check
      _
    $region107: #{forward.1} parent=1 // pred_check_branch
      %375 = sbr.rel (0) target = $region109
    $region108: #{forward.1} parent=1 // pred_region
      %s377 = ssub.s32 32, 32
      %378 = vsyncadd [#allocation43], %s377
      %s380 = sshll.u32 [#allocation44], 4
      %s381 = int_to_ptr.vmem [resolvable:$true] %s380
      %383 = dma.hbm_to_vmem [thread:$0]  %s53, 32, %s381, [#allocation43]
    $region109: #{forward.1} parent=1 // pred_fallthru
      _
    // Predicated region
    $region110: #{forward.1} parent=1 // pred_check
      _
    $region111: #{forward.1} parent=1 // pred_check_branch
      %385 = sbr.rel (0) target = $region113
    $region112: #{forward.1} parent=1 // pred_region
      %s387 = ssub.s32 32, 32
      %388 = vsyncadd [#allocation46], %s387
      %s390 = sshll.u32 [#allocation45], 4
      %s391 = int_to_ptr.vmem [resolvable:$true] %s390
      %393 = dma.hbm_to_vmem [thread:$0]  %s55, 32, %s391, [#allocation46]
    $region113: #{forward.1} parent=1 // pred_fallthru
      _
    // Predicated region
    $region114: #{forward.1} parent=1 // pred_check
      _
    $region115: #{forward.1} parent=1 // pred_check_branch
      %395 = sbr.rel (0) target = $region117
    $region116: #{forward.1} parent=1 // pred_region
      %s397 = ssub.s32 12288, 12288
      %398 = vsyncadd [#allocation46], %s397
      %s399 = sshll.u32 [#allocation47], 4
      %s400 = int_to_ptr.vmem [resolvable:$true] %s399
      %405 = dma.hbm_to_vmem [thread:$0]  %s57, 12288, %s400, [#allocation46], 128, 128, 8
    $region117: #{forward.1} parent=1 // pred_fallthru
      _
    // Predicated region
    $region118: #{forward.1} parent=1 // pred_check
      _
    $region119: #{forward.1} parent=1 // pred_check_branch
      %407 = sbr.rel (0) target = $region121
    $region120: #{forward.1} parent=1 // pred_region
      %s409 = ssub.s32 32, 32
      %410 = vsyncadd [#allocation49], %s409
      %s412 = sshll.u32 [#allocation48], 4
      %s413 = int_to_ptr.vmem [resolvable:$true] %s412
      %415 = dma.hbm_to_vmem [thread:$0]  %s59, 32, %s413, [#allocation49]
    $region121: #{forward.1} parent=1 // pred_fallthru
      _
    // Predicated region
    $region122: #{forward.1} parent=1 // pred_check
      _
    $region123: #{forward.1} parent=1 // pred_check_branch
      %417 = sbr.rel (0) target = $region125
    $region124: #{forward.1} parent=1 // pred_region
      %s419 = ssub.s32 32, 32
      %420 = vsyncadd [#allocation49], %s419
      %s422 = sshll.u32 [#allocation50], 4
      %s423 = int_to_ptr.vmem [resolvable:$true] %s422
      %425 = dma.hbm_to_vmem [thread:$0]  %s61, 32, %s423, [#allocation49]
    $region125: #{forward.1} parent=1 // pred_fallthru
      _
    // Predicated region
    $region126: #{forward.1} parent=1 // pred_check
      _
    $region127: #{forward.1} parent=1 // pred_check_branch
      %427 = sbr.rel (0) target = $region129
    $region128: #{forward.1} parent=1 // pred_region
      %s429 = ssub.s32 32, 32
      %430 = vsyncadd [#allocation52], %s429
      %s432 = sshll.u32 [#allocation51], 4
      %s433 = int_to_ptr.vmem [resolvable:$true] %s432
      %435 = dma.hbm_to_vmem [thread:$0]  %s63, 32, %s433, [#allocation52]
    $region129: #{forward.1} parent=1 // pred_fallthru
      _
    // Predicated region
    $region130: #{forward.1} parent=1 // pred_check
      _
    $region131: #{forward.1} parent=1 // pred_check_branch
      %437 = sbr.rel (0) target = $region133
    $region132: #{forward.1} parent=1 // pred_region
      %s439 = ssub.s32 32, 32
      %440 = vsyncadd [#allocation52], %s439
      %s442 = sshll.u32 [#allocation53], 4
      %s443 = int_to_ptr.vmem [resolvable:$true] %s442
      %445 = dma.hbm_to_vmem [thread:$0]  %s65, 32, %s443, [#allocation52]
    $region133: #{forward.1} parent=1 // pred_fallthru
      _
    // Predicated region
    $region134: #{forward.1} parent=1 // pred_check
      _
    $region135: #{forward.1} parent=1 // pred_check_branch
      %447 = sbr.rel (0) target = $region137
    $region136: #{forward.1} parent=1 // pred_region
      %s449 = ssub.s32 64, 64
      %450 = vsyncadd [#allocation55], %s449
      %s452 = sshll.u32 [#allocation54], 4
      %s453 = int_to_ptr.vmem [resolvable:$true] %s452
      %455 = dma.hbm_to_vmem [thread:$0]  %s69, 64, %s453, [#allocation55]
    $region137: #{forward.1} parent=1 // pred_fallthru
      _
    // Predicated region
    $region138: #{forward.1} parent=1 // pred_check
      _
    $region139: #{forward.1} parent=1 // pred_check_branch
      %457 = sbr.rel (0) target = $region141
    $region140: #{forward.1} parent=1 // pred_region
      %s459 = ssub.s32 64, 64
      %460 = vsyncadd [#allocation55], %s459
      %s462 = sshll.u32 [#allocation56], 4
      %s463 = int_to_ptr.vmem [resolvable:$true] %s462
      %465 = dma.hbm_to_vmem [thread:$0]  %s71, 64, %s463, [#allocation55]
    $region141: #{forward.1} parent=1 // pred_fallthru
      _
    // Predicated region
    $region142: #{forward.1} parent=1 // pred_check
      _
    $region143: #{forward.1} parent=1 // pred_check_branch
      %467 = sbr.rel (0) target = $region145
    $region144: #{forward.1} parent=1 // pred_region
      %s469 = ssub.s32 64, 64
      %470 = vsyncadd [#allocation58], %s469
      %s472 = sshll.u32 [#allocation57], 4
      %s473 = int_to_ptr.vmem [resolvable:$true] %s472
      %475 = dma.hbm_to_vmem [thread:$0]  %s73, 64, %s473, [#allocation58]
    $region145: #{forward.1} parent=1 // pred_fallthru
      _
    // Predicated region
    $region146: #{forward.1} parent=1 // pred_check
      _
    $region147: #{forward.1} parent=1 // pred_check_branch
      %477 = sbr.rel (0) target = $region149
    $region148: #{forward.1} parent=1 // pred_region
      %s479 = ssub.s32 64, 64
      %480 = vsyncadd [#allocation58], %s479
      %s482 = sshll.u32 [#allocation59], 4
      %s483 = int_to_ptr.vmem [resolvable:$true] %s482
      %485 = dma.hbm_to_vmem [thread:$0]  %s75, 64, %s483, [#allocation58]
    $region149: #{forward.1} parent=1 // pred_fallthru
      _
    // Predicated region
    $region150: #{forward.1} parent=1 // pred_check
      _
    $region151: #{forward.1} parent=1 // pred_check_branch
      %487 = sbr.rel (0) target = $region153
    $region152: #{forward.1} parent=1 // pred_region
      %s489 = ssub.s32 64, 64
      %490 = vsyncadd [#allocation61], %s489
      %s492 = sshll.u32 [#allocation60], 4
      %s493 = int_to_ptr.vmem [resolvable:$true] %s492
      %495 = dma.hbm_to_vmem [thread:$0]  %s79, 64, %s493, [#allocation61]
    $region153: #{forward.1} parent=1 // pred_fallthru
      _
    // Predicated region
    $region154: #{forward.1} parent=1 // pred_check
      _
    $region155: #{forward.1} parent=1 // pred_check_branch
      %497 = sbr.rel (0) target = $region157
    $region156: #{forward.1} parent=1 // pred_region
      %s499 = ssub.s32 64, 64
      %500 = vsyncadd [#allocation61], %s499
      %s502 = sshll.u32 [#allocation62], 4
      %s503 = int_to_ptr.vmem [resolvable:$true] %s502
      %505 = dma.hbm_to_vmem [thread:$0]  %s81, 64, %s503, [#allocation61]
    $region157: #{forward.1} parent=1 // pred_fallthru
      _
    // Predicated region
    $region158: #{forward.1} parent=1 // pred_check
      _
    $region159: #{forward.1} parent=1 // pred_check_branch
      %507 = sbr.rel (0) target = $region161
    $region160: #{forward.1} parent=1 // pred_region
      %s509 = ssub.s32 32, 32
      %510 = vsyncadd [#allocation64], %s509
      %s512 = sshll.u32 [#allocation63], 4
      %s513 = int_to_ptr.vmem [resolvable:$true] %s512
      %515 = dma.hbm_to_vmem [thread:$0]  %s83, 32, %s513, [#allocation64]
    $region161: #{forward.1} parent=1 // pred_fallthru
      _
    // Predicated region
    $region162: #{forward.1} parent=1 // pred_check
      _
    $region163: #{forward.1} parent=1 // pred_check_branch
      %517 = sbr.rel (0) target = $region165
    $region164: #{forward.1} parent=1 // pred_region
      %s519 = ssub.s32 8192, 8192
      %520 = vsyncadd [#allocation64], %s519
      %s521 = sshll.u32 [#allocation65], 4
      %s522 = int_to_ptr.vmem [resolvable:$true] %s521
      %527 = dma.hbm_to_vmem [thread:$0]  %s85, 8192, %s522, [#allocation64], 128, 128, 8
    $region165: #{forward.1} parent=1 // pred_fallthru
      _
    // Predicated region
    $region166: #{forward.1} parent=1 // pred_check
      _
    $region167: #{forward.1} parent=1 // pred_check_branch
      %529 = sbr.rel (0) target = $region169
    $region168: #{forward.1} parent=1 // pred_region
      %s531 = ssub.s32 16, 16
      %532 = vsyncadd [#allocation67], %s531
      %s534 = sshll.u32 [#allocation66], 4
      %s535 = int_to_ptr.vmem [resolvable:$true] %s534
      %537 = dma.hbm_to_vmem [thread:$0]  %s87, 16, %s535, [#allocation67]
    $region169: #{forward.1} parent=1 // pred_fallthru
      _
    // Predicated region
    $region170: #{forward.1} parent=1 // pred_check
      _
    $region171: #{forward.1} parent=1 // pred_check_branch
      %539 = sbr.rel (0) target = $region173
    $region172: #{forward.1} parent=1 // pred_region
      %540 = dma.done [#allocation7], 128
    $region173: #{forward.1} parent=1 // pred_fallthru
      _
    // Predicated region
    $region174: #{forward.1} parent=1 // pred_check
      _
    $region175: #{forward.1} parent=1 // pred_check_branch
      %542 = sbr.rel (0) target = $region177
    $region176: #{forward.1} parent=1 // pred_region
      %543 = dma.done [#allocation10], 16
    $region177: #{forward.1} parent=1 // pred_fallthru
      _
    // Predicated region
    $region178: #{forward.1} parent=1 // pred_check
      _
    $region179: #{forward.1} parent=1 // pred_check_branch
      %545 = sbr.rel (0) target = $region181
    $region180: #{forward.1} parent=1 // pred_region
      %546 = dma.done [#allocation10], 16
    $region181: #{forward.1} parent=1 // pred_fallthru
      _
    // Predicated region
    $region182: #{forward.1} parent=1 // pred_check
      _
    $region183: #{forward.1} parent=1 // pred_check_branch
      %548 = sbr.rel (0) target = $region185
    $region184: #{forward.1} parent=1 // pred_region
      %549 = dma.done [#allocation13], 3072
    $region185: #{forward.1} parent=1 // pred_fallthru
      _
    // Predicated region
    $region186: #{forward.1} parent=1 // pred_check
      _
    $region187: #{forward.1} parent=1 // pred_check_branch
      %551 = sbr.rel (0) target = $region189
    $region188: #{forward.1} parent=1 // pred_region
      %552 = dma.done [#allocation13], 16
    $region189: #{forward.1} parent=1 // pred_fallthru
      _
    // Predicated region
    $region190: #{forward.1} parent=1 // pred_check
      _
    $region191: #{forward.1} parent=1 // pred_check_branch
      %554 = sbr.rel (0) target = $region193
    $region192: #{forward.1} parent=1 // pred_region
      %555 = dma.done [#allocation16], 16
    $region193: #{forward.1} parent=1 // pred_fallthru
      _
    // Predicated region
    $region194: #{forward.1} parent=1 // pred_check
      _
    $region195: #{forward.1} parent=1 // pred_check_branch
      %557 = sbr.rel (0) target = $region197
    $region196: #{forward.1} parent=1 // pred_region
      %558 = dma.done [#allocation16], 3072
    $region197: #{forward.1} parent=1 // pred_fallthru
      _
    // Predicated region
    $region198: #{forward.1} parent=1 // pred_check
      _
    $region199: #{forward.1} parent=1 // pred_check_branch
      %560 = sbr.rel (0) target = $region201
    $region200: #{forward.1} parent=1 // pred_region
      %561 = dma.done [#allocation19], 16
    $region201: #{forward.1} parent=1 // pred_fallthru
      _
    // Predicated region
    $region202: #{forward.1} parent=1 // pred_check
      _
    $region203: #{forward.1} parent=1 // pred_check_branch
      %563 = sbr.rel (0) target = $region205
    $region204: #{forward.1} parent=1 // pred_region
      %564 = dma.done [#allocation19], 16
    $region205: #{forward.1} parent=1 // pred_fallthru
      _
    // Predicated region
    $region206: #{forward.1} parent=1 // pred_check
      _
    $region207: #{forward.1} parent=1 // pred_check_branch
      %566 = sbr.rel (0) target = $region209
    $region208: #{forward.1} parent=1 // pred_region
      %567 = dma.done [#allocation22], 128
    $region209: #{forward.1} parent=1 // pred_fallthru
      _
    // Predicated region
    $region210: #{forward.1} parent=1 // pred_check
      _
    $region211: #{forward.1} parent=1 // pred_check_branch
      %569 = sbr.rel (0) target = $region213
    $region212: #{forward.1} parent=1 // pred_region
      %570 = dma.done [#allocation22], 128
    $region213: #{forward.1} parent=1 // pred_fallthru
      _
    // Predicated region
    $region214: #{forward.1} parent=1 // pred_check
      _
    $region215: #{forward.1} parent=1 // pred_check_branch
      %572 = sbr.rel (0) target = $region217
    $region216: #{forward.1} parent=1 // pred_region
      %573 = dma.done [#allocation25], 6144
    $region217: #{forward.1} parent=1 // pred_fallthru
      _
    // Predicated region
    $region218: #{forward.1} parent=1 // pred_check
      _
    $region219: #{forward.1} parent=1 // pred_check_branch
      %575 = sbr.rel (0) target = $region221
    $region220: #{forward.1} parent=1 // pred_region
      %576 = dma.done [#allocation25], 16
    $region221: #{forward.1} parent=1 // pred_fallthru
      _
    // Predicated region
    $region222: #{forward.1} parent=1 // pred_check
      _
    $region223: #{forward.1} parent=1 // pred_check_branch
      %578 = sbr.rel (0) target = $region225
    $region224: #{forward.1} parent=1 // pred_region
      %579 = dma.done [#allocation28], 16
    $region225: #{forward.1} parent=1 // pred_fallthru
      _
    // Predicated region
    $region226: #{forward.1} parent=1 // pred_check
      _
    $region227: #{forward.1} parent=1 // pred_check_branch
      %581 = sbr.rel (0) target = $region229
    $region228: #{forward.1} parent=1 // pred_region
      %582 = dma.done [#allocation28], 16
    $region229: #{forward.1} parent=1 // pred_fallthru
      _
    // Predicated region
    $region230: #{forward.1} parent=1 // pred_check
      _
    $region231: #{forward.1} parent=1 // pred_check_branch
      %584 = sbr.rel (0) target = $region233
    $region232: #{forward.1} parent=1 // pred_region
      %585 = dma.done [#allocation31], 16
    $region233: #{forward.1} parent=1 // pred_fallthru
      _
    // Predicated region
    $region234: #{forward.1} parent=1 // pred_check
      _
    $region235: #{forward.1} parent=1 // pred_check_branch
      %587 = sbr.rel (0) target = $region237
    $region236: #{forward.1} parent=1 // pred_region
      %588 = dma.done [#allocation31], 3072
    $region237: #{forward.1} parent=1 // pred_fallthru
      _
    // Predicated region
    $region238: #{forward.1} parent=1 // pred_check
      _
    $region239: #{forward.1} parent=1 // pred_check_branch
      %590 = sbr.rel (0) target = $region241
    $region240: #{forward.1} parent=1 // pred_region
      %591 = dma.done [#allocation34], 16
    $region241: #{forward.1} parent=1 // pred_fallthru
      _
    // Predicated region
    $region242: #{forward.1} parent=1 // pred_check
      _
    $region243: #{forward.1} parent=1 // pred_check_branch
      %593 = sbr.rel (0) target = $region245
    $region244: #{forward.1} parent=1 // pred_region
      %594 = dma.done [#allocation34], 16
    $region245: #{forward.1} parent=1 // pred_fallthru
      _
    // Predicated region
    $region246: #{forward.1} parent=1 // pred_check
      _
    $region247: #{forward.1} parent=1 // pred_check_branch
      %596 = sbr.rel (0) target = $region249
    $region248: #{forward.1} parent=1 // pred_region
      %597 = dma.done [#allocation37], 64
    $region249: #{forward.1} parent=1 // pred_fallthru
      _
    // Predicated region
    $region250: #{forward.1} parent=1 // pred_check
      _
    $region251: #{forward.1} parent=1 // pred_check_branch
      %599 = sbr.rel (0) target = $region253
    $region252: #{forward.1} parent=1 // pred_region
      %600 = dma.done [#allocation37], 64
    $region253: #{forward.1} parent=1 // pred_fallthru
      _
    // Predicated region
    $region254: #{forward.1} parent=1 // pred_check
      _
    $region255: #{forward.1} parent=1 // pred_check_branch
      %602 = sbr.rel (0) target = $region257
    $region256: #{forward.1} parent=1 // pred_region
      %603 = dma.done [#allocation40], 12288
    $region257: #{forward.1} parent=1 // pred_fallthru
      _
    // Predicated region
    $region258: #{forward.1} parent=1 // pred_check
      _
    $region259: #{forward.1} parent=1 // pred_check_branch
      %605 = sbr.rel (0) target = $region261
    $region260: #{forward.1} parent=1 // pred_region
      %606 = dma.done [#allocation40], 32
    $region261: #{forward.1} parent=1 // pred_fallthru
      _
    // Predicated region
    $region262: #{forward.1} parent=1 // pred_check
      _
    $region263: #{forward.1} parent=1 // pred_check_branch
      %608 = sbr.rel (0) target = $region265
    $region264: #{forward.1} parent=1 // pred_region
      %609 = dma.done [#allocation43], 32
    $region265: #{forward.1} parent=1 // pred_fallthru
      _
    // Predicated region
    $region266: #{forward.1} parent=1 // pred_check
      _
    $region267: #{forward.1} parent=1 // pred_check_branch
      %611 = sbr.rel (0) target = $region269
    $region268: #{forward.1} parent=1 // pred_region
      %612 = dma.done [#allocation43], 32
    $region269: #{forward.1} parent=1 // pred_fallthru
      _
    // Predicated region
    $region270: #{forward.1} parent=1 // pred_check
      _
    $region271: #{forward.1} parent=1 // pred_check_branch
      %614 = sbr.rel (0) target = $region273
    $region272: #{forward.1} parent=1 // pred_region
      %615 = dma.done [#allocation46], 32
    $region273: #{forward.1} parent=1 // pred_fallthru
      _
    // Predicated region
    $region274: #{forward.1} parent=1 // pred_check
      _
    $region275: #{forward.1} parent=1 // pred_check_branch
      %617 = sbr.rel (0) target = $region277
    $region276: #{forward.1} parent=1 // pred_region
      %618 = dma.done [#allocation46], 12288
    $region277: #{forward.1} parent=1 // pred_fallthru
      _
    // Predicated region
    $region278: #{forward.1} parent=1 // pred_check
      _
    $region279: #{forward.1} parent=1 // pred_check_branch
      %620 = sbr.rel (0) target = $region281
    $region280: #{forward.1} parent=1 // pred_region
      %621 = dma.done [#allocation49], 32
    $region281: #{forward.1} parent=1 // pred_fallthru
      _
    // Predicated region
    $region282: #{forward.1} parent=1 // pred_check
      _
    $region283: #{forward.1} parent=1 // pred_check_branch
      %623 = sbr.rel (0) target = $region285
    $region284: #{forward.1} parent=1 // pred_region
      %624 = dma.done [#allocation49], 32
    $region285: #{forward.1} parent=1 // pred_fallthru
      _
    // Predicated region
    $region286: #{forward.1} parent=1 // pred_check
      _
    $region287: #{forward.1} parent=1 // pred_check_branch
      %626 = sbr.rel (0) target = $region289
    $region288: #{forward.1} parent=1 // pred_region
      %627 = dma.done [#allocation52], 32
    $region289: #{forward.1} parent=1 // pred_fallthru
      _
    // Predicated region
    $region290: #{forward.1} parent=1 // pred_check
      _
    $region291: #{forward.1} parent=1 // pred_check_branch
      %629 = sbr.rel (0) target = $region293
    $region292: #{forward.1} parent=1 // pred_region
      %630 = dma.done [#allocation52], 32
    $region293: #{forward.1} parent=1 // pred_fallthru
      _
    // Predicated region
    $region294: #{forward.1} parent=1 // pred_check
      _
    $region295: #{forward.1} parent=1 // pred_check_branch
      %632 = sbr.rel (0) target = $region297
    $region296: #{forward.1} parent=1 // pred_region
      %633 = dma.done [#allocation55], 64
    $region297: #{forward.1} parent=1 // pred_fallthru
      _
    // Predicated region
    $region298: #{forward.1} parent=1 // pred_check
      _
    $region299: #{forward.1} parent=1 // pred_check_branch
      %635 = sbr.rel (0) target = $region301
    $region300: #{forward.1} parent=1 // pred_region
      %636 = dma.done [#allocation55], 64
    $region301: #{forward.1} parent=1 // pred_fallthru
      _
    // Predicated region
    $region302: #{forward.1} parent=1 // pred_check
      _
    $region303: #{forward.1} parent=1 // pred_check_branch
      %638 = sbr.rel (0) target = $region305
    $region304: #{forward.1} parent=1 // pred_region
      %639 = dma.done [#allocation58], 64
    $region305: #{forward.1} parent=1 // pred_fallthru
      _
    // Predicated region
    $region306: #{forward.1} parent=1 // pred_check
      _
    $region307: #{forward.1} parent=1 // pred_check_branch
      %641 = sbr.rel (0) target = $region309
    $region308: #{forward.1} parent=1 // pred_region
      %642 = dma.done [#allocation58], 64
    $region309: #{forward.1} parent=1 // pred_fallthru
      _
    // Predicated region
    $region310: #{forward.1} parent=1 // pred_check
      _
    $region311: #{forward.1} parent=1 // pred_check_branch
      %644 = sbr.rel (0) target = $region313
    $region312: #{forward.1} parent=1 // pred_region
      %645 = dma.done [#allocation61], 64
    $region313: #{forward.1} parent=1 // pred_fallthru
      _
    // Predicated region
    $region314: #{forward.1} parent=1 // pred_check
      _
    $region315: #{forward.1} parent=1 // pred_check_branch
      %647 = sbr.rel (0) target = $region317
    $region316: #{forward.1} parent=1 // pred_region
      %648 = dma.done [#allocation61], 64
    $region317: #{forward.1} parent=1 // pred_fallthru
      _
    // Predicated region
    $region318: #{forward.1} parent=1 // pred_check
      _
    $region319: #{forward.1} parent=1 // pred_check_branch
      %650 = sbr.rel (0) target = $region321
    $region320: #{forward.1} parent=1 // pred_region
      %651 = dma.done [#allocation64], 32
    $region321: #{forward.1} parent=1 // pred_fallthru
      _
    // Predicated region
    $region322: #{forward.1} parent=1 // pred_check
      _
    $region323: #{forward.1} parent=1 // pred_check_branch
      %653 = sbr.rel (0) target = $region325
    $region324: #{forward.1} parent=1 // pred_region
      %654 = dma.done [#allocation64], 8192
    $region325: #{forward.1} parent=1 // pred_fallthru
      _
    // Predicated region
    $region326: #{forward.1} parent=1 // pred_check
      _
    $region327: #{forward.1} parent=1 // pred_check_branch
      %656 = sbr.rel (0) target = $region329
    $region328: #{forward.1} parent=1 // pred_region
      %657 = dma.done [#allocation67], 16
    $region329: #{forward.1} parent=1 // pred_fallthru
      _
    // Predicated region
    $region330: #{forward.1} parent=1 // pred_check
      _
    $region331: #{forward.1} parent=1 // pred_check_branch
      %660 = sbr.rel target = $region333
    $region332: #{forward.1} parent=1 // pred_region
      %661 = sst [smem:[#allocation71]] [#allocation70]
      %662 = sst [smem:[#allocation72]] [#allocation69]
    $region333: #{forward.1} parent=1 // pred_fallthru
      _
    %664 = shalt.err (0)
    %s666 = sshll.u32 [#allocation3], 4
    %s667 = int_to_ptr.vmem [resolvable:$true] %s666
    %669 = dma.hbm_to_vmem [thread:$0]  %s67, 49152, %s667, [#allocation5]
    %s670 = scalar_lea.sflag [#allocation5], 1
    // Predicated region
    $region334: #{forward.1} parent=1 // pred_check
      _
    $region335: #{forward.1} parent=1 // pred_check_branch
      %672 = sbr.rel target = $region337
    $region336: #{forward.1} parent=1 // pred_region
      %673 = sst [smem:[#allocation71]] [#allocation74]
      %674 = sst [smem:[#allocation72]] [#allocation73]
    $region337: #{forward.1} parent=1 // pred_fallthru
      _
    %676 = shalt.err (0)
    %s678 = sshll.u32 [#allocation4], 4
    %s679 = int_to_ptr.vmem [resolvable:$true] %s678
    %681 = dma.hbm_to_vmem [thread:$0]  %s77, 49152, %s679, %s670
    %v682 = vld [vmem:[%s1] sm:$0xff]
    %v683 = vld [vmem:[%s1 + $0x8] sm:$0xff]
    %v684 = vld [vmem:[%s1 + $0x10] sm:$0xff]
    %v685 = vld [vmem:[%s1 + $0x18] sm:$0xff]
    %v686 = vld [vmem:[#allocation6] sm:$0xff]
    %vm687 = vcmask 64512
    %v689 = vsel %vm687, %v682, 0
    %v692 = vsel %vm687, %v683, 0
    %v695 = vsel %vm687, %v684, 0
    %v698 = vsel %vm687, %v685, 0
    %700 = vmatprep.subr.mxu0 0.0
    %701 = vmatpush1.msra.mxu0 0.0
    %702 = vmatprep.subr.mxu0 0.0
    %703 = vmatpush1.msra.mxu0 0.0
    %704 = vmatprep.subr.mxu0 0.0
    %705 = vmatpush1.msra.mxu0 0.0
    %706 = vmatprep.subr.mxu0 0.0
    %707 = vmatpush1.msra.mxu0 0.0
    %708 = vmatprep.subr.mxu0 0.0
    %709 = vmatpush1.msra.mxu0 0.0
    %710 = vmatprep.subr.mxu0 0.0
    %711 = vmatpush1.msra.mxu0 0.0
    %712 = vmatprep.subr.mxu0 0.0
    %713 = vmatpush1.msra.mxu0 0.0
    %714 = vmatprep.subr.mxu0 0.0
    %715 = vmatpush1.msra.mxu0 0.0
    %716 = vmatprep.subr.mxu0 0.0
    %717 = vmatpush1.msra.mxu0 0.0
    %718 = vmatprep.subr.mxu0 0.0
    %719 = vmatpush1.msra.mxu0 0.0
    %720 = vmatprep.subr.mxu0 0.0
    %721 = vmatpush1.msra.mxu0 0.0
    %722 = vmatprep.subr.mxu0 0.0
    %723 = vmatpush1.msra.mxu0 0.0
    %724 = vmatprep.subr.mxu0 0.0
    %725 = vmatpush1.msra.mxu0 0.0
    %726 = vmatprep.subr.mxu0 0.0
    %727 = vmatpush1.msra.mxu0 0.0
    %728 = vmatprep.subr.mxu0 0.0
    %729 = vmatpush1.msra.mxu0 0.0
    %730 = vmatprep.subr.mxu0 0.0
    %731 = vmatpush1.msra.mxu0 %v686
    %732 = vmatprep.subr.mxu0 0.0
    %733 = vmatpush2.msra.mxu0 0.0
    %734 = vmatprep.subr.mxu0 0.0
    %735 = vmatpush2.msra.mxu0 0.0
    %736 = vmatprep.subr.mxu0 0.0
    %737 = vmatpush2.msra.mxu0 0.0
    %738 = vmatprep.subr.mxu0 0.0
    %739 = vmatpush2.msra.mxu0 0.0
    %740 = vmatprep.subr.mxu0 0.0
    %741 = vmatpush2.msra.mxu0 0.0
    %742 = vmatprep.subr.mxu0 0.0
    %743 = vmatpush2.msra.mxu0 0.0
    %744 = vmatprep.subr.mxu0 0.0
    %745 = vmatpush2.msra.mxu0 0.0
    %746 = vmatprep.subr.mxu0 0.0
    %747 = vmatpush2.msra.mxu0 0.0
    %748 = vmatprep.subr.mxu0 0.0
    %749 = vmatpush2.msra.mxu0 0.0
    %750 = vmatprep.subr.mxu0 0.0
    %751 = vmatpush2.msra.mxu0 0.0
    %752 = vmatprep.subr.mxu0 0.0
    %753 = vmatpush2.msra.mxu0 0.0
    %754 = vmatprep.subr.mxu0 0.0
    %755 = vmatpush2.msra.mxu0 0.0
    %756 = vmatprep.subr.mxu0 0.0
    %757 = vmatpush2.msra.mxu0 0.0
    %758 = vmatprep.subr.mxu0 0.0
    %759 = vmatpush2.msra.mxu0 0.0
    %760 = vmatprep.subr.mxu0 0.0
    %761 = vmatpush2.msra.mxu0 0.0
    %762 = vmatprep.subr.mxu0 0.0
    %763 = vmatpush2.msra.mxu0 0.0
    %764 = vmatprep.mubr.f32.mxu0 0.0
    %765 = vmatmul.mubr.f32.gmra.mxu0 %v689
    %v766 = vpop.f32.mrf.mxu0
    %v767 = vadd.f32 0.0, %v766
    %v768 = vpop.f32.mrf.mxu0
    %769 = vmatprep.mubr.f32.mxu0 0.0
    %770 = vmatmul.mubr.f32.gmra.mxu0 %v692
    %v771 = vpop.f32.mrf.mxu0
    %v772 = vadd.f32 0.0, %v771
    %v773 = vpop.f32.mrf.mxu0
    %774 = vmatprep.mubr.f32.mxu0 0.0
    %775 = vmatmul.mubr.f32.gmra.mxu0 %v695
    %v776 = vpop.f32.mrf.mxu0
    %v777 = vadd.f32 0.0, %v776
    %v778 = vpop.f32.mrf.mxu0
    %779 = vmatprep.mubr.f32.mxu0 0.0
    %780 = vmatmul.mubr.f32.gmra.mxu0 %v698
    %v781 = vpop.f32.mrf.mxu0
    %v782 = vadd.f32 0.0, %v781
    %v783 = vpop.f32.mrf.mxu0
    %784 = vdwg.mxu0
    %v785 = vld [vmem:[%s3] sm:$0xff]
    %v786 = vld [vmem:[%s3 + $0x8] sm:$0xff]
    %v787 = vld [vmem:[%s3 + $0x10] sm:$0xff]
    %v788 = vld [vmem:[%s3 + $0x18] sm:$0xff]
    %v790 = vsel %vm687, %v785, 0
    %v793 = vsel %vm687, %v786, 0
    %v796 = vsel %vm687, %v787, 0
    %v799 = vsel %vm687, %v788, 0
    %801 = vmatprep.subr.mxu0 0.0
    %802 = vmatpush1.msra.mxu0 0.0
    %803 = vmatprep.subr.mxu0 0.0
    %804 = vmatpush1.msra.mxu0 0.0
    %805 = vmatprep.subr.mxu0 0.0
    %806 = vmatpush1.msra.mxu0 0.0
    %807 = vmatprep.subr.mxu0 0.0
    %808 = vmatpush1.msra.mxu0 0.0
    %809 = vmatprep.subr.mxu0 0.0
    %810 = vmatpush1.msra.mxu0 0.0
    %811 = vmatprep.subr.mxu0 0.0
    %812 = vmatpush1.msra.mxu0 0.0
    %813 = vmatprep.subr.mxu0 0.0
    %814 = vmatpush1.msra.mxu0 0.0
    %815 = vmatprep.subr.mxu0 0.0
    %816 = vmatpush1.msra.mxu0 0.0
    %817 = vmatprep.subr.mxu0 0.0
    %818 = vmatpush1.msra.mxu0 0.0
    %819 = vmatprep.subr.mxu0 0.0
    %820 = vmatpush1.msra.mxu0 0.0
    %821 = vmatprep.subr.mxu0 0.0
    %822 = vmatpush1.msra.mxu0 0.0
    %823 = vmatprep.subr.mxu0 0.0
    %824 = vmatpush1.msra.mxu0 0.0
    %825 = vmatprep.subr.mxu0 0.0
    %826 = vmatpush1.msra.mxu0 0.0
    %827 = vmatprep.subr.mxu0 0.0
    %828 = vmatpush1.msra.mxu0 0.0
    %829 = vmatprep.subr.mxu0 0.0
    %830 = vmatpush1.msra.mxu0 0.0
    %831 = vmatprep.subr.mxu0 0.0
    %832 = vmatpush1.msra.mxu0 %v686
    %833 = vmatprep.subr.mxu0 0.0
    %834 = vmatpush2.msra.mxu0 0.0
    %835 = vmatprep.subr.mxu0 0.0
    %836 = vmatpush2.msra.mxu0 0.0
    %837 = vmatprep.subr.mxu0 0.0
    %838 = vmatpush2.msra.mxu0 0.0
    %839 = vmatprep.subr.mxu0 0.0
    %840 = vmatpush2.msra.mxu0 0.0
    %841 = vmatprep.subr.mxu0 0.0
    %842 = vmatpush2.msra.mxu0 0.0
    %843 = vmatprep.subr.mxu0 0.0
    %844 = vmatpush2.msra.mxu0 0.0
    %845 = vmatprep.subr.mxu0 0.0
    %846 = vmatpush2.msra.mxu0 0.0
    %847 = vmatprep.subr.mxu0 0.0
    %848 = vmatpush2.msra.mxu0 0.0
    %849 = vmatprep.subr.mxu0 0.0
    %850 = vmatpush2.msra.mxu0 0.0
    %851 = vmatprep.subr.mxu0 0.0
    %852 = vmatpush2.msra.mxu0 0.0
    %853 = vmatprep.subr.mxu0 0.0
    %854 = vmatpush2.msra.mxu0 0.0
    %855 = vmatprep.subr.mxu0 0.0
    %856 = vmatpush2.msra.mxu0 0.0
    %857 = vmatprep.subr.mxu0 0.0
    %858 = vmatpush2.msra.mxu0 0.0
    %859 = vmatprep.subr.mxu0 0.0
    %860 = vmatpush2.msra.mxu0 0.0
    %861 = vmatprep.subr.mxu0 0.0
    %862 = vmatpush2.msra.mxu0 0.0
    %863 = vmatprep.subr.mxu0 0.0
    %864 = vmatpush2.msra.mxu0 0.0
    %865 = vmatprep.mubr.f32.mxu0 0.0
    %866 = vmatmul.mubr.f32.gmra.mxu0 %v790
    %v867 = vpop.f32.mrf.mxu0
    %v868 = vadd.f32 0.0, %v867
    %v869 = vpop.f32.mrf.mxu0
    %870 = vmatprep.mubr.f32.mxu0 0.0
    %871 = vmatmul.mubr.f32.gmra.mxu0 %v793
    %v872 = vpop.f32.mrf.mxu0
    %v873 = vadd.f32 0.0, %v872
    %v874 = vpop.f32.mrf.mxu0
    %875 = vmatprep.mubr.f32.mxu0 0.0
    %876 = vmatmul.mubr.f32.gmra.mxu0 %v796
    %v877 = vpop.f32.mrf.mxu0
    %v878 = vadd.f32 0.0, %v877
    %v879 = vpop.f32.mrf.mxu0
    %880 = vmatprep.mubr.f32.mxu0 0.0
    %881 = vmatmul.mubr.f32.gmra.mxu0 %v799
    %v882 = vpop.f32.mrf.mxu0
    %v883 = vadd.f32 0.0, %v882
    %v884 = vpop.f32.mrf.mxu0
    %885 = vdwg.mxu0
    %v886 = vadd.f32 %v767, %v772
    %v887 = vadd.f32 %v886, %v777
    %v888 = vadd.f32 %v887, %v782
    %v889 = vrot.slane %v888, 4
    %v890 = vadd.f32 %v888, %v889
    %v891 = vrot.slane %v890, 2
    %v892 = vadd.f32 %v890, %v891
    %v893 = vrot.slane %v892, 1
    %v894 = vadd.f32 %v892, %v893
    %v895 = vadd.f32 %v868, %v873
    %v896 = vadd.f32 %v895, %v878
    %v897 = vadd.f32 %v896, %v883
    %v898 = vrot.slane %v897, 4
    %v899 = vadd.f32 %v897, %v898
    %v900 = vrot.slane %v899, 2
    %v901 = vadd.f32 %v899, %v900
    %v902 = vrot.slane %v901, 1
    %v903 = vadd.f32 %v901, %v902
    %v904 = vadd.f32 %v894, %v903
    %v905 = vmul.f32 %v767, %v767
    %v906 = vmul.f32 %v772, %v772
    %v907 = vmul.f32 %v777, %v777
    %v908 = vmul.f32 %v782, %v782
    %v909 = vadd.f32 %v905, %v906
    %v910 = vadd.f32 %v909, %v907
    %v911 = vadd.f32 %v910, %v908
    %v912 = vrot.slane %v911, 4
    %v913 = vadd.f32 %v911, %v912
    %v914 = vrot.slane %v913, 2
    %v915 = vadd.f32 %v913, %v914
    %v916 = vrot.slane %v915, 1
    %v917 = vadd.f32 %v915, %v916
    %v918 = vmul.f32 %v868, %v868
    %v919 = vmul.f32 %v873, %v873
    %v920 = vmul.f32 %v878, %v878
    %v921 = vmul.f32 %v883, %v883
    %v922 = vadd.f32 %v918, %v919
    %v923 = vadd.f32 %v922, %v920
    %v924 = vadd.f32 %v923, %v921
    %v925 = vrot.slane %v924, 4
    %v926 = vadd.f32 %v924, %v925
    %v927 = vrot.slane %v926, 2
    %v928 = vadd.f32 %v926, %v927
    %v929 = vrot.slane %v928, 1
    %v930 = vadd.f32 %v928, %v929
    %v931 = vadd.f32 %v917, %v930
    %v932 = vmul.f32 %v904, 0.015625
    %v933 = vmul.f32 %v931, 0.015625
    %v934 = vmul.f32 %v932, %v932
    %v935 = vsub.f32 %v933, %v934
    %v936 = vld [vmem:[#allocation9] sm:$0x1]
    %v937 = vadd.f32 %v935, 1e-05
    %v938 = vrsqrt.pop %v937
    %v939 = vmul.f32 %v936, %v938
    %v940 = vld [vmem:[#allocation11] sm:$0x1]
    %v941 = vmul.f32 %v932, %v939
    %v942 = vsub.f32 %v940, %v941
    %v944 = vlaneseq
    %v945 = vshrl.u32 %v944, 7
    %v946 = vsub.s32 0, %v945
    %v947 = vrot.slane %v939, %v946
    %v949 = vmul.f32 %v767, %v947
    %v950 = vmul.f32 %v772, %v947
    %v951 = vmul.f32 %v777, %v947
    %v952 = vmul.f32 %v782, %v947
    %v954 = vlaneseq
    %v955 = vshrl.u32 %v954, 7
    %v956 = vsub.s32 0, %v955
    %v957 = vrot.slane %v942, %v956
    %v959 = vadd.f32 %v949, %v957
    %v960 = vadd.f32 %v950, %v957
    %v961 = vadd.f32 %v951, %v957
    %v962 = vadd.f32 %v952, %v957
    %v963 = vmax.f32 %v959, 0.0
    %v964 = vmax.f32 %v960, 0.0
    %v965 = vmax.f32 %v961, 0.0
    %v966 = vmax.f32 %v962, 0.0
    %v967 = vmul.f32 %v868, %v947
    %v968 = vmul.f32 %v873, %v947
    %v969 = vmul.f32 %v878, %v947
    %v970 = vmul.f32 %v883, %v947
    %v971 = vadd.f32 %v967, %v957
    %v972 = vadd.f32 %v968, %v957
    %v973 = vadd.f32 %v969, %v957
    %v974 = vadd.f32 %v970, %v957
    %v975 = vmax.f32 %v971, 0.0
    %v976 = vmax.f32 %v972, 0.0
    %v977 = vmax.f32 %v973, 0.0
    %v978 = vmax.f32 %v974, 0.0
    %vm983 = vcmask 1040384
    %v984 = vrot.slane %v975, 7
    %v985 = vrot.slane %v976, 7
    %v986 = vsel %vm983, %v984, %v985
    %v987 = vrot.slane %v977, 7
    %v988 = vsel %vm983, %v985, %v987
    %v989 = vrot.slane %v978, 7
    %v990 = vsel %vm983, %v987, %v989
    %996 = vst [vmem:[#allocation2] sm:$0xfe] %v984
    %997 = vst [vmem:[#allocation2 + $0x20] sm:$0xff] %v986
    %998 = vst [vmem:[#allocation2 + $0x40] sm:$0xff] %v988
    %999 = vst [vmem:[#allocation2 + $0x60] sm:$0xff] %v990
    %1000 = vst [vmem:[#allocation2 + $0x80] sm:$0x1] %v989
    %v1001 = vld [vmem:[#allocation2] sm:$0xff]
    %v1002 = vld [vmem:[#allocation2 + $0x20] sm:$0xff]
    %v1003 = vld [vmem:[#allocation2 + $0x40] sm:$0xff]
    %v1004 = vld [vmem:[#allocation2 + $0x60] sm:$0xff]
    %v1005 = vlaneseq
    %v1006 = vshrl.u32 %v1005, 7
    %v1007 = vadd.s32 %v1006, 8
    %v1008 = vadd.s32 %v1006, 16
    %v1009 = vadd.s32 %v1006, 24
    %v1010 = vand.u32 %v1006, 15
    %v1011 = vand.u32 %v1007, 15
    %v1012 = vand.u32 %v1008, 15
    %v1013 = vand.u32 %v1009, 15
    %vm1014 = vcmp.eq.s32.totalorder %v1010, 0
    %vm1015 = vcmp.eq.s32.totalorder %v1011, 0
    %vm1016 = vcmp.eq.s32.totalorder %v1012, 0
    %vm1017 = vcmp.eq.s32.totalorder %v1013, 0
    %v1018 = vsel %vm1014, 0.0, %v1001
    %v1019 = vsel %vm1015, 0.0, %v1002
    %v1020 = vsel %vm1016, 0.0, %v1003
    %v1021 = vsel %vm1017, 0.0, %v1004
    %v1022 = vmax.f32 %v1018, %v963
    %v1023 = vmax.f32 %v1019, %v964
    %v1024 = vmax.f32 %v1020, %v965
    %v1025 = vmax.f32 %v1021, %v966
    %v1026 = vmax.f32 %v1022, %v975
    %v1027 = vmax.f32 %v1023, %v976
    %v1028 = vmax.f32 %v1024, %v977
    %v1029 = vmax.f32 %v1025, %v978
    %v1030 = vld [vmem:[#allocation12] sm:$0xf]
    %v1031 = vld [vmem:[#allocation12 + $0x4] sm:$0xf]
    %v1032 = vld [vmem:[#allocation12 + $0x8] sm:$0xf]
    %v1033 = vld [vmem:[#allocation12 + $0xc] sm:$0xf]
    %v1034 = vld [vmem:[#allocation12 + $0x10] sm:$0xf]
    %v1035 = vld [vmem:[#allocation12 + $0x14] sm:$0xf]
    %v1036 = vld [vmem:[#allocation12 + $0x18] sm:$0xf]
    %v1037 = vld [vmem:[#allocation12 + $0x1c] sm:$0xf]
    %v1038 = vld [vmem:[#allocation12 + $0x20] sm:$0xf]
    %v1039 = vld [vmem:[#allocation12 + $0x24] sm:$0xf]
    %v1040 = vld [vmem:[#allocation12 + $0x28] sm:$0xf]
    %v1041 = vld [vmem:[#allocation12 + $0x2c] sm:$0xf]
    %v1042 = vld [vmem:[#allocation12 + $0x30] sm:$0xf]
    %v1043 = vld [vmem:[#allocation12 + $0x34] sm:$0xf]
    %v1044 = vld [vmem:[#allocation12 + $0x38] sm:$0xf]
    %v1045 = vld [vmem:[#allocation12 + $0x3c] sm:$0xf]
    %v1046 = vld [vmem:[#allocation12 + $0x40] sm:$0xf]
    %v1047 = vld [vmem:[#allocation12 + $0x44] sm:$0xf]
    %v1048 = vld [vmem:[#allocation12 + $0x48] sm:$0xf]
    %v1049 = vld [vmem:[#allocation12 + $0x4c] sm:$0xf]
    %v1050 = vld [vmem:[#allocation12 + $0x50] sm:$0xf]
    %v1051 = vld [vmem:[#allocation12 + $0x54] sm:$0xf]
    %v1052 = vld [vmem:[#allocation12 + $0x58] sm:$0xf]
    %v1053 = vld [vmem:[#allocation12 + $0x5c] sm:$0xf]
    %v1054 = vld [vmem:[#allocation12 + $0x60] sm:$0xf]
    %v1055 = vld [vmem:[#allocation12 + $0x64] sm:$0xf]
    %v1056 = vld [vmem:[#allocation12 + $0x68] sm:$0xf]
    %v1057 = vld [vmem:[#allocation12 + $0x6c] sm:$0xf]
    %v1058 = vld [vmem:[#allocation12 + $0x70] sm:$0xf]
    %v1059 = vld [vmem:[#allocation12 + $0x74] sm:$0xf]
    %v1060 = vld [vmem:[#allocation12 + $0x78] sm:$0xf]
    %v1061 = vld [vmem:[#allocation12 + $0x7c] sm:$0xf]
    %v1062 = vld [vmem:[#allocation12 + $0x80] sm:$0xf]
    %v1063 = vld [vmem:[#allocation12 + $0x84] sm:$0xf]
    %v1064 = vld [vmem:[#allocation12 + $0x88] sm:$0xf]
    %v1065 = vld [vmem:[#allocation12 + $0x8c] sm:$0xf]
    %v1066 = vld [vmem:[#allocation12 + $0x90] sm:$0xf]
    %v1067 = vld [vmem:[#allocation12 + $0x94] sm:$0xf]
    %v1068 = vld [vmem:[#allocation12 + $0x98] sm:$0xf]
    %v1069 = vld [vmem:[#allocation12 + $0x9c] sm:$0xf]
    %v1070 = vld [vmem:[#allocation12 + $0xa0] sm:$0xf]
    %v1071 = vld [vmem:[#allocation12 + $0xa4] sm:$0xf]
    %v1072 = vld [vmem:[#allocation12 + $0xa8] sm:$0xf]
    %v1073 = vld [vmem:[#allocation12 + $0xac] sm:$0xf]
    %v1074 = vld [vmem:[#allocation12 + $0xb0] sm:$0xf]
    %v1075 = vld [vmem:[#allocation12 + $0xb4] sm:$0xf]
    %v1076 = vld [vmem:[#allocation12 + $0xb8] sm:$0xf]
    %v1077 = vld [vmem:[#allocation12 + $0xbc] sm:$0xf]
    %v1078 = vld [vmem:[#allocation17] sm:$0xf]
    %v1079 = vld [vmem:[#allocation17 + $0x4] sm:$0xf]
    %v1080 = vld [vmem:[#allocation17 + $0x8] sm:$0xf]
    %v1081 = vld [vmem:[#allocation17 + $0xc] sm:$0xf]
    %v1082 = vld [vmem:[#allocation17 + $0x10] sm:$0xf]
    %v1083 = vld [vmem:[#allocation17 + $0x14] sm:$0xf]
    %v1084 = vld [vmem:[#allocation17 + $0x18] sm:$0xf]
    %v1085 = vld [vmem:[#allocation17 + $0x1c] sm:$0xf]
    %v1086 = vld [vmem:[#allocation17 + $0x20] sm:$0xf]
    %v1087 = vld [vmem:[#allocation17 + $0x24] sm:$0xf]
    %v1088 = vld [vmem:[#allocation17 + $0x28] sm:$0xf]
    %v1089 = vld [vmem:[#allocation17 + $0x2c] sm:$0xf]
    %v1090 = vld [vmem:[#allocation17 + $0x30] sm:$0xf]
    %v1091 = vld [vmem:[#allocation17 + $0x34] sm:$0xf]
    %v1092 = vld [vmem:[#allocation17 + $0x38] sm:$0xf]
    %v1093 = vld [vmem:[#allocation17 + $0x3c] sm:$0xf]
    %v1094 = vld [vmem:[#allocation17 + $0x40] sm:$0xf]
    %v1095 = vld [vmem:[#allocation17 + $0x44] sm:$0xf]
    %v1096 = vld [vmem:[#allocation17 + $0x48] sm:$0xf]
    %v1097 = vld [vmem:[#allocation17 + $0x4c] sm:$0xf]
    %v1098 = vld [vmem:[#allocation17 + $0x50] sm:$0xf]
    %v1099 = vld [vmem:[#allocation17 + $0x54] sm:$0xf]
    %v1100 = vld [vmem:[#allocation17 + $0x58] sm:$0xf]
    %v1101 = vld [vmem:[#allocation17 + $0x5c] sm:$0xf]
    %v1102 = vld [vmem:[#allocation17 + $0x60] sm:$0xf]
    %v1103 = vld [vmem:[#allocation17 + $0x64] sm:$0xf]
    %v1104 = vld [vmem:[#allocation17 + $0x68] sm:$0xf]
    %v1105 = vld [vmem:[#allocation17 + $0x6c] sm:$0xf]
    %v1106 = vld [vmem:[#allocation17 + $0x70] sm:$0xf]
    %v1107 = vld [vmem:[#allocation17 + $0x74] sm:$0xf]
    %v1108 = vld [vmem:[#allocation17 + $0x78] sm:$0xf]
    %v1109 = vld [vmem:[#allocation17 + $0x7c] sm:$0xf]
    %v1110 = vld [vmem:[#allocation17 + $0x80] sm:$0xf]
    %v1111 = vld [vmem:[#allocation17 + $0x84] sm:$0xf]
    %v1112 = vld [vmem:[#allocation17 + $0x88] sm:$0xf]
    %v1113 = vld [vmem:[#allocation17 + $0x8c] sm:$0xf]
    %v1114 = vld [vmem:[#allocation17 + $0x90] sm:$0xf]
    %v1115 = vld [vmem:[#allocation17 + $0x94] sm:$0xf]
    %v1116 = vld [vmem:[#allocation17 + $0x98] sm:$0xf]
    %v1117 = vld [vmem:[#allocation17 + $0x9c] sm:$0xf]
    %v1118 = vld [vmem:[#allocation17 + $0xa0] sm:$0xf]
    %v1119 = vld [vmem:[#allocation17 + $0xa4] sm:$0xf]
    %v1120 = vld [vmem:[#allocation17 + $0xa8] sm:$0xf]
    %v1121 = vld [vmem:[#allocation17 + $0xac] sm:$0xf]
    %v1122 = vld [vmem:[#allocation17 + $0xb0] sm:$0xf]
    %v1123 = vld [vmem:[#allocation17 + $0xb4] sm:$0xf]
    %v1124 = vld [vmem:[#allocation17 + $0xb8] sm:$0xf]
    %v1125 = vld [vmem:[#allocation17 + $0xbc] sm:$0xf]
    %v1130 = vrot.slane %v1026, 7
    %v1131 = vrot.slane %v1027, 7
    %v1132 = vsel %vm983, %v1130, %v1131
    %v1133 = vrot.slane %v1028, 7
    %v1134 = vsel %vm983, %v1131, %v1133
    %v1135 = vrot.slane %v1029, 7
    %v1136 = vsel %vm983, %v1133, %v1135
    %1142 = vst [vmem:[#allocation2] sm:$0xfe] %v1130
    %1143 = vst [vmem:[#allocation2 + $0x20] sm:$0xff] %v1132
    %1144 = vst [vmem:[#allocation2 + $0x40] sm:$0xff] %v1134
    %1145 = vst [vmem:[#allocation2 + $0x60] sm:$0xff] %v1136
    %1146 = vst [vmem:[#allocation2 + $0x80] sm:$0x1] %v1135
    %v1147 = vld [vmem:[#allocation2] sm:$0xff]
    %v1148 = vld [vmem:[#allocation2 + $0x20] sm:$0xff]
    %v1149 = vld [vmem:[#allocation2 + $0x40] sm:$0xff]
    %v1150 = vld [vmem:[#allocation2 + $0x60] sm:$0xff]
    %v1151 = vld [vmem:[#allocation2] sm:$0xfc]
    %v1152 = vld [vmem:[#allocation2 + $0x80] sm:$0x3]
    %v1153 = vsel %vm1014, 0.0, %v1147
    %v1154 = vsel %vm1015, 0.0, %v1148
    %v1155 = vsel %vm1016, 0.0, %v1149
    %v1156 = vsel %vm1017, 0.0, %v1150
    %vm1157 = vcmp.eq.s32.totalorder %v1010, 15
    %vm1158 = vcmp.eq.s32.totalorder %v1011, 15
    %vm1159 = vcmp.eq.s32.totalorder %v1012, 15
    %vm1160 = vcmp.eq.s32.totalorder %v1013, 15
    %vm1166 = vcmask 1045504
    %v1167 = vrot.slane %v1151, 2
    %v1168 = vrot.slane %v1148, 2
    %v1169 = vsel %vm1166, %v1167, %v1168
    %v1170 = vrot.slane %v1149, 2
    %v1171 = vsel %vm1166, %v1168, %v1170
    %v1172 = vrot.slane %v1150, 2
    %v1173 = vsel %vm1166, %v1170, %v1172
    %v1174 = vrot.slane %v1152, 2
    %v1175 = vsel %vm1166, %v1172, %v1174
    %v1180 = vsel %vm1157, 0.0, %v1169
    %v1181 = vsel %vm1158, 0.0, %v1171
    %v1182 = vsel %vm1159, 0.0, %v1173
    %v1183 = vsel %vm1160, 0.0, %v1175
    %v1184 = vpack.c.bf16 %v1154, %v1153
    %v1185 = vpack.c.bf16 %v1156, %v1155
    %v1186 = vpack.c.bf16 %v1027, %v1026
    %v1187 = vpack.c.bf16 %v1029, %v1028
    %v1188 = vpack.c.bf16 %v1181, %v1180
    %v1189 = vpack.c.bf16 %v1183, %v1182
    %v1238 = vunpack.c.l.b16 %v1030
    %v1239 = vunpack.c.l.b16 %v1031
    %v1240 = vunpack.c.l.b16 %v1032
    %v1241 = vunpack.c.l.b16 %v1033
    %v1242 = vunpack.c.l.b16 %v1034
    %v1243 = vunpack.c.l.b16 %v1035
    %v1244 = vunpack.c.l.b16 %v1036
    %v1245 = vunpack.c.l.b16 %v1037
    %v1246 = vunpack.c.l.b16 %v1038
    %v1247 = vunpack.c.l.b16 %v1039
    %v1248 = vunpack.c.l.b16 %v1040
    %v1249 = vunpack.c.l.b16 %v1041
    %v1250 = vunpack.c.l.b16 %v1042
    %v1251 = vunpack.c.l.b16 %v1043
    %v1252 = vunpack.c.l.b16 %v1044
    %v1253 = vunpack.c.l.b16 %v1045
    %v1254 = vunpack.c.l.b16 %v1046
    %v1255 = vunpack.c.l.b16 %v1047
    %v1256 = vunpack.c.l.b16 %v1048
    %v1257 = vunpack.c.l.b16 %v1049
    %v1258 = vunpack.c.l.b16 %v1050
    %v1259 = vunpack.c.l.b16 %v1051
    %v1260 = vunpack.c.l.b16 %v1052
    %v1261 = vunpack.c.l.b16 %v1053
    %v1262 = vunpack.c.l.b16 %v1054
    %v1263 = vunpack.c.l.b16 %v1055
    %v1264 = vunpack.c.l.b16 %v1056
    %v1265 = vunpack.c.l.b16 %v1057
    %v1266 = vunpack.c.l.b16 %v1058
    %v1267 = vunpack.c.l.b16 %v1059
    %v1268 = vunpack.c.l.b16 %v1060
    %v1269 = vunpack.c.l.b16 %v1061
    %v1270 = vunpack.c.l.b16 %v1062
    %v1271 = vunpack.c.l.b16 %v1063
    %v1272 = vunpack.c.l.b16 %v1064
    %v1273 = vunpack.c.l.b16 %v1065
    %v1274 = vunpack.c.l.b16 %v1066
    %v1275 = vunpack.c.l.b16 %v1067
    %v1276 = vunpack.c.l.b16 %v1068
    %v1277 = vunpack.c.l.b16 %v1069
    %v1278 = vunpack.c.l.b16 %v1070
    %v1279 = vunpack.c.l.b16 %v1071
    %v1280 = vunpack.c.l.b16 %v1072
    %v1281 = vunpack.c.l.b16 %v1073
    %v1282 = vunpack.c.l.b16 %v1074
    %v1283 = vunpack.c.l.b16 %v1075
    %v1284 = vunpack.c.l.b16 %v1076
    %v1285 = vunpack.c.l.b16 %v1077
    %v1286 = vpack.c.b16 %v1239, %v1238
    %v1287 = vpack.c.b16 %v1241, %v1240
    %v1288 = vpack.c.b16 %v1243, %v1242
    %v1289 = vpack.c.b16 %v1245, %v1244
    %v1290 = vpack.c.b16 %v1247, %v1246
    %v1291 = vpack.c.b16 %v1249, %v1248
    %v1292 = vpack.c.b16 %v1251, %v1250
    %v1293 = vpack.c.b16 %v1253, %v1252
    %v1294 = vpack.c.b16 %v1255, %v1254
    %v1295 = vpack.c.b16 %v1257, %v1256
    %v1296 = vpack.c.b16 %v1259, %v1258
    %v1297 = vpack.c.b16 %v1261, %v1260
    %v1298 = vpack.c.b16 %v1263, %v1262
    %v1299 = vpack.c.b16 %v1265, %v1264
    %v1300 = vpack.c.b16 %v1267, %v1266
    %v1301 = vpack.c.b16 %v1269, %v1268
    %v1302 = vpack.c.b16 %v1271, %v1270
    %v1303 = vpack.c.b16 %v1273, %v1272
    %v1304 = vpack.c.b16 %v1275, %v1274
    %v1305 = vpack.c.b16 %v1277, %v1276
    %v1306 = vpack.c.b16 %v1279, %v1278
    %v1307 = vpack.c.b16 %v1281, %v1280
    %v1308 = vpack.c.b16 %v1283, %v1282
    %v1309 = vpack.c.b16 %v1285, %v1284
    %1334 = vmatprep.subr.bf16.mxu0 0
    %1335 = vmatpush1.bf16.msra.mxu0 %v1293
    %1336 = vmatprep.subr.bf16.mxu0 0
    %1337 = vmatpush1.bf16.msra.mxu0 %v1292
    %1338 = vmatprep.subr.bf16.mxu0 0
    %1339 = vmatpush1.bf16.msra.mxu0 %v1291
    %1340 = vmatprep.subr.bf16.mxu0 0
    %1341 = vmatpush1.bf16.msra.mxu0 %v1290
    %1342 = vmatprep.subr.bf16.mxu0 0
    %1343 = vmatpush1.bf16.msra.mxu0 %v1289
    %1344 = vmatprep.subr.bf16.mxu0 0
    %1345 = vmatpush1.bf16.msra.mxu0 %v1288
    %1346 = vmatprep.subr.bf16.mxu0 0
    %1347 = vmatpush1.bf16.msra.mxu0 %v1287
    %1348 = vmatprep.subr.bf16.mxu0 0
    %1349 = vmatpush1.bf16.msra.mxu0 %v1286
    %1350 = vmatprep.subr.bf16.mxu0 0
    %1351 = vmatpush2.bf16.msra.mxu0 %v1301
    %1352 = vmatprep.subr.bf16.mxu0 0
    %1353 = vmatpush2.bf16.msra.mxu0 %v1300
    %1354 = vmatprep.subr.bf16.mxu0 0
    %1355 = vmatpush2.bf16.msra.mxu0 %v1299
    %1356 = vmatprep.subr.bf16.mxu0 0
    %1357 = vmatpush2.bf16.msra.mxu0 %v1298
    %1358 = vmatprep.subr.bf16.mxu0 0
    %1359 = vmatpush2.bf16.msra.mxu0 %v1297
    %1360 = vmatprep.subr.bf16.mxu0 0
    %1361 = vmatpush2.bf16.msra.mxu0 %v1296
    %1362 = vmatprep.subr.bf16.mxu0 0
    %1363 = vmatpush2.bf16.msra.mxu0 %v1295
    %1364 = vmatprep.subr.bf16.mxu0 0
    %1365 = vmatpush2.bf16.msra.mxu0 %v1294
    %1366 = vmatprep.mubr.bf16.mxu0 %v1186
    %1367 = vmatmul.mubr.bf16.gmra.mxu0 %v1184
    %v1368 = vpop.f32.mrf.mxu0
    %v1369 = vadd.f32 0.0, %v1368
    %v1370 = vpop.f32.mrf.mxu0
    %v1371 = vpop.f32.mrf.mxu0
    %v1372 = vadd.f32 0.0, %v1371
    %v1373 = vpop.f32.mrf.mxu0
    %1374 = vmatprep.mubr.bf16.mxu0 %v1187
    %1375 = vmatmul.mubr.bf16.gmra.mxu0 %v1185
    %v1376 = vpop.f32.mrf.mxu0
    %v1377 = vadd.f32 0.0, %v1376
    %v1378 = vpop.f32.mrf.mxu0
    %v1379 = vpop.f32.mrf.mxu0
    %v1380 = vadd.f32 0.0, %v1379
    %v1381 = vpop.f32.mrf.mxu0
    %1382 = vdwg.mxu0
    %1383 = vmatprep.subr.bf16.mxu0 0
    %1384 = vmatpush1.bf16.msra.mxu0 %v1309
    %1385 = vmatprep.subr.bf16.mxu0 0
    %1386 = vmatpush1.bf16.msra.mxu0 %v1308
    %1387 = vmatprep.subr.bf16.mxu0 0
    %1388 = vmatpush1.bf16.msra.mxu0 %v1307
    %1389 = vmatprep.subr.bf16.mxu0 0
    %1390 = vmatpush1.bf16.msra.mxu0 %v1306
    %1391 = vmatprep.subr.bf16.mxu0 0
    %1392 = vmatpush1.bf16.msra.mxu0 %v1305
    %1393 = vmatprep.subr.bf16.mxu0 0
    %1394 = vmatpush1.bf16.msra.mxu0 %v1304
    %1395 = vmatprep.subr.bf16.mxu0 0
    %1396 = vmatpush1.bf16.msra.mxu0 %v1303
    %1397 = vmatprep.subr.bf16.mxu0 0
    %1398 = vmatpush1.bf16.msra.mxu0 %v1302
    %1399 = vmatprep.subr.bf16.mxu0 0
    %1400 = vmatpush2.bf16.msra.mxu0 0
    %1401 = vmatprep.subr.bf16.mxu0 0
    %1402 = vmatpush2.bf16.msra.mxu0 0
    %1403 = vmatprep.subr.bf16.mxu0 0
    %1404 = vmatpush2.bf16.msra.mxu0 0
    %1405 = vmatprep.subr.bf16.mxu0 0
    %1406 = vmatpush2.bf16.msra.mxu0 0
    %1407 = vmatprep.subr.bf16.mxu0 0
    %1408 = vmatpush2.bf16.msra.mxu0 0
    %1409 = vmatprep.subr.bf16.mxu0 0
    %1410 = vmatpush2.bf16.msra.mxu0 0
    %1411 = vmatprep.subr.bf16.mxu0 0
    %1412 = vmatpush2.bf16.msra.mxu0 0
    %1413 = vmatprep.subr.bf16.mxu0 0
    %1414 = vmatpush2.bf16.msra.mxu0 0
    %1415 = vmatprep.mubr.bf16.mxu0 0
    %1416 = vmatmul.mubr.bf16.gmra.mxu0 %v1188
    %v1417 = vpop.f32.mrf.mxu0
    %v1418 = vadd.f32 %v1369, %v1417
    %v1419 = vpop.f32.mrf.mxu0
    %v1420 = vpop.f32.mrf.mxu0
    %v1421 = vadd.f32 %v1372, %v1420
    %v1422 = vpop.f32.mrf.mxu0
    %1423 = vmatprep.mubr.bf16.mxu0 0
    %1424 = vmatmul.mubr.bf16.gmra.mxu0 %v1189
    %v1425 = vpop.f32.mrf.mxu0
    %v1426 = vadd.f32 %v1377, %v1425
    %v1427 = vpop.f32.mrf.mxu0
    %v1428 = vpop.f32.mrf.mxu0
    %v1429 = vadd.f32 %v1380, %v1428
    %v1430 = vpop.f32.mrf.mxu0
    %1431 = vdwg.mxu0
    %v1432 = vld [vmem:[#allocation14] sm:$0x1]
    %v1433 = vld [vmem:[#allocation15] sm:$0x1]
    %v1434 = vadd.f32 %v1418, %v1421
    %v1435 = vadd.f32 %v1434, %v1426
    %v1436 = vadd.f32 %v1435, %v1429
    %v1437 = vrot.slane %v1436, 4
    %v1438 = vadd.f32 %v1436, %v1437
    %v1439 = vrot.slane %v1438, 2
    %v1440 = vadd.f32 %v1438, %v1439
    %v1441 = vrot.slane %v1440, 1
    %v1442 = vadd.f32 %v1440, %v1441
    %v1443 = vmul.f32 %v1418, %v1418
    %v1444 = vmul.f32 %v1421, %v1421
    %v1445 = vmul.f32 %v1426, %v1426
    %v1446 = vmul.f32 %v1429, %v1429
    %v1447 = vadd.f32 %v1443, %v1444
    %v1448 = vadd.f32 %v1447, %v1445
    %v1449 = vadd.f32 %v1448, %v1446
    %v1450 = vrot.slane %v1449, 4
    %v1451 = vadd.f32 %v1449, %v1450
    %v1452 = vrot.slane %v1451, 2
    %v1453 = vadd.f32 %v1451, %v1452
    %v1454 = vrot.slane %v1453, 1
    %v1455 = vadd.f32 %v1453, %v1454
    %v1456 = vmul.f32 %v1442, 0.03125
    %v1457 = vmul.f32 %v1455, 0.03125
    %v1458 = vmul.f32 %v1456, %v1456
    %v1459 = vsub.f32 %v1457, %v1458
    %v1460 = vadd.f32 %v1459, 1e-05
    %v1461 = vrsqrt.pop %v1460
    %v1462 = vmul.f32 %v1432, %v1461
    %v1464 = vlaneseq
    %v1465 = vshrl.u32 %v1464, 7
    %v1466 = vsub.s32 0, %v1465
    %v1467 = vrot.slane %v1462, %v1466
    %v1469 = vmul.f32 %v1418, %v1467
    %v1470 = vmul.f32 %v1421, %v1467
    %v1471 = vmul.f32 %v1426, %v1467
    %v1472 = vmul.f32 %v1429, %v1467
    %v1473 = vmul.f32 %v1456, %v1462
    %v1474 = vsub.f32 %v1433, %v1473
    %v1476 = vlaneseq
    %v1477 = vshrl.u32 %v1476, 7
    %v1478 = vsub.s32 0, %v1477
    %v1479 = vrot.slane %v1474, %v1478
    %v1481 = vadd.f32 %v1469, %v1479
    %v1482 = vadd.f32 %v1470, %v1479
    %v1483 = vadd.f32 %v1471, %v1479
    %v1484 = vadd.f32 %v1472, %v1479
    %v1485 = vmax.f32 %v1481, 0.0
    %v1486 = vmax.f32 %v1482, 0.0
    %v1487 = vmax.f32 %v1483, 0.0
    %v1488 = vmax.f32 %v1484, 0.0
    %v1493 = vrot.slane %v1485, 7
    %v1494 = vrot.slane %v1486, 7
    %v1495 = vsel %vm983, %v1493, %v1494
    %v1496 = vrot.slane %v1487, 7
    %v1497 = vsel %vm983, %v1494, %v1496
    %v1498 = vrot.slane %v1488, 7
    %v1499 = vsel %vm983, %v1496, %v1498
    %1505 = vst [vmem:[#allocation2] sm:$0xfe] %v1493
    %1506 = vst [vmem:[#allocation2 + $0x20] sm:$0xff] %v1495
    %1507 = vst [vmem:[#allocation2 + $0x40] sm:$0xff] %v1497
    %1508 = vst [vmem:[#allocation2 + $0x60] sm:$0xff] %v1499
    %1509 = vst [vmem:[#allocation2 + $0x80] sm:$0x1] %v1498
    %v1510 = vld [vmem:[#allocation2] sm:$0xff]
    %v1511 = vld [vmem:[#allocation2 + $0x20] sm:$0xff]
    %v1512 = vld [vmem:[#allocation2 + $0x40] sm:$0xff]
    %v1513 = vld [vmem:[#allocation2 + $0x60] sm:$0xff]
    %v1514 = vld [vmem:[#allocation2] sm:$0xfc]
    %v1515 = vld [vmem:[#allocation2 + $0x80] sm:$0x3]
    %v1516 = vsel %vm1014, 0.0, %v1510
    %v1517 = vsel %vm1015, 0.0, %v1511
    %v1518 = vsel %vm1016, 0.0, %v1512
    %v1519 = vsel %vm1017, 0.0, %v1513
    %v1525 = vrot.slane %v1514, 2
    %v1526 = vrot.slane %v1511, 2
    %v1527 = vsel %vm1166, %v1525, %v1526
    %v1528 = vrot.slane %v1512, 2
    %v1529 = vsel %vm1166, %v1526, %v1528
    %v1530 = vrot.slane %v1513, 2
    %v1531 = vsel %vm1166, %v1528, %v1530
    %v1532 = vrot.slane %v1515, 2
    %v1533 = vsel %vm1166, %v1530, %v1532
    %v1538 = vsel %vm1157, 0.0, %v1527
    %v1539 = vsel %vm1158, 0.0, %v1529
    %v1540 = vsel %vm1159, 0.0, %v1531
    %v1541 = vsel %vm1160, 0.0, %v1533
    %v1542 = vpack.c.bf16 %v1517, %v1516
    %v1543 = vpack.c.bf16 %v1519, %v1518
    %v1544 = vpack.c.bf16 %v1486, %v1485
    %v1545 = vpack.c.bf16 %v1488, %v1487
    %v1546 = vpack.c.bf16 %v1539, %v1538
    %v1547 = vpack.c.bf16 %v1541, %v1540
    %v1596 = vunpack.c.l.b16 %v1078
    %v1597 = vunpack.c.l.b16 %v1079
    %v1598 = vunpack.c.l.b16 %v1080
    %v1599 = vunpack.c.l.b16 %v1081
    %v1600 = vunpack.c.l.b16 %v1082
    %v1601 = vunpack.c.l.b16 %v1083
    %v1602 = vunpack.c.l.b16 %v1084
    %v1603 = vunpack.c.l.b16 %v1085
    %v1604 = vunpack.c.l.b16 %v1086
    %v1605 = vunpack.c.l.b16 %v1087
    %v1606 = vunpack.c.l.b16 %v1088
    %v1607 = vunpack.c.l.b16 %v1089
    %v1608 = vunpack.c.l.b16 %v1090
    %v1609 = vunpack.c.l.b16 %v1091
    %v1610 = vunpack.c.l.b16 %v1092
    %v1611 = vunpack.c.l.b16 %v1093
    %v1612 = vunpack.c.l.b16 %v1094
    %v1613 = vunpack.c.l.b16 %v1095
    %v1614 = vunpack.c.l.b16 %v1096
    %v1615 = vunpack.c.l.b16 %v1097
    %v1616 = vunpack.c.l.b16 %v1098
    %v1617 = vunpack.c.l.b16 %v1099
    %v1618 = vunpack.c.l.b16 %v1100
    %v1619 = vunpack.c.l.b16 %v1101
    %v1620 = vunpack.c.l.b16 %v1102
    %v1621 = vunpack.c.l.b16 %v1103
    %v1622 = vunpack.c.l.b16 %v1104
    %v1623 = vunpack.c.l.b16 %v1105
    %v1624 = vunpack.c.l.b16 %v1106
    %v1625 = vunpack.c.l.b16 %v1107
    %v1626 = vunpack.c.l.b16 %v1108
    %v1627 = vunpack.c.l.b16 %v1109
    %v1628 = vunpack.c.l.b16 %v1110
    %v1629 = vunpack.c.l.b16 %v1111
    %v1630 = vunpack.c.l.b16 %v1112
    %v1631 = vunpack.c.l.b16 %v1113
    %v1632 = vunpack.c.l.b16 %v1114
    %v1633 = vunpack.c.l.b16 %v1115
    %v1634 = vunpack.c.l.b16 %v1116
    %v1635 = vunpack.c.l.b16 %v1117
    %v1636 = vunpack.c.l.b16 %v1118
    %v1637 = vunpack.c.l.b16 %v1119
    %v1638 = vunpack.c.l.b16 %v1120
    %v1639 = vunpack.c.l.b16 %v1121
    %v1640 = vunpack.c.l.b16 %v1122
    %v1641 = vunpack.c.l.b16 %v1123
    %v1642 = vunpack.c.l.b16 %v1124
    %v1643 = vunpack.c.l.b16 %v1125
    %v1644 = vpack.c.b16 %v1597, %v1596
    %v1645 = vpack.c.b16 %v1599, %v1598
    %v1646 = vpack.c.b16 %v1601, %v1600
    %v1647 = vpack.c.b16 %v1603, %v1602
    %v1648 = vpack.c.b16 %v1605, %v1604
    %v1649 = vpack.c.b16 %v1607, %v1606
    %v1650 = vpack.c.b16 %v1609, %v1608
    %v1651 = vpack.c.b16 %v1611, %v1610
    %v1652 = vpack.c.b16 %v1613, %v1612
    %v1653 = vpack.c.b16 %v1615, %v1614
    %v1654 = vpack.c.b16 %v1617, %v1616
    %v1655 = vpack.c.b16 %v1619, %v1618
    %v1656 = vpack.c.b16 %v1621, %v1620
    %v1657 = vpack.c.b16 %v1623, %v1622
    %v1658 = vpack.c.b16 %v1625, %v1624
    %v1659 = vpack.c.b16 %v1627, %v1626
    %v1660 = vpack.c.b16 %v1629, %v1628
    %v1661 = vpack.c.b16 %v1631, %v1630
    %v1662 = vpack.c.b16 %v1633, %v1632
    %v1663 = vpack.c.b16 %v1635, %v1634
    %v1664 = vpack.c.b16 %v1637, %v1636
    %v1665 = vpack.c.b16 %v1639, %v1638
    %v1666 = vpack.c.b16 %v1641, %v1640
    %v1667 = vpack.c.b16 %v1643, %v1642
    %1692 = vmatprep.subr.bf16.mxu0 0
    %1693 = vmatpush1.bf16.msra.mxu0 %v1651
    %1694 = vmatprep.subr.bf16.mxu0 0
    %1695 = vmatpush1.bf16.msra.mxu0 %v1650
    %1696 = vmatprep.subr.bf16.mxu0 0
    %1697 = vmatpush1.bf16.msra.mxu0 %v1649
    %1698 = vmatprep.subr.bf16.mxu0 0
    %1699 = vmatpush1.bf16.msra.mxu0 %v1648
    %1700 = vmatprep.subr.bf16.mxu0 0
    %1701 = vmatpush1.bf16.msra.mxu0 %v1647
    %1702 = vmatprep.subr.bf16.mxu0 0
    %1703 = vmatpush1.bf16.msra.mxu0 %v1646
    %1704 = vmatprep.subr.bf16.mxu0 0
    %1705 = vmatpush1.bf16.msra.mxu0 %v1645
    %1706 = vmatprep.subr.bf16.mxu0 0
    %1707 = vmatpush1.bf16.msra.mxu0 %v1644
    %1708 = vmatprep.subr.bf16.mxu0 0
    %1709 = vmatpush2.bf16.msra.mxu0 %v1659
    %1710 = vmatprep.subr.bf16.mxu0 0
    %1711 = vmatpush2.bf16.msra.mxu0 %v1658
    %1712 = vmatprep.subr.bf16.mxu0 0
    %1713 = vmatpush2.bf16.msra.mxu0 %v1657
    %1714 = vmatprep.subr.bf16.mxu0 0
    %1715 = vmatpush2.bf16.msra.mxu0 %v1656
    %1716 = vmatprep.subr.bf16.mxu0 0
    %1717 = vmatpush2.bf16.msra.mxu0 %v1655
    %1718 = vmatprep.subr.bf16.mxu0 0
    %1719 = vmatpush2.bf16.msra.mxu0 %v1654
    %1720 = vmatprep.subr.bf16.mxu0 0
    %1721 = vmatpush2.bf16.msra.mxu0 %v1653
    %1722 = vmatprep.subr.bf16.mxu0 0
    %1723 = vmatpush2.bf16.msra.mxu0 %v1652
    %1724 = vmatprep.mubr.bf16.mxu0 %v1544
    %1725 = vmatmul.mubr.bf16.gmra.mxu0 %v1542
    %v1726 = vpop.f32.mrf.mxu0
    %v1727 = vadd.f32 0.0, %v1726
    %v1728 = vpop.f32.mrf.mxu0
    %v1729 = vpop.f32.mrf.mxu0
    %v1730 = vadd.f32 0.0, %v1729
    %v1731 = vpop.f32.mrf.mxu0
    %1732 = vmatprep.mubr.bf16.mxu0 %v1545
    %1733 = vmatmul.mubr.bf16.gmra.mxu0 %v1543
    %v1734 = vpop.f32.mrf.mxu0
    %v1735 = vadd.f32 0.0, %v1734
    %v1736 = vpop.f32.mrf.mxu0
    %v1737 = vpop.f32.mrf.mxu0
    %v1738 = vadd.f32 0.0, %v1737
    %v1739 = vpop.f32.mrf.mxu0
    %1740 = vdwg.mxu0
    %1741 = vmatprep.subr.bf16.mxu0 0
    %1742 = vmatpush1.bf16.msra.mxu0 %v1667
    %1743 = vmatprep.subr.bf16.mxu0 0
    %1744 = vmatpush1.bf16.msra.mxu0 %v1666
    %1745 = vmatprep.subr.bf16.mxu0 0
    %1746 = vmatpush1.bf16.msra.mxu0 %v1665
    %1747 = vmatprep.subr.bf16.mxu0 0
    %1748 = vmatpush1.bf16.msra.mxu0 %v1664
    %1749 = vmatprep.subr.bf16.mxu0 0
    %1750 = vmatpush1.bf16.msra.mxu0 %v1663
    %1751 = vmatprep.subr.bf16.mxu0 0
    %1752 = vmatpush1.bf16.msra.mxu0 %v1662
    %1753 = vmatprep.subr.bf16.mxu0 0
    %1754 = vmatpush1.bf16.msra.mxu0 %v1661
    %1755 = vmatprep.subr.bf16.mxu0 0
    %1756 = vmatpush1.bf16.msra.mxu0 %v1660
    %1757 = vmatprep.subr.bf16.mxu0 0
    %1758 = vmatpush2.bf16.msra.mxu0 0
    %1759 = vmatprep.subr.bf16.mxu0 0
    %1760 = vmatpush2.bf16.msra.mxu0 0
    %1761 = vmatprep.subr.bf16.mxu0 0
    %1762 = vmatpush2.bf16.msra.mxu0 0
    %1763 = vmatprep.subr.bf16.mxu0 0
    %1764 = vmatpush2.bf16.msra.mxu0 0
    %1765 = vmatprep.subr.bf16.mxu0 0
    %1766 = vmatpush2.bf16.msra.mxu0 0
    %1767 = vmatprep.subr.bf16.mxu0 0
    %1768 = vmatpush2.bf16.msra.mxu0 0
    %1769 = vmatprep.subr.bf16.mxu0 0
    %1770 = vmatpush2.bf16.msra.mxu0 0
    %1771 = vmatprep.subr.bf16.mxu0 0
    %1772 = vmatpush2.bf16.msra.mxu0 0
    %1773 = vmatprep.mubr.bf16.mxu0 0
    %1774 = vmatmul.mubr.bf16.gmra.mxu0 %v1546
    %v1775 = vpop.f32.mrf.mxu0
    %v1776 = vadd.f32 %v1727, %v1775
    %v1777 = vpop.f32.mrf.mxu0
    %v1778 = vpop.f32.mrf.mxu0
    %v1779 = vadd.f32 %v1730, %v1778
    %v1780 = vpop.f32.mrf.mxu0
    %1781 = vmatprep.mubr.bf16.mxu0 0
    %1782 = vmatmul.mubr.bf16.gmra.mxu0 %v1547
    %v1783 = vpop.f32.mrf.mxu0
    %v1784 = vadd.f32 %v1735, %v1783
    %v1785 = vpop.f32.mrf.mxu0
    %v1786 = vpop.f32.mrf.mxu0
    %v1787 = vadd.f32 %v1738, %v1786
    %v1788 = vpop.f32.mrf.mxu0
    %1789 = vdwg.mxu0
    %v1790 = vld [vmem:[#allocation18] sm:$0x1]
    %v1791 = vld [vmem:[#allocation20] sm:$0x1]
    %v1792 = vadd.f32 %v1776, %v1779
    %v1793 = vadd.f32 %v1792, %v1784
    %v1794 = vadd.f32 %v1793, %v1787
    %v1795 = vrot.slane %v1794, 4
    %v1796 = vadd.f32 %v1794, %v1795
    %v1797 = vrot.slane %v1796, 2
    %v1798 = vadd.f32 %v1796, %v1797
    %v1799 = vrot.slane %v1798, 1
    %v1800 = vadd.f32 %v1798, %v1799
    %v1801 = vmul.f32 %v1776, %v1776
    %v1802 = vmul.f32 %v1779, %v1779
    %v1803 = vmul.f32 %v1784, %v1784
    %v1804 = vmul.f32 %v1787, %v1787
    %v1805 = vadd.f32 %v1801, %v1802
    %v1806 = vadd.f32 %v1805, %v1803
    %v1807 = vadd.f32 %v1806, %v1804
    %v1808 = vrot.slane %v1807, 4
    %v1809 = vadd.f32 %v1807, %v1808
    %v1810 = vrot.slane %v1809, 2
    %v1811 = vadd.f32 %v1809, %v1810
    %v1812 = vrot.slane %v1811, 1
    %v1813 = vadd.f32 %v1811, %v1812
    %v1814 = vmul.f32 %v1800, 0.03125
    %v1815 = vmul.f32 %v1813, 0.03125
    %v1816 = vmul.f32 %v1814, %v1814
    %v1817 = vsub.f32 %v1815, %v1816
    %v1818 = vadd.f32 %v1817, 1e-05
    %v1819 = vrsqrt.pop %v1818
    %v1820 = vmul.f32 %v1790, %v1819
    %v1822 = vlaneseq
    %v1823 = vshrl.u32 %v1822, 7
    %v1824 = vsub.s32 0, %v1823
    %v1825 = vrot.slane %v1820, %v1824
    %v1827 = vmul.f32 %v1776, %v1825
    %v1828 = vmul.f32 %v1779, %v1825
    %v1829 = vmul.f32 %v1784, %v1825
    %v1830 = vmul.f32 %v1787, %v1825
    %v1831 = vmul.f32 %v1814, %v1820
    %v1832 = vsub.f32 %v1791, %v1831
    %v1834 = vlaneseq
    %v1835 = vshrl.u32 %v1834, 7
    %v1836 = vsub.s32 0, %v1835
    %v1837 = vrot.slane %v1832, %v1836
    %v1839 = vadd.f32 %v1827, %v1837
    %v1840 = vadd.f32 %v1828, %v1837
    %v1841 = vadd.f32 %v1829, %v1837
    %v1842 = vadd.f32 %v1830, %v1837
    %v1843 = vadd.f32 %v1839, %v1026
    %v1844 = vadd.f32 %v1840, %v1027
    %v1845 = vadd.f32 %v1841, %v1028
    %v1846 = vadd.f32 %v1842, %v1029
    %v1847 = vmax.f32 %v1843, 0.0
    %v1848 = vmax.f32 %v1844, 0.0
    %v1849 = vmax.f32 %v1845, 0.0
    %v1850 = vmax.f32 %v1846, 0.0
    %v1851 = vld [vmem:[#allocation24] sm:$0xff]
    %v1852 = vld [vmem:[#allocation24 + $0x8] sm:$0xff]
    %v1853 = vld [vmem:[#allocation24 + $0x10] sm:$0xff]
    %v1854 = vld [vmem:[#allocation24 + $0x18] sm:$0xff]
    %v1855 = vld [vmem:[#allocation24 + $0x20] sm:$0xff]
    %v1856 = vld [vmem:[#allocation24 + $0x28] sm:$0xff]
    %v1857 = vld [vmem:[#allocation24 + $0x30] sm:$0xff]
    %v1858 = vld [vmem:[#allocation24 + $0x38] sm:$0xff]
    %v1859 = vld [vmem:[#allocation24 + $0x40] sm:$0xff]
    %v1860 = vld [vmem:[#allocation24 + $0x48] sm:$0xff]
    %v1861 = vld [vmem:[#allocation24 + $0x50] sm:$0xff]
    %v1862 = vld [vmem:[#allocation24 + $0x58] sm:$0xff]
    %v1863 = vld [vmem:[#allocation24 + $0x60] sm:$0xff]
    %v1864 = vld [vmem:[#allocation24 + $0x68] sm:$0xff]
    %v1865 = vld [vmem:[#allocation24 + $0x70] sm:$0xff]
    %v1866 = vld [vmem:[#allocation24 + $0x78] sm:$0xff]
    %v1867 = vld [vmem:[#allocation24 + $0x80] sm:$0xff]
    %v1868 = vld [vmem:[#allocation24 + $0x88] sm:$0xff]
    %v1869 = vld [vmem:[#allocation24 + $0x90] sm:$0xff]
    %v1870 = vld [vmem:[#allocation24 + $0x98] sm:$0xff]
    %v1871 = vld [vmem:[#allocation24 + $0xa0] sm:$0xff]
    %v1872 = vld [vmem:[#allocation24 + $0xa8] sm:$0xff]
    %v1873 = vld [vmem:[#allocation24 + $0xb0] sm:$0xff]
    %v1874 = vld [vmem:[#allocation24 + $0xb8] sm:$0xff]
    %v1875 = vld [vmem:[#allocation24 + $0xc0] sm:$0xff]
    %v1876 = vld [vmem:[#allocation24 + $0xc8] sm:$0xff]
    %v1877 = vld [vmem:[#allocation24 + $0xd0] sm:$0xff]
    %v1878 = vld [vmem:[#allocation24 + $0xd8] sm:$0xff]
    %v1879 = vld [vmem:[#allocation24 + $0xe0] sm:$0xff]
    %v1880 = vld [vmem:[#allocation24 + $0xe8] sm:$0xff]
    %v1881 = vld [vmem:[#allocation24 + $0xf0] sm:$0xff]
    %v1882 = vld [vmem:[#allocation24 + $0xf8] sm:$0xff]
    %v1883 = vld [vmem:[#allocation24 + $0x100] sm:$0xff]
    %v1884 = vld [vmem:[#allocation24 + $0x108] sm:$0xff]
    %v1885 = vld [vmem:[#allocation24 + $0x110] sm:$0xff]
    %v1886 = vld [vmem:[#allocation24 + $0x118] sm:$0xff]
    %v1887 = vld [vmem:[#allocation24 + $0x120] sm:$0xff]
    %v1888 = vld [vmem:[#allocation24 + $0x128] sm:$0xff]
    %v1889 = vld [vmem:[#allocation24 + $0x130] sm:$0xff]
    %v1890 = vld [vmem:[#allocation24 + $0x138] sm:$0xff]
    %v1891 = vld [vmem:[#allocation24 + $0x140] sm:$0xff]
    %v1892 = vld [vmem:[#allocation24 + $0x148] sm:$0xff]
    %v1893 = vld [vmem:[#allocation24 + $0x150] sm:$0xff]
    %v1894 = vld [vmem:[#allocation24 + $0x158] sm:$0xff]
    %v1895 = vld [vmem:[#allocation24 + $0x160] sm:$0xff]
    %v1896 = vld [vmem:[#allocation24 + $0x168] sm:$0xff]
    %v1897 = vld [vmem:[#allocation24 + $0x170] sm:$0xff]
    %v1898 = vld [vmem:[#allocation24 + $0x178] sm:$0xff]
    %v1899 = vld [vmem:[#allocation32] sm:$0xf]
    %v1900 = vld [vmem:[#allocation32 + $0x4] sm:$0xf]
    %v1901 = vld [vmem:[#allocation32 + $0x8] sm:$0xf]
    %v1902 = vld [vmem:[#allocation32 + $0xc] sm:$0xf]
    %v1903 = vld [vmem:[#allocation32 + $0x10] sm:$0xf]
    %v1904 = vld [vmem:[#allocation32 + $0x14] sm:$0xf]
    %v1905 = vld [vmem:[#allocation32 + $0x18] sm:$0xf]
    %v1906 = vld [vmem:[#allocation32 + $0x1c] sm:$0xf]
    %v1907 = vld [vmem:[#allocation32 + $0x20] sm:$0xf]
    %v1908 = vld [vmem:[#allocation32 + $0x24] sm:$0xf]
    %v1909 = vld [vmem:[#allocation32 + $0x28] sm:$0xf]
    %v1910 = vld [vmem:[#allocation32 + $0x2c] sm:$0xf]
    %v1911 = vld [vmem:[#allocation32 + $0x30] sm:$0xf]
    %v1912 = vld [vmem:[#allocation32 + $0x34] sm:$0xf]
    %v1913 = vld [vmem:[#allocation32 + $0x38] sm:$0xf]
    %v1914 = vld [vmem:[#allocation32 + $0x3c] sm:$0xf]
    %v1915 = vld [vmem:[#allocation32 + $0x40] sm:$0xf]
    %v1916 = vld [vmem:[#allocation32 + $0x44] sm:$0xf]
    %v1917 = vld [vmem:[#allocation32 + $0x48] sm:$0xf]
    %v1918 = vld [vmem:[#allocation32 + $0x4c] sm:$0xf]
    %v1919 = vld [vmem:[#allocation32 + $0x50] sm:$0xf]
    %v1920 = vld [vmem:[#allocation32 + $0x54] sm:$0xf]
    %v1921 = vld [vmem:[#allocation32 + $0x58] sm:$0xf]
    %v1922 = vld [vmem:[#allocation32 + $0x5c] sm:$0xf]
    %v1923 = vld [vmem:[#allocation32 + $0x60] sm:$0xf]
    %v1924 = vld [vmem:[#allocation32 + $0x64] sm:$0xf]
    %v1925 = vld [vmem:[#allocation32 + $0x68] sm:$0xf]
    %v1926 = vld [vmem:[#allocation32 + $0x6c] sm:$0xf]
    %v1927 = vld [vmem:[#allocation32 + $0x70] sm:$0xf]
    %v1928 = vld [vmem:[#allocation32 + $0x74] sm:$0xf]
    %v1929 = vld [vmem:[#allocation32 + $0x78] sm:$0xf]
    %v1930 = vld [vmem:[#allocation32 + $0x7c] sm:$0xf]
    %v1931 = vld [vmem:[#allocation32 + $0x80] sm:$0xf]
    %v1932 = vld [vmem:[#allocation32 + $0x84] sm:$0xf]
    %v1933 = vld [vmem:[#allocation32 + $0x88] sm:$0xf]
    %v1934 = vld [vmem:[#allocation32 + $0x8c] sm:$0xf]
    %v1935 = vld [vmem:[#allocation32 + $0x90] sm:$0xf]
    %v1936 = vld [vmem:[#allocation32 + $0x94] sm:$0xf]
    %v1937 = vld [vmem:[#allocation32 + $0x98] sm:$0xf]
    %v1938 = vld [vmem:[#allocation32 + $0x9c] sm:$0xf]
    %v1939 = vld [vmem:[#allocation32 + $0xa0] sm:$0xf]
    %v1940 = vld [vmem:[#allocation32 + $0xa4] sm:$0xf]
    %v1941 = vld [vmem:[#allocation32 + $0xa8] sm:$0xf]
    %v1942 = vld [vmem:[#allocation32 + $0xac] sm:$0xf]
    %v1943 = vld [vmem:[#allocation32 + $0xb0] sm:$0xf]
    %v1944 = vld [vmem:[#allocation32 + $0xb4] sm:$0xf]
    %v1945 = vld [vmem:[#allocation32 + $0xb8] sm:$0xf]
    %v1946 = vld [vmem:[#allocation32 + $0xbc] sm:$0xf]
    %v1947 = vpack.c.bf16 %v1848, %v1847
    %v1948 = vpack.c.bf16 %v1850, %v1849
    %v1949 = vld [vmem:[#allocation21] sm:$0xf]
    %v1950 = vld [vmem:[#allocation21 + $0x4] sm:$0xf]
    %v1953 = vunpack.c.l.b16 %v1949
    %v1954 = vunpack.c.l.b16 %v1950
    %v1955 = vpack.c.b16 %v1954, %v1953
    %vm1956 = vcmask 261120
    %v1958 = vsel %vm1956, %v1955, 0
    %1960 = vmatprep.subr.bf16.mxu0 0
    %1961 = vmatpush1.bf16.msra.mxu0 0
    %1962 = vmatprep.subr.bf16.mxu0 0
    %1963 = vmatpush1.bf16.msra.mxu0 0
    %1964 = vmatprep.subr.bf16.mxu0 0
    %1965 = vmatpush1.bf16.msra.mxu0 0
    %1966 = vmatprep.subr.bf16.mxu0 0
    %1967 = vmatpush1.bf16.msra.mxu0 0
    %1968 = vmatprep.subr.bf16.mxu0 0
    %1969 = vmatpush1.bf16.msra.mxu0 0
    %1970 = vmatprep.subr.bf16.mxu0 0
    %1971 = vmatpush1.bf16.msra.mxu0 0
    %1972 = vmatprep.subr.bf16.mxu0 0
    %1973 = vmatpush1.bf16.msra.mxu0 %v1948
    %1974 = vmatprep.subr.bf16.mxu0 0
    %1975 = vmatpush1.bf16.msra.mxu0 %v1947
    %1976 = vmatprep.subr.bf16.mxu0 0
    %1977 = vmatpush2.bf16.msra.mxu0 0
    %1978 = vmatprep.subr.bf16.mxu0 0
    %1979 = vmatpush2.bf16.msra.mxu0 0
    %1980 = vmatprep.subr.bf16.mxu0 0
    %1981 = vmatpush2.bf16.msra.mxu0 0
    %1982 = vmatprep.subr.bf16.mxu0 0
    %1983 = vmatpush2.bf16.msra.mxu0 0
    %1984 = vmatprep.subr.bf16.mxu0 0
    %1985 = vmatpush2.bf16.msra.mxu0 0
    %1986 = vmatprep.subr.bf16.mxu0 0
    %1987 = vmatpush2.bf16.msra.mxu0 0
    %1988 = vmatprep.subr.bf16.mxu0 0
    %1989 = vmatpush2.bf16.msra.mxu0 0
    %1990 = vmatprep.subr.bf16.mxu0 0
    %1991 = vmatpush2.bf16.msra.mxu0 0
    %1992 = vmatprep.mubr.bf16.mxu0 0
    %1993 = vmatmul.mubr.bf16.gmra.mxu0 %v1958
    %v1994 = vpop.f32.mrf.mxu0
    %v1995 = vadd.f32 0.0, %v1994
    %v1996 = vpop.f32.mrf.mxu0
    %v1997 = vpop.f32.mrf.mxu0
    %v1998 = vadd.f32 0.0, %v1997
    %v1999 = vpop.f32.mrf.mxu0
    %2000 = vdwg.mxu0
    %v2001 = vld [vmem:[#allocation23] sm:$0xf]
    %v2002 = vld [vmem:[#allocation23 + $0x4] sm:$0xf]
    %v2005 = vunpack.c.l.b16 %v2001
    %v2006 = vunpack.c.l.b16 %v2002
    %v2007 = vpack.c.b16 %v2006, %v2005
    %v2009 = vsel %vm1956, %v2007, 0
    %2011 = vmatprep.subr.bf16.mxu0 0
    %2012 = vmatpush1.bf16.msra.mxu0 0
    %2013 = vmatprep.subr.bf16.mxu0 0
    %2014 = vmatpush1.bf16.msra.mxu0 0
    %2015 = vmatprep.subr.bf16.mxu0 0
    %2016 = vmatpush1.bf16.msra.mxu0 0
    %2017 = vmatprep.subr.bf16.mxu0 0
    %2018 = vmatpush1.bf16.msra.mxu0 0
    %2019 = vmatprep.subr.bf16.mxu0 0
    %2020 = vmatpush1.bf16.msra.mxu0 0
    %2021 = vmatprep.subr.bf16.mxu0 0
    %2022 = vmatpush1.bf16.msra.mxu0 0
    %2023 = vmatprep.subr.bf16.mxu0 0
    %2024 = vmatpush1.bf16.msra.mxu0 %v1948
    %2025 = vmatprep.subr.bf16.mxu0 0
    %2026 = vmatpush1.bf16.msra.mxu0 %v1947
    %2027 = vmatprep.subr.bf16.mxu0 0
    %2028 = vmatpush2.bf16.msra.mxu0 0
    %2029 = vmatprep.subr.bf16.mxu0 0
    %2030 = vmatpush2.bf16.msra.mxu0 0
    %2031 = vmatprep.subr.bf16.mxu0 0
    %2032 = vmatpush2.bf16.msra.mxu0 0
    %2033 = vmatprep.subr.bf16.mxu0 0
    %2034 = vmatpush2.bf16.msra.mxu0 0
    %2035 = vmatprep.subr.bf16.mxu0 0
    %2036 = vmatpush2.bf16.msra.mxu0 0
    %2037 = vmatprep.subr.bf16.mxu0 0
    %2038 = vmatpush2.bf16.msra.mxu0 0
    %2039 = vmatprep.subr.bf16.mxu0 0
    %2040 = vmatpush2.bf16.msra.mxu0 0
    %2041 = vmatprep.subr.bf16.mxu0 0
    %2042 = vmatpush2.bf16.msra.mxu0 0
    %2043 = vmatprep.mubr.bf16.mxu0 0
    %2044 = vmatmul.mubr.bf16.gmra.mxu0 %v2009
    %v2045 = vpop.f32.mrf.mxu0
    %v2046 = vadd.f32 0.0, %v2045
    %v2047 = vpop.f32.mrf.mxu0
    %v2048 = vpop.f32.mrf.mxu0
    %v2049 = vadd.f32 0.0, %v2048
    %v2050 = vpop.f32.mrf.mxu0
    %2051 = vdwg.mxu0
    %v2054 = vrot.slane %v2046, 7
    %v2055 = vrot.slane %v2049, 7
    %v2056 = vsel %vm983, %v2054, %v2055
    %2060 = vst [vmem:[#allocation2] sm:$0xfe] %v2054
    %2061 = vst [vmem:[#allocation2 + $0x20] sm:$0xff] %v2056
    %2062 = vst [vmem:[#allocation2 + $0x40] sm:$0x1] %v2055
    %v2063 = vld [vmem:[#allocation2] sm:$0xff]
    %v2064 = vld [vmem:[#allocation2 + $0x20] sm:$0xff]
    %v2065 = vand.u32 %v1006, 7
    %v2066 = vand.u32 %v1007, 7
    %vm2067 = vcmp.eq.s32.totalorder %v2065, 0
    %vm2068 = vcmp.eq.s32.totalorder %v2066, 0
    %v2069 = vsel %vm2067, 0.0, %v2063
    %v2070 = vsel %vm2068, 0.0, %v2064
    %v2071 = vpack.c.bf16 %v2070, %v2069
    %v2072 = vpack.c.bf16 %v1998, %v1995
    %v2073 = vpack.c.bf16 %v2049, %v2046
    %v2122 = vunpack.c.l.b16 %v1851
    %v2123 = vunpack.c.h.b16 %v1851
    %v2124 = vunpack.c.l.b16 %v1852
    %v2125 = vunpack.c.h.b16 %v1852
    %v2126 = vunpack.c.l.b16 %v1853
    %v2127 = vunpack.c.h.b16 %v1853
    %v2128 = vunpack.c.l.b16 %v1854
    %v2129 = vunpack.c.h.b16 %v1854
    %v2130 = vunpack.c.l.b16 %v1855
    %v2131 = vunpack.c.h.b16 %v1855
    %v2132 = vunpack.c.l.b16 %v1856
    %v2133 = vunpack.c.h.b16 %v1856
    %v2134 = vunpack.c.l.b16 %v1857
    %v2135 = vunpack.c.h.b16 %v1857
    %v2136 = vunpack.c.l.b16 %v1858
    %v2137 = vunpack.c.h.b16 %v1858
    %v2138 = vunpack.c.l.b16 %v1859
    %v2139 = vunpack.c.h.b16 %v1859
    %v2140 = vunpack.c.l.b16 %v1860
    %v2141 = vunpack.c.h.b16 %v1860
    %v2142 = vunpack.c.l.b16 %v1861
    %v2143 = vunpack.c.h.b16 %v1861
    %v2144 = vunpack.c.l.b16 %v1862
    %v2145 = vunpack.c.h.b16 %v1862
    %v2146 = vunpack.c.l.b16 %v1863
    %v2147 = vunpack.c.h.b16 %v1863
    %v2148 = vunpack.c.l.b16 %v1864
    %v2149 = vunpack.c.h.b16 %v1864
    %v2150 = vunpack.c.l.b16 %v1865
    %v2151 = vunpack.c.h.b16 %v1865
    %v2152 = vunpack.c.l.b16 %v1866
    %v2153 = vunpack.c.h.b16 %v1866
    %v2154 = vunpack.c.l.b16 %v1867
    %v2155 = vunpack.c.h.b16 %v1867
    %v2156 = vunpack.c.l.b16 %v1868
    %v2157 = vunpack.c.h.b16 %v1868
    %v2158 = vunpack.c.l.b16 %v1869
    %v2159 = vunpack.c.h.b16 %v1869
    %v2160 = vunpack.c.l.b16 %v1870
    %v2161 = vunpack.c.h.b16 %v1870
    %v2162 = vunpack.c.l.b16 %v1871
    %v2163 = vunpack.c.h.b16 %v1871
    %v2164 = vunpack.c.l.b16 %v1872
    %v2165 = vunpack.c.h.b16 %v1872
    %v2166 = vunpack.c.l.b16 %v1873
    %v2167 = vunpack.c.h.b16 %v1873
    %v2168 = vunpack.c.l.b16 %v1874
    %v2169 = vunpack.c.h.b16 %v1874
    %v2170 = vunpack.c.l.b16 %v1875
    %v2171 = vunpack.c.h.b16 %v1875
    %v2172 = vunpack.c.l.b16 %v1876
    %v2173 = vunpack.c.h.b16 %v1876
    %v2174 = vunpack.c.l.b16 %v1877
    %v2175 = vunpack.c.h.b16 %v1877
    %v2176 = vunpack.c.l.b16 %v1878
    %v2177 = vunpack.c.h.b16 %v1878
    %v2178 = vunpack.c.l.b16 %v1879
    %v2179 = vunpack.c.h.b16 %v1879
    %v2180 = vunpack.c.l.b16 %v1880
    %v2181 = vunpack.c.h.b16 %v1880
    %v2182 = vunpack.c.l.b16 %v1881
    %v2183 = vunpack.c.h.b16 %v1881
    %v2184 = vunpack.c.l.b16 %v1882
    %v2185 = vunpack.c.h.b16 %v1882
    %v2186 = vunpack.c.l.b16 %v1883
    %v2187 = vunpack.c.h.b16 %v1883
    %v2188 = vunpack.c.l.b16 %v1884
    %v2189 = vunpack.c.h.b16 %v1884
    %v2190 = vunpack.c.l.b16 %v1885
    %v2191 = vunpack.c.h.b16 %v1885
    %v2192 = vunpack.c.l.b16 %v1886
    %v2193 = vunpack.c.h.b16 %v1886
    %v2194 = vunpack.c.l.b16 %v1887
    %v2195 = vunpack.c.h.b16 %v1887
    %v2196 = vunpack.c.l.b16 %v1888
    %v2197 = vunpack.c.h.b16 %v1888
    %v2198 = vunpack.c.l.b16 %v1889
    %v2199 = vunpack.c.h.b16 %v1889
    %v2200 = vunpack.c.l.b16 %v1890
    %v2201 = vunpack.c.h.b16 %v1890
    %v2202 = vunpack.c.l.b16 %v1891
    %v2203 = vunpack.c.h.b16 %v1891
    %v2204 = vunpack.c.l.b16 %v1892
    %v2205 = vunpack.c.h.b16 %v1892
    %v2206 = vunpack.c.l.b16 %v1893
    %v2207 = vunpack.c.h.b16 %v1893
    %v2208 = vunpack.c.l.b16 %v1894
    %v2209 = vunpack.c.h.b16 %v1894
    %v2210 = vunpack.c.l.b16 %v1895
    %v2211 = vunpack.c.h.b16 %v1895
    %v2212 = vunpack.c.l.b16 %v1896
    %v2213 = vunpack.c.h.b16 %v1896
    %v2214 = vunpack.c.l.b16 %v1897
    %v2215 = vunpack.c.h.b16 %v1897
    %v2216 = vunpack.c.l.b16 %v1898
    %v2217 = vunpack.c.h.b16 %v1898
    %v2218 = vpack.c.b16 %v2124, %v2122
    %v2219 = vpack.c.b16 %v2125, %v2123
    %v2220 = vpack.c.b16 %v2128, %v2126
    %v2221 = vpack.c.b16 %v2129, %v2127
    %v2222 = vpack.c.b16 %v2132, %v2130
    %v2223 = vpack.c.b16 %v2133, %v2131
    %v2224 = vpack.c.b16 %v2136, %v2134
    %v2225 = vpack.c.b16 %v2137, %v2135
    %v2226 = vpack.c.b16 %v2140, %v2138
    %v2227 = vpack.c.b16 %v2141, %v2139
    %v2228 = vpack.c.b16 %v2144, %v2142
    %v2229 = vpack.c.b16 %v2145, %v2143
    %v2230 = vpack.c.b16 %v2148, %v2146
    %v2231 = vpack.c.b16 %v2149, %v2147
    %v2232 = vpack.c.b16 %v2152, %v2150
    %v2233 = vpack.c.b16 %v2153, %v2151
    %v2234 = vpack.c.b16 %v2156, %v2154
    %v2235 = vpack.c.b16 %v2157, %v2155
    %v2236 = vpack.c.b16 %v2160, %v2158
    %v2237 = vpack.c.b16 %v2161, %v2159
    %v2238 = vpack.c.b16 %v2164, %v2162
    %v2239 = vpack.c.b16 %v2165, %v2163
    %v2240 = vpack.c.b16 %v2168, %v2166
    %v2241 = vpack.c.b16 %v2169, %v2167
    %v2242 = vpack.c.b16 %v2172, %v2170
    %v2243 = vpack.c.b16 %v2173, %v2171
    %v2244 = vpack.c.b16 %v2176, %v2174
    %v2245 = vpack.c.b16 %v2177, %v2175
    %v2246 = vpack.c.b16 %v2180, %v2178
    %v2247 = vpack.c.b16 %v2181, %v2179
    %v2248 = vpack.c.b16 %v2184, %v2182
    %v2249 = vpack.c.b16 %v2185, %v2183
    %v2250 = vpack.c.b16 %v2188, %v2186
    %v2251 = vpack.c.b16 %v2189, %v2187
    %v2252 = vpack.c.b16 %v2192, %v2190
    %v2253 = vpack.c.b16 %v2193, %v2191
    %v2254 = vpack.c.b16 %v2196, %v2194
    %v2255 = vpack.c.b16 %v2197, %v2195
    %v2256 = vpack.c.b16 %v2200, %v2198
    %v2257 = vpack.c.b16 %v2201, %v2199
    %v2258 = vpack.c.b16 %v2204, %v2202
    %v2259 = vpack.c.b16 %v2205, %v2203
    %v2260 = vpack.c.b16 %v2208, %v2206
    %v2261 = vpack.c.b16 %v2209, %v2207
    %v2262 = vpack.c.b16 %v2212, %v2210
    %v2263 = vpack.c.b16 %v2213, %v2211
    %v2264 = vpack.c.b16 %v2216, %v2214
    %v2265 = vpack.c.b16 %v2217, %v2215
    %2314 = vmatprep.subr.bf16.mxu0 %v2233
    %2315 = vmatpush1.bf16.msra.mxu0 %v2232
    %2316 = vmatprep.subr.bf16.mxu0 %v2231
    %2317 = vmatpush1.bf16.msra.mxu0 %v2230
    %2318 = vmatprep.subr.bf16.mxu0 %v2229
    %2319 = vmatpush1.bf16.msra.mxu0 %v2228
    %2320 = vmatprep.subr.bf16.mxu0 %v2227
    %2321 = vmatpush1.bf16.msra.mxu0 %v2226
    %2322 = vmatprep.subr.bf16.mxu0 %v2225
    %2323 = vmatpush1.bf16.msra.mxu0 %v2224
    %2324 = vmatprep.subr.bf16.mxu0 %v2223
    %2325 = vmatpush1.bf16.msra.mxu0 %v2222
    %2326 = vmatprep.subr.bf16.mxu0 %v2221
    %2327 = vmatpush1.bf16.msra.mxu0 %v2220
    %2328 = vmatprep.subr.bf16.mxu0 %v2219
    %2329 = vmatpush1.bf16.msra.mxu0 %v2218
    %2330 = vmatprep.subr.bf16.mxu0 %v2249
    %2331 = vmatpush2.bf16.msra.mxu0 %v2248
    %2332 = vmatprep.subr.bf16.mxu0 %v2247
    %2333 = vmatpush2.bf16.msra.mxu0 %v2246
    %2334 = vmatprep.subr.bf16.mxu0 %v2245
    %2335 = vmatpush2.bf16.msra.mxu0 %v2244
    %2336 = vmatprep.subr.bf16.mxu0 %v2243
    %2337 = vmatpush2.bf16.msra.mxu0 %v2242
    %2338 = vmatprep.subr.bf16.mxu0 %v2241
    %2339 = vmatpush2.bf16.msra.mxu0 %v2240
    %2340 = vmatprep.subr.bf16.mxu0 %v2239
    %2341 = vmatpush2.bf16.msra.mxu0 %v2238
    %2342 = vmatprep.subr.bf16.mxu0 %v2237
    %2343 = vmatpush2.bf16.msra.mxu0 %v2236
    %2344 = vmatprep.subr.bf16.mxu0 %v2235
    %2345 = vmatpush2.bf16.msra.mxu0 %v2234
    %2346 = vmatprep.mubr.bf16.mxu0 %v2072
    %2347 = vmatmul.mubr.bf16.gmra.mxu0 %v2071
    %v2348 = vpop.f32.mrf.mxu0
    %v2349 = vadd.f32 0.0, %v2348
    %v2350 = vpop.f32.mrf.mxu0
    %v2351 = vadd.f32 0.0, %v2350
    %v2352 = vpop.f32.mrf.mxu0
    %v2353 = vadd.f32 0.0, %v2352
    %v2354 = vpop.f32.mrf.mxu0
    %v2355 = vadd.f32 0.0, %v2354
    %2356 = vdwg.mxu0
    %2357 = vmatprep.subr.bf16.mxu0 %v2265
    %2358 = vmatpush1.bf16.msra.mxu0 %v2264
    %2359 = vmatprep.subr.bf16.mxu0 %v2263
    %2360 = vmatpush1.bf16.msra.mxu0 %v2262
    %2361 = vmatprep.subr.bf16.mxu0 %v2261
    %2362 = vmatpush1.bf16.msra.mxu0 %v2260
    %2363 = vmatprep.subr.bf16.mxu0 %v2259
    %2364 = vmatpush1.bf16.msra.mxu0 %v2258
    %2365 = vmatprep.subr.bf16.mxu0 %v2257
    %2366 = vmatpush1.bf16.msra.mxu0 %v2256
    %2367 = vmatprep.subr.bf16.mxu0 %v2255
    %2368 = vmatpush1.bf16.msra.mxu0 %v2254
    %2369 = vmatprep.subr.bf16.mxu0 %v2253
    %2370 = vmatpush1.bf16.msra.mxu0 %v2252
    %2371 = vmatprep.subr.bf16.mxu0 %v2251
    %2372 = vmatpush1.bf16.msra.mxu0 %v2250
    %2373 = vmatprep.subr.bf16.mxu0 0
    %2374 = vmatpush2.bf16.msra.mxu0 0
    %2375 = vmatprep.subr.bf16.mxu0 0
    %2376 = vmatpush2.bf16.msra.mxu0 0
    %2377 = vmatprep.subr.bf16.mxu0 0
    %2378 = vmatpush2.bf16.msra.mxu0 0
    %2379 = vmatprep.subr.bf16.mxu0 0
    %2380 = vmatpush2.bf16.msra.mxu0 0
    %2381 = vmatprep.subr.bf16.mxu0 0
    %2382 = vmatpush2.bf16.msra.mxu0 0
    %2383 = vmatprep.subr.bf16.mxu0 0
    %2384 = vmatpush2.bf16.msra.mxu0 0
    %2385 = vmatprep.subr.bf16.mxu0 0
    %2386 = vmatpush2.bf16.msra.mxu0 0
    %2387 = vmatprep.subr.bf16.mxu0 0
    %2388 = vmatpush2.bf16.msra.mxu0 0
    %2389 = vmatprep.mubr.bf16.mxu0 0
    %2390 = vmatmul.mubr.bf16.gmra.mxu0 %v2073
    %v2391 = vpop.f32.mrf.mxu0
    %v2392 = vadd.f32 %v2349, %v2391
    %v2393 = vpop.f32.mrf.mxu0
    %v2394 = vadd.f32 %v2351, %v2393
    %v2395 = vpop.f32.mrf.mxu0
    %v2396 = vadd.f32 %v2353, %v2395
    %v2397 = vpop.f32.mrf.mxu0
    %v2398 = vadd.f32 %v2355, %v2397
    %2399 = vdwg.mxu0
    %v2400 = vld [vmem:[#allocation26] sm:$0x1]
    %v2401 = vld [vmem:[#allocation27] sm:$0x1]
    %v2402 = vadd.f32 %v2392, %v2396
    %v2403 = vrot.slane %v2402, 4
    %v2404 = vadd.f32 %v2402, %v2403
    %v2405 = vrot.slane %v2404, 2
    %v2406 = vadd.f32 %v2404, %v2405
    %v2407 = vrot.slane %v2406, 1
    %v2408 = vadd.f32 %v2406, %v2407
    %v2409 = vmul.f32 %v2392, %v2392
    %v2410 = vmul.f32 %v2396, %v2396
    %v2411 = vadd.f32 %v2409, %v2410
    %v2412 = vrot.slane %v2411, 4
    %v2413 = vadd.f32 %v2411, %v2412
    %v2414 = vrot.slane %v2413, 2
    %v2415 = vadd.f32 %v2413, %v2414
    %v2416 = vrot.slane %v2415, 1
    %v2417 = vadd.f32 %v2415, %v2416
    %v2418 = vmul.f32 %v2408, 0.0625
    %v2419 = vmul.f32 %v2417, 0.0625
    %v2420 = vmul.f32 %v2418, %v2418
    %v2421 = vsub.f32 %v2419, %v2420
    %v2422 = vadd.f32 %v2421, 1e-05
    %v2423 = vrsqrt.pop %v2422
    %v2424 = vmul.f32 %v2400, %v2423
    %v2426 = vlaneseq
    %v2427 = vshrl.u32 %v2426, 7
    %v2428 = vsub.s32 0, %v2427
    %v2429 = vrot.slane %v2424, %v2428
    %v2431 = vmul.f32 %v2392, %v2429
    %v2432 = vmul.f32 %v2396, %v2429
    %v2433 = vmul.f32 %v2418, %v2424
    %v2434 = vsub.f32 %v2401, %v2433
    %v2436 = vlaneseq
    %v2437 = vshrl.u32 %v2436, 7
    %v2438 = vsub.s32 0, %v2437
    %v2439 = vrot.slane %v2434, %v2438
    %v2441 = vadd.f32 %v2431, %v2439
    %v2442 = vadd.f32 %v2432, %v2439
    %v2443 = vmax.f32 %v2441, 0.0
    %v2444 = vmax.f32 %v2442, 0.0
    %v2445 = vld [vmem:[#allocation29] sm:$0x1]
    %v2446 = vld [vmem:[#allocation30] sm:$0x1]
    %v2447 = vadd.f32 %v2394, %v2398
    %v2448 = vrot.slane %v2447, 4
    %v2449 = vadd.f32 %v2447, %v2448
    %v2450 = vrot.slane %v2449, 2
    %v2451 = vadd.f32 %v2449, %v2450
    %v2452 = vrot.slane %v2451, 1
    %v2453 = vadd.f32 %v2451, %v2452
    %v2454 = vmul.f32 %v2394, %v2394
    %v2455 = vmul.f32 %v2398, %v2398
    %v2456 = vadd.f32 %v2454, %v2455
    %v2457 = vrot.slane %v2456, 4
    %v2458 = vadd.f32 %v2456, %v2457
    %v2459 = vrot.slane %v2458, 2
    %v2460 = vadd.f32 %v2458, %v2459
    %v2461 = vrot.slane %v2460, 1
    %v2462 = vadd.f32 %v2460, %v2461
    %v2463 = vmul.f32 %v2453, 0.0625
    %v2464 = vmul.f32 %v2462, 0.0625
    %v2465 = vmul.f32 %v2463, %v2463
    %v2466 = vsub.f32 %v2464, %v2465
    %v2467 = vadd.f32 %v2466, 1e-05
    %v2468 = vrsqrt.pop %v2467
    %v2469 = vmul.f32 %v2445, %v2468
    %v2471 = vlaneseq
    %v2472 = vshrl.u32 %v2471, 7
    %v2473 = vsub.s32 0, %v2472
    %v2474 = vrot.slane %v2469, %v2473
    %v2476 = vmul.f32 %v2394, %v2474
    %v2477 = vmul.f32 %v2398, %v2474
    %v2478 = vmul.f32 %v2463, %v2469
    %v2479 = vsub.f32 %v2446, %v2478
    %v2481 = vlaneseq
    %v2482 = vshrl.u32 %v2481, 7
    %v2483 = vsub.s32 0, %v2482
    %v2484 = vrot.slane %v2479, %v2483
    %v2486 = vadd.f32 %v2476, %v2484
    %v2487 = vadd.f32 %v2477, %v2484
    %v2490 = vrot.slane %v2443, 7
    %v2491 = vrot.slane %v2444, 7
    %v2492 = vsel %vm983, %v2490, %v2491
    %2496 = vst [vmem:[#allocation2] sm:$0xfe] %v2490
    %2497 = vst [vmem:[#allocation2 + $0x20] sm:$0xff] %v2492
    %2498 = vst [vmem:[#allocation2 + $0x40] sm:$0x1] %v2491
    %v2499 = vld [vmem:[#allocation2] sm:$0xff]
    %v2500 = vld [vmem:[#allocation2 + $0x20] sm:$0xff]
    %v2501 = vld [vmem:[#allocation2] sm:$0xfc]
    %v2502 = vld [vmem:[#allocation2 + $0x40] sm:$0x3]
    %v2503 = vsel %vm2067, 0.0, %v2499
    %v2504 = vsel %vm2068, 0.0, %v2500
    %vm2505 = vcmp.eq.s32.totalorder %v2065, 7
    %vm2506 = vcmp.eq.s32.totalorder %v2066, 7
    %v2510 = vrot.slane %v2501, 2
    %v2511 = vrot.slane %v2500, 2
    %v2512 = vsel %vm1166, %v2510, %v2511
    %v2513 = vrot.slane %v2502, 2
    %v2514 = vsel %vm1166, %v2511, %v2513
    %v2517 = vsel %vm2505, 0.0, %v2512
    %v2518 = vsel %vm2506, 0.0, %v2514
    %v2519 = vpack.c.bf16 %v2504, %v2503
    %v2520 = vpack.c.bf16 %v2444, %v2443
    %v2521 = vpack.c.bf16 %v2518, %v2517
    %v2570 = vunpack.c.l.b16 %v1899
    %v2571 = vunpack.c.l.b16 %v1900
    %v2572 = vunpack.c.l.b16 %v1901
    %v2573 = vunpack.c.l.b16 %v1902
    %v2574 = vunpack.c.l.b16 %v1903
    %v2575 = vunpack.c.l.b16 %v1904
    %v2576 = vunpack.c.l.b16 %v1905
    %v2577 = vunpack.c.l.b16 %v1906
    %v2578 = vunpack.c.l.b16 %v1907
    %v2579 = vunpack.c.l.b16 %v1908
    %v2580 = vunpack.c.l.b16 %v1909
    %v2581 = vunpack.c.l.b16 %v1910
    %v2582 = vunpack.c.l.b16 %v1911
    %v2583 = vunpack.c.l.b16 %v1912
    %v2584 = vunpack.c.l.b16 %v1913
    %v2585 = vunpack.c.l.b16 %v1914
    %v2586 = vunpack.c.l.b16 %v1915
    %v2587 = vunpack.c.l.b16 %v1916
    %v2588 = vunpack.c.l.b16 %v1917
    %v2589 = vunpack.c.l.b16 %v1918
    %v2590 = vunpack.c.l.b16 %v1919
    %v2591 = vunpack.c.l.b16 %v1920
    %v2592 = vunpack.c.l.b16 %v1921
    %v2593 = vunpack.c.l.b16 %v1922
    %v2594 = vunpack.c.l.b16 %v1923
    %v2595 = vunpack.c.l.b16 %v1924
    %v2596 = vunpack.c.l.b16 %v1925
    %v2597 = vunpack.c.l.b16 %v1926
    %v2598 = vunpack.c.l.b16 %v1927
    %v2599 = vunpack.c.l.b16 %v1928
    %v2600 = vunpack.c.l.b16 %v1929
    %v2601 = vunpack.c.l.b16 %v1930
    %v2602 = vunpack.c.l.b16 %v1931
    %v2603 = vunpack.c.l.b16 %v1932
    %v2604 = vunpack.c.l.b16 %v1933
    %v2605 = vunpack.c.l.b16 %v1934
    %v2606 = vunpack.c.l.b16 %v1935
    %v2607 = vunpack.c.l.b16 %v1936
    %v2608 = vunpack.c.l.b16 %v1937
    %v2609 = vunpack.c.l.b16 %v1938
    %v2610 = vunpack.c.l.b16 %v1939
    %v2611 = vunpack.c.l.b16 %v1940
    %v2612 = vunpack.c.l.b16 %v1941
    %v2613 = vunpack.c.l.b16 %v1942
    %v2614 = vunpack.c.l.b16 %v1943
    %v2615 = vunpack.c.l.b16 %v1944
    %v2616 = vunpack.c.l.b16 %v1945
    %v2617 = vunpack.c.l.b16 %v1946
    %v2618 = vpack.c.b16 %v2571, %v2570
    %v2619 = vpack.c.b16 %v2573, %v2572
    %v2620 = vpack.c.b16 %v2575, %v2574
    %v2621 = vpack.c.b16 %v2577, %v2576
    %v2622 = vpack.c.b16 %v2579, %v2578
    %v2623 = vpack.c.b16 %v2581, %v2580
    %v2624 = vpack.c.b16 %v2583, %v2582
    %v2625 = vpack.c.b16 %v2585, %v2584
    %v2626 = vpack.c.b16 %v2587, %v2586
    %v2627 = vpack.c.b16 %v2589, %v2588
    %v2628 = vpack.c.b16 %v2591, %v2590
    %v2629 = vpack.c.b16 %v2593, %v2592
    %v2630 = vpack.c.b16 %v2595, %v2594
    %v2631 = vpack.c.b16 %v2597, %v2596
    %v2632 = vpack.c.b16 %v2599, %v2598
    %v2633 = vpack.c.b16 %v2601, %v2600
    %v2634 = vpack.c.b16 %v2603, %v2602
    %v2635 = vpack.c.b16 %v2605, %v2604
    %v2636 = vpack.c.b16 %v2607, %v2606
    %v2637 = vpack.c.b16 %v2609, %v2608
    %v2638 = vpack.c.b16 %v2611, %v2610
    %v2639 = vpack.c.b16 %v2613, %v2612
    %v2640 = vpack.c.b16 %v2615, %v2614
    %v2641 = vpack.c.b16 %v2617, %v2616
    %2666 = vmatprep.subr.bf16.mxu0 0
    %2667 = vmatpush1.bf16.msra.mxu0 %v2625
    %2668 = vmatprep.subr.bf16.mxu0 0
    %2669 = vmatpush1.bf16.msra.mxu0 %v2624
    %2670 = vmatprep.subr.bf16.mxu0 0
    %2671 = vmatpush1.bf16.msra.mxu0 %v2623
    %2672 = vmatprep.subr.bf16.mxu0 0
    %2673 = vmatpush1.bf16.msra.mxu0 %v2622
    %2674 = vmatprep.subr.bf16.mxu0 0
    %2675 = vmatpush1.bf16.msra.mxu0 %v2621
    %2676 = vmatprep.subr.bf16.mxu0 0
    %2677 = vmatpush1.bf16.msra.mxu0 %v2620
    %2678 = vmatprep.subr.bf16.mxu0 0
    %2679 = vmatpush1.bf16.msra.mxu0 %v2619
    %2680 = vmatprep.subr.bf16.mxu0 0
    %2681 = vmatpush1.bf16.msra.mxu0 %v2618
    %2682 = vmatprep.subr.bf16.mxu0 0
    %2683 = vmatpush2.bf16.msra.mxu0 %v2633
    %2684 = vmatprep.subr.bf16.mxu0 0
    %2685 = vmatpush2.bf16.msra.mxu0 %v2632
    %2686 = vmatprep.subr.bf16.mxu0 0
    %2687 = vmatpush2.bf16.msra.mxu0 %v2631
    %2688 = vmatprep.subr.bf16.mxu0 0
    %2689 = vmatpush2.bf16.msra.mxu0 %v2630
    %2690 = vmatprep.subr.bf16.mxu0 0
    %2691 = vmatpush2.bf16.msra.mxu0 %v2629
    %2692 = vmatprep.subr.bf16.mxu0 0
    %2693 = vmatpush2.bf16.msra.mxu0 %v2628
    %2694 = vmatprep.subr.bf16.mxu0 0
    %2695 = vmatpush2.bf16.msra.mxu0 %v2627
    %2696 = vmatprep.subr.bf16.mxu0 0
    %2697 = vmatpush2.bf16.msra.mxu0 %v2626
    %2698 = vmatprep.mubr.bf16.mxu0 %v2520
    %2699 = vmatmul.mubr.bf16.gmra.mxu0 %v2519
    %v2700 = vpop.f32.mrf.mxu0
    %v2701 = vadd.f32 0.0, %v2700
    %v2702 = vpop.f32.mrf.mxu0
    %v2703 = vpop.f32.mrf.mxu0
    %v2704 = vadd.f32 0.0, %v2703
    %v2705 = vpop.f32.mrf.mxu0
    %2706 = vdwg.mxu0
    %2707 = vmatprep.subr.bf16.mxu0 0
    %2708 = vmatpush1.bf16.msra.mxu0 %v2641
    %2709 = vmatprep.subr.bf16.mxu0 0
    %2710 = vmatpush1.bf16.msra.mxu0 %v2640
    %2711 = vmatprep.subr.bf16.mxu0 0
    %2712 = vmatpush1.bf16.msra.mxu0 %v2639
    %2713 = vmatprep.subr.bf16.mxu0 0
    %2714 = vmatpush1.bf16.msra.mxu0 %v2638
    %2715 = vmatprep.subr.bf16.mxu0 0
    %2716 = vmatpush1.bf16.msra.mxu0 %v2637
    %2717 = vmatprep.subr.bf16.mxu0 0
    %2718 = vmatpush1.bf16.msra.mxu0 %v2636
    %2719 = vmatprep.subr.bf16.mxu0 0
    %2720 = vmatpush1.bf16.msra.mxu0 %v2635
    %2721 = vmatprep.subr.bf16.mxu0 0
    %2722 = vmatpush1.bf16.msra.mxu0 %v2634
    %2723 = vmatprep.subr.bf16.mxu0 0
    %2724 = vmatpush2.bf16.msra.mxu0 0
    %2725 = vmatprep.subr.bf16.mxu0 0
    %2726 = vmatpush2.bf16.msra.mxu0 0
    %2727 = vmatprep.subr.bf16.mxu0 0
    %2728 = vmatpush2.bf16.msra.mxu0 0
    %2729 = vmatprep.subr.bf16.mxu0 0
    %2730 = vmatpush2.bf16.msra.mxu0 0
    %2731 = vmatprep.subr.bf16.mxu0 0
    %2732 = vmatpush2.bf16.msra.mxu0 0
    %2733 = vmatprep.subr.bf16.mxu0 0
    %2734 = vmatpush2.bf16.msra.mxu0 0
    %2735 = vmatprep.subr.bf16.mxu0 0
    %2736 = vmatpush2.bf16.msra.mxu0 0
    %2737 = vmatprep.subr.bf16.mxu0 0
    %2738 = vmatpush2.bf16.msra.mxu0 0
    %2739 = vmatprep.mubr.bf16.mxu0 0
    %2740 = vmatmul.mubr.bf16.gmra.mxu0 %v2521
    %v2741 = vpop.f32.mrf.mxu0
    %v2742 = vadd.f32 %v2701, %v2741
    %v2743 = vpop.f32.mrf.mxu0
    %v2744 = vpop.f32.mrf.mxu0
    %v2745 = vadd.f32 %v2704, %v2744
    %v2746 = vpop.f32.mrf.mxu0
    %2747 = vdwg.mxu0
    %v2748 = vld [vmem:[#allocation33] sm:$0x1]
    %v2749 = vld [vmem:[#allocation35] sm:$0x1]
    %v2750 = vadd.f32 %v2742, %v2745
    %v2751 = vrot.slane %v2750, 4
    %v2752 = vadd.f32 %v2750, %v2751
    %v2753 = vrot.slane %v2752, 2
    %v2754 = vadd.f32 %v2752, %v2753
    %v2755 = vrot.slane %v2754, 1
    %v2756 = vadd.f32 %v2754, %v2755
    %v2757 = vmul.f32 %v2742, %v2742
    %v2758 = vmul.f32 %v2745, %v2745
    %v2759 = vadd.f32 %v2757, %v2758
    %v2760 = vrot.slane %v2759, 4
    %v2761 = vadd.f32 %v2759, %v2760
    %v2762 = vrot.slane %v2761, 2
    %v2763 = vadd.f32 %v2761, %v2762
    %v2764 = vrot.slane %v2763, 1
    %v2765 = vadd.f32 %v2763, %v2764
    %v2766 = vmul.f32 %v2756, 0.0625
    %v2767 = vmul.f32 %v2765, 0.0625
    %v2768 = vmul.f32 %v2766, %v2766
    %v2769 = vsub.f32 %v2767, %v2768
    %v2770 = vadd.f32 %v2769, 1e-05
    %v2771 = vrsqrt.pop %v2770
    %v2772 = vmul.f32 %v2748, %v2771
    %v2774 = vlaneseq
    %v2775 = vshrl.u32 %v2774, 7
    %v2776 = vsub.s32 0, %v2775
    %v2777 = vrot.slane %v2772, %v2776
    %v2779 = vmul.f32 %v2742, %v2777
    %v2780 = vmul.f32 %v2745, %v2777
    %v2781 = vmul.f32 %v2766, %v2772
    %v2782 = vsub.f32 %v2749, %v2781
    %v2784 = vlaneseq
    %v2785 = vshrl.u32 %v2784, 7
    %v2786 = vsub.s32 0, %v2785
    %v2787 = vrot.slane %v2782, %v2786
    %v2789 = vadd.f32 %v2779, %v2787
    %v2790 = vadd.f32 %v2780, %v2787
    %v2791 = vadd.f32 %v2789, %v2486
    %v2792 = vadd.f32 %v2790, %v2487
    %v2793 = vmax.f32 %v2791, 0.0
    %v2794 = vmax.f32 %v2792, 0.0
    %v2795 = vld [vmem:[#allocation39] sm:$0xff]
    %v2796 = vld [vmem:[#allocation39 + $0x8] sm:$0xff]
    %v2797 = vld [vmem:[#allocation39 + $0x10] sm:$0xff]
    %v2798 = vld [vmem:[#allocation39 + $0x18] sm:$0xff]
    %v2799 = vld [vmem:[#allocation39 + $0x20] sm:$0xff]
    %v2800 = vld [vmem:[#allocation39 + $0x28] sm:$0xff]
    %v2801 = vld [vmem:[#allocation39 + $0x30] sm:$0xff]
    %v2802 = vld [vmem:[#allocation39 + $0x38] sm:$0xff]
    %v2803 = vld [vmem:[#allocation39 + $0x40] sm:$0xff]
    %v2804 = vld [vmem:[#allocation39 + $0x48] sm:$0xff]
    %v2805 = vld [vmem:[#allocation39 + $0x50] sm:$0xff]
    %v2806 = vld [vmem:[#allocation39 + $0x58] sm:$0xff]
    %v2807 = vld [vmem:[#allocation39 + $0x60] sm:$0xff]
    %v2808 = vld [vmem:[#allocation39 + $0x68] sm:$0xff]
    %v2809 = vld [vmem:[#allocation39 + $0x70] sm:$0xff]
    %v2810 = vld [vmem:[#allocation39 + $0x78] sm:$0xff]
    %v2811 = vld [vmem:[#allocation39 + $0x80] sm:$0xff]
    %v2812 = vld [vmem:[#allocation39 + $0x88] sm:$0xff]
    %v2813 = vld [vmem:[#allocation39 + $0x90] sm:$0xff]
    %v2814 = vld [vmem:[#allocation39 + $0x98] sm:$0xff]
    %v2815 = vld [vmem:[#allocation39 + $0xa0] sm:$0xff]
    %v2816 = vld [vmem:[#allocation39 + $0xa8] sm:$0xff]
    %v2817 = vld [vmem:[#allocation39 + $0xb0] sm:$0xff]
    %v2818 = vld [vmem:[#allocation39 + $0xb8] sm:$0xff]
    %v2819 = vld [vmem:[#allocation39 + $0xc0] sm:$0xff]
    %v2820 = vld [vmem:[#allocation39 + $0xc8] sm:$0xff]
    %v2821 = vld [vmem:[#allocation39 + $0xd0] sm:$0xff]
    %v2822 = vld [vmem:[#allocation39 + $0xd8] sm:$0xff]
    %v2823 = vld [vmem:[#allocation39 + $0xe0] sm:$0xff]
    %v2824 = vld [vmem:[#allocation39 + $0xe8] sm:$0xff]
    %v2825 = vld [vmem:[#allocation39 + $0xf0] sm:$0xff]
    %v2826 = vld [vmem:[#allocation39 + $0xf8] sm:$0xff]
    %v2827 = vld [vmem:[#allocation39 + $0x100] sm:$0xff]
    %v2828 = vld [vmem:[#allocation39 + $0x108] sm:$0xff]
    %v2829 = vld [vmem:[#allocation39 + $0x110] sm:$0xff]
    %v2830 = vld [vmem:[#allocation39 + $0x118] sm:$0xff]
    %v2831 = vld [vmem:[#allocation39 + $0x120] sm:$0xff]
    %v2832 = vld [vmem:[#allocation39 + $0x128] sm:$0xff]
    %v2833 = vld [vmem:[#allocation39 + $0x130] sm:$0xff]
    %v2834 = vld [vmem:[#allocation39 + $0x138] sm:$0xff]
    %v2835 = vld [vmem:[#allocation39 + $0x140] sm:$0xff]
    %v2836 = vld [vmem:[#allocation39 + $0x148] sm:$0xff]
    %v2837 = vld [vmem:[#allocation39 + $0x150] sm:$0xff]
    %v2838 = vld [vmem:[#allocation39 + $0x158] sm:$0xff]
    %v2839 = vld [vmem:[#allocation39 + $0x160] sm:$0xff]
    %v2840 = vld [vmem:[#allocation39 + $0x168] sm:$0xff]
    %v2841 = vld [vmem:[#allocation39 + $0x170] sm:$0xff]
    %v2842 = vld [vmem:[#allocation39 + $0x178] sm:$0xff]
    %v2843 = vld [vmem:[#allocation39 + $0x180] sm:$0xff]
    %v2844 = vld [vmem:[#allocation39 + $0x188] sm:$0xff]
    %v2845 = vld [vmem:[#allocation39 + $0x190] sm:$0xff]
    %v2846 = vld [vmem:[#allocation39 + $0x198] sm:$0xff]
    %v2847 = vld [vmem:[#allocation39 + $0x1a0] sm:$0xff]
    %v2848 = vld [vmem:[#allocation39 + $0x1a8] sm:$0xff]
    %v2849 = vld [vmem:[#allocation39 + $0x1b0] sm:$0xff]
    %v2850 = vld [vmem:[#allocation39 + $0x1b8] sm:$0xff]
    %v2851 = vld [vmem:[#allocation39 + $0x1c0] sm:$0xff]
    %v2852 = vld [vmem:[#allocation39 + $0x1c8] sm:$0xff]
    %v2853 = vld [vmem:[#allocation39 + $0x1d0] sm:$0xff]
    %v2854 = vld [vmem:[#allocation39 + $0x1d8] sm:$0xff]
    %v2855 = vld [vmem:[#allocation39 + $0x1e0] sm:$0xff]
    %v2856 = vld [vmem:[#allocation39 + $0x1e8] sm:$0xff]
    %v2857 = vld [vmem:[#allocation39 + $0x1f0] sm:$0xff]
    %v2858 = vld [vmem:[#allocation39 + $0x1f8] sm:$0xff]
    %v2859 = vld [vmem:[#allocation39 + $0x200] sm:$0xff]
    %v2860 = vld [vmem:[#allocation39 + $0x208] sm:$0xff]
    %v2861 = vld [vmem:[#allocation39 + $0x210] sm:$0xff]
    %v2862 = vld [vmem:[#allocation39 + $0x218] sm:$0xff]
    %v2863 = vld [vmem:[#allocation39 + $0x220] sm:$0xff]
    %v2864 = vld [vmem:[#allocation39 + $0x228] sm:$0xff]
    %v2865 = vld [vmem:[#allocation39 + $0x230] sm:$0xff]
    %v2866 = vld [vmem:[#allocation39 + $0x238] sm:$0xff]
    %v2867 = vld [vmem:[#allocation39 + $0x240] sm:$0xff]
    %v2868 = vld [vmem:[#allocation39 + $0x248] sm:$0xff]
    %v2869 = vld [vmem:[#allocation39 + $0x250] sm:$0xff]
    %v2870 = vld [vmem:[#allocation39 + $0x258] sm:$0xff]
    %v2871 = vld [vmem:[#allocation39 + $0x260] sm:$0xff]
    %v2872 = vld [vmem:[#allocation39 + $0x268] sm:$0xff]
    %v2873 = vld [vmem:[#allocation39 + $0x270] sm:$0xff]
    %v2874 = vld [vmem:[#allocation39 + $0x278] sm:$0xff]
    %v2875 = vld [vmem:[#allocation39 + $0x280] sm:$0xff]
    %v2876 = vld [vmem:[#allocation39 + $0x288] sm:$0xff]
    %v2877 = vld [vmem:[#allocation39 + $0x290] sm:$0xff]
    %v2878 = vld [vmem:[#allocation39 + $0x298] sm:$0xff]
    %v2879 = vld [vmem:[#allocation39 + $0x2a0] sm:$0xff]
    %v2880 = vld [vmem:[#allocation39 + $0x2a8] sm:$0xff]
    %v2881 = vld [vmem:[#allocation39 + $0x2b0] sm:$0xff]
    %v2882 = vld [vmem:[#allocation39 + $0x2b8] sm:$0xff]
    %v2883 = vld [vmem:[#allocation39 + $0x2c0] sm:$0xff]
    %v2884 = vld [vmem:[#allocation39 + $0x2c8] sm:$0xff]
    %v2885 = vld [vmem:[#allocation39 + $0x2d0] sm:$0xff]
    %v2886 = vld [vmem:[#allocation39 + $0x2d8] sm:$0xff]
    %v2887 = vld [vmem:[#allocation39 + $0x2e0] sm:$0xff]
    %v2888 = vld [vmem:[#allocation39 + $0x2e8] sm:$0xff]
    %v2889 = vld [vmem:[#allocation39 + $0x2f0] sm:$0xff]
    %v2890 = vld [vmem:[#allocation39 + $0x2f8] sm:$0xff]
    %v2891 = vld [vmem:[#allocation47] sm:$0xff]
    %v2892 = vld [vmem:[#allocation47 + $0x8] sm:$0xff]
    %v2893 = vld [vmem:[#allocation47 + $0x10] sm:$0xff]
    %v2894 = vld [vmem:[#allocation47 + $0x18] sm:$0xff]
    %v2895 = vld [vmem:[#allocation47 + $0x20] sm:$0xff]
    %v2896 = vld [vmem:[#allocation47 + $0x28] sm:$0xff]
    %v2897 = vld [vmem:[#allocation47 + $0x30] sm:$0xff]
    %v2898 = vld [vmem:[#allocation47 + $0x38] sm:$0xff]
    %v2899 = vld [vmem:[#allocation47 + $0x40] sm:$0xff]
    %v2900 = vld [vmem:[#allocation47 + $0x48] sm:$0xff]
    %v2901 = vld [vmem:[#allocation47 + $0x50] sm:$0xff]
    %v2902 = vld [vmem:[#allocation47 + $0x58] sm:$0xff]
    %v2903 = vld [vmem:[#allocation47 + $0x60] sm:$0xff]
    %v2904 = vld [vmem:[#allocation47 + $0x68] sm:$0xff]
    %v2905 = vld [vmem:[#allocation47 + $0x70] sm:$0xff]
    %v2906 = vld [vmem:[#allocation47 + $0x78] sm:$0xff]
    %v2907 = vld [vmem:[#allocation47 + $0x80] sm:$0xff]
    %v2908 = vld [vmem:[#allocation47 + $0x88] sm:$0xff]
    %v2909 = vld [vmem:[#allocation47 + $0x90] sm:$0xff]
    %v2910 = vld [vmem:[#allocation47 + $0x98] sm:$0xff]
    %v2911 = vld [vmem:[#allocation47 + $0xa0] sm:$0xff]
    %v2912 = vld [vmem:[#allocation47 + $0xa8] sm:$0xff]
    %v2913 = vld [vmem:[#allocation47 + $0xb0] sm:$0xff]
    %v2914 = vld [vmem:[#allocation47 + $0xb8] sm:$0xff]
    %v2915 = vld [vmem:[#allocation47 + $0xc0] sm:$0xff]
    %v2916 = vld [vmem:[#allocation47 + $0xc8] sm:$0xff]
    %v2917 = vld [vmem:[#allocation47 + $0xd0] sm:$0xff]
    %v2918 = vld [vmem:[#allocation47 + $0xd8] sm:$0xff]
    %v2919 = vld [vmem:[#allocation47 + $0xe0] sm:$0xff]
    %v2920 = vld [vmem:[#allocation47 + $0xe8] sm:$0xff]
    %v2921 = vld [vmem:[#allocation47 + $0xf0] sm:$0xff]
    %v2922 = vld [vmem:[#allocation47 + $0xf8] sm:$0xff]
    %v2923 = vld [vmem:[#allocation47 + $0x100] sm:$0xff]
    %v2924 = vld [vmem:[#allocation47 + $0x108] sm:$0xff]
    %v2925 = vld [vmem:[#allocation47 + $0x110] sm:$0xff]
    %v2926 = vld [vmem:[#allocation47 + $0x118] sm:$0xff]
    %v2927 = vld [vmem:[#allocation47 + $0x120] sm:$0xff]
    %v2928 = vld [vmem:[#allocation47 + $0x128] sm:$0xff]
    %v2929 = vld [vmem:[#allocation47 + $0x130] sm:$0xff]
    %v2930 = vld [vmem:[#allocation47 + $0x138] sm:$0xff]
    %v2931 = vld [vmem:[#allocation47 + $0x140] sm:$0xff]
    %v2932 = vld [vmem:[#allocation47 + $0x148] sm:$0xff]
    %v2933 = vld [vmem:[#allocation47 + $0x150] sm:$0xff]
    %v2934 = vld [vmem:[#allocation47 + $0x158] sm:$0xff]
    %v2935 = vld [vmem:[#allocation47 + $0x160] sm:$0xff]
    %v2936 = vld [vmem:[#allocation47 + $0x168] sm:$0xff]
    %v2937 = vld [vmem:[#allocation47 + $0x170] sm:$0xff]
    %v2938 = vld [vmem:[#allocation47 + $0x178] sm:$0xff]
    %v2939 = vld [vmem:[#allocation47 + $0x180] sm:$0xff]
    %v2940 = vld [vmem:[#allocation47 + $0x188] sm:$0xff]
    %v2941 = vld [vmem:[#allocation47 + $0x190] sm:$0xff]
    %v2942 = vld [vmem:[#allocation47 + $0x198] sm:$0xff]
    %v2943 = vld [vmem:[#allocation47 + $0x1a0] sm:$0xff]
    %v2944 = vld [vmem:[#allocation47 + $0x1a8] sm:$0xff]
    %v2945 = vld [vmem:[#allocation47 + $0x1b0] sm:$0xff]
    %v2946 = vld [vmem:[#allocation47 + $0x1b8] sm:$0xff]
    %v2947 = vld [vmem:[#allocation47 + $0x1c0] sm:$0xff]
    %v2948 = vld [vmem:[#allocation47 + $0x1c8] sm:$0xff]
    %v2949 = vld [vmem:[#allocation47 + $0x1d0] sm:$0xff]
    %v2950 = vld [vmem:[#allocation47 + $0x1d8] sm:$0xff]
    %v2951 = vld [vmem:[#allocation47 + $0x1e0] sm:$0xff]
    %v2952 = vld [vmem:[#allocation47 + $0x1e8] sm:$0xff]
    %v2953 = vld [vmem:[#allocation47 + $0x1f0] sm:$0xff]
    %v2954 = vld [vmem:[#allocation47 + $0x1f8] sm:$0xff]
    %v2955 = vld [vmem:[#allocation47 + $0x200] sm:$0xff]
    %v2956 = vld [vmem:[#allocation47 + $0x208] sm:$0xff]
    %v2957 = vld [vmem:[#allocation47 + $0x210] sm:$0xff]
    %v2958 = vld [vmem:[#allocation47 + $0x218] sm:$0xff]
    %v2959 = vld [vmem:[#allocation47 + $0x220] sm:$0xff]
    %v2960 = vld [vmem:[#allocation47 + $0x228] sm:$0xff]
    %v2961 = vld [vmem:[#allocation47 + $0x230] sm:$0xff]
    %v2962 = vld [vmem:[#allocation47 + $0x238] sm:$0xff]
    %v2963 = vld [vmem:[#allocation47 + $0x240] sm:$0xff]
    %v2964 = vld [vmem:[#allocation47 + $0x248] sm:$0xff]
    %v2965 = vld [vmem:[#allocation47 + $0x250] sm:$0xff]
    %v2966 = vld [vmem:[#allocation47 + $0x258] sm:$0xff]
    %v2967 = vld [vmem:[#allocation47 + $0x260] sm:$0xff]
    %v2968 = vld [vmem:[#allocation47 + $0x268] sm:$0xff]
    %v2969 = vld [vmem:[#allocation47 + $0x270] sm:$0xff]
    %v2970 = vld [vmem:[#allocation47 + $0x278] sm:$0xff]
    %v2971 = vld [vmem:[#allocation47 + $0x280] sm:$0xff]
    %v2972 = vld [vmem:[#allocation47 + $0x288] sm:$0xff]
    %v2973 = vld [vmem:[#allocation47 + $0x290] sm:$0xff]
    %v2974 = vld [vmem:[#allocation47 + $0x298] sm:$0xff]
    %v2975 = vld [vmem:[#allocation47 + $0x2a0] sm:$0xff]
    %v2976 = vld [vmem:[#allocation47 + $0x2a8] sm:$0xff]
    %v2977 = vld [vmem:[#allocation47 + $0x2b0] sm:$0xff]
    %v2978 = vld [vmem:[#allocation47 + $0x2b8] sm:$0xff]
    %v2979 = vld [vmem:[#allocation47 + $0x2c0] sm:$0xff]
    %v2980 = vld [vmem:[#allocation47 + $0x2c8] sm:$0xff]
    %v2981 = vld [vmem:[#allocation47 + $0x2d0] sm:$0xff]
    %v2982 = vld [vmem:[#allocation47 + $0x2d8] sm:$0xff]
    %v2983 = vld [vmem:[#allocation47 + $0x2e0] sm:$0xff]
    %v2984 = vld [vmem:[#allocation47 + $0x2e8] sm:$0xff]
    %v2985 = vld [vmem:[#allocation47 + $0x2f0] sm:$0xff]
    %v2986 = vld [vmem:[#allocation47 + $0x2f8] sm:$0xff]
    %v2987 = vpack.c.bf16 %v2794, %v2793
    %v2988 = vld [vmem:[#allocation36] sm:$0xf]
    %vm2989 = vcmask 130048
    %v2991 = vsel %vm2989, %v2988, 0
    %2993 = vmatprep.subr.bf16.mxu0 0
    %2994 = vmatpush1.bf16.msra.mxu0 0
    %2995 = vmatprep.subr.bf16.mxu0 0
    %2996 = vmatpush1.bf16.msra.mxu0 0
    %2997 = vmatprep.subr.bf16.mxu0 0
    %2998 = vmatpush1.bf16.msra.mxu0 0
    %2999 = vmatprep.subr.bf16.mxu0 0
    %3000 = vmatpush1.bf16.msra.mxu0 0
    %3001 = vmatprep.subr.bf16.mxu0 0
    %3002 = vmatpush1.bf16.msra.mxu0 0
    %3003 = vmatprep.subr.bf16.mxu0 0
    %3004 = vmatpush1.bf16.msra.mxu0 0
    %3005 = vmatprep.subr.bf16.mxu0 0
    %3006 = vmatpush1.bf16.msra.mxu0 0
    %3007 = vmatprep.subr.bf16.mxu0 0
    %3008 = vmatpush1.bf16.msra.mxu0 %v2987
    %3009 = vmatprep.subr.bf16.mxu0 0
    %3010 = vmatpush2.bf16.msra.mxu0 0
    %3011 = vmatprep.subr.bf16.mxu0 0
    %3012 = vmatpush2.bf16.msra.mxu0 0
    %3013 = vmatprep.subr.bf16.mxu0 0
    %3014 = vmatpush2.bf16.msra.mxu0 0
    %3015 = vmatprep.subr.bf16.mxu0 0
    %3016 = vmatpush2.bf16.msra.mxu0 0
    %3017 = vmatprep.subr.bf16.mxu0 0
    %3018 = vmatpush2.bf16.msra.mxu0 0
    %3019 = vmatprep.subr.bf16.mxu0 0
    %3020 = vmatpush2.bf16.msra.mxu0 0
    %3021 = vmatprep.subr.bf16.mxu0 0
    %3022 = vmatpush2.bf16.msra.mxu0 0
    %3023 = vmatprep.subr.bf16.mxu0 0
    %3024 = vmatpush2.bf16.msra.mxu0 0
    %3025 = vmatprep.mubr.bf16.mxu0 0
    %3026 = vmatmul.mubr.bf16.gmra.mxu0 %v2991
    %v3027 = vpop.f32.mrf.mxu0
    %v3028 = vadd.f32 0.0, %v3027
    %v3029 = vpop.f32.mrf.mxu0
    %v3030 = vpop.f32.mrf.mxu0
    %v3031 = vpop.f32.mrf.mxu0
    %3032 = vdwg.mxu0
    %v3033 = vld [vmem:[#allocation38] sm:$0xf]
    %v3035 = vsel %vm2989, %v3033, 0
    %3037 = vmatprep.subr.bf16.mxu0 0
    %3038 = vmatpush1.bf16.msra.mxu0 0
    %3039 = vmatprep.subr.bf16.mxu0 0
    %3040 = vmatpush1.bf16.msra.mxu0 0
    %3041 = vmatprep.subr.bf16.mxu0 0
    %3042 = vmatpush1.bf16.msra.mxu0 0
    %3043 = vmatprep.subr.bf16.mxu0 0
    %3044 = vmatpush1.bf16.msra.mxu0 0
    %3045 = vmatprep.subr.bf16.mxu0 0
    %3046 = vmatpush1.bf16.msra.mxu0 0
    %3047 = vmatprep.subr.bf16.mxu0 0
    %3048 = vmatpush1.bf16.msra.mxu0 0
    %3049 = vmatprep.subr.bf16.mxu0 0
    %3050 = vmatpush1.bf16.msra.mxu0 0
    %3051 = vmatprep.subr.bf16.mxu0 0
    %3052 = vmatpush1.bf16.msra.mxu0 %v2987
    %3053 = vmatprep.subr.bf16.mxu0 0
    %3054 = vmatpush2.bf16.msra.mxu0 0
    %3055 = vmatprep.subr.bf16.mxu0 0
    %3056 = vmatpush2.bf16.msra.mxu0 0
    %3057 = vmatprep.subr.bf16.mxu0 0
    %3058 = vmatpush2.bf16.msra.mxu0 0
    %3059 = vmatprep.subr.bf16.mxu0 0
    %3060 = vmatpush2.bf16.msra.mxu0 0
    %3061 = vmatprep.subr.bf16.mxu0 0
    %3062 = vmatpush2.bf16.msra.mxu0 0
    %3063 = vmatprep.subr.bf16.mxu0 0
    %3064 = vmatpush2.bf16.msra.mxu0 0
    %3065 = vmatprep.subr.bf16.mxu0 0
    %3066 = vmatpush2.bf16.msra.mxu0 0
    %3067 = vmatprep.subr.bf16.mxu0 0
    %3068 = vmatpush2.bf16.msra.mxu0 0
    %3069 = vmatprep.mubr.bf16.mxu0 0
    %3070 = vmatmul.mubr.bf16.gmra.mxu0 %v3035
    %v3071 = vpop.f32.mrf.mxu0
    %v3072 = vadd.f32 0.0, %v3071
    %v3073 = vpop.f32.mrf.mxu0
    %v3074 = vpop.f32.mrf.mxu0
    %v3075 = vpop.f32.mrf.mxu0
    %3076 = vdwg.mxu0
    %v3078 = vrot.slane %v3072, 7
    %3080 = vst [vmem:[#allocation2] sm:$0xfe] %v3078
    %3081 = vst [vmem:[#allocation2 + $0x20] sm:$0x1] %v3078
    %v3082 = vld [vmem:[#allocation2] sm:$0xff]
    %v3083 = vand.u32 %v1006, 3
    %vm3084 = vcmp.eq.s32.totalorder %v3083, 0
    %v3085 = vsel %vm3084, 0.0, %v3082
    %v3086 = vpack.c.bf16 %v3085, %v3085
    %v3087 = vpack.c.bf16 %v3028, %v3028
    %v3088 = vpack.c.bf16 %v3072, %v3072
    %v3185 = vunpack.c.l.b16 %v2795
    %v3186 = vunpack.c.h.b16 %v2795
    %v3187 = vunpack.c.l.b16 %v2796
    %v3188 = vunpack.c.h.b16 %v2796
    %v3189 = vunpack.c.l.b16 %v2797
    %v3190 = vunpack.c.h.b16 %v2797
    %v3191 = vunpack.c.l.b16 %v2798
    %v3192 = vunpack.c.h.b16 %v2798
    %v3193 = vunpack.c.l.b16 %v2799
    %v3194 = vunpack.c.h.b16 %v2799
    %v3195 = vunpack.c.l.b16 %v2800
    %v3196 = vunpack.c.h.b16 %v2800
    %v3197 = vunpack.c.l.b16 %v2801
    %v3198 = vunpack.c.h.b16 %v2801
    %v3199 = vunpack.c.l.b16 %v2802
    %v3200 = vunpack.c.h.b16 %v2802
    %v3201 = vunpack.c.l.b16 %v2803
    %v3202 = vunpack.c.h.b16 %v2803
    %v3203 = vunpack.c.l.b16 %v2804
    %v3204 = vunpack.c.h.b16 %v2804
    %v3205 = vunpack.c.l.b16 %v2805
    %v3206 = vunpack.c.h.b16 %v2805
    %v3207 = vunpack.c.l.b16 %v2806
    %v3208 = vunpack.c.h.b16 %v2806
    %v3209 = vunpack.c.l.b16 %v2807
    %v3210 = vunpack.c.h.b16 %v2807
    %v3211 = vunpack.c.l.b16 %v2808
    %v3212 = vunpack.c.h.b16 %v2808
    %v3213 = vunpack.c.l.b16 %v2809
    %v3214 = vunpack.c.h.b16 %v2809
    %v3215 = vunpack.c.l.b16 %v2810
    %v3216 = vunpack.c.h.b16 %v2810
    %v3217 = vunpack.c.l.b16 %v2811
    %v3218 = vunpack.c.h.b16 %v2811
    %v3219 = vunpack.c.l.b16 %v2812
    %v3220 = vunpack.c.h.b16 %v2812
    %v3221 = vunpack.c.l.b16 %v2813
    %v3222 = vunpack.c.h.b16 %v2813
    %v3223 = vunpack.c.l.b16 %v2814
    %v3224 = vunpack.c.h.b16 %v2814
    %v3225 = vunpack.c.l.b16 %v2815
    %v3226 = vunpack.c.h.b16 %v2815
    %v3227 = vunpack.c.l.b16 %v2816
    %v3228 = vunpack.c.h.b16 %v2816
    %v3229 = vunpack.c.l.b16 %v2817
    %v3230 = vunpack.c.h.b16 %v2817
    %v3231 = vunpack.c.l.b16 %v2818
    %v3232 = vunpack.c.h.b16 %v2818
    %v3233 = vunpack.c.l.b16 %v2819
    %v3234 = vunpack.c.h.b16 %v2819
    %v3235 = vunpack.c.l.b16 %v2820
    %v3236 = vunpack.c.h.b16 %v2820
    %v3237 = vunpack.c.l.b16 %v2821
    %v3238 = vunpack.c.h.b16 %v2821
    %v3239 = vunpack.c.l.b16 %v2822
    %v3240 = vunpack.c.h.b16 %v2822
    %v3241 = vunpack.c.l.b16 %v2823
    %v3242 = vunpack.c.h.b16 %v2823
    %v3243 = vunpack.c.l.b16 %v2824
    %v3244 = vunpack.c.h.b16 %v2824
    %v3245 = vunpack.c.l.b16 %v2825
    %v3246 = vunpack.c.h.b16 %v2825
    %v3247 = vunpack.c.l.b16 %v2826
    %v3248 = vunpack.c.h.b16 %v2826
    %v3249 = vunpack.c.l.b16 %v2827
    %v3250 = vunpack.c.h.b16 %v2827
    %v3251 = vunpack.c.l.b16 %v2828
    %v3252 = vunpack.c.h.b16 %v2828
    %v3253 = vunpack.c.l.b16 %v2829
    %v3254 = vunpack.c.h.b16 %v2829
    %v3255 = vunpack.c.l.b16 %v2830
    %v3256 = vunpack.c.h.b16 %v2830
    %v3257 = vunpack.c.l.b16 %v2831
    %v3258 = vunpack.c.h.b16 %v2831
    %v3259 = vunpack.c.l.b16 %v2832
    %v3260 = vunpack.c.h.b16 %v2832
    %v3261 = vunpack.c.l.b16 %v2833
    %v3262 = vunpack.c.h.b16 %v2833
    %v3263 = vunpack.c.l.b16 %v2834
    %v3264 = vunpack.c.h.b16 %v2834
    %v3265 = vunpack.c.l.b16 %v2835
    %v3266 = vunpack.c.h.b16 %v2835
    %v3267 = vunpack.c.l.b16 %v2836
    %v3268 = vunpack.c.h.b16 %v2836
    %v3269 = vunpack.c.l.b16 %v2837
    %v3270 = vunpack.c.h.b16 %v2837
    %v3271 = vunpack.c.l.b16 %v2838
    %v3272 = vunpack.c.h.b16 %v2838
    %v3273 = vunpack.c.l.b16 %v2839
    %v3274 = vunpack.c.h.b16 %v2839
    %v3275 = vunpack.c.l.b16 %v2840
    %v3276 = vunpack.c.h.b16 %v2840
    %v3277 = vunpack.c.l.b16 %v2841
    %v3278 = vunpack.c.h.b16 %v2841
    %v3279 = vunpack.c.l.b16 %v2842
    %v3280 = vunpack.c.h.b16 %v2842
    %v3281 = vunpack.c.l.b16 %v2843
    %v3282 = vunpack.c.h.b16 %v2843
    %v3283 = vunpack.c.l.b16 %v2844
    %v3284 = vunpack.c.h.b16 %v2844
    %v3285 = vunpack.c.l.b16 %v2845
    %v3286 = vunpack.c.h.b16 %v2845
    %v3287 = vunpack.c.l.b16 %v2846
    %v3288 = vunpack.c.h.b16 %v2846
    %v3289 = vunpack.c.l.b16 %v2847
    %v3290 = vunpack.c.h.b16 %v2847
    %v3291 = vunpack.c.l.b16 %v2848
    %v3292 = vunpack.c.h.b16 %v2848
    %v3293 = vunpack.c.l.b16 %v2849
    %v3294 = vunpack.c.h.b16 %v2849
    %v3295 = vunpack.c.l.b16 %v2850
    %v3296 = vunpack.c.h.b16 %v2850
    %v3297 = vunpack.c.l.b16 %v2851
    %v3298 = vunpack.c.h.b16 %v2851
    %v3299 = vunpack.c.l.b16 %v2852
    %v3300 = vunpack.c.h.b16 %v2852
    %v3301 = vunpack.c.l.b16 %v2853
    %v3302 = vunpack.c.h.b16 %v2853
    %v3303 = vunpack.c.l.b16 %v2854
    %v3304 = vunpack.c.h.b16 %v2854
    %v3305 = vunpack.c.l.b16 %v2855
    %v3306 = vunpack.c.h.b16 %v2855
    %v3307 = vunpack.c.l.b16 %v2856
    %v3308 = vunpack.c.h.b16 %v2856
    %v3309 = vunpack.c.l.b16 %v2857
    %v3310 = vunpack.c.h.b16 %v2857
    %v3311 = vunpack.c.l.b16 %v2858
    %v3312 = vunpack.c.h.b16 %v2858
    %v3313 = vunpack.c.l.b16 %v2859
    %v3314 = vunpack.c.h.b16 %v2859
    %v3315 = vunpack.c.l.b16 %v2860
    %v3316 = vunpack.c.h.b16 %v2860
    %v3317 = vunpack.c.l.b16 %v2861
    %v3318 = vunpack.c.h.b16 %v2861
    %v3319 = vunpack.c.l.b16 %v2862
    %v3320 = vunpack.c.h.b16 %v2862
    %v3321 = vunpack.c.l.b16 %v2863
    %v3322 = vunpack.c.h.b16 %v2863
    %v3323 = vunpack.c.l.b16 %v2864
    %v3324 = vunpack.c.h.b16 %v2864
    %v3325 = vunpack.c.l.b16 %v2865
    %v3326 = vunpack.c.h.b16 %v2865
    %v3327 = vunpack.c.l.b16 %v2866
    %v3328 = vunpack.c.h.b16 %v2866
    %v3329 = vunpack.c.l.b16 %v2867
    %v3330 = vunpack.c.h.b16 %v2867
    %v3331 = vunpack.c.l.b16 %v2868
    %v3332 = vunpack.c.h.b16 %v2868
    %v3333 = vunpack.c.l.b16 %v2869
    %v3334 = vunpack.c.h.b16 %v2869
    %v3335 = vunpack.c.l.b16 %v2870
    %v3336 = vunpack.c.h.b16 %v2870
    %v3337 = vunpack.c.l.b16 %v2871
    %v3338 = vunpack.c.h.b16 %v2871
    %v3339 = vunpack.c.l.b16 %v2872
    %v3340 = vunpack.c.h.b16 %v2872
    %v3341 = vunpack.c.l.b16 %v2873
    %v3342 = vunpack.c.h.b16 %v2873
    %v3343 = vunpack.c.l.b16 %v2874
    %v3344 = vunpack.c.h.b16 %v2874
    %v3345 = vunpack.c.l.b16 %v2875
    %v3346 = vunpack.c.h.b16 %v2875
    %v3347 = vunpack.c.l.b16 %v2876
    %v3348 = vunpack.c.h.b16 %v2876
    %v3349 = vunpack.c.l.b16 %v2877
    %v3350 = vunpack.c.h.b16 %v2877
    %v3351 = vunpack.c.l.b16 %v2878
    %v3352 = vunpack.c.h.b16 %v2878
    %v3353 = vunpack.c.l.b16 %v2879
    %v3354 = vunpack.c.h.b16 %v2879
    %v3355 = vunpack.c.l.b16 %v2880
    %v3356 = vunpack.c.h.b16 %v2880
    %v3357 = vunpack.c.l.b16 %v2881
    %v3358 = vunpack.c.h.b16 %v2881
    %v3359 = vunpack.c.l.b16 %v2882
    %v3360 = vunpack.c.h.b16 %v2882
    %v3361 = vunpack.c.l.b16 %v2883
    %v3362 = vunpack.c.h.b16 %v2883
    %v3363 = vunpack.c.l.b16 %v2884
    %v3364 = vunpack.c.h.b16 %v2884
    %v3365 = vunpack.c.l.b16 %v2885
    %v3366 = vunpack.c.h.b16 %v2885
    %v3367 = vunpack.c.l.b16 %v2886
    %v3368 = vunpack.c.h.b16 %v2886
    %v3369 = vunpack.c.l.b16 %v2887
    %v3370 = vunpack.c.h.b16 %v2887
    %v3371 = vunpack.c.l.b16 %v2888
    %v3372 = vunpack.c.h.b16 %v2888
    %v3373 = vunpack.c.l.b16 %v2889
    %v3374 = vunpack.c.h.b16 %v2889
    %v3375 = vunpack.c.l.b16 %v2890
    %v3376 = vunpack.c.h.b16 %v2890
    %v3377 = vpack.c.b16 %v3189, %v3185
    %v3378 = vpack.c.b16 %v3190, %v3186
    %v3379 = vpack.c.b16 %v3191, %v3187
    %v3380 = vpack.c.b16 %v3192, %v3188
    %v3381 = vpack.c.b16 %v3197, %v3193
    %v3382 = vpack.c.b16 %v3198, %v3194
    %v3383 = vpack.c.b16 %v3199, %v3195
    %v3384 = vpack.c.b16 %v3200, %v3196
    %v3385 = vpack.c.b16 %v3205, %v3201
    %v3386 = vpack.c.b16 %v3206, %v3202
    %v3387 = vpack.c.b16 %v3207, %v3203
    %v3388 = vpack.c.b16 %v3208, %v3204
    %v3389 = vpack.c.b16 %v3213, %v3209
    %v3390 = vpack.c.b16 %v3214, %v3210
    %v3391 = vpack.c.b16 %v3215, %v3211
    %v3392 = vpack.c.b16 %v3216, %v3212
    %v3393 = vpack.c.b16 %v3221, %v3217
    %v3394 = vpack.c.b16 %v3222, %v3218
    %v3395 = vpack.c.b16 %v3223, %v3219
    %v3396 = vpack.c.b16 %v3224, %v3220
    %v3397 = vpack.c.b16 %v3229, %v3225
    %v3398 = vpack.c.b16 %v3230, %v3226
    %v3399 = vpack.c.b16 %v3231, %v3227
    %v3400 = vpack.c.b16 %v3232, %v3228
    %v3401 = vpack.c.b16 %v3237, %v3233
    %v3402 = vpack.c.b16 %v3238, %v3234
    %v3403 = vpack.c.b16 %v3239, %v3235
    %v3404 = vpack.c.b16 %v3240, %v3236
    %v3405 = vpack.c.b16 %v3245, %v3241
    %v3406 = vpack.c.b16 %v3246, %v3242
    %v3407 = vpack.c.b16 %v3247, %v3243
    %v3408 = vpack.c.b16 %v3248, %v3244
    %v3409 = vpack.c.b16 %v3253, %v3249
    %v3410 = vpack.c.b16 %v3254, %v3250
    %v3411 = vpack.c.b16 %v3255, %v3251
    %v3412 = vpack.c.b16 %v3256, %v3252
    %v3413 = vpack.c.b16 %v3261, %v3257
    %v3414 = vpack.c.b16 %v3262, %v3258
    %v3415 = vpack.c.b16 %v3263, %v3259
    %v3416 = vpack.c.b16 %v3264, %v3260
    %v3417 = vpack.c.b16 %v3269, %v3265
    %v3418 = vpack.c.b16 %v3270, %v3266
    %v3419 = vpack.c.b16 %v3271, %v3267
    %v3420 = vpack.c.b16 %v3272, %v3268
    %v3421 = vpack.c.b16 %v3277, %v3273
    %v3422 = vpack.c.b16 %v3278, %v3274
    %v3423 = vpack.c.b16 %v3279, %v3275
    %v3424 = vpack.c.b16 %v3280, %v3276
    %v3425 = vpack.c.b16 %v3285, %v3281
    %v3426 = vpack.c.b16 %v3286, %v3282
    %v3427 = vpack.c.b16 %v3287, %v3283
    %v3428 = vpack.c.b16 %v3288, %v3284
    %v3429 = vpack.c.b16 %v3293, %v3289
    %v3430 = vpack.c.b16 %v3294, %v3290
    %v3431 = vpack.c.b16 %v3295, %v3291
    %v3432 = vpack.c.b16 %v3296, %v3292
    %v3433 = vpack.c.b16 %v3301, %v3297
    %v3434 = vpack.c.b16 %v3302, %v3298
    %v3435 = vpack.c.b16 %v3303, %v3299
    %v3436 = vpack.c.b16 %v3304, %v3300
    %v3437 = vpack.c.b16 %v3309, %v3305
    %v3438 = vpack.c.b16 %v3310, %v3306
    %v3439 = vpack.c.b16 %v3311, %v3307
    %v3440 = vpack.c.b16 %v3312, %v3308
    %v3441 = vpack.c.b16 %v3317, %v3313
    %v3442 = vpack.c.b16 %v3318, %v3314
    %v3443 = vpack.c.b16 %v3319, %v3315
    %v3444 = vpack.c.b16 %v3320, %v3316
    %v3445 = vpack.c.b16 %v3325, %v3321
    %v3446 = vpack.c.b16 %v3326, %v3322
    %v3447 = vpack.c.b16 %v3327, %v3323
    %v3448 = vpack.c.b16 %v3328, %v3324
    %v3449 = vpack.c.b16 %v3333, %v3329
    %v3450 = vpack.c.b16 %v3334, %v3330
    %v3451 = vpack.c.b16 %v3335, %v3331
    %v3452 = vpack.c.b16 %v3336, %v3332
    %v3453 = vpack.c.b16 %v3341, %v3337
    %v3454 = vpack.c.b16 %v3342, %v3338
    %v3455 = vpack.c.b16 %v3343, %v3339
    %v3456 = vpack.c.b16 %v3344, %v3340
    %v3457 = vpack.c.b16 %v3349, %v3345
    %v3458 = vpack.c.b16 %v3350, %v3346
    %v3459 = vpack.c.b16 %v3351, %v3347
    %v3460 = vpack.c.b16 %v3352, %v3348
    %v3461 = vpack.c.b16 %v3357, %v3353
    %v3462 = vpack.c.b16 %v3358, %v3354
    %v3463 = vpack.c.b16 %v3359, %v3355
    %v3464 = vpack.c.b16 %v3360, %v3356
    %v3465 = vpack.c.b16 %v3365, %v3361
    %v3466 = vpack.c.b16 %v3366, %v3362
    %v3467 = vpack.c.b16 %v3367, %v3363
    %v3468 = vpack.c.b16 %v3368, %v3364
    %v3469 = vpack.c.b16 %v3373, %v3369
    %v3470 = vpack.c.b16 %v3374, %v3370
    %v3471 = vpack.c.b16 %v3375, %v3371
    %v3472 = vpack.c.b16 %v3376, %v3372
    %3569 = vmatprep.subr.bf16.mxu0 %v3406
    %3570 = vmatpush1.bf16.msra.mxu0 %v3405
    %3571 = vmatprep.subr.bf16.mxu0 %v3402
    %3572 = vmatpush1.bf16.msra.mxu0 %v3401
    %3573 = vmatprep.subr.bf16.mxu0 %v3398
    %3574 = vmatpush1.bf16.msra.mxu0 %v3397
    %3575 = vmatprep.subr.bf16.mxu0 %v3394
    %3576 = vmatpush1.bf16.msra.mxu0 %v3393
    %3577 = vmatprep.subr.bf16.mxu0 %v3390
    %3578 = vmatpush1.bf16.msra.mxu0 %v3389
    %3579 = vmatprep.subr.bf16.mxu0 %v3386
    %3580 = vmatpush1.bf16.msra.mxu0 %v3385
    %3581 = vmatprep.subr.bf16.mxu0 %v3382
    %3582 = vmatpush1.bf16.msra.mxu0 %v3381
    %3583 = vmatprep.subr.bf16.mxu0 %v3378
    %3584 = vmatpush1.bf16.msra.mxu0 %v3377
    %3585 = vmatprep.subr.bf16.mxu0 %v3438
    %3586 = vmatpush2.bf16.msra.mxu0 %v3437
    %3587 = vmatprep.subr.bf16.mxu0 %v3434
    %3588 = vmatpush2.bf16.msra.mxu0 %v3433
    %3589 = vmatprep.subr.bf16.mxu0 %v3430
    %3590 = vmatpush2.bf16.msra.mxu0 %v3429
    %3591 = vmatprep.subr.bf16.mxu0 %v3426
    %3592 = vmatpush2.bf16.msra.mxu0 %v3425
    %3593 = vmatprep.subr.bf16.mxu0 %v3422
    %3594 = vmatpush2.bf16.msra.mxu0 %v3421
    %3595 = vmatprep.subr.bf16.mxu0 %v3418
    %3596 = vmatpush2.bf16.msra.mxu0 %v3417
    %3597 = vmatprep.subr.bf16.mxu0 %v3414
    %3598 = vmatpush2.bf16.msra.mxu0 %v3413
    %3599 = vmatprep.subr.bf16.mxu0 %v3410
    %3600 = vmatpush2.bf16.msra.mxu0 %v3409
    %3601 = vmatprep.mubr.bf16.mxu0 %v3087
    %3602 = vmatmul.mubr.bf16.gmra.mxu0 %v3086
    %v3603 = vpop.f32.mrf.mxu0
    %v3604 = vadd.f32 0.0, %v3603
    %v3605 = vpop.f32.mrf.mxu0
    %v3606 = vadd.f32 0.0, %v3605
    %v3607 = vpop.f32.mrf.mxu0
    %v3608 = vpop.f32.mrf.mxu0
    %3609 = vdwg.mxu0
    %3610 = vmatprep.subr.bf16.mxu0 %v3470
    %3611 = vmatpush1.bf16.msra.mxu0 %v3469
    %3612 = vmatprep.subr.bf16.mxu0 %v3466
    %3613 = vmatpush1.bf16.msra.mxu0 %v3465
    %3614 = vmatprep.subr.bf16.mxu0 %v3462
    %3615 = vmatpush1.bf16.msra.mxu0 %v3461
    %3616 = vmatprep.subr.bf16.mxu0 %v3458
    %3617 = vmatpush1.bf16.msra.mxu0 %v3457
    %3618 = vmatprep.subr.bf16.mxu0 %v3454
    %3619 = vmatpush1.bf16.msra.mxu0 %v3453
    %3620 = vmatprep.subr.bf16.mxu0 %v3450
    %3621 = vmatpush1.bf16.msra.mxu0 %v3449
    %3622 = vmatprep.subr.bf16.mxu0 %v3446
    %3623 = vmatpush1.bf16.msra.mxu0 %v3445
    %3624 = vmatprep.subr.bf16.mxu0 %v3442
    %3625 = vmatpush1.bf16.msra.mxu0 %v3441
    %3626 = vmatprep.subr.bf16.mxu0 0
    %3627 = vmatpush2.bf16.msra.mxu0 0
    %3628 = vmatprep.subr.bf16.mxu0 0
    %3629 = vmatpush2.bf16.msra.mxu0 0
    %3630 = vmatprep.subr.bf16.mxu0 0
    %3631 = vmatpush2.bf16.msra.mxu0 0
    %3632 = vmatprep.subr.bf16.mxu0 0
    %3633 = vmatpush2.bf16.msra.mxu0 0
    %3634 = vmatprep.subr.bf16.mxu0 0
    %3635 = vmatpush2.bf16.msra.mxu0 0
    %3636 = vmatprep.subr.bf16.mxu0 0
    %3637 = vmatpush2.bf16.msra.mxu0 0
    %3638 = vmatprep.subr.bf16.mxu0 0
    %3639 = vmatpush2.bf16.msra.mxu0 0
    %3640 = vmatprep.subr.bf16.mxu0 0
    %3641 = vmatpush2.bf16.msra.mxu0 0
    %3642 = vmatprep.mubr.bf16.mxu0 0
    %3643 = vmatmul.mubr.bf16.gmra.mxu0 %v3088
    %v3644 = vpop.f32.mrf.mxu0
    %v3645 = vadd.f32 %v3604, %v3644
    %v3646 = vpop.f32.mrf.mxu0
    %v3647 = vadd.f32 %v3606, %v3646
    %v3648 = vpop.f32.mrf.mxu0
    %v3649 = vpop.f32.mrf.mxu0
    %3650 = vdwg.mxu0
    %3651 = vmatprep.subr.bf16.mxu0 %v3408
    %3652 = vmatpush1.bf16.msra.mxu0 %v3407
    %3653 = vmatprep.subr.bf16.mxu0 %v3404
    %3654 = vmatpush1.bf16.msra.mxu0 %v3403
    %3655 = vmatprep.subr.bf16.mxu0 %v3400
    %3656 = vmatpush1.bf16.msra.mxu0 %v3399
    %3657 = vmatprep.subr.bf16.mxu0 %v3396
    %3658 = vmatpush1.bf16.msra.mxu0 %v3395
    %3659 = vmatprep.subr.bf16.mxu0 %v3392
    %3660 = vmatpush1.bf16.msra.mxu0 %v3391
    %3661 = vmatprep.subr.bf16.mxu0 %v3388
    %3662 = vmatpush1.bf16.msra.mxu0 %v3387
    %3663 = vmatprep.subr.bf16.mxu0 %v3384
    %3664 = vmatpush1.bf16.msra.mxu0 %v3383
    %3665 = vmatprep.subr.bf16.mxu0 %v3380
    %3666 = vmatpush1.bf16.msra.mxu0 %v3379
    %3667 = vmatprep.subr.bf16.mxu0 %v3440
    %3668 = vmatpush2.bf16.msra.mxu0 %v3439
    %3669 = vmatprep.subr.bf16.mxu0 %v3436
    %3670 = vmatpush2.bf16.msra.mxu0 %v3435
    %3671 = vmatprep.subr.bf16.mxu0 %v3432
    %3672 = vmatpush2.bf16.msra.mxu0 %v3431
    %3673 = vmatprep.subr.bf16.mxu0 %v3428
    %3674 = vmatpush2.bf16.msra.mxu0 %v3427
    %3675 = vmatprep.subr.bf16.mxu0 %v3424
    %3676 = vmatpush2.bf16.msra.mxu0 %v3423
    %3677 = vmatprep.subr.bf16.mxu0 %v3420
    %3678 = vmatpush2.bf16.msra.mxu0 %v3419
    %3679 = vmatprep.subr.bf16.mxu0 %v3416
    %3680 = vmatpush2.bf16.msra.mxu0 %v3415
    %3681 = vmatprep.subr.bf16.mxu0 %v3412
    %3682 = vmatpush2.bf16.msra.mxu0 %v3411
    %3683 = vmatprep.mubr.bf16.mxu0 %v3087
    %3684 = vmatmul.mubr.bf16.gmra.mxu0 %v3086
    %v3685 = vpop.f32.mrf.mxu0
    %v3686 = vadd.f32 0.0, %v3685
    %v3687 = vpop.f32.mrf.mxu0
    %v3688 = vadd.f32 0.0, %v3687
    %v3689 = vpop.f32.mrf.mxu0
    %v3690 = vpop.f32.mrf.mxu0
    %3691 = vdwg.mxu0
    %3692 = vmatprep.subr.bf16.mxu0 %v3472
    %3693 = vmatpush1.bf16.msra.mxu0 %v3471
    %3694 = vmatprep.subr.bf16.mxu0 %v3468
    %3695 = vmatpush1.bf16.msra.mxu0 %v3467
    %3696 = vmatprep.subr.bf16.mxu0 %v3464
    %3697 = vmatpush1.bf16.msra.mxu0 %v3463
    %3698 = vmatprep.subr.bf16.mxu0 %v3460
    %3699 = vmatpush1.bf16.msra.mxu0 %v3459
    %3700 = vmatprep.subr.bf16.mxu0 %v3456
    %3701 = vmatpush1.bf16.msra.mxu0 %v3455
    %3702 = vmatprep.subr.bf16.mxu0 %v3452
    %3703 = vmatpush1.bf16.msra.mxu0 %v3451
    %3704 = vmatprep.subr.bf16.mxu0 %v3448
    %3705 = vmatpush1.bf16.msra.mxu0 %v3447
    %3706 = vmatprep.subr.bf16.mxu0 %v3444
    %3707 = vmatpush1.bf16.msra.mxu0 %v3443
    %3708 = vmatprep.subr.bf16.mxu0 0
    %3709 = vmatpush2.bf16.msra.mxu0 0
    %3710 = vmatprep.subr.bf16.mxu0 0
    %3711 = vmatpush2.bf16.msra.mxu0 0
    %3712 = vmatprep.subr.bf16.mxu0 0
    %3713 = vmatpush2.bf16.msra.mxu0 0
    %3714 = vmatprep.subr.bf16.mxu0 0
    %3715 = vmatpush2.bf16.msra.mxu0 0
    %3716 = vmatprep.subr.bf16.mxu0 0
    %3717 = vmatpush2.bf16.msra.mxu0 0
    %3718 = vmatprep.subr.bf16.mxu0 0
    %3719 = vmatpush2.bf16.msra.mxu0 0
    %3720 = vmatprep.subr.bf16.mxu0 0
    %3721 = vmatpush2.bf16.msra.mxu0 0
    %3722 = vmatprep.subr.bf16.mxu0 0
    %3723 = vmatpush2.bf16.msra.mxu0 0
    %3724 = vmatprep.mubr.bf16.mxu0 0
    %3725 = vmatmul.mubr.bf16.gmra.mxu0 %v3088
    %v3726 = vpop.f32.mrf.mxu0
    %v3727 = vadd.f32 %v3686, %v3726
    %v3728 = vpop.f32.mrf.mxu0
    %v3729 = vadd.f32 %v3688, %v3728
    %v3730 = vpop.f32.mrf.mxu0
    %v3731 = vpop.f32.mrf.mxu0
    %3732 = vdwg.mxu0
    %v3733 = vld [vmem:[#allocation41] sm:$0x3]
    %v3734 = vld [vmem:[#allocation42] sm:$0x3]
    %v3735 = vrot.slane %v3645, 4
    %v3736 = vadd.f32 %v3645, %v3735
    %v3737 = vrot.slane %v3736, 2
    %v3738 = vadd.f32 %v3736, %v3737
    %v3739 = vrot.slane %v3738, 1
    %v3740 = vadd.f32 %v3738, %v3739
    %v3741 = vrot.slane %v3647, 4
    %v3742 = vadd.f32 %v3647, %v3741
    %v3743 = vrot.slane %v3742, 2
    %v3744 = vadd.f32 %v3742, %v3743
    %v3745 = vrot.slane %v3744, 1
    %v3746 = vadd.f32 %v3744, %v3745
    %v3747 = vmul.f32 %v3645, %v3645
    %v3748 = vmul.f32 %v3647, %v3647
    %v3749 = vrot.slane %v3747, 4
    %v3750 = vadd.f32 %v3747, %v3749
    %v3751 = vrot.slane %v3750, 2
    %v3752 = vadd.f32 %v3750, %v3751
    %v3753 = vrot.slane %v3752, 1
    %v3754 = vadd.f32 %v3752, %v3753
    %v3755 = vrot.slane %v3748, 4
    %v3756 = vadd.f32 %v3748, %v3755
    %v3757 = vrot.slane %v3756, 2
    %v3758 = vadd.f32 %v3756, %v3757
    %v3759 = vrot.slane %v3758, 1
    %v3760 = vadd.f32 %v3758, %v3759
    %v3761 = vmul.f32 %v3740, 0.125
    %v3762 = vmul.f32 %v3746, 0.125
    %v3763 = vmul.f32 %v3754, 0.125
    %v3764 = vmul.f32 %v3760, 0.125
    %v3765 = vmul.f32 %v3761, %v3761
    %v3766 = vmul.f32 %v3762, %v3762
    %v3767 = vsub.f32 %v3763, %v3765
    %v3768 = vsub.f32 %v3764, %v3766
    %v3769 = vadd.f32 %v3767, 1e-05
    %v3770 = vadd.f32 %v3768, 1e-05
    %v3771 = vrsqrt.pop %v3769
    %v3772 = vrsqrt.pop %v3770
    %v3775 = vcombine.low %v3771, %v3772
    %v3777 = vunpack.c.l.s4 1966171168
    %v3778 = vunpack.c.0.s8 %v3777
    %v3779 = vlaneseq
    %v3780 = vshrl.u32 %v3779, 7
    %v3781 = vsub.s32 %v3778, %v3780
    %v3782 = vrot.slane %v3775, %v3781
    %v3784 = vunpack.c.l.s4 1966171168
    %v3785 = vunpack.c.0.s8 %v3784
    %v3786 = vlaneseq
    %v3787 = vshrl.u32 %v3786, 7
    %v3788 = vsub.s32 %v3785, %v3787
    %v3789 = vrot.slane %v3782, %v3788
    %v3791 = vmul.f32 %v3733, %v3789
    %v3793 = vlaneseq
    %v3794 = vshrl.u32 %v3793, 7
    %v3795 = vsub.s32 0, %v3794
    %v3796 = vrot.slane %v3791, %v3795
    %v3797 = vlaneseq
    %v3798 = vshrl.u32 %v3797, 7
    %v3799 = vsub.s32 1, %v3798
    %v3800 = vrot.slane %v3791, %v3799
    %v3803 = vmul.f32 %v3645, %v3796
    %v3804 = vmul.f32 %v3647, %v3800
    %v3805 = vmul.f32 %v3761, %v3796
    %v3806 = vmul.f32 %v3762, %v3800
    %v3809 = vcombine.low %v3805, %v3806
    %v3811 = vunpack.c.l.s4 1966171168
    %v3812 = vunpack.c.0.s8 %v3811
    %v3813 = vlaneseq
    %v3814 = vshrl.u32 %v3813, 7
    %v3815 = vsub.s32 %v3812, %v3814
    %v3816 = vrot.slane %v3809, %v3815
    %v3818 = vunpack.c.l.s4 1966171168
    %v3819 = vunpack.c.0.s8 %v3818
    %v3820 = vlaneseq
    %v3821 = vshrl.u32 %v3820, 7
    %v3822 = vsub.s32 %v3819, %v3821
    %v3823 = vrot.slane %v3816, %v3822
    %v3825 = vsub.f32 %v3734, %v3823
    %v3827 = vlaneseq
    %v3828 = vshrl.u32 %v3827, 7
    %v3829 = vsub.s32 0, %v3828
    %v3830 = vrot.slane %v3825, %v3829
    %v3831 = vlaneseq
    %v3832 = vshrl.u32 %v3831, 7
    %v3833 = vsub.s32 1, %v3832
    %v3834 = vrot.slane %v3825, %v3833
    %v3837 = vadd.f32 %v3803, %v3830
    %v3838 = vadd.f32 %v3804, %v3834
    %v3839 = vmax.f32 %v3837, 0.0
    %v3840 = vmax.f32 %v3838, 0.0
    %v3841 = vld [vmem:[#allocation44] sm:$0x3]
    %v3842 = vld [vmem:[#allocation45] sm:$0x3]
    %v3843 = vrot.slane %v3727, 4
    %v3844 = vadd.f32 %v3727, %v3843
    %v3845 = vrot.slane %v3844, 2
    %v3846 = vadd.f32 %v3844, %v3845
    %v3847 = vrot.slane %v3846, 1
    %v3848 = vadd.f32 %v3846, %v3847
    %v3849 = vrot.slane %v3729, 4
    %v3850 = vadd.f32 %v3729, %v3849
    %v3851 = vrot.slane %v3850, 2
    %v3852 = vadd.f32 %v3850, %v3851
    %v3853 = vrot.slane %v3852, 1
    %v3854 = vadd.f32 %v3852, %v3853
    %v3855 = vmul.f32 %v3727, %v3727
    %v3856 = vmul.f32 %v3729, %v3729
    %v3857 = vrot.slane %v3855, 4
    %v3858 = vadd.f32 %v3855, %v3857
    %v3859 = vrot.slane %v3858, 2
    %v3860 = vadd.f32 %v3858, %v3859
    %v3861 = vrot.slane %v3860, 1
    %v3862 = vadd.f32 %v3860, %v3861
    %v3863 = vrot.slane %v3856, 4
    %v3864 = vadd.f32 %v3856, %v3863
    %v3865 = vrot.slane %v3864, 2
    %v3866 = vadd.f32 %v3864, %v3865
    %v3867 = vrot.slane %v3866, 1
    %v3868 = vadd.f32 %v3866, %v3867
    %v3869 = vmul.f32 %v3848, 0.125
    %v3870 = vmul.f32 %v3854, 0.125
    %v3871 = vmul.f32 %v3862, 0.125
    %v3872 = vmul.f32 %v3868, 0.125
    %v3873 = vmul.f32 %v3869, %v3869
    %v3874 = vmul.f32 %v3870, %v3870
    %v3875 = vsub.f32 %v3871, %v3873
    %v3876 = vsub.f32 %v3872, %v3874
    %v3877 = vadd.f32 %v3875, 1e-05
    %v3878 = vadd.f32 %v3876, 1e-05
    %v3879 = vrsqrt.pop %v3877
    %v3880 = vrsqrt.pop %v3878
    %v3883 = vcombine.low %v3879, %v3880
    %v3885 = vunpack.c.l.s4 1966171168
    %v3886 = vunpack.c.0.s8 %v3885
    %v3887 = vlaneseq
    %v3888 = vshrl.u32 %v3887, 7
    %v3889 = vsub.s32 %v3886, %v3888
    %v3890 = vrot.slane %v3883, %v3889
    %v3892 = vunpack.c.l.s4 1966171168
    %v3893 = vunpack.c.0.s8 %v3892
    %v3894 = vlaneseq
    %v3895 = vshrl.u32 %v3894, 7
    %v3896 = vsub.s32 %v3893, %v3895
    %v3897 = vrot.slane %v3890, %v3896
    %v3899 = vmul.f32 %v3841, %v3897
    %v3901 = vlaneseq
    %v3902 = vshrl.u32 %v3901, 7
    %v3903 = vsub.s32 0, %v3902
    %v3904 = vrot.slane %v3899, %v3903
    %v3905 = vlaneseq
    %v3906 = vshrl.u32 %v3905, 7
    %v3907 = vsub.s32 1, %v3906
    %v3908 = vrot.slane %v3899, %v3907
    %v3911 = vmul.f32 %v3727, %v3904
    %v3912 = vmul.f32 %v3729, %v3908
    %v3913 = vmul.f32 %v3869, %v3904
    %v3914 = vmul.f32 %v3870, %v3908
    %v3917 = vcombine.low %v3913, %v3914
    %v3919 = vunpack.c.l.s4 1966171168
    %v3920 = vunpack.c.0.s8 %v3919
    %v3921 = vlaneseq
    %v3922 = vshrl.u32 %v3921, 7
    %v3923 = vsub.s32 %v3920, %v3922
    %v3924 = vrot.slane %v3917, %v3923
    %v3926 = vunpack.c.l.s4 1966171168
    %v3927 = vunpack.c.0.s8 %v3926
    %v3928 = vlaneseq
    %v3929 = vshrl.u32 %v3928, 7
    %v3930 = vsub.s32 %v3927, %v3929
    %v3931 = vrot.slane %v3924, %v3930
    %v3933 = vsub.f32 %v3842, %v3931
    %v3935 = vlaneseq
    %v3936 = vshrl.u32 %v3935, 7
    %v3937 = vsub.s32 0, %v3936
    %v3938 = vrot.slane %v3933, %v3937
    %v3939 = vlaneseq
    %v3940 = vshrl.u32 %v3939, 7
    %v3941 = vsub.s32 1, %v3940
    %v3942 = vrot.slane %v3933, %v3941
    %v3945 = vadd.f32 %v3911, %v3938
    %v3946 = vadd.f32 %v3912, %v3942
    %v3949 = vrot.slane %v3839, 7
    %v3950 = vrot.slane %v3840, 7
    %3953 = vst [vmem:[#allocation2] sm:$0xfe] %v3949
    %3954 = vst [vmem:[#allocation2 + $0x8] sm:$0xfe] %v3950
    %3955 = vst [vmem:[#allocation2 + $0x20] sm:$0x1] %v3949
    %3956 = vst [vmem:[#allocation2 + $0x28] sm:$0x1] %v3950
    %v3957 = vld [vmem:[#allocation2] sm:$0xff]
    %v3958 = vld [vmem:[#allocation2 + $0x8] sm:$0xff]
    %v3959 = vld [vmem:[#allocation2] sm:$0xfc]
    %v3960 = vld [vmem:[#allocation2 + $0x8] sm:$0xfc]
    %v3961 = vld [vmem:[#allocation2 + $0x20] sm:$0x3]
    %v3962 = vld [vmem:[#allocation2 + $0x28] sm:$0x3]
    %v3963 = vsel %vm3084, 0.0, %v3957
    %v3964 = vsel %vm3084, 0.0, %v3958
    %vm3965 = vcmp.eq.s32.totalorder %v3083, 3
    %v3970 = vrot.slane %v3959, 2
    %v3971 = vrot.slane %v3961, 2
    %v3972 = vsel %vm1166, %v3970, %v3971
    %v3973 = vrot.slane %v3960, 2
    %v3974 = vrot.slane %v3962, 2
    %v3975 = vsel %vm1166, %v3973, %v3974
    %v3978 = vsel %vm3965, 0.0, %v3972
    %v3979 = vsel %vm3965, 0.0, %v3975
    %v3980 = vpack.c.bf16 %v3963, %v3963
    %v3981 = vpack.c.bf16 %v3964, %v3964
    %v3982 = vpack.c.bf16 %v3839, %v3839
    %v3983 = vpack.c.bf16 %v3840, %v3840
    %v3984 = vpack.c.bf16 %v3978, %v3978
    %v3985 = vpack.c.bf16 %v3979, %v3979
    %v4082 = vunpack.c.l.b16 %v2891
    %v4083 = vunpack.c.h.b16 %v2891
    %v4084 = vunpack.c.l.b16 %v2892
    %v4085 = vunpack.c.h.b16 %v2892
    %v4086 = vunpack.c.l.b16 %v2893
    %v4087 = vunpack.c.h.b16 %v2893
    %v4088 = vunpack.c.l.b16 %v2894
    %v4089 = vunpack.c.h.b16 %v2894
    %v4090 = vunpack.c.l.b16 %v2895
    %v4091 = vunpack.c.h.b16 %v2895
    %v4092 = vunpack.c.l.b16 %v2896
    %v4093 = vunpack.c.h.b16 %v2896
    %v4094 = vunpack.c.l.b16 %v2897
    %v4095 = vunpack.c.h.b16 %v2897
    %v4096 = vunpack.c.l.b16 %v2898
    %v4097 = vunpack.c.h.b16 %v2898
    %v4098 = vunpack.c.l.b16 %v2899
    %v4099 = vunpack.c.h.b16 %v2899
    %v4100 = vunpack.c.l.b16 %v2900
    %v4101 = vunpack.c.h.b16 %v2900
    %v4102 = vunpack.c.l.b16 %v2901
    %v4103 = vunpack.c.h.b16 %v2901
    %v4104 = vunpack.c.l.b16 %v2902
    %v4105 = vunpack.c.h.b16 %v2902
    %v4106 = vunpack.c.l.b16 %v2903
    %v4107 = vunpack.c.h.b16 %v2903
    %v4108 = vunpack.c.l.b16 %v2904
    %v4109 = vunpack.c.h.b16 %v2904
    %v4110 = vunpack.c.l.b16 %v2905
    %v4111 = vunpack.c.h.b16 %v2905
    %v4112 = vunpack.c.l.b16 %v2906
    %v4113 = vunpack.c.h.b16 %v2906
    %v4114 = vunpack.c.l.b16 %v2907
    %v4115 = vunpack.c.h.b16 %v2907
    %v4116 = vunpack.c.l.b16 %v2908
    %v4117 = vunpack.c.h.b16 %v2908
    %v4118 = vunpack.c.l.b16 %v2909
    %v4119 = vunpack.c.h.b16 %v2909
    %v4120 = vunpack.c.l.b16 %v2910
    %v4121 = vunpack.c.h.b16 %v2910
    %v4122 = vunpack.c.l.b16 %v2911
    %v4123 = vunpack.c.h.b16 %v2911
    %v4124 = vunpack.c.l.b16 %v2912
    %v4125 = vunpack.c.h.b16 %v2912
    %v4126 = vunpack.c.l.b16 %v2913
    %v4127 = vunpack.c.h.b16 %v2913
    %v4128 = vunpack.c.l.b16 %v2914
    %v4129 = vunpack.c.h.b16 %v2914
    %v4130 = vunpack.c.l.b16 %v2915
    %v4131 = vunpack.c.h.b16 %v2915
    %v4132 = vunpack.c.l.b16 %v2916
    %v4133 = vunpack.c.h.b16 %v2916
    %v4134 = vunpack.c.l.b16 %v2917
    %v4135 = vunpack.c.h.b16 %v2917
    %v4136 = vunpack.c.l.b16 %v2918
    %v4137 = vunpack.c.h.b16 %v2918
    %v4138 = vunpack.c.l.b16 %v2919
    %v4139 = vunpack.c.h.b16 %v2919
    %v4140 = vunpack.c.l.b16 %v2920
    %v4141 = vunpack.c.h.b16 %v2920
    %v4142 = vunpack.c.l.b16 %v2921
    %v4143 = vunpack.c.h.b16 %v2921
    %v4144 = vunpack.c.l.b16 %v2922
    %v4145 = vunpack.c.h.b16 %v2922
    %v4146 = vunpack.c.l.b16 %v2923
    %v4147 = vunpack.c.h.b16 %v2923
    %v4148 = vunpack.c.l.b16 %v2924
    %v4149 = vunpack.c.h.b16 %v2924
    %v4150 = vunpack.c.l.b16 %v2925
    %v4151 = vunpack.c.h.b16 %v2925
    %v4152 = vunpack.c.l.b16 %v2926
    %v4153 = vunpack.c.h.b16 %v2926
    %v4154 = vunpack.c.l.b16 %v2927
    %v4155 = vunpack.c.h.b16 %v2927
    %v4156 = vunpack.c.l.b16 %v2928
    %v4157 = vunpack.c.h.b16 %v2928
    %v4158 = vunpack.c.l.b16 %v2929
    %v4159 = vunpack.c.h.b16 %v2929
    %v4160 = vunpack.c.l.b16 %v2930
    %v4161 = vunpack.c.h.b16 %v2930
    %v4162 = vunpack.c.l.b16 %v2931
    %v4163 = vunpack.c.h.b16 %v2931
    %v4164 = vunpack.c.l.b16 %v2932
    %v4165 = vunpack.c.h.b16 %v2932
    %v4166 = vunpack.c.l.b16 %v2933
    %v4167 = vunpack.c.h.b16 %v2933
    %v4168 = vunpack.c.l.b16 %v2934
    %v4169 = vunpack.c.h.b16 %v2934
    %v4170 = vunpack.c.l.b16 %v2935
    %v4171 = vunpack.c.h.b16 %v2935
    %v4172 = vunpack.c.l.b16 %v2936
    %v4173 = vunpack.c.h.b16 %v2936
    %v4174 = vunpack.c.l.b16 %v2937
    %v4175 = vunpack.c.h.b16 %v2937
    %v4176 = vunpack.c.l.b16 %v2938
    %v4177 = vunpack.c.h.b16 %v2938
    %v4178 = vunpack.c.l.b16 %v2939
    %v4179 = vunpack.c.h.b16 %v2939
    %v4180 = vunpack.c.l.b16 %v2940
    %v4181 = vunpack.c.h.b16 %v2940
    %v4182 = vunpack.c.l.b16 %v2941
    %v4183 = vunpack.c.h.b16 %v2941
    %v4184 = vunpack.c.l.b16 %v2942
    %v4185 = vunpack.c.h.b16 %v2942
    %v4186 = vunpack.c.l.b16 %v2943
    %v4187 = vunpack.c.h.b16 %v2943
    %v4188 = vunpack.c.l.b16 %v2944
    %v4189 = vunpack.c.h.b16 %v2944
    %v4190 = vunpack.c.l.b16 %v2945
    %v4191 = vunpack.c.h.b16 %v2945
    %v4192 = vunpack.c.l.b16 %v2946
    %v4193 = vunpack.c.h.b16 %v2946
    %v4194 = vunpack.c.l.b16 %v2947
    %v4195 = vunpack.c.h.b16 %v2947
    %v4196 = vunpack.c.l.b16 %v2948
    %v4197 = vunpack.c.h.b16 %v2948
    %v4198 = vunpack.c.l.b16 %v2949
    %v4199 = vunpack.c.h.b16 %v2949
    %v4200 = vunpack.c.l.b16 %v2950
    %v4201 = vunpack.c.h.b16 %v2950
    %v4202 = vunpack.c.l.b16 %v2951
    %v4203 = vunpack.c.h.b16 %v2951
    %v4204 = vunpack.c.l.b16 %v2952
    %v4205 = vunpack.c.h.b16 %v2952
    %v4206 = vunpack.c.l.b16 %v2953
    %v4207 = vunpack.c.h.b16 %v2953
    %v4208 = vunpack.c.l.b16 %v2954
    %v4209 = vunpack.c.h.b16 %v2954
    %v4210 = vunpack.c.l.b16 %v2955
    %v4211 = vunpack.c.h.b16 %v2955
    %v4212 = vunpack.c.l.b16 %v2956
    %v4213 = vunpack.c.h.b16 %v2956
    %v4214 = vunpack.c.l.b16 %v2957
    %v4215 = vunpack.c.h.b16 %v2957
    %v4216 = vunpack.c.l.b16 %v2958
    %v4217 = vunpack.c.h.b16 %v2958
    %v4218 = vunpack.c.l.b16 %v2959
    %v4219 = vunpack.c.h.b16 %v2959
    %v4220 = vunpack.c.l.b16 %v2960
    %v4221 = vunpack.c.h.b16 %v2960
    %v4222 = vunpack.c.l.b16 %v2961
    %v4223 = vunpack.c.h.b16 %v2961
    %v4224 = vunpack.c.l.b16 %v2962
    %v4225 = vunpack.c.h.b16 %v2962
    %v4226 = vunpack.c.l.b16 %v2963
    %v4227 = vunpack.c.h.b16 %v2963
    %v4228 = vunpack.c.l.b16 %v2964
    %v4229 = vunpack.c.h.b16 %v2964
    %v4230 = vunpack.c.l.b16 %v2965
    %v4231 = vunpack.c.h.b16 %v2965
    %v4232 = vunpack.c.l.b16 %v2966
    %v4233 = vunpack.c.h.b16 %v2966
    %v4234 = vunpack.c.l.b16 %v2967
    %v4235 = vunpack.c.h.b16 %v2967
    %v4236 = vunpack.c.l.b16 %v2968
    %v4237 = vunpack.c.h.b16 %v2968
    %v4238 = vunpack.c.l.b16 %v2969
    %v4239 = vunpack.c.h.b16 %v2969
    %v4240 = vunpack.c.l.b16 %v2970
    %v4241 = vunpack.c.h.b16 %v2970
    %v4242 = vunpack.c.l.b16 %v2971
    %v4243 = vunpack.c.h.b16 %v2971
    %v4244 = vunpack.c.l.b16 %v2972
    %v4245 = vunpack.c.h.b16 %v2972
    %v4246 = vunpack.c.l.b16 %v2973
    %v4247 = vunpack.c.h.b16 %v2973
    %v4248 = vunpack.c.l.b16 %v2974
    %v4249 = vunpack.c.h.b16 %v2974
    %v4250 = vunpack.c.l.b16 %v2975
    %v4251 = vunpack.c.h.b16 %v2975
    %v4252 = vunpack.c.l.b16 %v2976
    %v4253 = vunpack.c.h.b16 %v2976
    %v4254 = vunpack.c.l.b16 %v2977
    %v4255 = vunpack.c.h.b16 %v2977
    %v4256 = vunpack.c.l.b16 %v2978
    %v4257 = vunpack.c.h.b16 %v2978
    %v4258 = vunpack.c.l.b16 %v2979
    %v4259 = vunpack.c.h.b16 %v2979
    %v4260 = vunpack.c.l.b16 %v2980
    %v4261 = vunpack.c.h.b16 %v2980
    %v4262 = vunpack.c.l.b16 %v2981
    %v4263 = vunpack.c.h.b16 %v2981
    %v4264 = vunpack.c.l.b16 %v2982
    %v4265 = vunpack.c.h.b16 %v2982
    %v4266 = vunpack.c.l.b16 %v2983
    %v4267 = vunpack.c.h.b16 %v2983
    %v4268 = vunpack.c.l.b16 %v2984
    %v4269 = vunpack.c.h.b16 %v2984
    %v4270 = vunpack.c.l.b16 %v2985
    %v4271 = vunpack.c.h.b16 %v2985
    %v4272 = vunpack.c.l.b16 %v2986
    %v4273 = vunpack.c.h.b16 %v2986
    %v4274 = vpack.c.b16 %v4084, %v4082
    %v4275 = vpack.c.b16 %v4085, %v4083
    %v4276 = vpack.c.b16 %v4088, %v4086
    %v4277 = vpack.c.b16 %v4089, %v4087
    %v4278 = vpack.c.b16 %v4092, %v4090
    %v4279 = vpack.c.b16 %v4093, %v4091
    %v4280 = vpack.c.b16 %v4096, %v4094
    %v4281 = vpack.c.b16 %v4097, %v4095
    %v4282 = vpack.c.b16 %v4100, %v4098
    %v4283 = vpack.c.b16 %v4101, %v4099
    %v4284 = vpack.c.b16 %v4104, %v4102
    %v4285 = vpack.c.b16 %v4105, %v4103
    %v4286 = vpack.c.b16 %v4108, %v4106
    %v4287 = vpack.c.b16 %v4109, %v4107
    %v4288 = vpack.c.b16 %v4112, %v4110
    %v4289 = vpack.c.b16 %v4113, %v4111
    %v4290 = vpack.c.b16 %v4116, %v4114
    %v4291 = vpack.c.b16 %v4117, %v4115
    %v4292 = vpack.c.b16 %v4120, %v4118
    %v4293 = vpack.c.b16 %v4121, %v4119
    %v4294 = vpack.c.b16 %v4124, %v4122
    %v4295 = vpack.c.b16 %v4125, %v4123
    %v4296 = vpack.c.b16 %v4128, %v4126
    %v4297 = vpack.c.b16 %v4129, %v4127
    %v4298 = vpack.c.b16 %v4132, %v4130
    %v4299 = vpack.c.b16 %v4133, %v4131
    %v4300 = vpack.c.b16 %v4136, %v4134
    %v4301 = vpack.c.b16 %v4137, %v4135
    %v4302 = vpack.c.b16 %v4140, %v4138
    %v4303 = vpack.c.b16 %v4141, %v4139
    %v4304 = vpack.c.b16 %v4144, %v4142
    %v4305 = vpack.c.b16 %v4145, %v4143
    %v4306 = vpack.c.b16 %v4148, %v4146
    %v4307 = vpack.c.b16 %v4149, %v4147
    %v4308 = vpack.c.b16 %v4152, %v4150
    %v4309 = vpack.c.b16 %v4153, %v4151
    %v4310 = vpack.c.b16 %v4156, %v4154
    %v4311 = vpack.c.b16 %v4157, %v4155
    %v4312 = vpack.c.b16 %v4160, %v4158
    %v4313 = vpack.c.b16 %v4161, %v4159
    %v4314 = vpack.c.b16 %v4164, %v4162
    %v4315 = vpack.c.b16 %v4165, %v4163
    %v4316 = vpack.c.b16 %v4168, %v4166
    %v4317 = vpack.c.b16 %v4169, %v4167
    %v4318 = vpack.c.b16 %v4172, %v4170
    %v4319 = vpack.c.b16 %v4173, %v4171
    %v4320 = vpack.c.b16 %v4176, %v4174
    %v4321 = vpack.c.b16 %v4177, %v4175
    %v4322 = vpack.c.b16 %v4180, %v4178
    %v4323 = vpack.c.b16 %v4181, %v4179
    %v4324 = vpack.c.b16 %v4184, %v4182
    %v4325 = vpack.c.b16 %v4185, %v4183
    %v4326 = vpack.c.b16 %v4188, %v4186
    %v4327 = vpack.c.b16 %v4189, %v4187
    %v4328 = vpack.c.b16 %v4192, %v4190
    %v4329 = vpack.c.b16 %v4193, %v4191
    %v4330 = vpack.c.b16 %v4196, %v4194
    %v4331 = vpack.c.b16 %v4197, %v4195
    %v4332 = vpack.c.b16 %v4200, %v4198
    %v4333 = vpack.c.b16 %v4201, %v4199
    %v4334 = vpack.c.b16 %v4204, %v4202
    %v4335 = vpack.c.b16 %v4205, %v4203
    %v4336 = vpack.c.b16 %v4208, %v4206
    %v4337 = vpack.c.b16 %v4209, %v4207
    %v4338 = vpack.c.b16 %v4212, %v4210
    %v4339 = vpack.c.b16 %v4213, %v4211
    %v4340 = vpack.c.b16 %v4216, %v4214
    %v4341 = vpack.c.b16 %v4217, %v4215
    %v4342 = vpack.c.b16 %v4220, %v4218
    %v4343 = vpack.c.b16 %v4221, %v4219
    %v4344 = vpack.c.b16 %v4224, %v4222
    %v4345 = vpack.c.b16 %v4225, %v4223
    %v4346 = vpack.c.b16 %v4228, %v4226
    %v4347 = vpack.c.b16 %v4229, %v4227
    %v4348 = vpack.c.b16 %v4232, %v4230
    %v4349 = vpack.c.b16 %v4233, %v4231
    %v4350 = vpack.c.b16 %v4236, %v4234
    %v4351 = vpack.c.b16 %v4237, %v4235
    %v4352 = vpack.c.b16 %v4240, %v4238
    %v4353 = vpack.c.b16 %v4241, %v4239
    %v4354 = vpack.c.b16 %v4244, %v4242
    %v4355 = vpack.c.b16 %v4245, %v4243
    %v4356 = vpack.c.b16 %v4248, %v4246
    %v4357 = vpack.c.b16 %v4249, %v4247
    %v4358 = vpack.c.b16 %v4252, %v4250
    %v4359 = vpack.c.b16 %v4253, %v4251
    %v4360 = vpack.c.b16 %v4256, %v4254
    %v4361 = vpack.c.b16 %v4257, %v4255
    %v4362 = vpack.c.b16 %v4260, %v4258
    %v4363 = vpack.c.b16 %v4261, %v4259
    %v4364 = vpack.c.b16 %v4264, %v4262
    %v4365 = vpack.c.b16 %v4265, %v4263
    %v4366 = vpack.c.b16 %v4268, %v4266
    %v4367 = vpack.c.b16 %v4269, %v4267
    %v4368 = vpack.c.b16 %v4272, %v4270
    %v4369 = vpack.c.b16 %v4273, %v4271
    %4466 = vmatprep.subr.bf16.mxu0 %v4289
    %4467 = vmatpush1.bf16.msra.mxu0 %v4288
    %4468 = vmatprep.subr.bf16.mxu0 %v4287
    %4469 = vmatpush1.bf16.msra.mxu0 %v4286
    %4470 = vmatprep.subr.bf16.mxu0 %v4285
    %4471 = vmatpush1.bf16.msra.mxu0 %v4284
    %4472 = vmatprep.subr.bf16.mxu0 %v4283
    %4473 = vmatpush1.bf16.msra.mxu0 %v4282
    %4474 = vmatprep.subr.bf16.mxu0 %v4281
    %4475 = vmatpush1.bf16.msra.mxu0 %v4280
    %4476 = vmatprep.subr.bf16.mxu0 %v4279
    %4477 = vmatpush1.bf16.msra.mxu0 %v4278
    %4478 = vmatprep.subr.bf16.mxu0 %v4277
    %4479 = vmatpush1.bf16.msra.mxu0 %v4276
    %4480 = vmatprep.subr.bf16.mxu0 %v4275
    %4481 = vmatpush1.bf16.msra.mxu0 %v4274
    %4482 = vmatprep.subr.bf16.mxu0 %v4305
    %4483 = vmatpush2.bf16.msra.mxu0 %v4304
    %4484 = vmatprep.subr.bf16.mxu0 %v4303
    %4485 = vmatpush2.bf16.msra.mxu0 %v4302
    %4486 = vmatprep.subr.bf16.mxu0 %v4301
    %4487 = vmatpush2.bf16.msra.mxu0 %v4300
    %4488 = vmatprep.subr.bf16.mxu0 %v4299
    %4489 = vmatpush2.bf16.msra.mxu0 %v4298
    %4490 = vmatprep.subr.bf16.mxu0 %v4297
    %4491 = vmatpush2.bf16.msra.mxu0 %v4296
    %4492 = vmatprep.subr.bf16.mxu0 %v4295
    %4493 = vmatpush2.bf16.msra.mxu0 %v4294
    %4494 = vmatprep.subr.bf16.mxu0 %v4293
    %4495 = vmatpush2.bf16.msra.mxu0 %v4292
    %4496 = vmatprep.subr.bf16.mxu0 %v4291
    %4497 = vmatpush2.bf16.msra.mxu0 %v4290
    %4498 = vmatprep.mubr.bf16.mxu0 %v3981
    %4499 = vmatmul.mubr.bf16.gmra.mxu0 %v3980
    %v4500 = vpop.f32.mrf.mxu0
    %v4501 = vadd.f32 0.0, %v4500
    %v4502 = vpop.f32.mrf.mxu0
    %v4503 = vadd.f32 0.0, %v4502
    %v4504 = vpop.f32.mrf.mxu0
    %v4505 = vpop.f32.mrf.mxu0
    %4506 = vdwg.mxu0
    %4507 = vmatprep.subr.bf16.mxu0 %v4321
    %4508 = vmatpush1.bf16.msra.mxu0 %v4320
    %4509 = vmatprep.subr.bf16.mxu0 %v4319
    %4510 = vmatpush1.bf16.msra.mxu0 %v4318
    %4511 = vmatprep.subr.bf16.mxu0 %v4317
    %4512 = vmatpush1.bf16.msra.mxu0 %v4316
    %4513 = vmatprep.subr.bf16.mxu0 %v4315
    %4514 = vmatpush1.bf16.msra.mxu0 %v4314
    %4515 = vmatprep.subr.bf16.mxu0 %v4313
    %4516 = vmatpush1.bf16.msra.mxu0 %v4312
    %4517 = vmatprep.subr.bf16.mxu0 %v4311
    %4518 = vmatpush1.bf16.msra.mxu0 %v4310
    %4519 = vmatprep.subr.bf16.mxu0 %v4309
    %4520 = vmatpush1.bf16.msra.mxu0 %v4308
    %4521 = vmatprep.subr.bf16.mxu0 %v4307
    %4522 = vmatpush1.bf16.msra.mxu0 %v4306
    %4523 = vmatprep.subr.bf16.mxu0 %v4337
    %4524 = vmatpush2.bf16.msra.mxu0 %v4336
    %4525 = vmatprep.subr.bf16.mxu0 %v4335
    %4526 = vmatpush2.bf16.msra.mxu0 %v4334
    %4527 = vmatprep.subr.bf16.mxu0 %v4333
    %4528 = vmatpush2.bf16.msra.mxu0 %v4332
    %4529 = vmatprep.subr.bf16.mxu0 %v4331
    %4530 = vmatpush2.bf16.msra.mxu0 %v4330
    %4531 = vmatprep.subr.bf16.mxu0 %v4329
    %4532 = vmatpush2.bf16.msra.mxu0 %v4328
    %4533 = vmatprep.subr.bf16.mxu0 %v4327
    %4534 = vmatpush2.bf16.msra.mxu0 %v4326
    %4535 = vmatprep.subr.bf16.mxu0 %v4325
    %4536 = vmatpush2.bf16.msra.mxu0 %v4324
    %4537 = vmatprep.subr.bf16.mxu0 %v4323
    %4538 = vmatpush2.bf16.msra.mxu0 %v4322
    %4539 = vmatprep.mubr.bf16.mxu0 %v3983
    %4540 = vmatmul.mubr.bf16.gmra.mxu0 %v3982
    %v4541 = vpop.f32.mrf.mxu0
    %v4542 = vadd.f32 %v4501, %v4541
    %v4543 = vpop.f32.mrf.mxu0
    %v4544 = vadd.f32 %v4503, %v4543
    %v4545 = vpop.f32.mrf.mxu0
    %v4546 = vpop.f32.mrf.mxu0
    %4547 = vdwg.mxu0
    %4548 = vmatprep.subr.bf16.mxu0 %v4353
    %4549 = vmatpush1.bf16.msra.mxu0 %v4352
    %4550 = vmatprep.subr.bf16.mxu0 %v4351
    %4551 = vmatpush1.bf16.msra.mxu0 %v4350
    %4552 = vmatprep.subr.bf16.mxu0 %v4349
    %4553 = vmatpush1.bf16.msra.mxu0 %v4348
    %4554 = vmatprep.subr.bf16.mxu0 %v4347
    %4555 = vmatpush1.bf16.msra.mxu0 %v4346
    %4556 = vmatprep.subr.bf16.mxu0 %v4345
    %4557 = vmatpush1.bf16.msra.mxu0 %v4344
    %4558 = vmatprep.subr.bf16.mxu0 %v4343
    %4559 = vmatpush1.bf16.msra.mxu0 %v4342
    %4560 = vmatprep.subr.bf16.mxu0 %v4341
    %4561 = vmatpush1.bf16.msra.mxu0 %v4340
    %4562 = vmatprep.subr.bf16.mxu0 %v4339
    %4563 = vmatpush1.bf16.msra.mxu0 %v4338
    %4564 = vmatprep.subr.bf16.mxu0 %v4369
    %4565 = vmatpush2.bf16.msra.mxu0 %v4368
    %4566 = vmatprep.subr.bf16.mxu0 %v4367
    %4567 = vmatpush2.bf16.msra.mxu0 %v4366
    %4568 = vmatprep.subr.bf16.mxu0 %v4365
    %4569 = vmatpush2.bf16.msra.mxu0 %v4364
    %4570 = vmatprep.subr.bf16.mxu0 %v4363
    %4571 = vmatpush2.bf16.msra.mxu0 %v4362
    %4572 = vmatprep.subr.bf16.mxu0 %v4361
    %4573 = vmatpush2.bf16.msra.mxu0 %v4360
    %4574 = vmatprep.subr.bf16.mxu0 %v4359
    %4575 = vmatpush2.bf16.msra.mxu0 %v4358
    %4576 = vmatprep.subr.bf16.mxu0 %v4357
    %4577 = vmatpush2.bf16.msra.mxu0 %v4356
    %4578 = vmatprep.subr.bf16.mxu0 %v4355
    %4579 = vmatpush2.bf16.msra.mxu0 %v4354
    %4580 = vmatprep.mubr.bf16.mxu0 %v3985
    %4581 = vmatmul.mubr.bf16.gmra.mxu0 %v3984
    %v4582 = vpop.f32.mrf.mxu0
    %v4583 = vadd.f32 %v4542, %v4582
    %v4584 = vpop.f32.mrf.mxu0
    %v4585 = vadd.f32 %v4544, %v4584
    %v4586 = vpop.f32.mrf.mxu0
    %v4587 = vpop.f32.mrf.mxu0
    %4588 = vdwg.mxu0
    %v4589 = vld [vmem:[#allocation48] sm:$0x3]
    %v4590 = vld [vmem:[#allocation50] sm:$0x3]
    %v4591 = vrot.slane %v4583, 4
    %v4592 = vadd.f32 %v4583, %v4591
    %v4593 = vrot.slane %v4592, 2
    %v4594 = vadd.f32 %v4592, %v4593
    %v4595 = vrot.slane %v4594, 1
    %v4596 = vadd.f32 %v4594, %v4595
    %v4597 = vrot.slane %v4585, 4
    %v4598 = vadd.f32 %v4585, %v4597
    %v4599 = vrot.slane %v4598, 2
    %v4600 = vadd.f32 %v4598, %v4599
    %v4601 = vrot.slane %v4600, 1
    %v4602 = vadd.f32 %v4600, %v4601
    %v4603 = vmul.f32 %v4583, %v4583
    %v4604 = vmul.f32 %v4585, %v4585
    %v4605 = vrot.slane %v4603, 4
    %v4606 = vadd.f32 %v4603, %v4605
    %v4607 = vrot.slane %v4606, 2
    %v4608 = vadd.f32 %v4606, %v4607
    %v4609 = vrot.slane %v4608, 1
    %v4610 = vadd.f32 %v4608, %v4609
    %v4611 = vrot.slane %v4604, 4
    %v4612 = vadd.f32 %v4604, %v4611
    %v4613 = vrot.slane %v4612, 2
    %v4614 = vadd.f32 %v4612, %v4613
    %v4615 = vrot.slane %v4614, 1
    %v4616 = vadd.f32 %v4614, %v4615
    %v4617 = vmul.f32 %v4596, 0.125
    %v4618 = vmul.f32 %v4602, 0.125
    %v4619 = vmul.f32 %v4610, 0.125
    %v4620 = vmul.f32 %v4616, 0.125
    %v4621 = vmul.f32 %v4617, %v4617
    %v4622 = vmul.f32 %v4618, %v4618
    %v4623 = vsub.f32 %v4619, %v4621
    %v4624 = vsub.f32 %v4620, %v4622
    %v4625 = vadd.f32 %v4623, 1e-05
    %v4626 = vadd.f32 %v4624, 1e-05
    %v4627 = vrsqrt.pop %v4625
    %v4628 = vrsqrt.pop %v4626
    %v4631 = vcombine.low %v4627, %v4628
    %v4633 = vunpack.c.l.s4 1966171168
    %v4634 = vunpack.c.0.s8 %v4633
    %v4635 = vlaneseq
    %v4636 = vshrl.u32 %v4635, 7
    %v4637 = vsub.s32 %v4634, %v4636
    %v4638 = vrot.slane %v4631, %v4637
    %v4640 = vunpack.c.l.s4 1966171168
    %v4641 = vunpack.c.0.s8 %v4640
    %v4642 = vlaneseq
    %v4643 = vshrl.u32 %v4642, 7
    %v4644 = vsub.s32 %v4641, %v4643
    %v4645 = vrot.slane %v4638, %v4644
    %v4647 = vmul.f32 %v4589, %v4645
    %v4649 = vlaneseq
    %v4650 = vshrl.u32 %v4649, 7
    %v4651 = vsub.s32 0, %v4650
    %v4652 = vrot.slane %v4647, %v4651
    %v4653 = vlaneseq
    %v4654 = vshrl.u32 %v4653, 7
    %v4655 = vsub.s32 1, %v4654
    %v4656 = vrot.slane %v4647, %v4655
    %v4659 = vmul.f32 %v4583, %v4652
    %v4660 = vmul.f32 %v4585, %v4656
    %v4661 = vmul.f32 %v4617, %v4652
    %v4662 = vmul.f32 %v4618, %v4656
    %v4665 = vcombine.low %v4661, %v4662
    %v4667 = vunpack.c.l.s4 1966171168
    %v4668 = vunpack.c.0.s8 %v4667
    %v4669 = vlaneseq
    %v4670 = vshrl.u32 %v4669, 7
    %v4671 = vsub.s32 %v4668, %v4670
    %v4672 = vrot.slane %v4665, %v4671
    %v4674 = vunpack.c.l.s4 1966171168
    %v4675 = vunpack.c.0.s8 %v4674
    %v4676 = vlaneseq
    %v4677 = vshrl.u32 %v4676, 7
    %v4678 = vsub.s32 %v4675, %v4677
    %v4679 = vrot.slane %v4672, %v4678
    %v4681 = vsub.f32 %v4590, %v4679
    %v4683 = vlaneseq
    %v4684 = vshrl.u32 %v4683, 7
    %v4685 = vsub.s32 0, %v4684
    %v4686 = vrot.slane %v4681, %v4685
    %v4687 = vlaneseq
    %v4688 = vshrl.u32 %v4687, 7
    %v4689 = vsub.s32 1, %v4688
    %v4690 = vrot.slane %v4681, %v4689
    %v4693 = vadd.f32 %v4659, %v4686
    %v4694 = vadd.f32 %v4660, %v4690
    %v4695 = vadd.f32 %v4693, %v3945
    %v4696 = vadd.f32 %v4694, %v3946
    %v4697 = vmax.f32 %v4695, 0.0
    %v4698 = vmax.f32 %v4696, 0.0
    %s4699 = smul.u32 4, 96
    %s4700 = smul.u32 %s4699, 8
    %s4701 = sshll.u32 %s4700, 4
    %4702 = dma.done [#allocation5], %s4701
    %s4703 = smul.u32 4, 192
    %s4704 = smul.u32 %s4703, 4
    %s4705 = sshll.u32 %s4704, 4
    %4706 = dma.done %s670, %s4705
    %v4707 = vld [vmem:[#allocation3] sm:$0xff]
    %v4708 = vld [vmem:[#allocation3 + $0x8] sm:$0xff]
    %v4709 = vld [vmem:[#allocation3 + $0x10] sm:$0xff]
    %v4710 = vld [vmem:[#allocation3 + $0x18] sm:$0xff]
    %v4711 = vld [vmem:[#allocation3 + $0x20] sm:$0xff]
    %v4712 = vld [vmem:[#allocation3 + $0x28] sm:$0xff]
    %v4713 = vld [vmem:[#allocation3 + $0x30] sm:$0xff]
    %v4714 = vld [vmem:[#allocation3 + $0x38] sm:$0xff]
    %v4715 = vld [vmem:[#allocation3 + $0x40] sm:$0xff]
    %v4716 = vld [vmem:[#allocation3 + $0x48] sm:$0xff]
    %v4717 = vld [vmem:[#allocation3 + $0x50] sm:$0xff]
    %v4718 = vld [vmem:[#allocation3 + $0x58] sm:$0xff]
    %v4719 = vld [vmem:[#allocation3 + $0x60] sm:$0xff]
    %v4720 = vld [vmem:[#allocation3 + $0x68] sm:$0xff]
    %v4721 = vld [vmem:[#allocation3 + $0x70] sm:$0xff]
    %v4722 = vld [vmem:[#allocation3 + $0x78] sm:$0xff]
    %v4723 = vld [vmem:[#allocation3 + $0x80] sm:$0xff]
    %v4724 = vld [vmem:[#allocation3 + $0x88] sm:$0xff]
    %v4725 = vld [vmem:[#allocation3 + $0x90] sm:$0xff]
    %v4726 = vld [vmem:[#allocation3 + $0x98] sm:$0xff]
    %v4727 = vld [vmem:[#allocation3 + $0xa0] sm:$0xff]
    %v4728 = vld [vmem:[#allocation3 + $0xa8] sm:$0xff]
    %v4729 = vld [vmem:[#allocation3 + $0xb0] sm:$0xff]
    %v4730 = vld [vmem:[#allocation3 + $0xb8] sm:$0xff]
    %v4731 = vld [vmem:[#allocation3 + $0xc0] sm:$0xff]
    %v4732 = vld [vmem:[#allocation3 + $0xc8] sm:$0xff]
    %v4733 = vld [vmem:[#allocation3 + $0xd0] sm:$0xff]
    %v4734 = vld [vmem:[#allocation3 + $0xd8] sm:$0xff]
    %v4735 = vld [vmem:[#allocation3 + $0xe0] sm:$0xff]
    %v4736 = vld [vmem:[#allocation3 + $0xe8] sm:$0xff]
    %v4737 = vld [vmem:[#allocation3 + $0xf0] sm:$0xff]
    %v4738 = vld [vmem:[#allocation3 + $0xf8] sm:$0xff]
    %v4739 = vld [vmem:[#allocation3 + $0x100] sm:$0xff]
    %v4740 = vld [vmem:[#allocation3 + $0x108] sm:$0xff]
    %v4741 = vld [vmem:[#allocation3 + $0x110] sm:$0xff]
    %v4742 = vld [vmem:[#allocation3 + $0x118] sm:$0xff]
    %v4743 = vld [vmem:[#allocation3 + $0x120] sm:$0xff]
    %v4744 = vld [vmem:[#allocation3 + $0x128] sm:$0xff]
    %v4745 = vld [vmem:[#allocation3 + $0x130] sm:$0xff]
    %v4746 = vld [vmem:[#allocation3 + $0x138] sm:$0xff]
    %v4747 = vld [vmem:[#allocation3 + $0x140] sm:$0xff]
    %v4748 = vld [vmem:[#allocation3 + $0x148] sm:$0xff]
    %v4749 = vld [vmem:[#allocation3 + $0x150] sm:$0xff]
    %v4750 = vld [vmem:[#allocation3 + $0x158] sm:$0xff]
    %v4751 = vld [vmem:[#allocation3 + $0x160] sm:$0xff]
    %v4752 = vld [vmem:[#allocation3 + $0x168] sm:$0xff]
    %v4753 = vld [vmem:[#allocation3 + $0x170] sm:$0xff]
    %v4754 = vld [vmem:[#allocation3 + $0x178] sm:$0xff]
    %v4755 = vld [vmem:[#allocation3 + $0x180] sm:$0xff]
    %v4756 = vld [vmem:[#allocation3 + $0x188] sm:$0xff]
    %v4757 = vld [vmem:[#allocation3 + $0x190] sm:$0xff]
    %v4758 = vld [vmem:[#allocation3 + $0x198] sm:$0xff]
    %v4759 = vld [vmem:[#allocation3 + $0x1a0] sm:$0xff]
    %v4760 = vld [vmem:[#allocation3 + $0x1a8] sm:$0xff]
    %v4761 = vld [vmem:[#allocation3 + $0x1b0] sm:$0xff]
    %v4762 = vld [vmem:[#allocation3 + $0x1b8] sm:$0xff]
    %v4763 = vld [vmem:[#allocation3 + $0x1c0] sm:$0xff]
    %v4764 = vld [vmem:[#allocation3 + $0x1c8] sm:$0xff]
    %v4765 = vld [vmem:[#allocation3 + $0x1d0] sm:$0xff]
    %v4766 = vld [vmem:[#allocation3 + $0x1d8] sm:$0xff]
    %v4767 = vld [vmem:[#allocation3 + $0x1e0] sm:$0xff]
    %v4768 = vld [vmem:[#allocation3 + $0x1e8] sm:$0xff]
    %v4769 = vld [vmem:[#allocation3 + $0x1f0] sm:$0xff]
    %v4770 = vld [vmem:[#allocation3 + $0x1f8] sm:$0xff]
    %v4771 = vld [vmem:[#allocation3 + $0x200] sm:$0xff]
    %v4772 = vld [vmem:[#allocation3 + $0x208] sm:$0xff]
    %v4773 = vld [vmem:[#allocation3 + $0x210] sm:$0xff]
    %v4774 = vld [vmem:[#allocation3 + $0x218] sm:$0xff]
    %v4775 = vld [vmem:[#allocation3 + $0x220] sm:$0xff]
    %v4776 = vld [vmem:[#allocation3 + $0x228] sm:$0xff]
    %v4777 = vld [vmem:[#allocation3 + $0x230] sm:$0xff]
    %v4778 = vld [vmem:[#allocation3 + $0x238] sm:$0xff]
    %v4779 = vld [vmem:[#allocation3 + $0x240] sm:$0xff]
    %v4780 = vld [vmem:[#allocation3 + $0x248] sm:$0xff]
    %v4781 = vld [vmem:[#allocation3 + $0x250] sm:$0xff]
    %v4782 = vld [vmem:[#allocation3 + $0x258] sm:$0xff]
    %v4783 = vld [vmem:[#allocation3 + $0x260] sm:$0xff]
    %v4784 = vld [vmem:[#allocation3 + $0x268] sm:$0xff]
    %v4785 = vld [vmem:[#allocation3 + $0x270] sm:$0xff]
    %v4786 = vld [vmem:[#allocation3 + $0x278] sm:$0xff]
    %v4787 = vld [vmem:[#allocation3 + $0x280] sm:$0xff]
    %v4788 = vld [vmem:[#allocation3 + $0x288] sm:$0xff]
    %v4789 = vld [vmem:[#allocation3 + $0x290] sm:$0xff]
    %v4790 = vld [vmem:[#allocation3 + $0x298] sm:$0xff]
    %v4791 = vld [vmem:[#allocation3 + $0x2a0] sm:$0xff]
    %v4792 = vld [vmem:[#allocation3 + $0x2a8] sm:$0xff]
    %v4793 = vld [vmem:[#allocation3 + $0x2b0] sm:$0xff]
    %v4794 = vld [vmem:[#allocation3 + $0x2b8] sm:$0xff]
    %v4795 = vld [vmem:[#allocation3 + $0x2c0] sm:$0xff]
    %v4796 = vld [vmem:[#allocation3 + $0x2c8] sm:$0xff]
    %v4797 = vld [vmem:[#allocation3 + $0x2d0] sm:$0xff]
    %v4798 = vld [vmem:[#allocation3 + $0x2d8] sm:$0xff]
    %v4799 = vld [vmem:[#allocation3 + $0x2e0] sm:$0xff]
    %v4800 = vld [vmem:[#allocation3 + $0x2e8] sm:$0xff]
    %v4801 = vld [vmem:[#allocation3 + $0x2f0] sm:$0xff]
    %v4802 = vld [vmem:[#allocation3 + $0x2f8] sm:$0xff]
    %v4803 = vld [vmem:[#allocation3 + $0x300] sm:$0xff]
    %v4804 = vld [vmem:[#allocation3 + $0x308] sm:$0xff]
    %v4805 = vld [vmem:[#allocation3 + $0x310] sm:$0xff]
    %v4806 = vld [vmem:[#allocation3 + $0x318] sm:$0xff]
    %v4807 = vld [vmem:[#allocation3 + $0x320] sm:$0xff]
    %v4808 = vld [vmem:[#allocation3 + $0x328] sm:$0xff]
    %v4809 = vld [vmem:[#allocation3 + $0x330] sm:$0xff]
    %v4810 = vld [vmem:[#allocation3 + $0x338] sm:$0xff]
    %v4811 = vld [vmem:[#allocation3 + $0x340] sm:$0xff]
    %v4812 = vld [vmem:[#allocation3 + $0x348] sm:$0xff]
    %v4813 = vld [vmem:[#allocation3 + $0x350] sm:$0xff]
    %v4814 = vld [vmem:[#allocation3 + $0x358] sm:$0xff]
    %v4815 = vld [vmem:[#allocation3 + $0x360] sm:$0xff]
    %v4816 = vld [vmem:[#allocation3 + $0x368] sm:$0xff]
    %v4817 = vld [vmem:[#allocation3 + $0x370] sm:$0xff]
    %v4818 = vld [vmem:[#allocation3 + $0x378] sm:$0xff]
    %v4819 = vld [vmem:[#allocation3 + $0x380] sm:$0xff]
    %v4820 = vld [vmem:[#allocation3 + $0x388] sm:$0xff]
    %v4821 = vld [vmem:[#allocation3 + $0x390] sm:$0xff]
    %v4822 = vld [vmem:[#allocation3 + $0x398] sm:$0xff]
    %v4823 = vld [vmem:[#allocation3 + $0x3a0] sm:$0xff]
    %v4824 = vld [vmem:[#allocation3 + $0x3a8] sm:$0xff]
    %v4825 = vld [vmem:[#allocation3 + $0x3b0] sm:$0xff]
    %v4826 = vld [vmem:[#allocation3 + $0x3b8] sm:$0xff]
    %v4827 = vld [vmem:[#allocation3 + $0x3c0] sm:$0xff]
    %v4828 = vld [vmem:[#allocation3 + $0x3c8] sm:$0xff]
    %v4829 = vld [vmem:[#allocation3 + $0x3d0] sm:$0xff]
    %v4830 = vld [vmem:[#allocation3 + $0x3d8] sm:$0xff]
    %v4831 = vld [vmem:[#allocation3 + $0x3e0] sm:$0xff]
    %v4832 = vld [vmem:[#allocation3 + $0x3e8] sm:$0xff]
    %v4833 = vld [vmem:[#allocation3 + $0x3f0] sm:$0xff]
    %v4834 = vld [vmem:[#allocation3 + $0x3f8] sm:$0xff]
    %v4835 = vld [vmem:[#allocation3 + $0x400] sm:$0xff]
    %v4836 = vld [vmem:[#allocation3 + $0x408] sm:$0xff]
    %v4837 = vld [vmem:[#allocation3 + $0x410] sm:$0xff]
    %v4838 = vld [vmem:[#allocation3 + $0x418] sm:$0xff]
    %v4839 = vld [vmem:[#allocation3 + $0x420] sm:$0xff]
    %v4840 = vld [vmem:[#allocation3 + $0x428] sm:$0xff]
    %v4841 = vld [vmem:[#allocation3 + $0x430] sm:$0xff]
    %v4842 = vld [vmem:[#allocation3 + $0x438] sm:$0xff]
    %v4843 = vld [vmem:[#allocation3 + $0x440] sm:$0xff]
    %v4844 = vld [vmem:[#allocation3 + $0x448] sm:$0xff]
    %v4845 = vld [vmem:[#allocation3 + $0x450] sm:$0xff]
    %v4846 = vld [vmem:[#allocation3 + $0x458] sm:$0xff]
    %v4847 = vld [vmem:[#allocation3 + $0x460] sm:$0xff]
    %v4848 = vld [vmem:[#allocation3 + $0x468] sm:$0xff]
    %v4849 = vld [vmem:[#allocation3 + $0x470] sm:$0xff]
    %v4850 = vld [vmem:[#allocation3 + $0x478] sm:$0xff]
    %v4851 = vld [vmem:[#allocation3 + $0x480] sm:$0xff]
    %v4852 = vld [vmem:[#allocation3 + $0x488] sm:$0xff]
    %v4853 = vld [vmem:[#allocation3 + $0x490] sm:$0xff]
    %v4854 = vld [vmem:[#allocation3 + $0x498] sm:$0xff]
    %v4855 = vld [vmem:[#allocation3 + $0x4a0] sm:$0xff]
    %v4856 = vld [vmem:[#allocation3 + $0x4a8] sm:$0xff]
    %v4857 = vld [vmem:[#allocation3 + $0x4b0] sm:$0xff]
    %v4858 = vld [vmem:[#allocation3 + $0x4b8] sm:$0xff]
    %v4859 = vld [vmem:[#allocation3 + $0x4c0] sm:$0xff]
    %v4860 = vld [vmem:[#allocation3 + $0x4c8] sm:$0xff]
    %v4861 = vld [vmem:[#allocation3 + $0x4d0] sm:$0xff]
    %v4862 = vld [vmem:[#allocation3 + $0x4d8] sm:$0xff]
    %v4863 = vld [vmem:[#allocation3 + $0x4e0] sm:$0xff]
    %v4864 = vld [vmem:[#allocation3 + $0x4e8] sm:$0xff]
    %v4865 = vld [vmem:[#allocation3 + $0x4f0] sm:$0xff]
    %v4866 = vld [vmem:[#allocation3 + $0x4f8] sm:$0xff]
    %v4867 = vld [vmem:[#allocation3 + $0x500] sm:$0xff]
    %v4868 = vld [vmem:[#allocation3 + $0x508] sm:$0xff]
    %v4869 = vld [vmem:[#allocation3 + $0x510] sm:$0xff]
    %v4870 = vld [vmem:[#allocation3 + $0x518] sm:$0xff]
    %v4871 = vld [vmem:[#allocation3 + $0x520] sm:$0xff]
    %v4872 = vld [vmem:[#allocation3 + $0x528] sm:$0xff]
    %v4873 = vld [vmem:[#allocation3 + $0x530] sm:$0xff]
    %v4874 = vld [vmem:[#allocation3 + $0x538] sm:$0xff]
    %v4875 = vld [vmem:[#allocation3 + $0x540] sm:$0xff]
    %v4876 = vld [vmem:[#allocation3 + $0x548] sm:$0xff]
    %v4877 = vld [vmem:[#allocation3 + $0x550] sm:$0xff]
    %v4878 = vld [vmem:[#allocation3 + $0x558] sm:$0xff]
    %v4879 = vld [vmem:[#allocation3 + $0x560] sm:$0xff]
    %v4880 = vld [vmem:[#allocation3 + $0x568] sm:$0xff]
    %v4881 = vld [vmem:[#allocation3 + $0x570] sm:$0xff]
    %v4882 = vld [vmem:[#allocation3 + $0x578] sm:$0xff]
    %v4883 = vld [vmem:[#allocation3 + $0x580] sm:$0xff]
    %v4884 = vld [vmem:[#allocation3 + $0x588] sm:$0xff]
    %v4885 = vld [vmem:[#allocation3 + $0x590] sm:$0xff]
    %v4886 = vld [vmem:[#allocation3 + $0x598] sm:$0xff]
    %v4887 = vld [vmem:[#allocation3 + $0x5a0] sm:$0xff]
    %v4888 = vld [vmem:[#allocation3 + $0x5a8] sm:$0xff]
    %v4889 = vld [vmem:[#allocation3 + $0x5b0] sm:$0xff]
    %v4890 = vld [vmem:[#allocation3 + $0x5b8] sm:$0xff]
    %v4891 = vld [vmem:[#allocation3 + $0x5c0] sm:$0xff]
    %v4892 = vld [vmem:[#allocation3 + $0x5c8] sm:$0xff]
    %v4893 = vld [vmem:[#allocation3 + $0x5d0] sm:$0xff]
    %v4894 = vld [vmem:[#allocation3 + $0x5d8] sm:$0xff]
    %v4895 = vld [vmem:[#allocation3 + $0x5e0] sm:$0xff]
    %v4896 = vld [vmem:[#allocation3 + $0x5e8] sm:$0xff]
    %v4897 = vld [vmem:[#allocation3 + $0x5f0] sm:$0xff]
    %v4898 = vld [vmem:[#allocation3 + $0x5f8] sm:$0xff]
    %v4899 = vld [vmem:[#allocation3 + $0x600] sm:$0xff]
    %v4900 = vld [vmem:[#allocation3 + $0x608] sm:$0xff]
    %v4901 = vld [vmem:[#allocation3 + $0x610] sm:$0xff]
    %v4902 = vld [vmem:[#allocation3 + $0x618] sm:$0xff]
    %v4903 = vld [vmem:[#allocation3 + $0x620] sm:$0xff]
    %v4904 = vld [vmem:[#allocation3 + $0x628] sm:$0xff]
    %v4905 = vld [vmem:[#allocation3 + $0x630] sm:$0xff]
    %v4906 = vld [vmem:[#allocation3 + $0x638] sm:$0xff]
    %v4907 = vld [vmem:[#allocation3 + $0x640] sm:$0xff]
    %v4908 = vld [vmem:[#allocation3 + $0x648] sm:$0xff]
    %v4909 = vld [vmem:[#allocation3 + $0x650] sm:$0xff]
    %v4910 = vld [vmem:[#allocation3 + $0x658] sm:$0xff]
    %v4911 = vld [vmem:[#allocation3 + $0x660] sm:$0xff]
    %v4912 = vld [vmem:[#allocation3 + $0x668] sm:$0xff]
    %v4913 = vld [vmem:[#allocation3 + $0x670] sm:$0xff]
    %v4914 = vld [vmem:[#allocation3 + $0x678] sm:$0xff]
    %v4915 = vld [vmem:[#allocation3 + $0x680] sm:$0xff]
    %v4916 = vld [vmem:[#allocation3 + $0x688] sm:$0xff]
    %v4917 = vld [vmem:[#allocation3 + $0x690] sm:$0xff]
    %v4918 = vld [vmem:[#allocation3 + $0x698] sm:$0xff]
    %v4919 = vld [vmem:[#allocation3 + $0x6a0] sm:$0xff]
    %v4920 = vld [vmem:[#allocation3 + $0x6a8] sm:$0xff]
    %v4921 = vld [vmem:[#allocation3 + $0x6b0] sm:$0xff]
    %v4922 = vld [vmem:[#allocation3 + $0x6b8] sm:$0xff]
    %v4923 = vld [vmem:[#allocation3 + $0x6c0] sm:$0xff]
    %v4924 = vld [vmem:[#allocation3 + $0x6c8] sm:$0xff]
    %v4925 = vld [vmem:[#allocation3 + $0x6d0] sm:$0xff]
    %v4926 = vld [vmem:[#allocation3 + $0x6d8] sm:$0xff]
    %v4927 = vld [vmem:[#allocation3 + $0x6e0] sm:$0xff]
    %v4928 = vld [vmem:[#allocation3 + $0x6e8] sm:$0xff]
    %v4929 = vld [vmem:[#allocation3 + $0x6f0] sm:$0xff]
    %v4930 = vld [vmem:[#allocation3 + $0x6f8] sm:$0xff]
    %v4931 = vld [vmem:[#allocation3 + $0x700] sm:$0xff]
    %v4932 = vld [vmem:[#allocation3 + $0x708] sm:$0xff]
    %v4933 = vld [vmem:[#allocation3 + $0x710] sm:$0xff]
    %v4934 = vld [vmem:[#allocation3 + $0x718] sm:$0xff]
    %v4935 = vld [vmem:[#allocation3 + $0x720] sm:$0xff]
    %v4936 = vld [vmem:[#allocation3 + $0x728] sm:$0xff]
    %v4937 = vld [vmem:[#allocation3 + $0x730] sm:$0xff]
    %v4938 = vld [vmem:[#allocation3 + $0x738] sm:$0xff]
    %v4939 = vld [vmem:[#allocation3 + $0x740] sm:$0xff]
    %v4940 = vld [vmem:[#allocation3 + $0x748] sm:$0xff]
    %v4941 = vld [vmem:[#allocation3 + $0x750] sm:$0xff]
    %v4942 = vld [vmem:[#allocation3 + $0x758] sm:$0xff]
    %v4943 = vld [vmem:[#allocation3 + $0x760] sm:$0xff]
    %v4944 = vld [vmem:[#allocation3 + $0x768] sm:$0xff]
    %v4945 = vld [vmem:[#allocation3 + $0x770] sm:$0xff]
    %v4946 = vld [vmem:[#allocation3 + $0x778] sm:$0xff]
    %v4947 = vld [vmem:[#allocation3 + $0x780] sm:$0xff]
    %v4948 = vld [vmem:[#allocation3 + $0x788] sm:$0xff]
    %v4949 = vld [vmem:[#allocation3 + $0x790] sm:$0xff]
    %v4950 = vld [vmem:[#allocation3 + $0x798] sm:$0xff]
    %v4951 = vld [vmem:[#allocation3 + $0x7a0] sm:$0xff]
    %v4952 = vld [vmem:[#allocation3 + $0x7a8] sm:$0xff]
    %v4953 = vld [vmem:[#allocation3 + $0x7b0] sm:$0xff]
    %v4954 = vld [vmem:[#allocation3 + $0x7b8] sm:$0xff]
    %v4955 = vld [vmem:[#allocation3 + $0x7c0] sm:$0xff]
    %v4956 = vld [vmem:[#allocation3 + $0x7c8] sm:$0xff]
    %v4957 = vld [vmem:[#allocation3 + $0x7d0] sm:$0xff]
    %v4958 = vld [vmem:[#allocation3 + $0x7d8] sm:$0xff]
    %v4959 = vld [vmem:[#allocation3 + $0x7e0] sm:$0xff]
    %v4960 = vld [vmem:[#allocation3 + $0x7e8] sm:$0xff]
    %v4961 = vld [vmem:[#allocation3 + $0x7f0] sm:$0xff]
    %v4962 = vld [vmem:[#allocation3 + $0x7f8] sm:$0xff]
    %v4963 = vld [vmem:[#allocation3 + $0x800] sm:$0xff]
    %v4964 = vld [vmem:[#allocation3 + $0x808] sm:$0xff]
    %v4965 = vld [vmem:[#allocation3 + $0x810] sm:$0xff]
    %v4966 = vld [vmem:[#allocation3 + $0x818] sm:$0xff]
    %v4967 = vld [vmem:[#allocation3 + $0x820] sm:$0xff]
    %v4968 = vld [vmem:[#allocation3 + $0x828] sm:$0xff]
    %v4969 = vld [vmem:[#allocation3 + $0x830] sm:$0xff]
    %v4970 = vld [vmem:[#allocation3 + $0x838] sm:$0xff]
    %v4971 = vld [vmem:[#allocation3 + $0x840] sm:$0xff]
    %v4972 = vld [vmem:[#allocation3 + $0x848] sm:$0xff]
    %v4973 = vld [vmem:[#allocation3 + $0x850] sm:$0xff]
    %v4974 = vld [vmem:[#allocation3 + $0x858] sm:$0xff]
    %v4975 = vld [vmem:[#allocation3 + $0x860] sm:$0xff]
    %v4976 = vld [vmem:[#allocation3 + $0x868] sm:$0xff]
    %v4977 = vld [vmem:[#allocation3 + $0x870] sm:$0xff]
    %v4978 = vld [vmem:[#allocation3 + $0x878] sm:$0xff]
    %v4979 = vld [vmem:[#allocation3 + $0x880] sm:$0xff]
    %v4980 = vld [vmem:[#allocation3 + $0x888] sm:$0xff]
    %v4981 = vld [vmem:[#allocation3 + $0x890] sm:$0xff]
    %v4982 = vld [vmem:[#allocation3 + $0x898] sm:$0xff]
    %v4983 = vld [vmem:[#allocation3 + $0x8a0] sm:$0xff]
    %v4984 = vld [vmem:[#allocation3 + $0x8a8] sm:$0xff]
    %v4985 = vld [vmem:[#allocation3 + $0x8b0] sm:$0xff]
    %v4986 = vld [vmem:[#allocation3 + $0x8b8] sm:$0xff]
    %v4987 = vld [vmem:[#allocation3 + $0x8c0] sm:$0xff]
    %v4988 = vld [vmem:[#allocation3 + $0x8c8] sm:$0xff]
    %v4989 = vld [vmem:[#allocation3 + $0x8d0] sm:$0xff]
    %v4990 = vld [vmem:[#allocation3 + $0x8d8] sm:$0xff]
    %v4991 = vld [vmem:[#allocation3 + $0x8e0] sm:$0xff]
    %v4992 = vld [vmem:[#allocation3 + $0x8e8] sm:$0xff]
    %v4993 = vld [vmem:[#allocation3 + $0x8f0] sm:$0xff]
    %v4994 = vld [vmem:[#allocation3 + $0x8f8] sm:$0xff]
    %v4995 = vld [vmem:[#allocation3 + $0x900] sm:$0xff]
    %v4996 = vld [vmem:[#allocation3 + $0x908] sm:$0xff]
    %v4997 = vld [vmem:[#allocation3 + $0x910] sm:$0xff]
    %v4998 = vld [vmem:[#allocation3 + $0x918] sm:$0xff]
    %v4999 = vld [vmem:[#allocation3 + $0x920] sm:$0xff]
    %v5000 = vld [vmem:[#allocation3 + $0x928] sm:$0xff]
    %v5001 = vld [vmem:[#allocation3 + $0x930] sm:$0xff]
    %v5002 = vld [vmem:[#allocation3 + $0x938] sm:$0xff]
    %v5003 = vld [vmem:[#allocation3 + $0x940] sm:$0xff]
    %v5004 = vld [vmem:[#allocation3 + $0x948] sm:$0xff]
    %v5005 = vld [vmem:[#allocation3 + $0x950] sm:$0xff]
    %v5006 = vld [vmem:[#allocation3 + $0x958] sm:$0xff]
    %v5007 = vld [vmem:[#allocation3 + $0x960] sm:$0xff]
    %v5008 = vld [vmem:[#allocation3 + $0x968] sm:$0xff]
    %v5009 = vld [vmem:[#allocation3 + $0x970] sm:$0xff]
    %v5010 = vld [vmem:[#allocation3 + $0x978] sm:$0xff]
    %v5011 = vld [vmem:[#allocation3 + $0x980] sm:$0xff]
    %v5012 = vld [vmem:[#allocation3 + $0x988] sm:$0xff]
    %v5013 = vld [vmem:[#allocation3 + $0x990] sm:$0xff]
    %v5014 = vld [vmem:[#allocation3 + $0x998] sm:$0xff]
    %v5015 = vld [vmem:[#allocation3 + $0x9a0] sm:$0xff]
    %v5016 = vld [vmem:[#allocation3 + $0x9a8] sm:$0xff]
    %v5017 = vld [vmem:[#allocation3 + $0x9b0] sm:$0xff]
    %v5018 = vld [vmem:[#allocation3 + $0x9b8] sm:$0xff]
    %v5019 = vld [vmem:[#allocation3 + $0x9c0] sm:$0xff]
    %v5020 = vld [vmem:[#allocation3 + $0x9c8] sm:$0xff]
    %v5021 = vld [vmem:[#allocation3 + $0x9d0] sm:$0xff]
    %v5022 = vld [vmem:[#allocation3 + $0x9d8] sm:$0xff]
    %v5023 = vld [vmem:[#allocation3 + $0x9e0] sm:$0xff]
    %v5024 = vld [vmem:[#allocation3 + $0x9e8] sm:$0xff]
    %v5025 = vld [vmem:[#allocation3 + $0x9f0] sm:$0xff]
    %v5026 = vld [vmem:[#allocation3 + $0x9f8] sm:$0xff]
    %v5027 = vld [vmem:[#allocation3 + $0xa00] sm:$0xff]
    %v5028 = vld [vmem:[#allocation3 + $0xa08] sm:$0xff]
    %v5029 = vld [vmem:[#allocation3 + $0xa10] sm:$0xff]
    %v5030 = vld [vmem:[#allocation3 + $0xa18] sm:$0xff]
    %v5031 = vld [vmem:[#allocation3 + $0xa20] sm:$0xff]
    %v5032 = vld [vmem:[#allocation3 + $0xa28] sm:$0xff]
    %v5033 = vld [vmem:[#allocation3 + $0xa30] sm:$0xff]
    %v5034 = vld [vmem:[#allocation3 + $0xa38] sm:$0xff]
    %v5035 = vld [vmem:[#allocation3 + $0xa40] sm:$0xff]
    %v5036 = vld [vmem:[#allocation3 + $0xa48] sm:$0xff]
    %v5037 = vld [vmem:[#allocation3 + $0xa50] sm:$0xff]
    %v5038 = vld [vmem:[#allocation3 + $0xa58] sm:$0xff]
    %v5039 = vld [vmem:[#allocation3 + $0xa60] sm:$0xff]
    %v5040 = vld [vmem:[#allocation3 + $0xa68] sm:$0xff]
    %v5041 = vld [vmem:[#allocation3 + $0xa70] sm:$0xff]
    %v5042 = vld [vmem:[#allocation3 + $0xa78] sm:$0xff]
    %v5043 = vld [vmem:[#allocation3 + $0xa80] sm:$0xff]
    %v5044 = vld [vmem:[#allocation3 + $0xa88] sm:$0xff]
    %v5045 = vld [vmem:[#allocation3 + $0xa90] sm:$0xff]
    %v5046 = vld [vmem:[#allocation3 + $0xa98] sm:$0xff]
    %v5047 = vld [vmem:[#allocation3 + $0xaa0] sm:$0xff]
    %v5048 = vld [vmem:[#allocation3 + $0xaa8] sm:$0xff]
    %v5049 = vld [vmem:[#allocation3 + $0xab0] sm:$0xff]
    %v5050 = vld [vmem:[#allocation3 + $0xab8] sm:$0xff]
    %v5051 = vld [vmem:[#allocation3 + $0xac0] sm:$0xff]
    %v5052 = vld [vmem:[#allocation3 + $0xac8] sm:$0xff]
    %v5053 = vld [vmem:[#allocation3 + $0xad0] sm:$0xff]
    %v5054 = vld [vmem:[#allocation3 + $0xad8] sm:$0xff]
    %v5055 = vld [vmem:[#allocation3 + $0xae0] sm:$0xff]
    %v5056 = vld [vmem:[#allocation3 + $0xae8] sm:$0xff]
    %v5057 = vld [vmem:[#allocation3 + $0xaf0] sm:$0xff]
    %v5058 = vld [vmem:[#allocation3 + $0xaf8] sm:$0xff]
    %v5059 = vld [vmem:[#allocation3 + $0xb00] sm:$0xff]
    %v5060 = vld [vmem:[#allocation3 + $0xb08] sm:$0xff]
    %v5061 = vld [vmem:[#allocation3 + $0xb10] sm:$0xff]
    %v5062 = vld [vmem:[#allocation3 + $0xb18] sm:$0xff]
    %v5063 = vld [vmem:[#allocation3 + $0xb20] sm:$0xff]
    %v5064 = vld [vmem:[#allocation3 + $0xb28] sm:$0xff]
    %v5065 = vld [vmem:[#allocation3 + $0xb30] sm:$0xff]
    %v5066 = vld [vmem:[#allocation3 + $0xb38] sm:$0xff]
    %v5067 = vld [vmem:[#allocation3 + $0xb40] sm:$0xff]
    %v5068 = vld [vmem:[#allocation3 + $0xb48] sm:$0xff]
    %v5069 = vld [vmem:[#allocation3 + $0xb50] sm:$0xff]
    %v5070 = vld [vmem:[#allocation3 + $0xb58] sm:$0xff]
    %v5071 = vld [vmem:[#allocation3 + $0xb60] sm:$0xff]
    %v5072 = vld [vmem:[#allocation3 + $0xb68] sm:$0xff]
    %v5073 = vld [vmem:[#allocation3 + $0xb70] sm:$0xff]
    %v5074 = vld [vmem:[#allocation3 + $0xb78] sm:$0xff]
    %v5075 = vld [vmem:[#allocation3 + $0xb80] sm:$0xff]
    %v5076 = vld [vmem:[#allocation3 + $0xb88] sm:$0xff]
    %v5077 = vld [vmem:[#allocation3 + $0xb90] sm:$0xff]
    %v5078 = vld [vmem:[#allocation3 + $0xb98] sm:$0xff]
    %v5079 = vld [vmem:[#allocation3 + $0xba0] sm:$0xff]
    %v5080 = vld [vmem:[#allocation3 + $0xba8] sm:$0xff]
    %v5081 = vld [vmem:[#allocation3 + $0xbb0] sm:$0xff]
    %v5082 = vld [vmem:[#allocation3 + $0xbb8] sm:$0xff]
    %v5083 = vld [vmem:[#allocation3 + $0xbc0] sm:$0xff]
    %v5084 = vld [vmem:[#allocation3 + $0xbc8] sm:$0xff]
    %v5085 = vld [vmem:[#allocation3 + $0xbd0] sm:$0xff]
    %v5086 = vld [vmem:[#allocation3 + $0xbd8] sm:$0xff]
    %v5087 = vld [vmem:[#allocation3 + $0xbe0] sm:$0xff]
    %v5088 = vld [vmem:[#allocation3 + $0xbe8] sm:$0xff]
    %v5089 = vld [vmem:[#allocation3 + $0xbf0] sm:$0xff]
    %v5090 = vld [vmem:[#allocation3 + $0xbf8] sm:$0xff]
    %v5091 = vld [vmem:[#allocation4] sm:$0xff]
    %v5092 = vld [vmem:[#allocation4 + $0x8] sm:$0xff]
    %v5093 = vld [vmem:[#allocation4 + $0x10] sm:$0xff]
    %v5094 = vld [vmem:[#allocation4 + $0x18] sm:$0xff]
    %v5095 = vld [vmem:[#allocation4 + $0x20] sm:$0xff]
    %v5096 = vld [vmem:[#allocation4 + $0x28] sm:$0xff]
    %v5097 = vld [vmem:[#allocation4 + $0x30] sm:$0xff]
    %v5098 = vld [vmem:[#allocation4 + $0x38] sm:$0xff]
    %v5099 = vld [vmem:[#allocation4 + $0x40] sm:$0xff]
    %v5100 = vld [vmem:[#allocation4 + $0x48] sm:$0xff]
    %v5101 = vld [vmem:[#allocation4 + $0x50] sm:$0xff]
    %v5102 = vld [vmem:[#allocation4 + $0x58] sm:$0xff]
    %v5103 = vld [vmem:[#allocation4 + $0x60] sm:$0xff]
    %v5104 = vld [vmem:[#allocation4 + $0x68] sm:$0xff]
    %v5105 = vld [vmem:[#allocation4 + $0x70] sm:$0xff]
    %v5106 = vld [vmem:[#allocation4 + $0x78] sm:$0xff]
    %v5107 = vld [vmem:[#allocation4 + $0x80] sm:$0xff]
    %v5108 = vld [vmem:[#allocation4 + $0x88] sm:$0xff]
    %v5109 = vld [vmem:[#allocation4 + $0x90] sm:$0xff]
    %v5110 = vld [vmem:[#allocation4 + $0x98] sm:$0xff]
    %v5111 = vld [vmem:[#allocation4 + $0xa0] sm:$0xff]
    %v5112 = vld [vmem:[#allocation4 + $0xa8] sm:$0xff]
    %v5113 = vld [vmem:[#allocation4 + $0xb0] sm:$0xff]
    %v5114 = vld [vmem:[#allocation4 + $0xb8] sm:$0xff]
    %v5115 = vld [vmem:[#allocation4 + $0xc0] sm:$0xff]
    %v5116 = vld [vmem:[#allocation4 + $0xc8] sm:$0xff]
    %v5117 = vld [vmem:[#allocation4 + $0xd0] sm:$0xff]
    %v5118 = vld [vmem:[#allocation4 + $0xd8] sm:$0xff]
    %v5119 = vld [vmem:[#allocation4 + $0xe0] sm:$0xff]
    %v5120 = vld [vmem:[#allocation4 + $0xe8] sm:$0xff]
    %v5121 = vld [vmem:[#allocation4 + $0xf0] sm:$0xff]
    %v5122 = vld [vmem:[#allocation4 + $0xf8] sm:$0xff]
    %v5123 = vld [vmem:[#allocation4 + $0x100] sm:$0xff]
    %v5124 = vld [vmem:[#allocation4 + $0x108] sm:$0xff]
    %v5125 = vld [vmem:[#allocation4 + $0x110] sm:$0xff]
    %v5126 = vld [vmem:[#allocation4 + $0x118] sm:$0xff]
    %v5127 = vld [vmem:[#allocation4 + $0x120] sm:$0xff]
    %v5128 = vld [vmem:[#allocation4 + $0x128] sm:$0xff]
    %v5129 = vld [vmem:[#allocation4 + $0x130] sm:$0xff]
    %v5130 = vld [vmem:[#allocation4 + $0x138] sm:$0xff]
    %v5131 = vld [vmem:[#allocation4 + $0x140] sm:$0xff]
    %v5132 = vld [vmem:[#allocation4 + $0x148] sm:$0xff]
    %v5133 = vld [vmem:[#allocation4 + $0x150] sm:$0xff]
    %v5134 = vld [vmem:[#allocation4 + $0x158] sm:$0xff]
    %v5135 = vld [vmem:[#allocation4 + $0x160] sm:$0xff]
    %v5136 = vld [vmem:[#allocation4 + $0x168] sm:$0xff]
    %v5137 = vld [vmem:[#allocation4 + $0x170] sm:$0xff]
    %v5138 = vld [vmem:[#allocation4 + $0x178] sm:$0xff]
    %v5139 = vld [vmem:[#allocation4 + $0x180] sm:$0xff]
    %v5140 = vld [vmem:[#allocation4 + $0x188] sm:$0xff]
    %v5141 = vld [vmem:[#allocation4 + $0x190] sm:$0xff]
    %v5142 = vld [vmem:[#allocation4 + $0x198] sm:$0xff]
    %v5143 = vld [vmem:[#allocation4 + $0x1a0] sm:$0xff]
    %v5144 = vld [vmem:[#allocation4 + $0x1a8] sm:$0xff]
    %v5145 = vld [vmem:[#allocation4 + $0x1b0] sm:$0xff]
    %v5146 = vld [vmem:[#allocation4 + $0x1b8] sm:$0xff]
    %v5147 = vld [vmem:[#allocation4 + $0x1c0] sm:$0xff]
    %v5148 = vld [vmem:[#allocation4 + $0x1c8] sm:$0xff]
    %v5149 = vld [vmem:[#allocation4 + $0x1d0] sm:$0xff]
    %v5150 = vld [vmem:[#allocation4 + $0x1d8] sm:$0xff]
    %v5151 = vld [vmem:[#allocation4 + $0x1e0] sm:$0xff]
    %v5152 = vld [vmem:[#allocation4 + $0x1e8] sm:$0xff]
    %v5153 = vld [vmem:[#allocation4 + $0x1f0] sm:$0xff]
    %v5154 = vld [vmem:[#allocation4 + $0x1f8] sm:$0xff]
    %v5155 = vld [vmem:[#allocation4 + $0x200] sm:$0xff]
    %v5156 = vld [vmem:[#allocation4 + $0x208] sm:$0xff]
    %v5157 = vld [vmem:[#allocation4 + $0x210] sm:$0xff]
    %v5158 = vld [vmem:[#allocation4 + $0x218] sm:$0xff]
    %v5159 = vld [vmem:[#allocation4 + $0x220] sm:$0xff]
    %v5160 = vld [vmem:[#allocation4 + $0x228] sm:$0xff]
    %v5161 = vld [vmem:[#allocation4 + $0x230] sm:$0xff]
    %v5162 = vld [vmem:[#allocation4 + $0x238] sm:$0xff]
    %v5163 = vld [vmem:[#allocation4 + $0x240] sm:$0xff]
    %v5164 = vld [vmem:[#allocation4 + $0x248] sm:$0xff]
    %v5165 = vld [vmem:[#allocation4 + $0x250] sm:$0xff]
    %v5166 = vld [vmem:[#allocation4 + $0x258] sm:$0xff]
    %v5167 = vld [vmem:[#allocation4 + $0x260] sm:$0xff]
    %v5168 = vld [vmem:[#allocation4 + $0x268] sm:$0xff]
    %v5169 = vld [vmem:[#allocation4 + $0x270] sm:$0xff]
    %v5170 = vld [vmem:[#allocation4 + $0x278] sm:$0xff]
    %v5171 = vld [vmem:[#allocation4 + $0x280] sm:$0xff]
    %v5172 = vld [vmem:[#allocation4 + $0x288] sm:$0xff]
    %v5173 = vld [vmem:[#allocation4 + $0x290] sm:$0xff]
    %v5174 = vld [vmem:[#allocation4 + $0x298] sm:$0xff]
    %v5175 = vld [vmem:[#allocation4 + $0x2a0] sm:$0xff]
    %v5176 = vld [vmem:[#allocation4 + $0x2a8] sm:$0xff]
    %v5177 = vld [vmem:[#allocation4 + $0x2b0] sm:$0xff]
    %v5178 = vld [vmem:[#allocation4 + $0x2b8] sm:$0xff]
    %v5179 = vld [vmem:[#allocation4 + $0x2c0] sm:$0xff]
    %v5180 = vld [vmem:[#allocation4 + $0x2c8] sm:$0xff]
    %v5181 = vld [vmem:[#allocation4 + $0x2d0] sm:$0xff]
    %v5182 = vld [vmem:[#allocation4 + $0x2d8] sm:$0xff]
    %v5183 = vld [vmem:[#allocation4 + $0x2e0] sm:$0xff]
    %v5184 = vld [vmem:[#allocation4 + $0x2e8] sm:$0xff]
    %v5185 = vld [vmem:[#allocation4 + $0x2f0] sm:$0xff]
    %v5186 = vld [vmem:[#allocation4 + $0x2f8] sm:$0xff]
    %v5187 = vld [vmem:[#allocation4 + $0x300] sm:$0xff]
    %v5188 = vld [vmem:[#allocation4 + $0x308] sm:$0xff]
    %v5189 = vld [vmem:[#allocation4 + $0x310] sm:$0xff]
    %v5190 = vld [vmem:[#allocation4 + $0x318] sm:$0xff]
    %v5191 = vld [vmem:[#allocation4 + $0x320] sm:$0xff]
    %v5192 = vld [vmem:[#allocation4 + $0x328] sm:$0xff]
    %v5193 = vld [vmem:[#allocation4 + $0x330] sm:$0xff]
    %v5194 = vld [vmem:[#allocation4 + $0x338] sm:$0xff]
    %v5195 = vld [vmem:[#allocation4 + $0x340] sm:$0xff]
    %v5196 = vld [vmem:[#allocation4 + $0x348] sm:$0xff]
    %v5197 = vld [vmem:[#allocation4 + $0x350] sm:$0xff]
    %v5198 = vld [vmem:[#allocation4 + $0x358] sm:$0xff]
    %v5199 = vld [vmem:[#allocation4 + $0x360] sm:$0xff]
    %v5200 = vld [vmem:[#allocation4 + $0x368] sm:$0xff]
    %v5201 = vld [vmem:[#allocation4 + $0x370] sm:$0xff]
    %v5202 = vld [vmem:[#allocation4 + $0x378] sm:$0xff]
    %v5203 = vld [vmem:[#allocation4 + $0x380] sm:$0xff]
    %v5204 = vld [vmem:[#allocation4 + $0x388] sm:$0xff]
    %v5205 = vld [vmem:[#allocation4 + $0x390] sm:$0xff]
    %v5206 = vld [vmem:[#allocation4 + $0x398] sm:$0xff]
    %v5207 = vld [vmem:[#allocation4 + $0x3a0] sm:$0xff]
    %v5208 = vld [vmem:[#allocation4 + $0x3a8] sm:$0xff]
    %v5209 = vld [vmem:[#allocation4 + $0x3b0] sm:$0xff]
    %v5210 = vld [vmem:[#allocation4 + $0x3b8] sm:$0xff]
    %v5211 = vld [vmem:[#allocation4 + $0x3c0] sm:$0xff]
    %v5212 = vld [vmem:[#allocation4 + $0x3c8] sm:$0xff]
    %v5213 = vld [vmem:[#allocation4 + $0x3d0] sm:$0xff]
    %v5214 = vld [vmem:[#allocation4 + $0x3d8] sm:$0xff]
    %v5215 = vld [vmem:[#allocation4 + $0x3e0] sm:$0xff]
    %v5216 = vld [vmem:[#allocation4 + $0x3e8] sm:$0xff]
    %v5217 = vld [vmem:[#allocation4 + $0x3f0] sm:$0xff]
    %v5218 = vld [vmem:[#allocation4 + $0x3f8] sm:$0xff]
    %v5219 = vld [vmem:[#allocation4 + $0x400] sm:$0xff]
    %v5220 = vld [vmem:[#allocation4 + $0x408] sm:$0xff]
    %v5221 = vld [vmem:[#allocation4 + $0x410] sm:$0xff]
    %v5222 = vld [vmem:[#allocation4 + $0x418] sm:$0xff]
    %v5223 = vld [vmem:[#allocation4 + $0x420] sm:$0xff]
    %v5224 = vld [vmem:[#allocation4 + $0x428] sm:$0xff]
    %v5225 = vld [vmem:[#allocation4 + $0x430] sm:$0xff]
    %v5226 = vld [vmem:[#allocation4 + $0x438] sm:$0xff]
    %v5227 = vld [vmem:[#allocation4 + $0x440] sm:$0xff]
    %v5228 = vld [vmem:[#allocation4 + $0x448] sm:$0xff]
    %v5229 = vld [vmem:[#allocation4 + $0x450] sm:$0xff]
    %v5230 = vld [vmem:[#allocation4 + $0x458] sm:$0xff]
    %v5231 = vld [vmem:[#allocation4 + $0x460] sm:$0xff]
    %v5232 = vld [vmem:[#allocation4 + $0x468] sm:$0xff]
    %v5233 = vld [vmem:[#allocation4 + $0x470] sm:$0xff]
    %v5234 = vld [vmem:[#allocation4 + $0x478] sm:$0xff]
    %v5235 = vld [vmem:[#allocation4 + $0x480] sm:$0xff]
    %v5236 = vld [vmem:[#allocation4 + $0x488] sm:$0xff]
    %v5237 = vld [vmem:[#allocation4 + $0x490] sm:$0xff]
    %v5238 = vld [vmem:[#allocation4 + $0x498] sm:$0xff]
    %v5239 = vld [vmem:[#allocation4 + $0x4a0] sm:$0xff]
    %v5240 = vld [vmem:[#allocation4 + $0x4a8] sm:$0xff]
    %v5241 = vld [vmem:[#allocation4 + $0x4b0] sm:$0xff]
    %v5242 = vld [vmem:[#allocation4 + $0x4b8] sm:$0xff]
    %v5243 = vld [vmem:[#allocation4 + $0x4c0] sm:$0xff]
    %v5244 = vld [vmem:[#allocation4 + $0x4c8] sm:$0xff]
    %v5245 = vld [vmem:[#allocation4 + $0x4d0] sm:$0xff]
    %v5246 = vld [vmem:[#allocation4 + $0x4d8] sm:$0xff]
    %v5247 = vld [vmem:[#allocation4 + $0x4e0] sm:$0xff]
    %v5248 = vld [vmem:[#allocation4 + $0x4e8] sm:$0xff]
    %v5249 = vld [vmem:[#allocation4 + $0x4f0] sm:$0xff]
    %v5250 = vld [vmem:[#allocation4 + $0x4f8] sm:$0xff]
    %v5251 = vld [vmem:[#allocation4 + $0x500] sm:$0xff]
    %v5252 = vld [vmem:[#allocation4 + $0x508] sm:$0xff]
    %v5253 = vld [vmem:[#allocation4 + $0x510] sm:$0xff]
    %v5254 = vld [vmem:[#allocation4 + $0x518] sm:$0xff]
    %v5255 = vld [vmem:[#allocation4 + $0x520] sm:$0xff]
    %v5256 = vld [vmem:[#allocation4 + $0x528] sm:$0xff]
    %v5257 = vld [vmem:[#allocation4 + $0x530] sm:$0xff]
    %v5258 = vld [vmem:[#allocation4 + $0x538] sm:$0xff]
    %v5259 = vld [vmem:[#allocation4 + $0x540] sm:$0xff]
    %v5260 = vld [vmem:[#allocation4 + $0x548] sm:$0xff]
    %v5261 = vld [vmem:[#allocation4 + $0x550] sm:$0xff]
    %v5262 = vld [vmem:[#allocation4 + $0x558] sm:$0xff]
    %v5263 = vld [vmem:[#allocation4 + $0x560] sm:$0xff]
    %v5264 = vld [vmem:[#allocation4 + $0x568] sm:$0xff]
    %v5265 = vld [vmem:[#allocation4 + $0x570] sm:$0xff]
    %v5266 = vld [vmem:[#allocation4 + $0x578] sm:$0xff]
    %v5267 = vld [vmem:[#allocation4 + $0x580] sm:$0xff]
    %v5268 = vld [vmem:[#allocation4 + $0x588] sm:$0xff]
    %v5269 = vld [vmem:[#allocation4 + $0x590] sm:$0xff]
    %v5270 = vld [vmem:[#allocation4 + $0x598] sm:$0xff]
    %v5271 = vld [vmem:[#allocation4 + $0x5a0] sm:$0xff]
    %v5272 = vld [vmem:[#allocation4 + $0x5a8] sm:$0xff]
    %v5273 = vld [vmem:[#allocation4 + $0x5b0] sm:$0xff]
    %v5274 = vld [vmem:[#allocation4 + $0x5b8] sm:$0xff]
    %v5275 = vld [vmem:[#allocation4 + $0x5c0] sm:$0xff]
    %v5276 = vld [vmem:[#allocation4 + $0x5c8] sm:$0xff]
    %v5277 = vld [vmem:[#allocation4 + $0x5d0] sm:$0xff]
    %v5278 = vld [vmem:[#allocation4 + $0x5d8] sm:$0xff]
    %v5279 = vld [vmem:[#allocation4 + $0x5e0] sm:$0xff]
    %v5280 = vld [vmem:[#allocation4 + $0x5e8] sm:$0xff]
    %v5281 = vld [vmem:[#allocation4 + $0x5f0] sm:$0xff]
    %v5282 = vld [vmem:[#allocation4 + $0x5f8] sm:$0xff]
    %v5283 = vld [vmem:[#allocation4 + $0x600] sm:$0xff]
    %v5284 = vld [vmem:[#allocation4 + $0x608] sm:$0xff]
    %v5285 = vld [vmem:[#allocation4 + $0x610] sm:$0xff]
    %v5286 = vld [vmem:[#allocation4 + $0x618] sm:$0xff]
    %v5287 = vld [vmem:[#allocation4 + $0x620] sm:$0xff]
    %v5288 = vld [vmem:[#allocation4 + $0x628] sm:$0xff]
    %v5289 = vld [vmem:[#allocation4 + $0x630] sm:$0xff]
    %v5290 = vld [vmem:[#allocation4 + $0x638] sm:$0xff]
    %v5291 = vld [vmem:[#allocation4 + $0x640] sm:$0xff]
    %v5292 = vld [vmem:[#allocation4 + $0x648] sm:$0xff]
    %v5293 = vld [vmem:[#allocation4 + $0x650] sm:$0xff]
    %v5294 = vld [vmem:[#allocation4 + $0x658] sm:$0xff]
    %v5295 = vld [vmem:[#allocation4 + $0x660] sm:$0xff]
    %v5296 = vld [vmem:[#allocation4 + $0x668] sm:$0xff]
    %v5297 = vld [vmem:[#allocation4 + $0x670] sm:$0xff]
    %v5298 = vld [vmem:[#allocation4 + $0x678] sm:$0xff]
    %v5299 = vld [vmem:[#allocation4 + $0x680] sm:$0xff]
    %v5300 = vld [vmem:[#allocation4 + $0x688] sm:$0xff]
    %v5301 = vld [vmem:[#allocation4 + $0x690] sm:$0xff]
    %v5302 = vld [vmem:[#allocation4 + $0x698] sm:$0xff]
    %v5303 = vld [vmem:[#allocation4 + $0x6a0] sm:$0xff]
    %v5304 = vld [vmem:[#allocation4 + $0x6a8] sm:$0xff]
    %v5305 = vld [vmem:[#allocation4 + $0x6b0] sm:$0xff]
    %v5306 = vld [vmem:[#allocation4 + $0x6b8] sm:$0xff]
    %v5307 = vld [vmem:[#allocation4 + $0x6c0] sm:$0xff]
    %v5308 = vld [vmem:[#allocation4 + $0x6c8] sm:$0xff]
    %v5309 = vld [vmem:[#allocation4 + $0x6d0] sm:$0xff]
    %v5310 = vld [vmem:[#allocation4 + $0x6d8] sm:$0xff]
    %v5311 = vld [vmem:[#allocation4 + $0x6e0] sm:$0xff]
    %v5312 = vld [vmem:[#allocation4 + $0x6e8] sm:$0xff]
    %v5313 = vld [vmem:[#allocation4 + $0x6f0] sm:$0xff]
    %v5314 = vld [vmem:[#allocation4 + $0x6f8] sm:$0xff]
    %v5315 = vld [vmem:[#allocation4 + $0x700] sm:$0xff]
    %v5316 = vld [vmem:[#allocation4 + $0x708] sm:$0xff]
    %v5317 = vld [vmem:[#allocation4 + $0x710] sm:$0xff]
    %v5318 = vld [vmem:[#allocation4 + $0x718] sm:$0xff]
    %v5319 = vld [vmem:[#allocation4 + $0x720] sm:$0xff]
    %v5320 = vld [vmem:[#allocation4 + $0x728] sm:$0xff]
    %v5321 = vld [vmem:[#allocation4 + $0x730] sm:$0xff]
    %v5322 = vld [vmem:[#allocation4 + $0x738] sm:$0xff]
    %v5323 = vld [vmem:[#allocation4 + $0x740] sm:$0xff]
    %v5324 = vld [vmem:[#allocation4 + $0x748] sm:$0xff]
    %v5325 = vld [vmem:[#allocation4 + $0x750] sm:$0xff]
    %v5326 = vld [vmem:[#allocation4 + $0x758] sm:$0xff]
    %v5327 = vld [vmem:[#allocation4 + $0x760] sm:$0xff]
    %v5328 = vld [vmem:[#allocation4 + $0x768] sm:$0xff]
    %v5329 = vld [vmem:[#allocation4 + $0x770] sm:$0xff]
    %v5330 = vld [vmem:[#allocation4 + $0x778] sm:$0xff]
    %v5331 = vld [vmem:[#allocation4 + $0x780] sm:$0xff]
    %v5332 = vld [vmem:[#allocation4 + $0x788] sm:$0xff]
    %v5333 = vld [vmem:[#allocation4 + $0x790] sm:$0xff]
    %v5334 = vld [vmem:[#allocation4 + $0x798] sm:$0xff]
    %v5335 = vld [vmem:[#allocation4 + $0x7a0] sm:$0xff]
    %v5336 = vld [vmem:[#allocation4 + $0x7a8] sm:$0xff]
    %v5337 = vld [vmem:[#allocation4 + $0x7b0] sm:$0xff]
    %v5338 = vld [vmem:[#allocation4 + $0x7b8] sm:$0xff]
    %v5339 = vld [vmem:[#allocation4 + $0x7c0] sm:$0xff]
    %v5340 = vld [vmem:[#allocation4 + $0x7c8] sm:$0xff]
    %v5341 = vld [vmem:[#allocation4 + $0x7d0] sm:$0xff]
    %v5342 = vld [vmem:[#allocation4 + $0x7d8] sm:$0xff]
    %v5343 = vld [vmem:[#allocation4 + $0x7e0] sm:$0xff]
    %v5344 = vld [vmem:[#allocation4 + $0x7e8] sm:$0xff]
    %v5345 = vld [vmem:[#allocation4 + $0x7f0] sm:$0xff]
    %v5346 = vld [vmem:[#allocation4 + $0x7f8] sm:$0xff]
    %v5347 = vld [vmem:[#allocation4 + $0x800] sm:$0xff]
    %v5348 = vld [vmem:[#allocation4 + $0x808] sm:$0xff]
    %v5349 = vld [vmem:[#allocation4 + $0x810] sm:$0xff]
    %v5350 = vld [vmem:[#allocation4 + $0x818] sm:$0xff]
    %v5351 = vld [vmem:[#allocation4 + $0x820] sm:$0xff]
    %v5352 = vld [vmem:[#allocation4 + $0x828] sm:$0xff]
    %v5353 = vld [vmem:[#allocation4 + $0x830] sm:$0xff]
    %v5354 = vld [vmem:[#allocation4 + $0x838] sm:$0xff]
    %v5355 = vld [vmem:[#allocation4 + $0x840] sm:$0xff]
    %v5356 = vld [vmem:[#allocation4 + $0x848] sm:$0xff]
    %v5357 = vld [vmem:[#allocation4 + $0x850] sm:$0xff]
    %v5358 = vld [vmem:[#allocation4 + $0x858] sm:$0xff]
    %v5359 = vld [vmem:[#allocation4 + $0x860] sm:$0xff]
    %v5360 = vld [vmem:[#allocation4 + $0x868] sm:$0xff]
    %v5361 = vld [vmem:[#allocation4 + $0x870] sm:$0xff]
    %v5362 = vld [vmem:[#allocation4 + $0x878] sm:$0xff]
    %v5363 = vld [vmem:[#allocation4 + $0x880] sm:$0xff]
    %v5364 = vld [vmem:[#allocation4 + $0x888] sm:$0xff]
    %v5365 = vld [vmem:[#allocation4 + $0x890] sm:$0xff]
    %v5366 = vld [vmem:[#allocation4 + $0x898] sm:$0xff]
    %v5367 = vld [vmem:[#allocation4 + $0x8a0] sm:$0xff]
    %v5368 = vld [vmem:[#allocation4 + $0x8a8] sm:$0xff]
    %v5369 = vld [vmem:[#allocation4 + $0x8b0] sm:$0xff]
    %v5370 = vld [vmem:[#allocation4 + $0x8b8] sm:$0xff]
    %v5371 = vld [vmem:[#allocation4 + $0x8c0] sm:$0xff]
    %v5372 = vld [vmem:[#allocation4 + $0x8c8] sm:$0xff]
    %v5373 = vld [vmem:[#allocation4 + $0x8d0] sm:$0xff]
    %v5374 = vld [vmem:[#allocation4 + $0x8d8] sm:$0xff]
    %v5375 = vld [vmem:[#allocation4 + $0x8e0] sm:$0xff]
    %v5376 = vld [vmem:[#allocation4 + $0x8e8] sm:$0xff]
    %v5377 = vld [vmem:[#allocation4 + $0x8f0] sm:$0xff]
    %v5378 = vld [vmem:[#allocation4 + $0x8f8] sm:$0xff]
    %v5379 = vld [vmem:[#allocation4 + $0x900] sm:$0xff]
    %v5380 = vld [vmem:[#allocation4 + $0x908] sm:$0xff]
    %v5381 = vld [vmem:[#allocation4 + $0x910] sm:$0xff]
    %v5382 = vld [vmem:[#allocation4 + $0x918] sm:$0xff]
    %v5383 = vld [vmem:[#allocation4 + $0x920] sm:$0xff]
    %v5384 = vld [vmem:[#allocation4 + $0x928] sm:$0xff]
    %v5385 = vld [vmem:[#allocation4 + $0x930] sm:$0xff]
    %v5386 = vld [vmem:[#allocation4 + $0x938] sm:$0xff]
    %v5387 = vld [vmem:[#allocation4 + $0x940] sm:$0xff]
    %v5388 = vld [vmem:[#allocation4 + $0x948] sm:$0xff]
    %v5389 = vld [vmem:[#allocation4 + $0x950] sm:$0xff]
    %v5390 = vld [vmem:[#allocation4 + $0x958] sm:$0xff]
    %v5391 = vld [vmem:[#allocation4 + $0x960] sm:$0xff]
    %v5392 = vld [vmem:[#allocation4 + $0x968] sm:$0xff]
    %v5393 = vld [vmem:[#allocation4 + $0x970] sm:$0xff]
    %v5394 = vld [vmem:[#allocation4 + $0x978] sm:$0xff]
    %v5395 = vld [vmem:[#allocation4 + $0x980] sm:$0xff]
    %v5396 = vld [vmem:[#allocation4 + $0x988] sm:$0xff]
    %v5397 = vld [vmem:[#allocation4 + $0x990] sm:$0xff]
    %v5398 = vld [vmem:[#allocation4 + $0x998] sm:$0xff]
    %v5399 = vld [vmem:[#allocation4 + $0x9a0] sm:$0xff]
    %v5400 = vld [vmem:[#allocation4 + $0x9a8] sm:$0xff]
    %v5401 = vld [vmem:[#allocation4 + $0x9b0] sm:$0xff]
    %v5402 = vld [vmem:[#allocation4 + $0x9b8] sm:$0xff]
    %v5403 = vld [vmem:[#allocation4 + $0x9c0] sm:$0xff]
    %v5404 = vld [vmem:[#allocation4 + $0x9c8] sm:$0xff]
    %v5405 = vld [vmem:[#allocation4 + $0x9d0] sm:$0xff]
    %v5406 = vld [vmem:[#allocation4 + $0x9d8] sm:$0xff]
    %v5407 = vld [vmem:[#allocation4 + $0x9e0] sm:$0xff]
    %v5408 = vld [vmem:[#allocation4 + $0x9e8] sm:$0xff]
    %v5409 = vld [vmem:[#allocation4 + $0x9f0] sm:$0xff]
    %v5410 = vld [vmem:[#allocation4 + $0x9f8] sm:$0xff]
    %v5411 = vld [vmem:[#allocation4 + $0xa00] sm:$0xff]
    %v5412 = vld [vmem:[#allocation4 + $0xa08] sm:$0xff]
    %v5413 = vld [vmem:[#allocation4 + $0xa10] sm:$0xff]
    %v5414 = vld [vmem:[#allocation4 + $0xa18] sm:$0xff]
    %v5415 = vld [vmem:[#allocation4 + $0xa20] sm:$0xff]
    %v5416 = vld [vmem:[#allocation4 + $0xa28] sm:$0xff]
    %v5417 = vld [vmem:[#allocation4 + $0xa30] sm:$0xff]
    %v5418 = vld [vmem:[#allocation4 + $0xa38] sm:$0xff]
    %v5419 = vld [vmem:[#allocation4 + $0xa40] sm:$0xff]
    %v5420 = vld [vmem:[#allocation4 + $0xa48] sm:$0xff]
    %v5421 = vld [vmem:[#allocation4 + $0xa50] sm:$0xff]
    %v5422 = vld [vmem:[#allocation4 + $0xa58] sm:$0xff]
    %v5423 = vld [vmem:[#allocation4 + $0xa60] sm:$0xff]
    %v5424 = vld [vmem:[#allocation4 + $0xa68] sm:$0xff]
    %v5425 = vld [vmem:[#allocation4 + $0xa70] sm:$0xff]
    %v5426 = vld [vmem:[#allocation4 + $0xa78] sm:$0xff]
    %v5427 = vld [vmem:[#allocation4 + $0xa80] sm:$0xff]
    %v5428 = vld [vmem:[#allocation4 + $0xa88] sm:$0xff]
    %v5429 = vld [vmem:[#allocation4 + $0xa90] sm:$0xff]
    %v5430 = vld [vmem:[#allocation4 + $0xa98] sm:$0xff]
    %v5431 = vld [vmem:[#allocation4 + $0xaa0] sm:$0xff]
    %v5432 = vld [vmem:[#allocation4 + $0xaa8] sm:$0xff]
    %v5433 = vld [vmem:[#allocation4 + $0xab0] sm:$0xff]
    %v5434 = vld [vmem:[#allocation4 + $0xab8] sm:$0xff]
    %v5435 = vld [vmem:[#allocation4 + $0xac0] sm:$0xff]
    %v5436 = vld [vmem:[#allocation4 + $0xac8] sm:$0xff]
    %v5437 = vld [vmem:[#allocation4 + $0xad0] sm:$0xff]
    %v5438 = vld [vmem:[#allocation4 + $0xad8] sm:$0xff]
    %v5439 = vld [vmem:[#allocation4 + $0xae0] sm:$0xff]
    %v5440 = vld [vmem:[#allocation4 + $0xae8] sm:$0xff]
    %v5441 = vld [vmem:[#allocation4 + $0xaf0] sm:$0xff]
    %v5442 = vld [vmem:[#allocation4 + $0xaf8] sm:$0xff]
    %v5443 = vld [vmem:[#allocation4 + $0xb00] sm:$0xff]
    %v5444 = vld [vmem:[#allocation4 + $0xb08] sm:$0xff]
    %v5445 = vld [vmem:[#allocation4 + $0xb10] sm:$0xff]
    %v5446 = vld [vmem:[#allocation4 + $0xb18] sm:$0xff]
    %v5447 = vld [vmem:[#allocation4 + $0xb20] sm:$0xff]
    %v5448 = vld [vmem:[#allocation4 + $0xb28] sm:$0xff]
    %v5449 = vld [vmem:[#allocation4 + $0xb30] sm:$0xff]
    %v5450 = vld [vmem:[#allocation4 + $0xb38] sm:$0xff]
    %v5451 = vld [vmem:[#allocation4 + $0xb40] sm:$0xff]
    %v5452 = vld [vmem:[#allocation4 + $0xb48] sm:$0xff]
    %v5453 = vld [vmem:[#allocation4 + $0xb50] sm:$0xff]
    %v5454 = vld [vmem:[#allocation4 + $0xb58] sm:$0xff]
    %v5455 = vld [vmem:[#allocation4 + $0xb60] sm:$0xff]
    %v5456 = vld [vmem:[#allocation4 + $0xb68] sm:$0xff]
    %v5457 = vld [vmem:[#allocation4 + $0xb70] sm:$0xff]
    %v5458 = vld [vmem:[#allocation4 + $0xb78] sm:$0xff]
    %v5459 = vld [vmem:[#allocation4 + $0xb80] sm:$0xff]
    %v5460 = vld [vmem:[#allocation4 + $0xb88] sm:$0xff]
    %v5461 = vld [vmem:[#allocation4 + $0xb90] sm:$0xff]
    %v5462 = vld [vmem:[#allocation4 + $0xb98] sm:$0xff]
    %v5463 = vld [vmem:[#allocation4 + $0xba0] sm:$0xff]
    %v5464 = vld [vmem:[#allocation4 + $0xba8] sm:$0xff]
    %v5465 = vld [vmem:[#allocation4 + $0xbb0] sm:$0xff]
    %v5466 = vld [vmem:[#allocation4 + $0xbb8] sm:$0xff]
    %v5467 = vld [vmem:[#allocation4 + $0xbc0] sm:$0xff]
    %v5468 = vld [vmem:[#allocation4 + $0xbc8] sm:$0xff]
    %v5469 = vld [vmem:[#allocation4 + $0xbd0] sm:$0xff]
    %v5470 = vld [vmem:[#allocation4 + $0xbd8] sm:$0xff]
    %v5471 = vld [vmem:[#allocation4 + $0xbe0] sm:$0xff]
    %v5472 = vld [vmem:[#allocation4 + $0xbe8] sm:$0xff]
    %v5473 = vld [vmem:[#allocation4 + $0xbf0] sm:$0xff]
    %v5474 = vld [vmem:[#allocation4 + $0xbf8] sm:$0xff]
    %v5475 = vpack.c.bf16 %v4697, %v4697
    %v5476 = vpack.c.bf16 %v4698, %v4698
    %v5477 = vld [vmem:[#allocation51] sm:$0x3]
    %v5479 = vsel %vm687, %v5477, 0
    %vm5481 = vcmask 1043456
    %v5483 = vsel %vm5481, %v5475, 0
    %v5486 = vsel %vm5481, %v5476, 0
    %5488 = vmatprep.subr.bf16.mxu0 0
    %5489 = vmatpush1.bf16.msra.mxu0 0
    %5490 = vmatprep.subr.bf16.mxu0 0
    %5491 = vmatpush1.bf16.msra.mxu0 0
    %5492 = vmatprep.subr.bf16.mxu0 0
    %5493 = vmatpush1.bf16.msra.mxu0 0
    %5494 = vmatprep.subr.bf16.mxu0 0
    %5495 = vmatpush1.bf16.msra.mxu0 0
    %5496 = vmatprep.subr.bf16.mxu0 0
    %5497 = vmatpush1.bf16.msra.mxu0 0
    %5498 = vmatprep.subr.bf16.mxu0 0
    %5499 = vmatpush1.bf16.msra.mxu0 0
    %5500 = vmatprep.subr.bf16.mxu0 0
    %5501 = vmatpush1.bf16.msra.mxu0 0
    %5502 = vmatprep.subr.bf16.mxu0 %v5486
    %5503 = vmatpush1.bf16.msra.mxu0 %v5483
    %5504 = vmatprep.subr.bf16.mxu0 0
    %5505 = vmatpush2.bf16.msra.mxu0 0
    %5506 = vmatprep.subr.bf16.mxu0 0
    %5507 = vmatpush2.bf16.msra.mxu0 0
    %5508 = vmatprep.subr.bf16.mxu0 0
    %5509 = vmatpush2.bf16.msra.mxu0 0
    %5510 = vmatprep.subr.bf16.mxu0 0
    %5511 = vmatpush2.bf16.msra.mxu0 0
    %5512 = vmatprep.subr.bf16.mxu0 0
    %5513 = vmatpush2.bf16.msra.mxu0 0
    %5514 = vmatprep.subr.bf16.mxu0 0
    %5515 = vmatpush2.bf16.msra.mxu0 0
    %5516 = vmatprep.subr.bf16.mxu0 0
    %5517 = vmatpush2.bf16.msra.mxu0 0
    %5518 = vmatprep.subr.bf16.mxu0 0
    %5519 = vmatpush2.bf16.msra.mxu0 0
    %5520 = vmatprep.mubr.bf16.mxu0 0
    %5521 = vmatmul.mubr.bf16.gmra.mxu0 %v5479
    %v5522 = vpop.f32.mrf.mxu0
    %v5523 = vadd.f32 0.0, %v5522
    %v5524 = vpop.f32.mrf.mxu0
    %v5525 = vadd.f32 0.0, %v5524
    %v5526 = vpop.f32.mrf.mxu0
    %v5527 = vpop.f32.mrf.mxu0
    %5528 = vdwg.mxu0
    %v5529 = vld [vmem:[#allocation53] sm:$0x3]
    %v5531 = vsel %vm687, %v5529, 0
    %5533 = vmatprep.subr.bf16.mxu0 0
    %5534 = vmatpush1.bf16.msra.mxu0 0
    %5535 = vmatprep.subr.bf16.mxu0 0
    %5536 = vmatpush1.bf16.msra.mxu0 0
    %5537 = vmatprep.subr.bf16.mxu0 0
    %5538 = vmatpush1.bf16.msra.mxu0 0
    %5539 = vmatprep.subr.bf16.mxu0 0
    %5540 = vmatpush1.bf16.msra.mxu0 0
    %5541 = vmatprep.subr.bf16.mxu0 0
    %5542 = vmatpush1.bf16.msra.mxu0 0
    %5543 = vmatprep.subr.bf16.mxu0 0
    %5544 = vmatpush1.bf16.msra.mxu0 0
    %5545 = vmatprep.subr.bf16.mxu0 0
    %5546 = vmatpush1.bf16.msra.mxu0 0
    %5547 = vmatprep.subr.bf16.mxu0 %v5486
    %5548 = vmatpush1.bf16.msra.mxu0 %v5483
    %5549 = vmatprep.subr.bf16.mxu0 0
    %5550 = vmatpush2.bf16.msra.mxu0 0
    %5551 = vmatprep.subr.bf16.mxu0 0
    %5552 = vmatpush2.bf16.msra.mxu0 0
    %5553 = vmatprep.subr.bf16.mxu0 0
    %5554 = vmatpush2.bf16.msra.mxu0 0
    %5555 = vmatprep.subr.bf16.mxu0 0
    %5556 = vmatpush2.bf16.msra.mxu0 0
    %5557 = vmatprep.subr.bf16.mxu0 0
    %5558 = vmatpush2.bf16.msra.mxu0 0
    %5559 = vmatprep.subr.bf16.mxu0 0
    %5560 = vmatpush2.bf16.msra.mxu0 0
    %5561 = vmatprep.subr.bf16.mxu0 0
    %5562 = vmatpush2.bf16.msra.mxu0 0
    %5563 = vmatprep.subr.bf16.mxu0 0
    %5564 = vmatpush2.bf16.msra.mxu0 0
    %5565 = vmatprep.mubr.bf16.mxu0 0
    %5566 = vmatmul.mubr.bf16.gmra.mxu0 %v5531
    %v5567 = vpop.f32.mrf.mxu0
    %v5568 = vadd.f32 0.0, %v5567
    %v5569 = vpop.f32.mrf.mxu0
    %v5570 = vadd.f32 0.0, %v5569
    %v5571 = vpop.f32.mrf.mxu0
    %v5572 = vpop.f32.mrf.mxu0
    %5573 = vdwg.mxu0
    %v5576 = vrot.slane %v5568, 7
    %v5577 = vrot.slane %v5570, 7
    %5580 = vst [vmem:[#allocation2] sm:$0x1e] %v5576
    %5581 = vst [vmem:[#allocation2 + $0x8] sm:$0x1e] %v5577
    %v5582 = vld [vmem:[#allocation2] sm:$0xf]
    %v5583 = vld [vmem:[#allocation2 + $0x8] sm:$0xf]
    %v5584 = vand.u32 %v1006, 1
    %vm5585 = vcmp.eq.s32.totalorder %v5584, 0
    %v5586 = vsel %vm5585, 0.0, %v5582
    %v5587 = vsel %vm5585, 0.0, %v5583
    %v5588 = vpack.c.bf16 %v5586, %v5586
    %v5589 = vpack.c.bf16 %v5587, %v5587
    %v5590 = vpack.c.bf16 %v5523, %v5523
    %v5591 = vpack.c.bf16 %v5525, %v5525
    %v5592 = vpack.c.bf16 %v5568, %v5568
    %v5593 = vpack.c.bf16 %v5570, %v5570
    %v5978 = vunpack.c.l.b16 %v4707
    %v5979 = vunpack.c.h.b16 %v4707
    %v5980 = vunpack.c.l.b16 %v4708
    %v5981 = vunpack.c.h.b16 %v4708
    %v5982 = vunpack.c.l.b16 %v4709
    %v5983 = vunpack.c.h.b16 %v4709
    %v5984 = vunpack.c.l.b16 %v4710
    %v5985 = vunpack.c.h.b16 %v4710
    %v5986 = vunpack.c.l.b16 %v4711
    %v5987 = vunpack.c.h.b16 %v4711
    %v5988 = vunpack.c.l.b16 %v4712
    %v5989 = vunpack.c.h.b16 %v4712
    %v5990 = vunpack.c.l.b16 %v4713
    %v5991 = vunpack.c.h.b16 %v4713
    %v5992 = vunpack.c.l.b16 %v4714
    %v5993 = vunpack.c.h.b16 %v4714
    %v5994 = vunpack.c.l.b16 %v4715
    %v5995 = vunpack.c.h.b16 %v4715
    %v5996 = vunpack.c.l.b16 %v4716
    %v5997 = vunpack.c.h.b16 %v4716
    %v5998 = vunpack.c.l.b16 %v4717
    %v5999 = vunpack.c.h.b16 %v4717
    %v6000 = vunpack.c.l.b16 %v4718
    %v6001 = vunpack.c.h.b16 %v4718
    %v6002 = vunpack.c.l.b16 %v4719
    %v6003 = vunpack.c.h.b16 %v4719
    %v6004 = vunpack.c.l.b16 %v4720
    %v6005 = vunpack.c.h.b16 %v4720
    %v6006 = vunpack.c.l.b16 %v4721
    %v6007 = vunpack.c.h.b16 %v4721
    %v6008 = vunpack.c.l.b16 %v4722
    %v6009 = vunpack.c.h.b16 %v4722
    %v6010 = vunpack.c.l.b16 %v4723
    %v6011 = vunpack.c.h.b16 %v4723
    %v6012 = vunpack.c.l.b16 %v4724
    %v6013 = vunpack.c.h.b16 %v4724
    %v6014 = vunpack.c.l.b16 %v4725
    %v6015 = vunpack.c.h.b16 %v4725
    %v6016 = vunpack.c.l.b16 %v4726
    %v6017 = vunpack.c.h.b16 %v4726
    %v6018 = vunpack.c.l.b16 %v4727
    %v6019 = vunpack.c.h.b16 %v4727
    %v6020 = vunpack.c.l.b16 %v4728
    %v6021 = vunpack.c.h.b16 %v4728
    %v6022 = vunpack.c.l.b16 %v4729
    %v6023 = vunpack.c.h.b16 %v4729
    %v6024 = vunpack.c.l.b16 %v4730
    %v6025 = vunpack.c.h.b16 %v4730
    %v6026 = vunpack.c.l.b16 %v4731
    %v6027 = vunpack.c.h.b16 %v4731
    %v6028 = vunpack.c.l.b16 %v4732
    %v6029 = vunpack.c.h.b16 %v4732
    %v6030 = vunpack.c.l.b16 %v4733
    %v6031 = vunpack.c.h.b16 %v4733
    %v6032 = vunpack.c.l.b16 %v4734
    %v6033 = vunpack.c.h.b16 %v4734
    %v6034 = vunpack.c.l.b16 %v4735
    %v6035 = vunpack.c.h.b16 %v4735
    %v6036 = vunpack.c.l.b16 %v4736
    %v6037 = vunpack.c.h.b16 %v4736
    %v6038 = vunpack.c.l.b16 %v4737
    %v6039 = vunpack.c.h.b16 %v4737
    %v6040 = vunpack.c.l.b16 %v4738
    %v6041 = vunpack.c.h.b16 %v4738
    %v6042 = vunpack.c.l.b16 %v4739
    %v6043 = vunpack.c.h.b16 %v4739
    %v6044 = vunpack.c.l.b16 %v4740
    %v6045 = vunpack.c.h.b16 %v4740
    %v6046 = vunpack.c.l.b16 %v4741
    %v6047 = vunpack.c.h.b16 %v4741
    %v6048 = vunpack.c.l.b16 %v4742
    %v6049 = vunpack.c.h.b16 %v4742
    %v6050 = vunpack.c.l.b16 %v4743
    %v6051 = vunpack.c.h.b16 %v4743
    %v6052 = vunpack.c.l.b16 %v4744
    %v6053 = vunpack.c.h.b16 %v4744
    %v6054 = vunpack.c.l.b16 %v4745
    %v6055 = vunpack.c.h.b16 %v4745
    %v6056 = vunpack.c.l.b16 %v4746
    %v6057 = vunpack.c.h.b16 %v4746
    %v6058 = vunpack.c.l.b16 %v4747
    %v6059 = vunpack.c.h.b16 %v4747
    %v6060 = vunpack.c.l.b16 %v4748
    %v6061 = vunpack.c.h.b16 %v4748
    %v6062 = vunpack.c.l.b16 %v4749
    %v6063 = vunpack.c.h.b16 %v4749
    %v6064 = vunpack.c.l.b16 %v4750
    %v6065 = vunpack.c.h.b16 %v4750
    %v6066 = vunpack.c.l.b16 %v4751
    %v6067 = vunpack.c.h.b16 %v4751
    %v6068 = vunpack.c.l.b16 %v4752
    %v6069 = vunpack.c.h.b16 %v4752
    %v6070 = vunpack.c.l.b16 %v4753
    %v6071 = vunpack.c.h.b16 %v4753
    %v6072 = vunpack.c.l.b16 %v4754
    %v6073 = vunpack.c.h.b16 %v4754
    %v6074 = vunpack.c.l.b16 %v4755
    %v6075 = vunpack.c.h.b16 %v4755
    %v6076 = vunpack.c.l.b16 %v4756
    %v6077 = vunpack.c.h.b16 %v4756
    %v6078 = vunpack.c.l.b16 %v4757
    %v6079 = vunpack.c.h.b16 %v4757
    %v6080 = vunpack.c.l.b16 %v4758
    %v6081 = vunpack.c.h.b16 %v4758
    %v6082 = vunpack.c.l.b16 %v4759
    %v6083 = vunpack.c.h.b16 %v4759
    %v6084 = vunpack.c.l.b16 %v4760
    %v6085 = vunpack.c.h.b16 %v4760
    %v6086 = vunpack.c.l.b16 %v4761
    %v6087 = vunpack.c.h.b16 %v4761
    %v6088 = vunpack.c.l.b16 %v4762
    %v6089 = vunpack.c.h.b16 %v4762
    %v6090 = vunpack.c.l.b16 %v4763
    %v6091 = vunpack.c.h.b16 %v4763
    %v6092 = vunpack.c.l.b16 %v4764
    %v6093 = vunpack.c.h.b16 %v4764
    %v6094 = vunpack.c.l.b16 %v4765
    %v6095 = vunpack.c.h.b16 %v4765
    %v6096 = vunpack.c.l.b16 %v4766
    %v6097 = vunpack.c.h.b16 %v4766
    %v6098 = vunpack.c.l.b16 %v4767
    %v6099 = vunpack.c.h.b16 %v4767
    %v6100 = vunpack.c.l.b16 %v4768
    %v6101 = vunpack.c.h.b16 %v4768
    %v6102 = vunpack.c.l.b16 %v4769
    %v6103 = vunpack.c.h.b16 %v4769
    %v6104 = vunpack.c.l.b16 %v4770
    %v6105 = vunpack.c.h.b16 %v4770
    %v6106 = vunpack.c.l.b16 %v4771
    %v6107 = vunpack.c.h.b16 %v4771
    %v6108 = vunpack.c.l.b16 %v4772
    %v6109 = vunpack.c.h.b16 %v4772
    %v6110 = vunpack.c.l.b16 %v4773
    %v6111 = vunpack.c.h.b16 %v4773
    %v6112 = vunpack.c.l.b16 %v4774
    %v6113 = vunpack.c.h.b16 %v4774
    %v6114 = vunpack.c.l.b16 %v4775
    %v6115 = vunpack.c.h.b16 %v4775
    %v6116 = vunpack.c.l.b16 %v4776
    %v6117 = vunpack.c.h.b16 %v4776
    %v6118 = vunpack.c.l.b16 %v4777
    %v6119 = vunpack.c.h.b16 %v4777
    %v6120 = vunpack.c.l.b16 %v4778
    %v6121 = vunpack.c.h.b16 %v4778
    %v6122 = vunpack.c.l.b16 %v4779
    %v6123 = vunpack.c.h.b16 %v4779
    %v6124 = vunpack.c.l.b16 %v4780
    %v6125 = vunpack.c.h.b16 %v4780
    %v6126 = vunpack.c.l.b16 %v4781
    %v6127 = vunpack.c.h.b16 %v4781
    %v6128 = vunpack.c.l.b16 %v4782
    %v6129 = vunpack.c.h.b16 %v4782
    %v6130 = vunpack.c.l.b16 %v4783
    %v6131 = vunpack.c.h.b16 %v4783
    %v6132 = vunpack.c.l.b16 %v4784
    %v6133 = vunpack.c.h.b16 %v4784
    %v6134 = vunpack.c.l.b16 %v4785
    %v6135 = vunpack.c.h.b16 %v4785
    %v6136 = vunpack.c.l.b16 %v4786
    %v6137 = vunpack.c.h.b16 %v4786
    %v6138 = vunpack.c.l.b16 %v4787
    %v6139 = vunpack.c.h.b16 %v4787
    %v6140 = vunpack.c.l.b16 %v4788
    %v6141 = vunpack.c.h.b16 %v4788
    %v6142 = vunpack.c.l.b16 %v4789
    %v6143 = vunpack.c.h.b16 %v4789
    %v6144 = vunpack.c.l.b16 %v4790
    %v6145 = vunpack.c.h.b16 %v4790
    %v6146 = vunpack.c.l.b16 %v4791
    %v6147 = vunpack.c.h.b16 %v4791
    %v6148 = vunpack.c.l.b16 %v4792
    %v6149 = vunpack.c.h.b16 %v4792
    %v6150 = vunpack.c.l.b16 %v4793
    %v6151 = vunpack.c.h.b16 %v4793
    %v6152 = vunpack.c.l.b16 %v4794
    %v6153 = vunpack.c.h.b16 %v4794
    %v6154 = vunpack.c.l.b16 %v4795
    %v6155 = vunpack.c.h.b16 %v4795
    %v6156 = vunpack.c.l.b16 %v4796
    %v6157 = vunpack.c.h.b16 %v4796
    %v6158 = vunpack.c.l.b16 %v4797
    %v6159 = vunpack.c.h.b16 %v4797
    %v6160 = vunpack.c.l.b16 %v4798
    %v6161 = vunpack.c.h.b16 %v4798
    %v6162 = vunpack.c.l.b16 %v4799
    %v6163 = vunpack.c.h.b16 %v4799
    %v6164 = vunpack.c.l.b16 %v4800
    %v6165 = vunpack.c.h.b16 %v4800
    %v6166 = vunpack.c.l.b16 %v4801
    %v6167 = vunpack.c.h.b16 %v4801
    %v6168 = vunpack.c.l.b16 %v4802
    %v6169 = vunpack.c.h.b16 %v4802
    %v6170 = vunpack.c.l.b16 %v4803
    %v6171 = vunpack.c.h.b16 %v4803
    %v6172 = vunpack.c.l.b16 %v4804
    %v6173 = vunpack.c.h.b16 %v4804
    %v6174 = vunpack.c.l.b16 %v4805
    %v6175 = vunpack.c.h.b16 %v4805
    %v6176 = vunpack.c.l.b16 %v4806
    %v6177 = vunpack.c.h.b16 %v4806
    %v6178 = vunpack.c.l.b16 %v4807
    %v6179 = vunpack.c.h.b16 %v4807
    %v6180 = vunpack.c.l.b16 %v4808
    %v6181 = vunpack.c.h.b16 %v4808
    %v6182 = vunpack.c.l.b16 %v4809
    %v6183 = vunpack.c.h.b16 %v4809
    %v6184 = vunpack.c.l.b16 %v4810
    %v6185 = vunpack.c.h.b16 %v4810
    %v6186 = vunpack.c.l.b16 %v4811
    %v6187 = vunpack.c.h.b16 %v4811
    %v6188 = vunpack.c.l.b16 %v4812
    %v6189 = vunpack.c.h.b16 %v4812
    %v6190 = vunpack.c.l.b16 %v4813
    %v6191 = vunpack.c.h.b16 %v4813
    %v6192 = vunpack.c.l.b16 %v4814
    %v6193 = vunpack.c.h.b16 %v4814
    %v6194 = vunpack.c.l.b16 %v4815
    %v6195 = vunpack.c.h.b16 %v4815
    %v6196 = vunpack.c.l.b16 %v4816
    %v6197 = vunpack.c.h.b16 %v4816
    %v6198 = vunpack.c.l.b16 %v4817
    %v6199 = vunpack.c.h.b16 %v4817
    %v6200 = vunpack.c.l.b16 %v4818
    %v6201 = vunpack.c.h.b16 %v4818
    %v6202 = vunpack.c.l.b16 %v4819
    %v6203 = vunpack.c.h.b16 %v4819
    %v6204 = vunpack.c.l.b16 %v4820
    %v6205 = vunpack.c.h.b16 %v4820
    %v6206 = vunpack.c.l.b16 %v4821
    %v6207 = vunpack.c.h.b16 %v4821
    %v6208 = vunpack.c.l.b16 %v4822
    %v6209 = vunpack.c.h.b16 %v4822
    %v6210 = vunpack.c.l.b16 %v4823
    %v6211 = vunpack.c.h.b16 %v4823
    %v6212 = vunpack.c.l.b16 %v4824
    %v6213 = vunpack.c.h.b16 %v4824
    %v6214 = vunpack.c.l.b16 %v4825
    %v6215 = vunpack.c.h.b16 %v4825
    %v6216 = vunpack.c.l.b16 %v4826
    %v6217 = vunpack.c.h.b16 %v4826
    %v6218 = vunpack.c.l.b16 %v4827
    %v6219 = vunpack.c.h.b16 %v4827
    %v6220 = vunpack.c.l.b16 %v4828
    %v6221 = vunpack.c.h.b16 %v4828
    %v6222 = vunpack.c.l.b16 %v4829
    %v6223 = vunpack.c.h.b16 %v4829
    %v6224 = vunpack.c.l.b16 %v4830
    %v6225 = vunpack.c.h.b16 %v4830
    %v6226 = vunpack.c.l.b16 %v4831
    %v6227 = vunpack.c.h.b16 %v4831
    %v6228 = vunpack.c.l.b16 %v4832
    %v6229 = vunpack.c.h.b16 %v4832
    %v6230 = vunpack.c.l.b16 %v4833
    %v6231 = vunpack.c.h.b16 %v4833
    %v6232 = vunpack.c.l.b16 %v4834
    %v6233 = vunpack.c.h.b16 %v4834
    %v6234 = vunpack.c.l.b16 %v4835
    %v6235 = vunpack.c.h.b16 %v4835
    %v6236 = vunpack.c.l.b16 %v4836
    %v6237 = vunpack.c.h.b16 %v4836
    %v6238 = vunpack.c.l.b16 %v4837
    %v6239 = vunpack.c.h.b16 %v4837
    %v6240 = vunpack.c.l.b16 %v4838
    %v6241 = vunpack.c.h.b16 %v4838
    %v6242 = vunpack.c.l.b16 %v4839
    %v6243 = vunpack.c.h.b16 %v4839
    %v6244 = vunpack.c.l.b16 %v4840
    %v6245 = vunpack.c.h.b16 %v4840
    %v6246 = vunpack.c.l.b16 %v4841
    %v6247 = vunpack.c.h.b16 %v4841
    %v6248 = vunpack.c.l.b16 %v4842
    %v6249 = vunpack.c.h.b16 %v4842
    %v6250 = vunpack.c.l.b16 %v4843
    %v6251 = vunpack.c.h.b16 %v4843
    %v6252 = vunpack.c.l.b16 %v4844
    %v6253 = vunpack.c.h.b16 %v4844
    %v6254 = vunpack.c.l.b16 %v4845
    %v6255 = vunpack.c.h.b16 %v4845
    %v6256 = vunpack.c.l.b16 %v4846
    %v6257 = vunpack.c.h.b16 %v4846
    %v6258 = vunpack.c.l.b16 %v4847
    %v6259 = vunpack.c.h.b16 %v4847
    %v6260 = vunpack.c.l.b16 %v4848
    %v6261 = vunpack.c.h.b16 %v4848
    %v6262 = vunpack.c.l.b16 %v4849
    %v6263 = vunpack.c.h.b16 %v4849
    %v6264 = vunpack.c.l.b16 %v4850
    %v6265 = vunpack.c.h.b16 %v4850
    %v6266 = vunpack.c.l.b16 %v4851
    %v6267 = vunpack.c.h.b16 %v4851
    %v6268 = vunpack.c.l.b16 %v4852
    %v6269 = vunpack.c.h.b16 %v4852
    %v6270 = vunpack.c.l.b16 %v4853
    %v6271 = vunpack.c.h.b16 %v4853
    %v6272 = vunpack.c.l.b16 %v4854
    %v6273 = vunpack.c.h.b16 %v4854
    %v6274 = vunpack.c.l.b16 %v4855
    %v6275 = vunpack.c.h.b16 %v4855
    %v6276 = vunpack.c.l.b16 %v4856
    %v6277 = vunpack.c.h.b16 %v4856
    %v6278 = vunpack.c.l.b16 %v4857
    %v6279 = vunpack.c.h.b16 %v4857
    %v6280 = vunpack.c.l.b16 %v4858
    %v6281 = vunpack.c.h.b16 %v4858
    %v6282 = vunpack.c.l.b16 %v4859
    %v6283 = vunpack.c.h.b16 %v4859
    %v6284 = vunpack.c.l.b16 %v4860
    %v6285 = vunpack.c.h.b16 %v4860
    %v6286 = vunpack.c.l.b16 %v4861
    %v6287 = vunpack.c.h.b16 %v4861
    %v6288 = vunpack.c.l.b16 %v4862
    %v6289 = vunpack.c.h.b16 %v4862
    %v6290 = vunpack.c.l.b16 %v4863
    %v6291 = vunpack.c.h.b16 %v4863
    %v6292 = vunpack.c.l.b16 %v4864
    %v6293 = vunpack.c.h.b16 %v4864
    %v6294 = vunpack.c.l.b16 %v4865
    %v6295 = vunpack.c.h.b16 %v4865
    %v6296 = vunpack.c.l.b16 %v4866
    %v6297 = vunpack.c.h.b16 %v4866
    %v6298 = vunpack.c.l.b16 %v4867
    %v6299 = vunpack.c.h.b16 %v4867
    %v6300 = vunpack.c.l.b16 %v4868
    %v6301 = vunpack.c.h.b16 %v4868
    %v6302 = vunpack.c.l.b16 %v4869
    %v6303 = vunpack.c.h.b16 %v4869
    %v6304 = vunpack.c.l.b16 %v4870
    %v6305 = vunpack.c.h.b16 %v4870
    %v6306 = vunpack.c.l.b16 %v4871
    %v6307 = vunpack.c.h.b16 %v4871
    %v6308 = vunpack.c.l.b16 %v4872
    %v6309 = vunpack.c.h.b16 %v4872
    %v6310 = vunpack.c.l.b16 %v4873
    %v6311 = vunpack.c.h.b16 %v4873
    %v6312 = vunpack.c.l.b16 %v4874
    %v6313 = vunpack.c.h.b16 %v4874
    %v6314 = vunpack.c.l.b16 %v4875
    %v6315 = vunpack.c.h.b16 %v4875
    %v6316 = vunpack.c.l.b16 %v4876
    %v6317 = vunpack.c.h.b16 %v4876
    %v6318 = vunpack.c.l.b16 %v4877
    %v6319 = vunpack.c.h.b16 %v4877
    %v6320 = vunpack.c.l.b16 %v4878
    %v6321 = vunpack.c.h.b16 %v4878
    %v6322 = vunpack.c.l.b16 %v4879
    %v6323 = vunpack.c.h.b16 %v4879
    %v6324 = vunpack.c.l.b16 %v4880
    %v6325 = vunpack.c.h.b16 %v4880
    %v6326 = vunpack.c.l.b16 %v4881
    %v6327 = vunpack.c.h.b16 %v4881
    %v6328 = vunpack.c.l.b16 %v4882
    %v6329 = vunpack.c.h.b16 %v4882
    %v6330 = vunpack.c.l.b16 %v4883
    %v6331 = vunpack.c.h.b16 %v4883
    %v6332 = vunpack.c.l.b16 %v4884
    %v6333 = vunpack.c.h.b16 %v4884
    %v6334 = vunpack.c.l.b16 %v4885
    %v6335 = vunpack.c.h.b16 %v4885
    %v6336 = vunpack.c.l.b16 %v4886
    %v6337 = vunpack.c.h.b16 %v4886
    %v6338 = vunpack.c.l.b16 %v4887
    %v6339 = vunpack.c.h.b16 %v4887
    %v6340 = vunpack.c.l.b16 %v4888
    %v6341 = vunpack.c.h.b16 %v4888
    %v6342 = vunpack.c.l.b16 %v4889
    %v6343 = vunpack.c.h.b16 %v4889
    %v6344 = vunpack.c.l.b16 %v4890
    %v6345 = vunpack.c.h.b16 %v4890
    %v6346 = vunpack.c.l.b16 %v4891
    %v6347 = vunpack.c.h.b16 %v4891
    %v6348 = vunpack.c.l.b16 %v4892
    %v6349 = vunpack.c.h.b16 %v4892
    %v6350 = vunpack.c.l.b16 %v4893
    %v6351 = vunpack.c.h.b16 %v4893
    %v6352 = vunpack.c.l.b16 %v4894
    %v6353 = vunpack.c.h.b16 %v4894
    %v6354 = vunpack.c.l.b16 %v4895
    %v6355 = vunpack.c.h.b16 %v4895
    %v6356 = vunpack.c.l.b16 %v4896
    %v6357 = vunpack.c.h.b16 %v4896
    %v6358 = vunpack.c.l.b16 %v4897
    %v6359 = vunpack.c.h.b16 %v4897
    %v6360 = vunpack.c.l.b16 %v4898
    %v6361 = vunpack.c.h.b16 %v4898
    %v6362 = vunpack.c.l.b16 %v4899
    %v6363 = vunpack.c.h.b16 %v4899
    %v6364 = vunpack.c.l.b16 %v4900
    %v6365 = vunpack.c.h.b16 %v4900
    %v6366 = vunpack.c.l.b16 %v4901
    %v6367 = vunpack.c.h.b16 %v4901
    %v6368 = vunpack.c.l.b16 %v4902
    %v6369 = vunpack.c.h.b16 %v4902
    %v6370 = vunpack.c.l.b16 %v4903
    %v6371 = vunpack.c.h.b16 %v4903
    %v6372 = vunpack.c.l.b16 %v4904
    %v6373 = vunpack.c.h.b16 %v4904
    %v6374 = vunpack.c.l.b16 %v4905
    %v6375 = vunpack.c.h.b16 %v4905
    %v6376 = vunpack.c.l.b16 %v4906
    %v6377 = vunpack.c.h.b16 %v4906
    %v6378 = vunpack.c.l.b16 %v4907
    %v6379 = vunpack.c.h.b16 %v4907
    %v6380 = vunpack.c.l.b16 %v4908
    %v6381 = vunpack.c.h.b16 %v4908
    %v6382 = vunpack.c.l.b16 %v4909
    %v6383 = vunpack.c.h.b16 %v4909
    %v6384 = vunpack.c.l.b16 %v4910
    %v6385 = vunpack.c.h.b16 %v4910
    %v6386 = vunpack.c.l.b16 %v4911
    %v6387 = vunpack.c.h.b16 %v4911
    %v6388 = vunpack.c.l.b16 %v4912
    %v6389 = vunpack.c.h.b16 %v4912
    %v6390 = vunpack.c.l.b16 %v4913
    %v6391 = vunpack.c.h.b16 %v4913
    %v6392 = vunpack.c.l.b16 %v4914
    %v6393 = vunpack.c.h.b16 %v4914
    %v6394 = vunpack.c.l.b16 %v4915
    %v6395 = vunpack.c.h.b16 %v4915
    %v6396 = vunpack.c.l.b16 %v4916
    %v6397 = vunpack.c.h.b16 %v4916
    %v6398 = vunpack.c.l.b16 %v4917
    %v6399 = vunpack.c.h.b16 %v4917
    %v6400 = vunpack.c.l.b16 %v4918
    %v6401 = vunpack.c.h.b16 %v4918
    %v6402 = vunpack.c.l.b16 %v4919
    %v6403 = vunpack.c.h.b16 %v4919
    %v6404 = vunpack.c.l.b16 %v4920
    %v6405 = vunpack.c.h.b16 %v4920
    %v6406 = vunpack.c.l.b16 %v4921
    %v6407 = vunpack.c.h.b16 %v4921
    %v6408 = vunpack.c.l.b16 %v4922
    %v6409 = vunpack.c.h.b16 %v4922
    %v6410 = vunpack.c.l.b16 %v4923
    %v6411 = vunpack.c.h.b16 %v4923
    %v6412 = vunpack.c.l.b16 %v4924
    %v6413 = vunpack.c.h.b16 %v4924
    %v6414 = vunpack.c.l.b16 %v4925
    %v6415 = vunpack.c.h.b16 %v4925
    %v6416 = vunpack.c.l.b16 %v4926
    %v6417 = vunpack.c.h.b16 %v4926
    %v6418 = vunpack.c.l.b16 %v4927
    %v6419 = vunpack.c.h.b16 %v4927
    %v6420 = vunpack.c.l.b16 %v4928
    %v6421 = vunpack.c.h.b16 %v4928
    %v6422 = vunpack.c.l.b16 %v4929
    %v6423 = vunpack.c.h.b16 %v4929
    %v6424 = vunpack.c.l.b16 %v4930
    %v6425 = vunpack.c.h.b16 %v4930
    %v6426 = vunpack.c.l.b16 %v4931
    %v6427 = vunpack.c.h.b16 %v4931
    %v6428 = vunpack.c.l.b16 %v4932
    %v6429 = vunpack.c.h.b16 %v4932
    %v6430 = vunpack.c.l.b16 %v4933
    %v6431 = vunpack.c.h.b16 %v4933
    %v6432 = vunpack.c.l.b16 %v4934
    %v6433 = vunpack.c.h.b16 %v4934
    %v6434 = vunpack.c.l.b16 %v4935
    %v6435 = vunpack.c.h.b16 %v4935
    %v6436 = vunpack.c.l.b16 %v4936
    %v6437 = vunpack.c.h.b16 %v4936
    %v6438 = vunpack.c.l.b16 %v4937
    %v6439 = vunpack.c.h.b16 %v4937
    %v6440 = vunpack.c.l.b16 %v4938
    %v6441 = vunpack.c.h.b16 %v4938
    %v6442 = vunpack.c.l.b16 %v4939
    %v6443 = vunpack.c.h.b16 %v4939
    %v6444 = vunpack.c.l.b16 %v4940
    %v6445 = vunpack.c.h.b16 %v4940
    %v6446 = vunpack.c.l.b16 %v4941
    %v6447 = vunpack.c.h.b16 %v4941
    %v6448 = vunpack.c.l.b16 %v4942
    %v6449 = vunpack.c.h.b16 %v4942
    %v6450 = vunpack.c.l.b16 %v4943
    %v6451 = vunpack.c.h.b16 %v4943
    %v6452 = vunpack.c.l.b16 %v4944
    %v6453 = vunpack.c.h.b16 %v4944
    %v6454 = vunpack.c.l.b16 %v4945
    %v6455 = vunpack.c.h.b16 %v4945
    %v6456 = vunpack.c.l.b16 %v4946
    %v6457 = vunpack.c.h.b16 %v4946
    %v6458 = vunpack.c.l.b16 %v4947
    %v6459 = vunpack.c.h.b16 %v4947
    %v6460 = vunpack.c.l.b16 %v4948
    %v6461 = vunpack.c.h.b16 %v4948
    %v6462 = vunpack.c.l.b16 %v4949
    %v6463 = vunpack.c.h.b16 %v4949
    %v6464 = vunpack.c.l.b16 %v4950
    %v6465 = vunpack.c.h.b16 %v4950
    %v6466 = vunpack.c.l.b16 %v4951
    %v6467 = vunpack.c.h.b16 %v4951
    %v6468 = vunpack.c.l.b16 %v4952
    %v6469 = vunpack.c.h.b16 %v4952
    %v6470 = vunpack.c.l.b16 %v4953
    %v6471 = vunpack.c.h.b16 %v4953
    %v6472 = vunpack.c.l.b16 %v4954
    %v6473 = vunpack.c.h.b16 %v4954
    %v6474 = vunpack.c.l.b16 %v4955
    %v6475 = vunpack.c.h.b16 %v4955
    %v6476 = vunpack.c.l.b16 %v4956
    %v6477 = vunpack.c.h.b16 %v4956
    %v6478 = vunpack.c.l.b16 %v4957
    %v6479 = vunpack.c.h.b16 %v4957
    %v6480 = vunpack.c.l.b16 %v4958
    %v6481 = vunpack.c.h.b16 %v4958
    %v6482 = vunpack.c.l.b16 %v4959
    %v6483 = vunpack.c.h.b16 %v4959
    %v6484 = vunpack.c.l.b16 %v4960
    %v6485 = vunpack.c.h.b16 %v4960
    %v6486 = vunpack.c.l.b16 %v4961
    %v6487 = vunpack.c.h.b16 %v4961
    %v6488 = vunpack.c.l.b16 %v4962
    %v6489 = vunpack.c.h.b16 %v4962
    %v6490 = vunpack.c.l.b16 %v4963
    %v6491 = vunpack.c.h.b16 %v4963
    %v6492 = vunpack.c.l.b16 %v4964
    %v6493 = vunpack.c.h.b16 %v4964
    %v6494 = vunpack.c.l.b16 %v4965
    %v6495 = vunpack.c.h.b16 %v4965
    %v6496 = vunpack.c.l.b16 %v4966
    %v6497 = vunpack.c.h.b16 %v4966
    %v6498 = vunpack.c.l.b16 %v4967
    %v6499 = vunpack.c.h.b16 %v4967
    %v6500 = vunpack.c.l.b16 %v4968
    %v6501 = vunpack.c.h.b16 %v4968
    %v6502 = vunpack.c.l.b16 %v4969
    %v6503 = vunpack.c.h.b16 %v4969
    %v6504 = vunpack.c.l.b16 %v4970
    %v6505 = vunpack.c.h.b16 %v4970
    %v6506 = vunpack.c.l.b16 %v4971
    %v6507 = vunpack.c.h.b16 %v4971
    %v6508 = vunpack.c.l.b16 %v4972
    %v6509 = vunpack.c.h.b16 %v4972
    %v6510 = vunpack.c.l.b16 %v4973
    %v6511 = vunpack.c.h.b16 %v4973
    %v6512 = vunpack.c.l.b16 %v4974
    %v6513 = vunpack.c.h.b16 %v4974
    %v6514 = vunpack.c.l.b16 %v4975
    %v6515 = vunpack.c.h.b16 %v4975
    %v6516 = vunpack.c.l.b16 %v4976
    %v6517 = vunpack.c.h.b16 %v4976
    %v6518 = vunpack.c.l.b16 %v4977
    %v6519 = vunpack.c.h.b16 %v4977
    %v6520 = vunpack.c.l.b16 %v4978
    %v6521 = vunpack.c.h.b16 %v4978
    %v6522 = vunpack.c.l.b16 %v4979
    %v6523 = vunpack.c.h.b16 %v4979
    %v6524 = vunpack.c.l.b16 %v4980
    %v6525 = vunpack.c.h.b16 %v4980
    %v6526 = vunpack.c.l.b16 %v4981
    %v6527 = vunpack.c.h.b16 %v4981
    %v6528 = vunpack.c.l.b16 %v4982
    %v6529 = vunpack.c.h.b16 %v4982
    %v6530 = vunpack.c.l.b16 %v4983
    %v6531 = vunpack.c.h.b16 %v4983
    %v6532 = vunpack.c.l.b16 %v4984
    %v6533 = vunpack.c.h.b16 %v4984
    %v6534 = vunpack.c.l.b16 %v4985
    %v6535 = vunpack.c.h.b16 %v4985
    %v6536 = vunpack.c.l.b16 %v4986
    %v6537 = vunpack.c.h.b16 %v4986
    %v6538 = vunpack.c.l.b16 %v4987
    %v6539 = vunpack.c.h.b16 %v4987
    %v6540 = vunpack.c.l.b16 %v4988
    %v6541 = vunpack.c.h.b16 %v4988
    %v6542 = vunpack.c.l.b16 %v4989
    %v6543 = vunpack.c.h.b16 %v4989
    %v6544 = vunpack.c.l.b16 %v4990
    %v6545 = vunpack.c.h.b16 %v4990
    %v6546 = vunpack.c.l.b16 %v4991
    %v6547 = vunpack.c.h.b16 %v4991
    %v6548 = vunpack.c.l.b16 %v4992
    %v6549 = vunpack.c.h.b16 %v4992
    %v6550 = vunpack.c.l.b16 %v4993
    %v6551 = vunpack.c.h.b16 %v4993
    %v6552 = vunpack.c.l.b16 %v4994
    %v6553 = vunpack.c.h.b16 %v4994
    %v6554 = vunpack.c.l.b16 %v4995
    %v6555 = vunpack.c.h.b16 %v4995
    %v6556 = vunpack.c.l.b16 %v4996
    %v6557 = vunpack.c.h.b16 %v4996
    %v6558 = vunpack.c.l.b16 %v4997
    %v6559 = vunpack.c.h.b16 %v4997
    %v6560 = vunpack.c.l.b16 %v4998
    %v6561 = vunpack.c.h.b16 %v4998
    %v6562 = vunpack.c.l.b16 %v4999
    %v6563 = vunpack.c.h.b16 %v4999
    %v6564 = vunpack.c.l.b16 %v5000
    %v6565 = vunpack.c.h.b16 %v5000
    %v6566 = vunpack.c.l.b16 %v5001
    %v6567 = vunpack.c.h.b16 %v5001
    %v6568 = vunpack.c.l.b16 %v5002
    %v6569 = vunpack.c.h.b16 %v5002
    %v6570 = vunpack.c.l.b16 %v5003
    %v6571 = vunpack.c.h.b16 %v5003
    %v6572 = vunpack.c.l.b16 %v5004
    %v6573 = vunpack.c.h.b16 %v5004
    %v6574 = vunpack.c.l.b16 %v5005
    %v6575 = vunpack.c.h.b16 %v5005
    %v6576 = vunpack.c.l.b16 %v5006
    %v6577 = vunpack.c.h.b16 %v5006
    %v6578 = vunpack.c.l.b16 %v5007
    %v6579 = vunpack.c.h.b16 %v5007
    %v6580 = vunpack.c.l.b16 %v5008
    %v6581 = vunpack.c.h.b16 %v5008
    %v6582 = vunpack.c.l.b16 %v5009
    %v6583 = vunpack.c.h.b16 %v5009
    %v6584 = vunpack.c.l.b16 %v5010
    %v6585 = vunpack.c.h.b16 %v5010
    %v6586 = vunpack.c.l.b16 %v5011
    %v6587 = vunpack.c.h.b16 %v5011
    %v6588 = vunpack.c.l.b16 %v5012
    %v6589 = vunpack.c.h.b16 %v5012
    %v6590 = vunpack.c.l.b16 %v5013
    %v6591 = vunpack.c.h.b16 %v5013
    %v6592 = vunpack.c.l.b16 %v5014
    %v6593 = vunpack.c.h.b16 %v5014
    %v6594 = vunpack.c.l.b16 %v5015
    %v6595 = vunpack.c.h.b16 %v5015
    %v6596 = vunpack.c.l.b16 %v5016
    %v6597 = vunpack.c.h.b16 %v5016
    %v6598 = vunpack.c.l.b16 %v5017
    %v6599 = vunpack.c.h.b16 %v5017
    %v6600 = vunpack.c.l.b16 %v5018
    %v6601 = vunpack.c.h.b16 %v5018
    %v6602 = vunpack.c.l.b16 %v5019
    %v6603 = vunpack.c.h.b16 %v5019
    %v6604 = vunpack.c.l.b16 %v5020
    %v6605 = vunpack.c.h.b16 %v5020
    %v6606 = vunpack.c.l.b16 %v5021
    %v6607 = vunpack.c.h.b16 %v5021
    %v6608 = vunpack.c.l.b16 %v5022
    %v6609 = vunpack.c.h.b16 %v5022
    %v6610 = vunpack.c.l.b16 %v5023
    %v6611 = vunpack.c.h.b16 %v5023
    %v6612 = vunpack.c.l.b16 %v5024
    %v6613 = vunpack.c.h.b16 %v5024
    %v6614 = vunpack.c.l.b16 %v5025
    %v6615 = vunpack.c.h.b16 %v5025
    %v6616 = vunpack.c.l.b16 %v5026
    %v6617 = vunpack.c.h.b16 %v5026
    %v6618 = vunpack.c.l.b16 %v5027
    %v6619 = vunpack.c.h.b16 %v5027
    %v6620 = vunpack.c.l.b16 %v5028
    %v6621 = vunpack.c.h.b16 %v5028
    %v6622 = vunpack.c.l.b16 %v5029
    %v6623 = vunpack.c.h.b16 %v5029
    %v6624 = vunpack.c.l.b16 %v5030
    %v6625 = vunpack.c.h.b16 %v5030
    %v6626 = vunpack.c.l.b16 %v5031
    %v6627 = vunpack.c.h.b16 %v5031
    %v6628 = vunpack.c.l.b16 %v5032
    %v6629 = vunpack.c.h.b16 %v5032
    %v6630 = vunpack.c.l.b16 %v5033
    %v6631 = vunpack.c.h.b16 %v5033
    %v6632 = vunpack.c.l.b16 %v5034
    %v6633 = vunpack.c.h.b16 %v5034
    %v6634 = vunpack.c.l.b16 %v5035
    %v6635 = vunpack.c.h.b16 %v5035
    %v6636 = vunpack.c.l.b16 %v5036
    %v6637 = vunpack.c.h.b16 %v5036
    %v6638 = vunpack.c.l.b16 %v5037
    %v6639 = vunpack.c.h.b16 %v5037
    %v6640 = vunpack.c.l.b16 %v5038
    %v6641 = vunpack.c.h.b16 %v5038
    %v6642 = vunpack.c.l.b16 %v5039
    %v6643 = vunpack.c.h.b16 %v5039
    %v6644 = vunpack.c.l.b16 %v5040
    %v6645 = vunpack.c.h.b16 %v5040
    %v6646 = vunpack.c.l.b16 %v5041
    %v6647 = vunpack.c.h.b16 %v5041
    %v6648 = vunpack.c.l.b16 %v5042
    %v6649 = vunpack.c.h.b16 %v5042
    %v6650 = vunpack.c.l.b16 %v5043
    %v6651 = vunpack.c.h.b16 %v5043
    %v6652 = vunpack.c.l.b16 %v5044
    %v6653 = vunpack.c.h.b16 %v5044
    %v6654 = vunpack.c.l.b16 %v5045
    %v6655 = vunpack.c.h.b16 %v5045
    %v6656 = vunpack.c.l.b16 %v5046
    %v6657 = vunpack.c.h.b16 %v5046
    %v6658 = vunpack.c.l.b16 %v5047
    %v6659 = vunpack.c.h.b16 %v5047
    %v6660 = vunpack.c.l.b16 %v5048
    %v6661 = vunpack.c.h.b16 %v5048
    %v6662 = vunpack.c.l.b16 %v5049
    %v6663 = vunpack.c.h.b16 %v5049
    %v6664 = vunpack.c.l.b16 %v5050
    %v6665 = vunpack.c.h.b16 %v5050
    %v6666 = vunpack.c.l.b16 %v5051
    %v6667 = vunpack.c.h.b16 %v5051
    %v6668 = vunpack.c.l.b16 %v5052
    %v6669 = vunpack.c.h.b16 %v5052
    %v6670 = vunpack.c.l.b16 %v5053
    %v6671 = vunpack.c.h.b16 %v5053
    %v6672 = vunpack.c.l.b16 %v5054
    %v6673 = vunpack.c.h.b16 %v5054
    %v6674 = vunpack.c.l.b16 %v5055
    %v6675 = vunpack.c.h.b16 %v5055
    %v6676 = vunpack.c.l.b16 %v5056
    %v6677 = vunpack.c.h.b16 %v5056
    %v6678 = vunpack.c.l.b16 %v5057
    %v6679 = vunpack.c.h.b16 %v5057
    %v6680 = vunpack.c.l.b16 %v5058
    %v6681 = vunpack.c.h.b16 %v5058
    %v6682 = vunpack.c.l.b16 %v5059
    %v6683 = vunpack.c.h.b16 %v5059
    %v6684 = vunpack.c.l.b16 %v5060
    %v6685 = vunpack.c.h.b16 %v5060
    %v6686 = vunpack.c.l.b16 %v5061
    %v6687 = vunpack.c.h.b16 %v5061
    %v6688 = vunpack.c.l.b16 %v5062
    %v6689 = vunpack.c.h.b16 %v5062
    %v6690 = vunpack.c.l.b16 %v5063
    %v6691 = vunpack.c.h.b16 %v5063
    %v6692 = vunpack.c.l.b16 %v5064
    %v6693 = vunpack.c.h.b16 %v5064
    %v6694 = vunpack.c.l.b16 %v5065
    %v6695 = vunpack.c.h.b16 %v5065
    %v6696 = vunpack.c.l.b16 %v5066
    %v6697 = vunpack.c.h.b16 %v5066
    %v6698 = vunpack.c.l.b16 %v5067
    %v6699 = vunpack.c.h.b16 %v5067
    %v6700 = vunpack.c.l.b16 %v5068
    %v6701 = vunpack.c.h.b16 %v5068
    %v6702 = vunpack.c.l.b16 %v5069
    %v6703 = vunpack.c.h.b16 %v5069
    %v6704 = vunpack.c.l.b16 %v5070
    %v6705 = vunpack.c.h.b16 %v5070
    %v6706 = vunpack.c.l.b16 %v5071
    %v6707 = vunpack.c.h.b16 %v5071
    %v6708 = vunpack.c.l.b16 %v5072
    %v6709 = vunpack.c.h.b16 %v5072
    %v6710 = vunpack.c.l.b16 %v5073
    %v6711 = vunpack.c.h.b16 %v5073
    %v6712 = vunpack.c.l.b16 %v5074
    %v6713 = vunpack.c.h.b16 %v5074
    %v6714 = vunpack.c.l.b16 %v5075
    %v6715 = vunpack.c.h.b16 %v5075
    %v6716 = vunpack.c.l.b16 %v5076
    %v6717 = vunpack.c.h.b16 %v5076
    %v6718 = vunpack.c.l.b16 %v5077
    %v6719 = vunpack.c.h.b16 %v5077
    %v6720 = vunpack.c.l.b16 %v5078
    %v6721 = vunpack.c.h.b16 %v5078
    %v6722 = vunpack.c.l.b16 %v5079
    %v6723 = vunpack.c.h.b16 %v5079
    %v6724 = vunpack.c.l.b16 %v5080
    %v6725 = vunpack.c.h.b16 %v5080
    %v6726 = vunpack.c.l.b16 %v5081
    %v6727 = vunpack.c.h.b16 %v5081
    %v6728 = vunpack.c.l.b16 %v5082
    %v6729 = vunpack.c.h.b16 %v5082
    %v6730 = vunpack.c.l.b16 %v5083
    %v6731 = vunpack.c.h.b16 %v5083
    %v6732 = vunpack.c.l.b16 %v5084
    %v6733 = vunpack.c.h.b16 %v5084
    %v6734 = vunpack.c.l.b16 %v5085
    %v6735 = vunpack.c.h.b16 %v5085
    %v6736 = vunpack.c.l.b16 %v5086
    %v6737 = vunpack.c.h.b16 %v5086
    %v6738 = vunpack.c.l.b16 %v5087
    %v6739 = vunpack.c.h.b16 %v5087
    %v6740 = vunpack.c.l.b16 %v5088
    %v6741 = vunpack.c.h.b16 %v5088
    %v6742 = vunpack.c.l.b16 %v5089
    %v6743 = vunpack.c.h.b16 %v5089
    %v6744 = vunpack.c.l.b16 %v5090
    %v6745 = vunpack.c.h.b16 %v5090
    %v6746 = vpack.c.b16 %v5986, %v5978
    %v6747 = vpack.c.b16 %v5987, %v5979
    %v6748 = vpack.c.b16 %v5988, %v5980
    %v6749 = vpack.c.b16 %v5989, %v5981
    %v6750 = vpack.c.b16 %v5990, %v5982
    %v6751 = vpack.c.b16 %v5991, %v5983
    %v6752 = vpack.c.b16 %v5992, %v5984
    %v6753 = vpack.c.b16 %v5993, %v5985
    %v6754 = vpack.c.b16 %v6002, %v5994
    %v6755 = vpack.c.b16 %v6003, %v5995
    %v6756 = vpack.c.b16 %v6004, %v5996
    %v6757 = vpack.c.b16 %v6005, %v5997
    %v6758 = vpack.c.b16 %v6006, %v5998
    %v6759 = vpack.c.b16 %v6007, %v5999
    %v6760 = vpack.c.b16 %v6008, %v6000
    %v6761 = vpack.c.b16 %v6009, %v6001
    %v6762 = vpack.c.b16 %v6018, %v6010
    %v6763 = vpack.c.b16 %v6019, %v6011
    %v6764 = vpack.c.b16 %v6020, %v6012
    %v6765 = vpack.c.b16 %v6021, %v6013
    %v6766 = vpack.c.b16 %v6022, %v6014
    %v6767 = vpack.c.b16 %v6023, %v6015
    %v6768 = vpack.c.b16 %v6024, %v6016
    %v6769 = vpack.c.b16 %v6025, %v6017
    %v6770 = vpack.c.b16 %v6034, %v6026
    %v6771 = vpack.c.b16 %v6035, %v6027
    %v6772 = vpack.c.b16 %v6036, %v6028
    %v6773 = vpack.c.b16 %v6037, %v6029
    %v6774 = vpack.c.b16 %v6038, %v6030
    %v6775 = vpack.c.b16 %v6039, %v6031
    %v6776 = vpack.c.b16 %v6040, %v6032
    %v6777 = vpack.c.b16 %v6041, %v6033
    %v6778 = vpack.c.b16 %v6050, %v6042
    %v6779 = vpack.c.b16 %v6051, %v6043
    %v6780 = vpack.c.b16 %v6052, %v6044
    %v6781 = vpack.c.b16 %v6053, %v6045
    %v6782 = vpack.c.b16 %v6054, %v6046
    %v6783 = vpack.c.b16 %v6055, %v6047
    %v6784 = vpack.c.b16 %v6056, %v6048
    %v6785 = vpack.c.b16 %v6057, %v6049
    %v6786 = vpack.c.b16 %v6066, %v6058
    %v6787 = vpack.c.b16 %v6067, %v6059
    %v6788 = vpack.c.b16 %v6068, %v6060
    %v6789 = vpack.c.b16 %v6069, %v6061
    %v6790 = vpack.c.b16 %v6070, %v6062
    %v6791 = vpack.c.b16 %v6071, %v6063
    %v6792 = vpack.c.b16 %v6072, %v6064
    %v6793 = vpack.c.b16 %v6073, %v6065
    %v6794 = vpack.c.b16 %v6082, %v6074
    %v6795 = vpack.c.b16 %v6083, %v6075
    %v6796 = vpack.c.b16 %v6084, %v6076
    %v6797 = vpack.c.b16 %v6085, %v6077
    %v6798 = vpack.c.b16 %v6086, %v6078
    %v6799 = vpack.c.b16 %v6087, %v6079
    %v6800 = vpack.c.b16 %v6088, %v6080
    %v6801 = vpack.c.b16 %v6089, %v6081
    %v6802 = vpack.c.b16 %v6098, %v6090
    %v6803 = vpack.c.b16 %v6099, %v6091
    %v6804 = vpack.c.b16 %v6100, %v6092
    %v6805 = vpack.c.b16 %v6101, %v6093
    %v6806 = vpack.c.b16 %v6102, %v6094
    %v6807 = vpack.c.b16 %v6103, %v6095
    %v6808 = vpack.c.b16 %v6104, %v6096
    %v6809 = vpack.c.b16 %v6105, %v6097
    %v6810 = vpack.c.b16 %v6114, %v6106
    %v6811 = vpack.c.b16 %v6115, %v6107
    %v6812 = vpack.c.b16 %v6116, %v6108
    %v6813 = vpack.c.b16 %v6117, %v6109
    %v6814 = vpack.c.b16 %v6118, %v6110
    %v6815 = vpack.c.b16 %v6119, %v6111
    %v6816 = vpack.c.b16 %v6120, %v6112
    %v6817 = vpack.c.b16 %v6121, %v6113
    %v6818 = vpack.c.b16 %v6130, %v6122
    %v6819 = vpack.c.b16 %v6131, %v6123
    %v6820 = vpack.c.b16 %v6132, %v6124
    %v6821 = vpack.c.b16 %v6133, %v6125
    %v6822 = vpack.c.b16 %v6134, %v6126
    %v6823 = vpack.c.b16 %v6135, %v6127
    %v6824 = vpack.c.b16 %v6136, %v6128
    %v6825 = vpack.c.b16 %v6137, %v6129
    %v6826 = vpack.c.b16 %v6146, %v6138
    %v6827 = vpack.c.b16 %v6147, %v6139
    %v6828 = vpack.c.b16 %v6148, %v6140
    %v6829 = vpack.c.b16 %v6149, %v6141
    %v6830 = vpack.c.b16 %v6150, %v6142
    %v6831 = vpack.c.b16 %v6151, %v6143
    %v6832 = vpack.c.b16 %v6152, %v6144
    %v6833 = vpack.c.b16 %v6153, %v6145
    %v6834 = vpack.c.b16 %v6162, %v6154
    %v6835 = vpack.c.b16 %v6163, %v6155
    %v6836 = vpack.c.b16 %v6164, %v6156
    %v6837 = vpack.c.b16 %v6165, %v6157
    %v6838 = vpack.c.b16 %v6166, %v6158
    %v6839 = vpack.c.b16 %v6167, %v6159
    %v6840 = vpack.c.b16 %v6168, %v6160
    %v6841 = vpack.c.b16 %v6169, %v6161
    %v6842 = vpack.c.b16 %v6178, %v6170
    %v6843 = vpack.c.b16 %v6179, %v6171
    %v6844 = vpack.c.b16 %v6180, %v6172
    %v6845 = vpack.c.b16 %v6181, %v6173
    %v6846 = vpack.c.b16 %v6182, %v6174
    %v6847 = vpack.c.b16 %v6183, %v6175
    %v6848 = vpack.c.b16 %v6184, %v6176
    %v6849 = vpack.c.b16 %v6185, %v6177
    %v6850 = vpack.c.b16 %v6194, %v6186
    %v6851 = vpack.c.b16 %v6195, %v6187
    %v6852 = vpack.c.b16 %v6196, %v6188
    %v6853 = vpack.c.b16 %v6197, %v6189
    %v6854 = vpack.c.b16 %v6198, %v6190
    %v6855 = vpack.c.b16 %v6199, %v6191
    %v6856 = vpack.c.b16 %v6200, %v6192
    %v6857 = vpack.c.b16 %v6201, %v6193
    %v6858 = vpack.c.b16 %v6210, %v6202
    %v6859 = vpack.c.b16 %v6211, %v6203
    %v6860 = vpack.c.b16 %v6212, %v6204
    %v6861 = vpack.c.b16 %v6213, %v6205
    %v6862 = vpack.c.b16 %v6214, %v6206
    %v6863 = vpack.c.b16 %v6215, %v6207
    %v6864 = vpack.c.b16 %v6216, %v6208
    %v6865 = vpack.c.b16 %v6217, %v6209
    %v6866 = vpack.c.b16 %v6226, %v6218
    %v6867 = vpack.c.b16 %v6227, %v6219
    %v6868 = vpack.c.b16 %v6228, %v6220
    %v6869 = vpack.c.b16 %v6229, %v6221
    %v6870 = vpack.c.b16 %v6230, %v6222
    %v6871 = vpack.c.b16 %v6231, %v6223
    %v6872 = vpack.c.b16 %v6232, %v6224
    %v6873 = vpack.c.b16 %v6233, %v6225
    %v6874 = vpack.c.b16 %v6242, %v6234
    %v6875 = vpack.c.b16 %v6243, %v6235
    %v6876 = vpack.c.b16 %v6244, %v6236
    %v6877 = vpack.c.b16 %v6245, %v6237
    %v6878 = vpack.c.b16 %v6246, %v6238
    %v6879 = vpack.c.b16 %v6247, %v6239
    %v6880 = vpack.c.b16 %v6248, %v6240
    %v6881 = vpack.c.b16 %v6249, %v6241
    %v6882 = vpack.c.b16 %v6258, %v6250
    %v6883 = vpack.c.b16 %v6259, %v6251
    %v6884 = vpack.c.b16 %v6260, %v6252
    %v6885 = vpack.c.b16 %v6261, %v6253
    %v6886 = vpack.c.b16 %v6262, %v6254
    %v6887 = vpack.c.b16 %v6263, %v6255
    %v6888 = vpack.c.b16 %v6264, %v6256
    %v6889 = vpack.c.b16 %v6265, %v6257
    %v6890 = vpack.c.b16 %v6274, %v6266
    %v6891 = vpack.c.b16 %v6275, %v6267
    %v6892 = vpack.c.b16 %v6276, %v6268
    %v6893 = vpack.c.b16 %v6277, %v6269
    %v6894 = vpack.c.b16 %v6278, %v6270
    %v6895 = vpack.c.b16 %v6279, %v6271
    %v6896 = vpack.c.b16 %v6280, %v6272
    %v6897 = vpack.c.b16 %v6281, %v6273
    %v6898 = vpack.c.b16 %v6290, %v6282
    %v6899 = vpack.c.b16 %v6291, %v6283
    %v6900 = vpack.c.b16 %v6292, %v6284
    %v6901 = vpack.c.b16 %v6293, %v6285
    %v6902 = vpack.c.b16 %v6294, %v6286
    %v6903 = vpack.c.b16 %v6295, %v6287
    %v6904 = vpack.c.b16 %v6296, %v6288
    %v6905 = vpack.c.b16 %v6297, %v6289
    %v6906 = vpack.c.b16 %v6306, %v6298
    %v6907 = vpack.c.b16 %v6307, %v6299
    %v6908 = vpack.c.b16 %v6308, %v6300
    %v6909 = vpack.c.b16 %v6309, %v6301
    %v6910 = vpack.c.b16 %v6310, %v6302
    %v6911 = vpack.c.b16 %v6311, %v6303
    %v6912 = vpack.c.b16 %v6312, %v6304
    %v6913 = vpack.c.b16 %v6313, %v6305
    %v6914 = vpack.c.b16 %v6322, %v6314
    %v6915 = vpack.c.b16 %v6323, %v6315
    %v6916 = vpack.c.b16 %v6324, %v6316
    %v6917 = vpack.c.b16 %v6325, %v6317
    %v6918 = vpack.c.b16 %v6326, %v6318
    %v6919 = vpack.c.b16 %v6327, %v6319
    %v6920 = vpack.c.b16 %v6328, %v6320
    %v6921 = vpack.c.b16 %v6329, %v6321
    %v6922 = vpack.c.b16 %v6338, %v6330
    %v6923 = vpack.c.b16 %v6339, %v6331
    %v6924 = vpack.c.b16 %v6340, %v6332
    %v6925 = vpack.c.b16 %v6341, %v6333
    %v6926 = vpack.c.b16 %v6342, %v6334
    %v6927 = vpack.c.b16 %v6343, %v6335
    %v6928 = vpack.c.b16 %v6344, %v6336
    %v6929 = vpack.c.b16 %v6345, %v6337
    %v6930 = vpack.c.b16 %v6354, %v6346
    %v6931 = vpack.c.b16 %v6355, %v6347
    %v6932 = vpack.c.b16 %v6356, %v6348
    %v6933 = vpack.c.b16 %v6357, %v6349
    %v6934 = vpack.c.b16 %v6358, %v6350
    %v6935 = vpack.c.b16 %v6359, %v6351
    %v6936 = vpack.c.b16 %v6360, %v6352
    %v6937 = vpack.c.b16 %v6361, %v6353
    %v6938 = vpack.c.b16 %v6370, %v6362
    %v6939 = vpack.c.b16 %v6371, %v6363
    %v6940 = vpack.c.b16 %v6372, %v6364
    %v6941 = vpack.c.b16 %v6373, %v6365
    %v6942 = vpack.c.b16 %v6374, %v6366
    %v6943 = vpack.c.b16 %v6375, %v6367
    %v6944 = vpack.c.b16 %v6376, %v6368
    %v6945 = vpack.c.b16 %v6377, %v6369
    %v6946 = vpack.c.b16 %v6386, %v6378
    %v6947 = vpack.c.b16 %v6387, %v6379
    %v6948 = vpack.c.b16 %v6388, %v6380
    %v6949 = vpack.c.b16 %v6389, %v6381
    %v6950 = vpack.c.b16 %v6390, %v6382
    %v6951 = vpack.c.b16 %v6391, %v6383
    %v6952 = vpack.c.b16 %v6392, %v6384
    %v6953 = vpack.c.b16 %v6393, %v6385
    %v6954 = vpack.c.b16 %v6402, %v6394
    %v6955 = vpack.c.b16 %v6403, %v6395
    %v6956 = vpack.c.b16 %v6404, %v6396
    %v6957 = vpack.c.b16 %v6405, %v6397
    %v6958 = vpack.c.b16 %v6406, %v6398
    %v6959 = vpack.c.b16 %v6407, %v6399
    %v6960 = vpack.c.b16 %v6408, %v6400
    %v6961 = vpack.c.b16 %v6409, %v6401
    %v6962 = vpack.c.b16 %v6418, %v6410
    %v6963 = vpack.c.b16 %v6419, %v6411
    %v6964 = vpack.c.b16 %v6420, %v6412
    %v6965 = vpack.c.b16 %v6421, %v6413
    %v6966 = vpack.c.b16 %v6422, %v6414
    %v6967 = vpack.c.b16 %v6423, %v6415
    %v6968 = vpack.c.b16 %v6424, %v6416
    %v6969 = vpack.c.b16 %v6425, %v6417
    %v6970 = vpack.c.b16 %v6434, %v6426
    %v6971 = vpack.c.b16 %v6435, %v6427
    %v6972 = vpack.c.b16 %v6436, %v6428
    %v6973 = vpack.c.b16 %v6437, %v6429
    %v6974 = vpack.c.b16 %v6438, %v6430
    %v6975 = vpack.c.b16 %v6439, %v6431
    %v6976 = vpack.c.b16 %v6440, %v6432
    %v6977 = vpack.c.b16 %v6441, %v6433
    %v6978 = vpack.c.b16 %v6450, %v6442
    %v6979 = vpack.c.b16 %v6451, %v6443
    %v6980 = vpack.c.b16 %v6452, %v6444
    %v6981 = vpack.c.b16 %v6453, %v6445
    %v6982 = vpack.c.b16 %v6454, %v6446
    %v6983 = vpack.c.b16 %v6455, %v6447
    %v6984 = vpack.c.b16 %v6456, %v6448
    %v6985 = vpack.c.b16 %v6457, %v6449
    %v6986 = vpack.c.b16 %v6466, %v6458
    %v6987 = vpack.c.b16 %v6467, %v6459
    %v6988 = vpack.c.b16 %v6468, %v6460
    %v6989 = vpack.c.b16 %v6469, %v6461
    %v6990 = vpack.c.b16 %v6470, %v6462
    %v6991 = vpack.c.b16 %v6471, %v6463
    %v6992 = vpack.c.b16 %v6472, %v6464
    %v6993 = vpack.c.b16 %v6473, %v6465
    %v6994 = vpack.c.b16 %v6482, %v6474
    %v6995 = vpack.c.b16 %v6483, %v6475
    %v6996 = vpack.c.b16 %v6484, %v6476
    %v6997 = vpack.c.b16 %v6485, %v6477
    %v6998 = vpack.c.b16 %v6486, %v6478
    %v6999 = vpack.c.b16 %v6487, %v6479
    %v7000 = vpack.c.b16 %v6488, %v6480
    %v7001 = vpack.c.b16 %v6489, %v6481
    %v7002 = vpack.c.b16 %v6498, %v6490
    %v7003 = vpack.c.b16 %v6499, %v6491
    %v7004 = vpack.c.b16 %v6500, %v6492
    %v7005 = vpack.c.b16 %v6501, %v6493
    %v7006 = vpack.c.b16 %v6502, %v6494
    %v7007 = vpack.c.b16 %v6503, %v6495
    %v7008 = vpack.c.b16 %v6504, %v6496
    %v7009 = vpack.c.b16 %v6505, %v6497
    %v7010 = vpack.c.b16 %v6514, %v6506
    %v7011 = vpack.c.b16 %v6515, %v6507
    %v7012 = vpack.c.b16 %v6516, %v6508
    %v7013 = vpack.c.b16 %v6517, %v6509
    %v7014 = vpack.c.b16 %v6518, %v6510
    %v7015 = vpack.c.b16 %v6519, %v6511
    %v7016 = vpack.c.b16 %v6520, %v6512
    %v7017 = vpack.c.b16 %v6521, %v6513
    %v7018 = vpack.c.b16 %v6530, %v6522
    %v7019 = vpack.c.b16 %v6531, %v6523
    %v7020 = vpack.c.b16 %v6532, %v6524
    %v7021 = vpack.c.b16 %v6533, %v6525
    %v7022 = vpack.c.b16 %v6534, %v6526
    %v7023 = vpack.c.b16 %v6535, %v6527
    %v7024 = vpack.c.b16 %v6536, %v6528
    %v7025 = vpack.c.b16 %v6537, %v6529
    %v7026 = vpack.c.b16 %v6546, %v6538
    %v7027 = vpack.c.b16 %v6547, %v6539
    %v7028 = vpack.c.b16 %v6548, %v6540
    %v7029 = vpack.c.b16 %v6549, %v6541
    %v7030 = vpack.c.b16 %v6550, %v6542
    %v7031 = vpack.c.b16 %v6551, %v6543
    %v7032 = vpack.c.b16 %v6552, %v6544
    %v7033 = vpack.c.b16 %v6553, %v6545
    %v7034 = vpack.c.b16 %v6562, %v6554
    %v7035 = vpack.c.b16 %v6563, %v6555
    %v7036 = vpack.c.b16 %v6564, %v6556
    %v7037 = vpack.c.b16 %v6565, %v6557
    %v7038 = vpack.c.b16 %v6566, %v6558
    %v7039 = vpack.c.b16 %v6567, %v6559
    %v7040 = vpack.c.b16 %v6568, %v6560
    %v7041 = vpack.c.b16 %v6569, %v6561
    %v7042 = vpack.c.b16 %v6578, %v6570
    %v7043 = vpack.c.b16 %v6579, %v6571
    %v7044 = vpack.c.b16 %v6580, %v6572
    %v7045 = vpack.c.b16 %v6581, %v6573
    %v7046 = vpack.c.b16 %v6582, %v6574
    %v7047 = vpack.c.b16 %v6583, %v6575
    %v7048 = vpack.c.b16 %v6584, %v6576
    %v7049 = vpack.c.b16 %v6585, %v6577
    %v7050 = vpack.c.b16 %v6594, %v6586
    %v7051 = vpack.c.b16 %v6595, %v6587
    %v7052 = vpack.c.b16 %v6596, %v6588
    %v7053 = vpack.c.b16 %v6597, %v6589
    %v7054 = vpack.c.b16 %v6598, %v6590
    %v7055 = vpack.c.b16 %v6599, %v6591
    %v7056 = vpack.c.b16 %v6600, %v6592
    %v7057 = vpack.c.b16 %v6601, %v6593
    %v7058 = vpack.c.b16 %v6610, %v6602
    %v7059 = vpack.c.b16 %v6611, %v6603
    %v7060 = vpack.c.b16 %v6612, %v6604
    %v7061 = vpack.c.b16 %v6613, %v6605
    %v7062 = vpack.c.b16 %v6614, %v6606
    %v7063 = vpack.c.b16 %v6615, %v6607
    %v7064 = vpack.c.b16 %v6616, %v6608
    %v7065 = vpack.c.b16 %v6617, %v6609
    %v7066 = vpack.c.b16 %v6626, %v6618
    %v7067 = vpack.c.b16 %v6627, %v6619
    %v7068 = vpack.c.b16 %v6628, %v6620
    %v7069 = vpack.c.b16 %v6629, %v6621
    %v7070 = vpack.c.b16 %v6630, %v6622
    %v7071 = vpack.c.b16 %v6631, %v6623
    %v7072 = vpack.c.b16 %v6632, %v6624
    %v7073 = vpack.c.b16 %v6633, %v6625
    %v7074 = vpack.c.b16 %v6642, %v6634
    %v7075 = vpack.c.b16 %v6643, %v6635
    %v7076 = vpack.c.b16 %v6644, %v6636
    %v7077 = vpack.c.b16 %v6645, %v6637
    %v7078 = vpack.c.b16 %v6646, %v6638
    %v7079 = vpack.c.b16 %v6647, %v6639
    %v7080 = vpack.c.b16 %v6648, %v6640
    %v7081 = vpack.c.b16 %v6649, %v6641
    %v7082 = vpack.c.b16 %v6658, %v6650
    %v7083 = vpack.c.b16 %v6659, %v6651
    %v7084 = vpack.c.b16 %v6660, %v6652
    %v7085 = vpack.c.b16 %v6661, %v6653
    %v7086 = vpack.c.b16 %v6662, %v6654
    %v7087 = vpack.c.b16 %v6663, %v6655
    %v7088 = vpack.c.b16 %v6664, %v6656
    %v7089 = vpack.c.b16 %v6665, %v6657
    %v7090 = vpack.c.b16 %v6674, %v6666
    %v7091 = vpack.c.b16 %v6675, %v6667
    %v7092 = vpack.c.b16 %v6676, %v6668
    %v7093 = vpack.c.b16 %v6677, %v6669
    %v7094 = vpack.c.b16 %v6678, %v6670
    %v7095 = vpack.c.b16 %v6679, %v6671
    %v7096 = vpack.c.b16 %v6680, %v6672
    %v7097 = vpack.c.b16 %v6681, %v6673
    %v7098 = vpack.c.b16 %v6690, %v6682
    %v7099 = vpack.c.b16 %v6691, %v6683
    %v7100 = vpack.c.b16 %v6692, %v6684
    %v7101 = vpack.c.b16 %v6693, %v6685
    %v7102 = vpack.c.b16 %v6694, %v6686
    %v7103 = vpack.c.b16 %v6695, %v6687
    %v7104 = vpack.c.b16 %v6696, %v6688
    %v7105 = vpack.c.b16 %v6697, %v6689
    %v7106 = vpack.c.b16 %v6706, %v6698
    %v7107 = vpack.c.b16 %v6707, %v6699
    %v7108 = vpack.c.b16 %v6708, %v6700
    %v7109 = vpack.c.b16 %v6709, %v6701
    %v7110 = vpack.c.b16 %v6710, %v6702
    %v7111 = vpack.c.b16 %v6711, %v6703
    %v7112 = vpack.c.b16 %v6712, %v6704
    %v7113 = vpack.c.b16 %v6713, %v6705
    %v7114 = vpack.c.b16 %v6722, %v6714
    %v7115 = vpack.c.b16 %v6723, %v6715
    %v7116 = vpack.c.b16 %v6724, %v6716
    %v7117 = vpack.c.b16 %v6725, %v6717
    %v7118 = vpack.c.b16 %v6726, %v6718
    %v7119 = vpack.c.b16 %v6727, %v6719
    %v7120 = vpack.c.b16 %v6728, %v6720
    %v7121 = vpack.c.b16 %v6729, %v6721
    %v7122 = vpack.c.b16 %v6738, %v6730
    %v7123 = vpack.c.b16 %v6739, %v6731
    %v7124 = vpack.c.b16 %v6740, %v6732
    %v7125 = vpack.c.b16 %v6741, %v6733
    %v7126 = vpack.c.b16 %v6742, %v6734
    %v7127 = vpack.c.b16 %v6743, %v6735
    %v7128 = vpack.c.b16 %v6744, %v6736
    %v7129 = vpack.c.b16 %v6745, %v6737
    %7514 = vmatprep.subr.bf16.mxu0 %v6803
    %7515 = vmatpush1.bf16.msra.mxu0 %v6802
    %7516 = vmatprep.subr.bf16.mxu0 %v6795
    %7517 = vmatpush1.bf16.msra.mxu0 %v6794
    %7518 = vmatprep.subr.bf16.mxu0 %v6787
    %7519 = vmatpush1.bf16.msra.mxu0 %v6786
    %7520 = vmatprep.subr.bf16.mxu0 %v6779
    %7521 = vmatpush1.bf16.msra.mxu0 %v6778
    %7522 = vmatprep.subr.bf16.mxu0 %v6771
    %7523 = vmatpush1.bf16.msra.mxu0 %v6770
    %7524 = vmatprep.subr.bf16.mxu0 %v6763
    %7525 = vmatpush1.bf16.msra.mxu0 %v6762
    %7526 = vmatprep.subr.bf16.mxu0 %v6755
    %7527 = vmatpush1.bf16.msra.mxu0 %v6754
    %7528 = vmatprep.subr.bf16.mxu0 %v6747
    %7529 = vmatpush1.bf16.msra.mxu0 %v6746
    %7530 = vmatprep.subr.bf16.mxu0 %v6867
    %7531 = vmatpush2.bf16.msra.mxu0 %v6866
    %7532 = vmatprep.subr.bf16.mxu0 %v6859
    %7533 = vmatpush2.bf16.msra.mxu0 %v6858
    %7534 = vmatprep.subr.bf16.mxu0 %v6851
    %7535 = vmatpush2.bf16.msra.mxu0 %v6850
    %7536 = vmatprep.subr.bf16.mxu0 %v6843
    %7537 = vmatpush2.bf16.msra.mxu0 %v6842
    %7538 = vmatprep.subr.bf16.mxu0 %v6835
    %7539 = vmatpush2.bf16.msra.mxu0 %v6834
    %7540 = vmatprep.subr.bf16.mxu0 %v6827
    %7541 = vmatpush2.bf16.msra.mxu0 %v6826
    %7542 = vmatprep.subr.bf16.mxu0 %v6819
    %7543 = vmatpush2.bf16.msra.mxu0 %v6818
    %7544 = vmatprep.subr.bf16.mxu0 %v6811
    %7545 = vmatpush2.bf16.msra.mxu0 %v6810
    %7546 = vmatprep.mubr.bf16.mxu0 %v5589
    %7547 = vmatmul.mubr.bf16.gmra.mxu0 %v5588
    %v7548 = vpop.f32.mrf.mxu0
    %v7549 = vadd.f32 0.0, %v7548
    %v7550 = vpop.f32.mrf.mxu0
    %v7551 = vadd.f32 0.0, %v7550
    %v7552 = vpop.f32.mrf.mxu0
    %v7553 = vpop.f32.mrf.mxu0
    %7554 = vdwg.mxu0
    %7555 = vmatprep.subr.bf16.mxu0 %v6931
    %7556 = vmatpush1.bf16.msra.mxu0 %v6930
    %7557 = vmatprep.subr.bf16.mxu0 %v6923
    %7558 = vmatpush1.bf16.msra.mxu0 %v6922
    %7559 = vmatprep.subr.bf16.mxu0 %v6915
    %7560 = vmatpush1.bf16.msra.mxu0 %v6914
    %7561 = vmatprep.subr.bf16.mxu0 %v6907
    %7562 = vmatpush1.bf16.msra.mxu0 %v6906
    %7563 = vmatprep.subr.bf16.mxu0 %v6899
    %7564 = vmatpush1.bf16.msra.mxu0 %v6898
    %7565 = vmatprep.subr.bf16.mxu0 %v6891
    %7566 = vmatpush1.bf16.msra.mxu0 %v6890
    %7567 = vmatprep.subr.bf16.mxu0 %v6883
    %7568 = vmatpush1.bf16.msra.mxu0 %v6882
    %7569 = vmatprep.subr.bf16.mxu0 %v6875
    %7570 = vmatpush1.bf16.msra.mxu0 %v6874
    %7571 = vmatprep.subr.bf16.mxu0 %v6995
    %7572 = vmatpush2.bf16.msra.mxu0 %v6994
    %7573 = vmatprep.subr.bf16.mxu0 %v6987
    %7574 = vmatpush2.bf16.msra.mxu0 %v6986
    %7575 = vmatprep.subr.bf16.mxu0 %v6979
    %7576 = vmatpush2.bf16.msra.mxu0 %v6978
    %7577 = vmatprep.subr.bf16.mxu0 %v6971
    %7578 = vmatpush2.bf16.msra.mxu0 %v6970
    %7579 = vmatprep.subr.bf16.mxu0 %v6963
    %7580 = vmatpush2.bf16.msra.mxu0 %v6962
    %7581 = vmatprep.subr.bf16.mxu0 %v6955
    %7582 = vmatpush2.bf16.msra.mxu0 %v6954
    %7583 = vmatprep.subr.bf16.mxu0 %v6947
    %7584 = vmatpush2.bf16.msra.mxu0 %v6946
    %7585 = vmatprep.subr.bf16.mxu0 %v6939
    %7586 = vmatpush2.bf16.msra.mxu0 %v6938
    %7587 = vmatprep.mubr.bf16.mxu0 %v5591
    %7588 = vmatmul.mubr.bf16.gmra.mxu0 %v5590
    %v7589 = vpop.f32.mrf.mxu0
    %v7590 = vadd.f32 %v7549, %v7589
    %v7591 = vpop.f32.mrf.mxu0
    %v7592 = vadd.f32 %v7551, %v7591
    %v7593 = vpop.f32.mrf.mxu0
    %v7594 = vpop.f32.mrf.mxu0
    %7595 = vdwg.mxu0
    %7596 = vmatprep.subr.bf16.mxu0 %v7059
    %7597 = vmatpush1.bf16.msra.mxu0 %v7058
    %7598 = vmatprep.subr.bf16.mxu0 %v7051
    %7599 = vmatpush1.bf16.msra.mxu0 %v7050
    %7600 = vmatprep.subr.bf16.mxu0 %v7043
    %7601 = vmatpush1.bf16.msra.mxu0 %v7042
    %7602 = vmatprep.subr.bf16.mxu0 %v7035
    %7603 = vmatpush1.bf16.msra.mxu0 %v7034
    %7604 = vmatprep.subr.bf16.mxu0 %v7027
    %7605 = vmatpush1.bf16.msra.mxu0 %v7026
    %7606 = vmatprep.subr.bf16.mxu0 %v7019
    %7607 = vmatpush1.bf16.msra.mxu0 %v7018
    %7608 = vmatprep.subr.bf16.mxu0 %v7011
    %7609 = vmatpush1.bf16.msra.mxu0 %v7010
    %7610 = vmatprep.subr.bf16.mxu0 %v7003
    %7611 = vmatpush1.bf16.msra.mxu0 %v7002
    %7612 = vmatprep.subr.bf16.mxu0 %v7123
    %7613 = vmatpush2.bf16.msra.mxu0 %v7122
    %7614 = vmatprep.subr.bf16.mxu0 %v7115
    %7615 = vmatpush2.bf16.msra.mxu0 %v7114
    %7616 = vmatprep.subr.bf16.mxu0 %v7107
    %7617 = vmatpush2.bf16.msra.mxu0 %v7106
    %7618 = vmatprep.subr.bf16.mxu0 %v7099
    %7619 = vmatpush2.bf16.msra.mxu0 %v7098
    %7620 = vmatprep.subr.bf16.mxu0 %v7091
    %7621 = vmatpush2.bf16.msra.mxu0 %v7090
    %7622 = vmatprep.subr.bf16.mxu0 %v7083
    %7623 = vmatpush2.bf16.msra.mxu0 %v7082
    %7624 = vmatprep.subr.bf16.mxu0 %v7075
    %7625 = vmatpush2.bf16.msra.mxu0 %v7074
    %7626 = vmatprep.subr.bf16.mxu0 %v7067
    %7627 = vmatpush2.bf16.msra.mxu0 %v7066
    %7628 = vmatprep.mubr.bf16.mxu0 %v5593
    %7629 = vmatmul.mubr.bf16.gmra.mxu0 %v5592
    %v7630 = vpop.f32.mrf.mxu0
    %v7631 = vadd.f32 %v7590, %v7630
    %v7632 = vpop.f32.mrf.mxu0
    %v7633 = vadd.f32 %v7592, %v7632
    %v7634 = vpop.f32.mrf.mxu0
    %v7635 = vpop.f32.mrf.mxu0
    %7636 = vdwg.mxu0
    %7637 = vmatprep.subr.bf16.mxu0 %v6805
    %7638 = vmatpush1.bf16.msra.mxu0 %v6804
    %7639 = vmatprep.subr.bf16.mxu0 %v6797
    %7640 = vmatpush1.bf16.msra.mxu0 %v6796
    %7641 = vmatprep.subr.bf16.mxu0 %v6789
    %7642 = vmatpush1.bf16.msra.mxu0 %v6788
    %7643 = vmatprep.subr.bf16.mxu0 %v6781
    %7644 = vmatpush1.bf16.msra.mxu0 %v6780
    %7645 = vmatprep.subr.bf16.mxu0 %v6773
    %7646 = vmatpush1.bf16.msra.mxu0 %v6772
    %7647 = vmatprep.subr.bf16.mxu0 %v6765
    %7648 = vmatpush1.bf16.msra.mxu0 %v6764
    %7649 = vmatprep.subr.bf16.mxu0 %v6757
    %7650 = vmatpush1.bf16.msra.mxu0 %v6756
    %7651 = vmatprep.subr.bf16.mxu0 %v6749
    %7652 = vmatpush1.bf16.msra.mxu0 %v6748
    %7653 = vmatprep.subr.bf16.mxu0 %v6869
    %7654 = vmatpush2.bf16.msra.mxu0 %v6868
    %7655 = vmatprep.subr.bf16.mxu0 %v6861
    %7656 = vmatpush2.bf16.msra.mxu0 %v6860
    %7657 = vmatprep.subr.bf16.mxu0 %v6853
    %7658 = vmatpush2.bf16.msra.mxu0 %v6852
    %7659 = vmatprep.subr.bf16.mxu0 %v6845
    %7660 = vmatpush2.bf16.msra.mxu0 %v6844
    %7661 = vmatprep.subr.bf16.mxu0 %v6837
    %7662 = vmatpush2.bf16.msra.mxu0 %v6836
    %7663 = vmatprep.subr.bf16.mxu0 %v6829
    %7664 = vmatpush2.bf16.msra.mxu0 %v6828
    %7665 = vmatprep.subr.bf16.mxu0 %v6821
    %7666 = vmatpush2.bf16.msra.mxu0 %v6820
    %7667 = vmatprep.subr.bf16.mxu0 %v6813
    %7668 = vmatpush2.bf16.msra.mxu0 %v6812
    %7669 = vmatprep.mubr.bf16.mxu0 %v5589
    %7670 = vmatmul.mubr.bf16.gmra.mxu0 %v5588
    %v7671 = vpop.f32.mrf.mxu0
    %v7672 = vadd.f32 0.0, %v7671
    %v7673 = vpop.f32.mrf.mxu0
    %v7674 = vadd.f32 0.0, %v7673
    %v7675 = vpop.f32.mrf.mxu0
    %v7676 = vpop.f32.mrf.mxu0
    %7677 = vdwg.mxu0
    %7678 = vmatprep.subr.bf16.mxu0 %v6933
    %7679 = vmatpush1.bf16.msra.mxu0 %v6932
    %7680 = vmatprep.subr.bf16.mxu0 %v6925
    %7681 = vmatpush1.bf16.msra.mxu0 %v6924
    %7682 = vmatprep.subr.bf16.mxu0 %v6917
    %7683 = vmatpush1.bf16.msra.mxu0 %v6916
    %7684 = vmatprep.subr.bf16.mxu0 %v6909
    %7685 = vmatpush1.bf16.msra.mxu0 %v6908
    %7686 = vmatprep.subr.bf16.mxu0 %v6901
    %7687 = vmatpush1.bf16.msra.mxu0 %v6900
    %7688 = vmatprep.subr.bf16.mxu0 %v6893
    %7689 = vmatpush1.bf16.msra.mxu0 %v6892
    %7690 = vmatprep.subr.bf16.mxu0 %v6885
    %7691 = vmatpush1.bf16.msra.mxu0 %v6884
    %7692 = vmatprep.subr.bf16.mxu0 %v6877
    %7693 = vmatpush1.bf16.msra.mxu0 %v6876
    %7694 = vmatprep.subr.bf16.mxu0 %v6997
    %7695 = vmatpush2.bf16.msra.mxu0 %v6996
    %7696 = vmatprep.subr.bf16.mxu0 %v6989
    %7697 = vmatpush2.bf16.msra.mxu0 %v6988
    %7698 = vmatprep.subr.bf16.mxu0 %v6981
    %7699 = vmatpush2.bf16.msra.mxu0 %v6980
    %7700 = vmatprep.subr.bf16.mxu0 %v6973
    %7701 = vmatpush2.bf16.msra.mxu0 %v6972
    %7702 = vmatprep.subr.bf16.mxu0 %v6965
    %7703 = vmatpush2.bf16.msra.mxu0 %v6964
    %7704 = vmatprep.subr.bf16.mxu0 %v6957
    %7705 = vmatpush2.bf16.msra.mxu0 %v6956
    %7706 = vmatprep.subr.bf16.mxu0 %v6949
    %7707 = vmatpush2.bf16.msra.mxu0 %v6948
    %7708 = vmatprep.subr.bf16.mxu0 %v6941
    %7709 = vmatpush2.bf16.msra.mxu0 %v6940
    %7710 = vmatprep.mubr.bf16.mxu0 %v5591
    %7711 = vmatmul.mubr.bf16.gmra.mxu0 %v5590
    %v7712 = vpop.f32.mrf.mxu0
    %v7713 = vadd.f32 %v7672, %v7712
    %v7714 = vpop.f32.mrf.mxu0
    %v7715 = vadd.f32 %v7674, %v7714
    %v7716 = vpop.f32.mrf.mxu0
    %v7717 = vpop.f32.mrf.mxu0
    %7718 = vdwg.mxu0
    %7719 = vmatprep.subr.bf16.mxu0 %v7061
    %7720 = vmatpush1.bf16.msra.mxu0 %v7060
    %7721 = vmatprep.subr.bf16.mxu0 %v7053
    %7722 = vmatpush1.bf16.msra.mxu0 %v7052
    %7723 = vmatprep.subr.bf16.mxu0 %v7045
    %7724 = vmatpush1.bf16.msra.mxu0 %v7044
    %7725 = vmatprep.subr.bf16.mxu0 %v7037
    %7726 = vmatpush1.bf16.msra.mxu0 %v7036
    %7727 = vmatprep.subr.bf16.mxu0 %v7029
    %7728 = vmatpush1.bf16.msra.mxu0 %v7028
    %7729 = vmatprep.subr.bf16.mxu0 %v7021
    %7730 = vmatpush1.bf16.msra.mxu0 %v7020
    %7731 = vmatprep.subr.bf16.mxu0 %v7013
    %7732 = vmatpush1.bf16.msra.mxu0 %v7012
    %7733 = vmatprep.subr.bf16.mxu0 %v7005
    %7734 = vmatpush1.bf16.msra.mxu0 %v7004
    %7735 = vmatprep.subr.bf16.mxu0 %v7125
    %7736 = vmatpush2.bf16.msra.mxu0 %v7124
    %7737 = vmatprep.subr.bf16.mxu0 %v7117
    %7738 = vmatpush2.bf16.msra.mxu0 %v7116
    %7739 = vmatprep.subr.bf16.mxu0 %v7109
    %7740 = vmatpush2.bf16.msra.mxu0 %v7108
    %7741 = vmatprep.subr.bf16.mxu0 %v7101
    %7742 = vmatpush2.bf16.msra.mxu0 %v7100
    %7743 = vmatprep.subr.bf16.mxu0 %v7093
    %7744 = vmatpush2.bf16.msra.mxu0 %v7092
    %7745 = vmatprep.subr.bf16.mxu0 %v7085
    %7746 = vmatpush2.bf16.msra.mxu0 %v7084
    %7747 = vmatprep.subr.bf16.mxu0 %v7077
    %7748 = vmatpush2.bf16.msra.mxu0 %v7076
    %7749 = vmatprep.subr.bf16.mxu0 %v7069
    %7750 = vmatpush2.bf16.msra.mxu0 %v7068
    %7751 = vmatprep.mubr.bf16.mxu0 %v5593
    %7752 = vmatmul.mubr.bf16.gmra.mxu0 %v5592
    %v7753 = vpop.f32.mrf.mxu0
    %v7754 = vadd.f32 %v7713, %v7753
    %v7755 = vpop.f32.mrf.mxu0
    %v7756 = vadd.f32 %v7715, %v7755
    %v7757 = vpop.f32.mrf.mxu0
    %v7758 = vpop.f32.mrf.mxu0
    %7759 = vdwg.mxu0
    %7760 = vmatprep.subr.bf16.mxu0 %v6807
    %7761 = vmatpush1.bf16.msra.mxu0 %v6806
    %7762 = vmatprep.subr.bf16.mxu0 %v6799
    %7763 = vmatpush1.bf16.msra.mxu0 %v6798
    %7764 = vmatprep.subr.bf16.mxu0 %v6791
    %7765 = vmatpush1.bf16.msra.mxu0 %v6790
    %7766 = vmatprep.subr.bf16.mxu0 %v6783
    %7767 = vmatpush1.bf16.msra.mxu0 %v6782
    %7768 = vmatprep.subr.bf16.mxu0 %v6775
    %7769 = vmatpush1.bf16.msra.mxu0 %v6774
    %7770 = vmatprep.subr.bf16.mxu0 %v6767
    %7771 = vmatpush1.bf16.msra.mxu0 %v6766
    %7772 = vmatprep.subr.bf16.mxu0 %v6759
    %7773 = vmatpush1.bf16.msra.mxu0 %v6758
    %7774 = vmatprep.subr.bf16.mxu0 %v6751
    %7775 = vmatpush1.bf16.msra.mxu0 %v6750
    %7776 = vmatprep.subr.bf16.mxu0 %v6871
    %7777 = vmatpush2.bf16.msra.mxu0 %v6870
    %7778 = vmatprep.subr.bf16.mxu0 %v6863
    %7779 = vmatpush2.bf16.msra.mxu0 %v6862
    %7780 = vmatprep.subr.bf16.mxu0 %v6855
    %7781 = vmatpush2.bf16.msra.mxu0 %v6854
    %7782 = vmatprep.subr.bf16.mxu0 %v6847
    %7783 = vmatpush2.bf16.msra.mxu0 %v6846
    %7784 = vmatprep.subr.bf16.mxu0 %v6839
    %7785 = vmatpush2.bf16.msra.mxu0 %v6838
    %7786 = vmatprep.subr.bf16.mxu0 %v6831
    %7787 = vmatpush2.bf16.msra.mxu0 %v6830
    %7788 = vmatprep.subr.bf16.mxu0 %v6823
    %7789 = vmatpush2.bf16.msra.mxu0 %v6822
    %7790 = vmatprep.subr.bf16.mxu0 %v6815
    %7791 = vmatpush2.bf16.msra.mxu0 %v6814
    %7792 = vmatprep.mubr.bf16.mxu0 %v5589
    %7793 = vmatmul.mubr.bf16.gmra.mxu0 %v5588
    %v7794 = vpop.f32.mrf.mxu0
    %v7795 = vadd.f32 0.0, %v7794
    %v7796 = vpop.f32.mrf.mxu0
    %v7797 = vadd.f32 0.0, %v7796
    %v7798 = vpop.f32.mrf.mxu0
    %v7799 = vpop.f32.mrf.mxu0
    %7800 = vdwg.mxu0
    %7801 = vmatprep.subr.bf16.mxu0 %v6935
    %7802 = vmatpush1.bf16.msra.mxu0 %v6934
    %7803 = vmatprep.subr.bf16.mxu0 %v6927
    %7804 = vmatpush1.bf16.msra.mxu0 %v6926
    %7805 = vmatprep.subr.bf16.mxu0 %v6919
    %7806 = vmatpush1.bf16.msra.mxu0 %v6918
    %7807 = vmatprep.subr.bf16.mxu0 %v6911
    %7808 = vmatpush1.bf16.msra.mxu0 %v6910
    %7809 = vmatprep.subr.bf16.mxu0 %v6903
    %7810 = vmatpush1.bf16.msra.mxu0 %v6902
    %7811 = vmatprep.subr.bf16.mxu0 %v6895
    %7812 = vmatpush1.bf16.msra.mxu0 %v6894
    %7813 = vmatprep.subr.bf16.mxu0 %v6887
    %7814 = vmatpush1.bf16.msra.mxu0 %v6886
    %7815 = vmatprep.subr.bf16.mxu0 %v6879
    %7816 = vmatpush1.bf16.msra.mxu0 %v6878
    %7817 = vmatprep.subr.bf16.mxu0 %v6999
    %7818 = vmatpush2.bf16.msra.mxu0 %v6998
    %7819 = vmatprep.subr.bf16.mxu0 %v6991
    %7820 = vmatpush2.bf16.msra.mxu0 %v6990
    %7821 = vmatprep.subr.bf16.mxu0 %v6983
    %7822 = vmatpush2.bf16.msra.mxu0 %v6982
    %7823 = vmatprep.subr.bf16.mxu0 %v6975
    %7824 = vmatpush2.bf16.msra.mxu0 %v6974
    %7825 = vmatprep.subr.bf16.mxu0 %v6967
    %7826 = vmatpush2.bf16.msra.mxu0 %v6966
    %7827 = vmatprep.subr.bf16.mxu0 %v6959
    %7828 = vmatpush2.bf16.msra.mxu0 %v6958
    %7829 = vmatprep.subr.bf16.mxu0 %v6951
    %7830 = vmatpush2.bf16.msra.mxu0 %v6950
    %7831 = vmatprep.subr.bf16.mxu0 %v6943
    %7832 = vmatpush2.bf16.msra.mxu0 %v6942
    %7833 = vmatprep.mubr.bf16.mxu0 %v5591
    %7834 = vmatmul.mubr.bf16.gmra.mxu0 %v5590
    %v7835 = vpop.f32.mrf.mxu0
    %v7836 = vadd.f32 %v7795, %v7835
    %v7837 = vpop.f32.mrf.mxu0
    %v7838 = vadd.f32 %v7797, %v7837
    %v7839 = vpop.f32.mrf.mxu0
    %v7840 = vpop.f32.mrf.mxu0
    %7841 = vdwg.mxu0
    %7842 = vmatprep.subr.bf16.mxu0 %v7063
    %7843 = vmatpush1.bf16.msra.mxu0 %v7062
    %7844 = vmatprep.subr.bf16.mxu0 %v7055
    %7845 = vmatpush1.bf16.msra.mxu0 %v7054
    %7846 = vmatprep.subr.bf16.mxu0 %v7047
    %7847 = vmatpush1.bf16.msra.mxu0 %v7046
    %7848 = vmatprep.subr.bf16.mxu0 %v7039
    %7849 = vmatpush1.bf16.msra.mxu0 %v7038
    %7850 = vmatprep.subr.bf16.mxu0 %v7031
    %7851 = vmatpush1.bf16.msra.mxu0 %v7030
    %7852 = vmatprep.subr.bf16.mxu0 %v7023
    %7853 = vmatpush1.bf16.msra.mxu0 %v7022
    %7854 = vmatprep.subr.bf16.mxu0 %v7015
    %7855 = vmatpush1.bf16.msra.mxu0 %v7014
    %7856 = vmatprep.subr.bf16.mxu0 %v7007
    %7857 = vmatpush1.bf16.msra.mxu0 %v7006
    %7858 = vmatprep.subr.bf16.mxu0 %v7127
    %7859 = vmatpush2.bf16.msra.mxu0 %v7126
    %7860 = vmatprep.subr.bf16.mxu0 %v7119
    %7861 = vmatpush2.bf16.msra.mxu0 %v7118
    %7862 = vmatprep.subr.bf16.mxu0 %v7111
    %7863 = vmatpush2.bf16.msra.mxu0 %v7110
    %7864 = vmatprep.subr.bf16.mxu0 %v7103
    %7865 = vmatpush2.bf16.msra.mxu0 %v7102
    %7866 = vmatprep.subr.bf16.mxu0 %v7095
    %7867 = vmatpush2.bf16.msra.mxu0 %v7094
    %7868 = vmatprep.subr.bf16.mxu0 %v7087
    %7869 = vmatpush2.bf16.msra.mxu0 %v7086
    %7870 = vmatprep.subr.bf16.mxu0 %v7079
    %7871 = vmatpush2.bf16.msra.mxu0 %v7078
    %7872 = vmatprep.subr.bf16.mxu0 %v7071
    %7873 = vmatpush2.bf16.msra.mxu0 %v7070
    %7874 = vmatprep.mubr.bf16.mxu0 %v5593
    %7875 = vmatmul.mubr.bf16.gmra.mxu0 %v5592
    %v7876 = vpop.f32.mrf.mxu0
    %v7877 = vadd.f32 %v7836, %v7876
    %v7878 = vpop.f32.mrf.mxu0
    %v7879 = vadd.f32 %v7838, %v7878
    %v7880 = vpop.f32.mrf.mxu0
    %v7881 = vpop.f32.mrf.mxu0
    %7882 = vdwg.mxu0
    %7883 = vmatprep.subr.bf16.mxu0 %v6809
    %7884 = vmatpush1.bf16.msra.mxu0 %v6808
    %7885 = vmatprep.subr.bf16.mxu0 %v6801
    %7886 = vmatpush1.bf16.msra.mxu0 %v6800
    %7887 = vmatprep.subr.bf16.mxu0 %v6793
    %7888 = vmatpush1.bf16.msra.mxu0 %v6792
    %7889 = vmatprep.subr.bf16.mxu0 %v6785
    %7890 = vmatpush1.bf16.msra.mxu0 %v6784
    %7891 = vmatprep.subr.bf16.mxu0 %v6777
    %7892 = vmatpush1.bf16.msra.mxu0 %v6776
    %7893 = vmatprep.subr.bf16.mxu0 %v6769
    %7894 = vmatpush1.bf16.msra.mxu0 %v6768
    %7895 = vmatprep.subr.bf16.mxu0 %v6761
    %7896 = vmatpush1.bf16.msra.mxu0 %v6760
    %7897 = vmatprep.subr.bf16.mxu0 %v6753
    %7898 = vmatpush1.bf16.msra.mxu0 %v6752
    %7899 = vmatprep.subr.bf16.mxu0 %v6873
    %7900 = vmatpush2.bf16.msra.mxu0 %v6872
    %7901 = vmatprep.subr.bf16.mxu0 %v6865
    %7902 = vmatpush2.bf16.msra.mxu0 %v6864
    %7903 = vmatprep.subr.bf16.mxu0 %v6857
    %7904 = vmatpush2.bf16.msra.mxu0 %v6856
    %7905 = vmatprep.subr.bf16.mxu0 %v6849
    %7906 = vmatpush2.bf16.msra.mxu0 %v6848
    %7907 = vmatprep.subr.bf16.mxu0 %v6841
    %7908 = vmatpush2.bf16.msra.mxu0 %v6840
    %7909 = vmatprep.subr.bf16.mxu0 %v6833
    %7910 = vmatpush2.bf16.msra.mxu0 %v6832
    %7911 = vmatprep.subr.bf16.mxu0 %v6825
    %7912 = vmatpush2.bf16.msra.mxu0 %v6824
    %7913 = vmatprep.subr.bf16.mxu0 %v6817
    %7914 = vmatpush2.bf16.msra.mxu0 %v6816
    %7915 = vmatprep.mubr.bf16.mxu0 %v5589
    %7916 = vmatmul.mubr.bf16.gmra.mxu0 %v5588
    %v7917 = vpop.f32.mrf.mxu0
    %v7918 = vadd.f32 0.0, %v7917
    %v7919 = vpop.f32.mrf.mxu0
    %v7920 = vadd.f32 0.0, %v7919
    %v7921 = vpop.f32.mrf.mxu0
    %v7922 = vpop.f32.mrf.mxu0
    %7923 = vdwg.mxu0
    %7924 = vmatprep.subr.bf16.mxu0 %v6937
    %7925 = vmatpush1.bf16.msra.mxu0 %v6936
    %7926 = vmatprep.subr.bf16.mxu0 %v6929
    %7927 = vmatpush1.bf16.msra.mxu0 %v6928
    %7928 = vmatprep.subr.bf16.mxu0 %v6921
    %7929 = vmatpush1.bf16.msra.mxu0 %v6920
    %7930 = vmatprep.subr.bf16.mxu0 %v6913
    %7931 = vmatpush1.bf16.msra.mxu0 %v6912
    %7932 = vmatprep.subr.bf16.mxu0 %v6905
    %7933 = vmatpush1.bf16.msra.mxu0 %v6904
    %7934 = vmatprep.subr.bf16.mxu0 %v6897
    %7935 = vmatpush1.bf16.msra.mxu0 %v6896
    %7936 = vmatprep.subr.bf16.mxu0 %v6889
    %7937 = vmatpush1.bf16.msra.mxu0 %v6888
    %7938 = vmatprep.subr.bf16.mxu0 %v6881
    %7939 = vmatpush1.bf16.msra.mxu0 %v6880
    %7940 = vmatprep.subr.bf16.mxu0 %v7001
    %7941 = vmatpush2.bf16.msra.mxu0 %v7000
    %7942 = vmatprep.subr.bf16.mxu0 %v6993
    %7943 = vmatpush2.bf16.msra.mxu0 %v6992
    %7944 = vmatprep.subr.bf16.mxu0 %v6985
    %7945 = vmatpush2.bf16.msra.mxu0 %v6984
    %7946 = vmatprep.subr.bf16.mxu0 %v6977
    %7947 = vmatpush2.bf16.msra.mxu0 %v6976
    %7948 = vmatprep.subr.bf16.mxu0 %v6969
    %7949 = vmatpush2.bf16.msra.mxu0 %v6968
    %7950 = vmatprep.subr.bf16.mxu0 %v6961
    %7951 = vmatpush2.bf16.msra.mxu0 %v6960
    %7952 = vmatprep.subr.bf16.mxu0 %v6953
    %7953 = vmatpush2.bf16.msra.mxu0 %v6952
    %7954 = vmatprep.subr.bf16.mxu0 %v6945
    %7955 = vmatpush2.bf16.msra.mxu0 %v6944
    %7956 = vmatprep.mubr.bf16.mxu0 %v5591
    %7957 = vmatmul.mubr.bf16.gmra.mxu0 %v5590
    %v7958 = vpop.f32.mrf.mxu0
    %v7959 = vadd.f32 %v7918, %v7958
    %v7960 = vpop.f32.mrf.mxu0
    %v7961 = vadd.f32 %v7920, %v7960
    %v7962 = vpop.f32.mrf.mxu0
    %v7963 = vpop.f32.mrf.mxu0
    %7964 = vdwg.mxu0
    %7965 = vmatprep.subr.bf16.mxu0 %v7065
    %7966 = vmatpush1.bf16.msra.mxu0 %v7064
    %7967 = vmatprep.subr.bf16.mxu0 %v7057
    %7968 = vmatpush1.bf16.msra.mxu0 %v7056
    %7969 = vmatprep.subr.bf16.mxu0 %v7049
    %7970 = vmatpush1.bf16.msra.mxu0 %v7048
    %7971 = vmatprep.subr.bf16.mxu0 %v7041
    %7972 = vmatpush1.bf16.msra.mxu0 %v7040
    %7973 = vmatprep.subr.bf16.mxu0 %v7033
    %7974 = vmatpush1.bf16.msra.mxu0 %v7032
    %7975 = vmatprep.subr.bf16.mxu0 %v7025
    %7976 = vmatpush1.bf16.msra.mxu0 %v7024
    %7977 = vmatprep.subr.bf16.mxu0 %v7017
    %7978 = vmatpush1.bf16.msra.mxu0 %v7016
    %7979 = vmatprep.subr.bf16.mxu0 %v7009
    %7980 = vmatpush1.bf16.msra.mxu0 %v7008
    %7981 = vmatprep.subr.bf16.mxu0 %v7129
    %7982 = vmatpush2.bf16.msra.mxu0 %v7128
    %7983 = vmatprep.subr.bf16.mxu0 %v7121
    %7984 = vmatpush2.bf16.msra.mxu0 %v7120
    %7985 = vmatprep.subr.bf16.mxu0 %v7113
    %7986 = vmatpush2.bf16.msra.mxu0 %v7112
    %7987 = vmatprep.subr.bf16.mxu0 %v7105
    %7988 = vmatpush2.bf16.msra.mxu0 %v7104
    %7989 = vmatprep.subr.bf16.mxu0 %v7097
    %7990 = vmatpush2.bf16.msra.mxu0 %v7096
    %7991 = vmatprep.subr.bf16.mxu0 %v7089
    %7992 = vmatpush2.bf16.msra.mxu0 %v7088
    %7993 = vmatprep.subr.bf16.mxu0 %v7081
    %7994 = vmatpush2.bf16.msra.mxu0 %v7080
    %7995 = vmatprep.subr.bf16.mxu0 %v7073
    %7996 = vmatpush2.bf16.msra.mxu0 %v7072
    %7997 = vmatprep.mubr.bf16.mxu0 %v5593
    %7998 = vmatmul.mubr.bf16.gmra.mxu0 %v5592
    %v7999 = vpop.f32.mrf.mxu0
    %v8000 = vadd.f32 %v7959, %v7999
    %v8001 = vpop.f32.mrf.mxu0
    %v8002 = vadd.f32 %v7961, %v8001
    %v8003 = vpop.f32.mrf.mxu0
    %v8004 = vpop.f32.mrf.mxu0
    %8005 = vdwg.mxu0
    %v8006 = vld [vmem:[#allocation54] sm:$0xf]
    %v8007 = vld [vmem:[#allocation56] sm:$0xf]
    %v8008 = vsel %vm5481, %v7631, 0.0
    %v8009 = vrot.slane %v8008, 4
    %v8010 = vadd.f32 %v8008, %v8009
    %v8011 = vrot.slane %v8010, 2
    %v8012 = vadd.f32 %v8010, %v8011
    %v8013 = vrot.slane %v8012, 1
    %v8014 = vadd.f32 %v8012, %v8013
    %v8015 = vsel %vm5481, %v7633, 0.0
    %v8016 = vrot.slane %v8015, 4
    %v8017 = vadd.f32 %v8015, %v8016
    %v8018 = vrot.slane %v8017, 2
    %v8019 = vadd.f32 %v8017, %v8018
    %v8020 = vrot.slane %v8019, 1
    %v8021 = vadd.f32 %v8019, %v8020
    %v8022 = vsel %vm5481, %v7754, 0.0
    %v8023 = vrot.slane %v8022, 4
    %v8024 = vadd.f32 %v8022, %v8023
    %v8025 = vrot.slane %v8024, 2
    %v8026 = vadd.f32 %v8024, %v8025
    %v8027 = vrot.slane %v8026, 1
    %v8028 = vadd.f32 %v8026, %v8027
    %v8029 = vsel %vm5481, %v7756, 0.0
    %v8030 = vrot.slane %v8029, 4
    %v8031 = vadd.f32 %v8029, %v8030
    %v8032 = vrot.slane %v8031, 2
    %v8033 = vadd.f32 %v8031, %v8032
    %v8034 = vrot.slane %v8033, 1
    %v8035 = vadd.f32 %v8033, %v8034
    %v8036 = vmul.f32 %v7631, %v7631
    %v8037 = vmul.f32 %v7633, %v7633
    %v8038 = vmul.f32 %v7754, %v7754
    %v8039 = vmul.f32 %v7756, %v7756
    %v8040 = vsel %vm5481, %v8036, 0.0
    %v8041 = vrot.slane %v8040, 4
    %v8042 = vadd.f32 %v8040, %v8041
    %v8043 = vrot.slane %v8042, 2
    %v8044 = vadd.f32 %v8042, %v8043
    %v8045 = vrot.slane %v8044, 1
    %v8046 = vadd.f32 %v8044, %v8045
    %v8047 = vsel %vm5481, %v8037, 0.0
    %v8048 = vrot.slane %v8047, 4
    %v8049 = vadd.f32 %v8047, %v8048
    %v8050 = vrot.slane %v8049, 2
    %v8051 = vadd.f32 %v8049, %v8050
    %v8052 = vrot.slane %v8051, 1
    %v8053 = vadd.f32 %v8051, %v8052
    %v8054 = vsel %vm5481, %v8038, 0.0
    %v8055 = vrot.slane %v8054, 4
    %v8056 = vadd.f32 %v8054, %v8055
    %v8057 = vrot.slane %v8056, 2
    %v8058 = vadd.f32 %v8056, %v8057
    %v8059 = vrot.slane %v8058, 1
    %v8060 = vadd.f32 %v8058, %v8059
    %v8061 = vsel %vm5481, %v8039, 0.0
    %v8062 = vrot.slane %v8061, 4
    %v8063 = vadd.f32 %v8061, %v8062
    %v8064 = vrot.slane %v8063, 2
    %v8065 = vadd.f32 %v8063, %v8064
    %v8066 = vrot.slane %v8065, 1
    %v8067 = vadd.f32 %v8065, %v8066
    %v8068 = vmul.f32 %v8014, 0.25
    %v8069 = vmul.f32 %v8021, 0.25
    %v8070 = vmul.f32 %v8028, 0.25
    %v8071 = vmul.f32 %v8035, 0.25
    %v8072 = vmul.f32 %v8046, 0.25
    %v8073 = vmul.f32 %v8053, 0.25
    %v8074 = vmul.f32 %v8060, 0.25
    %v8075 = vmul.f32 %v8067, 0.25
    %v8076 = vmul.f32 %v8068, %v8068
    %v8077 = vmul.f32 %v8069, %v8069
    %v8078 = vmul.f32 %v8070, %v8070
    %v8079 = vmul.f32 %v8071, %v8071
    %v8080 = vsub.f32 %v8072, %v8076
    %v8081 = vsub.f32 %v8073, %v8077
    %v8082 = vsub.f32 %v8074, %v8078
    %v8083 = vsub.f32 %v8075, %v8079
    %v8084 = vadd.f32 %v8080, 1e-05
    %v8085 = vadd.f32 %v8081, 1e-05
    %v8086 = vadd.f32 %v8082, 1e-05
    %v8087 = vadd.f32 %v8083, 1e-05
    %v8088 = vrsqrt.pop %v8084
    %v8089 = vrsqrt.pop %v8085
    %v8090 = vrsqrt.pop %v8086
    %v8091 = vrsqrt.pop %v8087
    %v8096 = vcombine.low %v8088, %v8089
    %v8097 = vcombine.low %v8090, %v8091
    %v8099 = vunpack.c.l.s4 1966171168
    %v8100 = vunpack.c.0.s8 %v8099
    %v8101 = vlaneseq
    %v8102 = vshrl.u32 %v8101, 7
    %v8103 = vsub.s32 %v8100, %v8102
    %v8104 = vrot.slane %v8096, %v8103
    %v8106 = vunpack.c.l.s4 1966171168
    %v8107 = vunpack.c.0.s8 %v8106
    %v8108 = vlaneseq
    %v8109 = vshrl.u32 %v8108, 7
    %v8110 = vsub.s32 %v8107, %v8109
    %v8111 = vrot.slane %v8097, %v8110
    %v8112 = vcombine.low %v8104, %v8111
    %v8114 = vunpack.c.l.s4 1966171168
    %v8115 = vunpack.c.0.s8 %v8114
    %v8116 = vlaneseq
    %v8117 = vshrl.u32 %v8116, 7
    %v8118 = vsub.s32 %v8115, %v8117
    %v8119 = vrot.slane %v8112, %v8118
    %v8121 = vmul.f32 %v8006, %v8119
    %v8123 = vlaneseq
    %v8124 = vshrl.u32 %v8123, 7
    %v8125 = vsub.s32 0, %v8124
    %v8126 = vrot.slane %v8121, %v8125
    %v8127 = vlaneseq
    %v8128 = vshrl.u32 %v8127, 7
    %v8129 = vsub.s32 1, %v8128
    %v8130 = vrot.slane %v8121, %v8129
    %v8131 = vlaneseq
    %v8132 = vshrl.u32 %v8131, 7
    %v8133 = vsub.s32 2, %v8132
    %v8134 = vrot.slane %v8121, %v8133
    %v8135 = vlaneseq
    %v8136 = vshrl.u32 %v8135, 7
    %v8137 = vsub.s32 3, %v8136
    %v8138 = vrot.slane %v8121, %v8137
    %v8143 = vmul.f32 %v7631, %v8126
    %v8144 = vmul.f32 %v7633, %v8130
    %v8145 = vmul.f32 %v7754, %v8134
    %v8146 = vmul.f32 %v7756, %v8138
    %v8147 = vmul.f32 %v8068, %v8126
    %v8148 = vmul.f32 %v8069, %v8130
    %v8149 = vmul.f32 %v8070, %v8134
    %v8150 = vmul.f32 %v8071, %v8138
    %v8155 = vcombine.low %v8147, %v8148
    %v8156 = vcombine.low %v8149, %v8150
    %v8158 = vunpack.c.l.s4 1966171168
    %v8159 = vunpack.c.0.s8 %v8158
    %v8160 = vlaneseq
    %v8161 = vshrl.u32 %v8160, 7
    %v8162 = vsub.s32 %v8159, %v8161
    %v8163 = vrot.slane %v8155, %v8162
    %v8165 = vunpack.c.l.s4 1966171168
    %v8166 = vunpack.c.0.s8 %v8165
    %v8167 = vlaneseq
    %v8168 = vshrl.u32 %v8167, 7
    %v8169 = vsub.s32 %v8166, %v8168
    %v8170 = vrot.slane %v8156, %v8169
    %v8171 = vcombine.low %v8163, %v8170
    %v8173 = vunpack.c.l.s4 1966171168
    %v8174 = vunpack.c.0.s8 %v8173
    %v8175 = vlaneseq
    %v8176 = vshrl.u32 %v8175, 7
    %v8177 = vsub.s32 %v8174, %v8176
    %v8178 = vrot.slane %v8171, %v8177
    %v8180 = vsub.f32 %v8007, %v8178
    %v8182 = vlaneseq
    %v8183 = vshrl.u32 %v8182, 7
    %v8184 = vsub.s32 0, %v8183
    %v8185 = vrot.slane %v8180, %v8184
    %v8186 = vlaneseq
    %v8187 = vshrl.u32 %v8186, 7
    %v8188 = vsub.s32 1, %v8187
    %v8189 = vrot.slane %v8180, %v8188
    %v8190 = vlaneseq
    %v8191 = vshrl.u32 %v8190, 7
    %v8192 = vsub.s32 2, %v8191
    %v8193 = vrot.slane %v8180, %v8192
    %v8194 = vlaneseq
    %v8195 = vshrl.u32 %v8194, 7
    %v8196 = vsub.s32 3, %v8195
    %v8197 = vrot.slane %v8180, %v8196
    %v8202 = vadd.f32 %v8143, %v8185
    %v8203 = vadd.f32 %v8144, %v8189
    %v8204 = vadd.f32 %v8145, %v8193
    %v8205 = vadd.f32 %v8146, %v8197
    %v8206 = vmax.f32 %v8202, 0.0
    %v8207 = vmax.f32 %v8203, 0.0
    %v8208 = vmax.f32 %v8204, 0.0
    %v8209 = vmax.f32 %v8205, 0.0
    %v8210 = vld [vmem:[#allocation57] sm:$0xf]
    %v8211 = vld [vmem:[#allocation59] sm:$0xf]
    %v8212 = vsel %vm5481, %v7877, 0.0
    %v8213 = vrot.slane %v8212, 4
    %v8214 = vadd.f32 %v8212, %v8213
    %v8215 = vrot.slane %v8214, 2
    %v8216 = vadd.f32 %v8214, %v8215
    %v8217 = vrot.slane %v8216, 1
    %v8218 = vadd.f32 %v8216, %v8217
    %v8219 = vsel %vm5481, %v7879, 0.0
    %v8220 = vrot.slane %v8219, 4
    %v8221 = vadd.f32 %v8219, %v8220
    %v8222 = vrot.slane %v8221, 2
    %v8223 = vadd.f32 %v8221, %v8222
    %v8224 = vrot.slane %v8223, 1
    %v8225 = vadd.f32 %v8223, %v8224
    %v8226 = vsel %vm5481, %v8000, 0.0
    %v8227 = vrot.slane %v8226, 4
    %v8228 = vadd.f32 %v8226, %v8227
    %v8229 = vrot.slane %v8228, 2
    %v8230 = vadd.f32 %v8228, %v8229
    %v8231 = vrot.slane %v8230, 1
    %v8232 = vadd.f32 %v8230, %v8231
    %v8233 = vsel %vm5481, %v8002, 0.0
    %v8234 = vrot.slane %v8233, 4
    %v8235 = vadd.f32 %v8233, %v8234
    %v8236 = vrot.slane %v8235, 2
    %v8237 = vadd.f32 %v8235, %v8236
    %v8238 = vrot.slane %v8237, 1
    %v8239 = vadd.f32 %v8237, %v8238
    %v8240 = vmul.f32 %v7877, %v7877
    %v8241 = vmul.f32 %v7879, %v7879
    %v8242 = vmul.f32 %v8000, %v8000
    %v8243 = vmul.f32 %v8002, %v8002
    %v8244 = vsel %vm5481, %v8240, 0.0
    %v8245 = vrot.slane %v8244, 4
    %v8246 = vadd.f32 %v8244, %v8245
    %v8247 = vrot.slane %v8246, 2
    %v8248 = vadd.f32 %v8246, %v8247
    %v8249 = vrot.slane %v8248, 1
    %v8250 = vadd.f32 %v8248, %v8249
    %v8251 = vsel %vm5481, %v8241, 0.0
    %v8252 = vrot.slane %v8251, 4
    %v8253 = vadd.f32 %v8251, %v8252
    %v8254 = vrot.slane %v8253, 2
    %v8255 = vadd.f32 %v8253, %v8254
    %v8256 = vrot.slane %v8255, 1
    %v8257 = vadd.f32 %v8255, %v8256
    %v8258 = vsel %vm5481, %v8242, 0.0
    %v8259 = vrot.slane %v8258, 4
    %v8260 = vadd.f32 %v8258, %v8259
    %v8261 = vrot.slane %v8260, 2
    %v8262 = vadd.f32 %v8260, %v8261
    %v8263 = vrot.slane %v8262, 1
    %v8264 = vadd.f32 %v8262, %v8263
    %v8265 = vsel %vm5481, %v8243, 0.0
    %v8266 = vrot.slane %v8265, 4
    %v8267 = vadd.f32 %v8265, %v8266
    %v8268 = vrot.slane %v8267, 2
    %v8269 = vadd.f32 %v8267, %v8268
    %v8270 = vrot.slane %v8269, 1
    %v8271 = vadd.f32 %v8269, %v8270
    %v8272 = vmul.f32 %v8218, 0.25
    %v8273 = vmul.f32 %v8225, 0.25
    %v8274 = vmul.f32 %v8232, 0.25
    %v8275 = vmul.f32 %v8239, 0.25
    %v8276 = vmul.f32 %v8250, 0.25
    %v8277 = vmul.f32 %v8257, 0.25
    %v8278 = vmul.f32 %v8264, 0.25
    %v8279 = vmul.f32 %v8271, 0.25
    %v8280 = vmul.f32 %v8272, %v8272
    %v8281 = vmul.f32 %v8273, %v8273
    %v8282 = vmul.f32 %v8274, %v8274
    %v8283 = vmul.f32 %v8275, %v8275
    %v8284 = vsub.f32 %v8276, %v8280
    %v8285 = vsub.f32 %v8277, %v8281
    %v8286 = vsub.f32 %v8278, %v8282
    %v8287 = vsub.f32 %v8279, %v8283
    %v8288 = vadd.f32 %v8284, 1e-05
    %v8289 = vadd.f32 %v8285, 1e-05
    %v8290 = vadd.f32 %v8286, 1e-05
    %v8291 = vadd.f32 %v8287, 1e-05
    %v8292 = vrsqrt.pop %v8288
    %v8293 = vrsqrt.pop %v8289
    %v8294 = vrsqrt.pop %v8290
    %v8295 = vrsqrt.pop %v8291
    %v8300 = vcombine.low %v8292, %v8293
    %v8301 = vcombine.low %v8294, %v8295
    %v8303 = vunpack.c.l.s4 1966171168
    %v8304 = vunpack.c.0.s8 %v8303
    %v8305 = vlaneseq
    %v8306 = vshrl.u32 %v8305, 7
    %v8307 = vsub.s32 %v8304, %v8306
    %v8308 = vrot.slane %v8300, %v8307
    %v8310 = vunpack.c.l.s4 1966171168
    %v8311 = vunpack.c.0.s8 %v8310
    %v8312 = vlaneseq
    %v8313 = vshrl.u32 %v8312, 7
    %v8314 = vsub.s32 %v8311, %v8313
    %v8315 = vrot.slane %v8301, %v8314
    %v8316 = vcombine.low %v8308, %v8315
    %v8318 = vunpack.c.l.s4 1966171168
    %v8319 = vunpack.c.0.s8 %v8318
    %v8320 = vlaneseq
    %v8321 = vshrl.u32 %v8320, 7
    %v8322 = vsub.s32 %v8319, %v8321
    %v8323 = vrot.slane %v8316, %v8322
    %v8325 = vmul.f32 %v8210, %v8323
    %v8327 = vlaneseq
    %v8328 = vshrl.u32 %v8327, 7
    %v8329 = vsub.s32 0, %v8328
    %v8330 = vrot.slane %v8325, %v8329
    %v8331 = vlaneseq
    %v8332 = vshrl.u32 %v8331, 7
    %v8333 = vsub.s32 1, %v8332
    %v8334 = vrot.slane %v8325, %v8333
    %v8335 = vlaneseq
    %v8336 = vshrl.u32 %v8335, 7
    %v8337 = vsub.s32 2, %v8336
    %v8338 = vrot.slane %v8325, %v8337
    %v8339 = vlaneseq
    %v8340 = vshrl.u32 %v8339, 7
    %v8341 = vsub.s32 3, %v8340
    %v8342 = vrot.slane %v8325, %v8341
    %v8347 = vmul.f32 %v7877, %v8330
    %v8348 = vmul.f32 %v7879, %v8334
    %v8349 = vmul.f32 %v8000, %v8338
    %v8350 = vmul.f32 %v8002, %v8342
    %v8351 = vmul.f32 %v8272, %v8330
    %v8352 = vmul.f32 %v8273, %v8334
    %v8353 = vmul.f32 %v8274, %v8338
    %v8354 = vmul.f32 %v8275, %v8342
    %v8359 = vcombine.low %v8351, %v8352
    %v8360 = vcombine.low %v8353, %v8354
    %v8362 = vunpack.c.l.s4 1966171168
    %v8363 = vunpack.c.0.s8 %v8362
    %v8364 = vlaneseq
    %v8365 = vshrl.u32 %v8364, 7
    %v8366 = vsub.s32 %v8363, %v8365
    %v8367 = vrot.slane %v8359, %v8366
    %v8369 = vunpack.c.l.s4 1966171168
    %v8370 = vunpack.c.0.s8 %v8369
    %v8371 = vlaneseq
    %v8372 = vshrl.u32 %v8371, 7
    %v8373 = vsub.s32 %v8370, %v8372
    %v8374 = vrot.slane %v8360, %v8373
    %v8375 = vcombine.low %v8367, %v8374
    %v8377 = vunpack.c.l.s4 1966171168
    %v8378 = vunpack.c.0.s8 %v8377
    %v8379 = vlaneseq
    %v8380 = vshrl.u32 %v8379, 7
    %v8381 = vsub.s32 %v8378, %v8380
    %v8382 = vrot.slane %v8375, %v8381
    %v8384 = vsub.f32 %v8211, %v8382
    %v8386 = vlaneseq
    %v8387 = vshrl.u32 %v8386, 7
    %v8388 = vsub.s32 0, %v8387
    %v8389 = vrot.slane %v8384, %v8388
    %v8390 = vlaneseq
    %v8391 = vshrl.u32 %v8390, 7
    %v8392 = vsub.s32 1, %v8391
    %v8393 = vrot.slane %v8384, %v8392
    %v8394 = vlaneseq
    %v8395 = vshrl.u32 %v8394, 7
    %v8396 = vsub.s32 2, %v8395
    %v8397 = vrot.slane %v8384, %v8396
    %v8398 = vlaneseq
    %v8399 = vshrl.u32 %v8398, 7
    %v8400 = vsub.s32 3, %v8399
    %v8401 = vrot.slane %v8384, %v8400
    %v8406 = vadd.f32 %v8347, %v8389
    %v8407 = vadd.f32 %v8348, %v8393
    %v8408 = vadd.f32 %v8349, %v8397
    %v8409 = vadd.f32 %v8350, %v8401
    %v8414 = vrot.slane %v8206, 7
    %v8415 = vrot.slane %v8207, 7
    %v8416 = vrot.slane %v8208, 7
    %v8417 = vrot.slane %v8209, 7
    %8422 = vst [vmem:[#allocation2] sm:$0x1e] %v8414
    %8423 = vst [vmem:[#allocation2 + $0x8] sm:$0x1e] %v8415
    %8424 = vst [vmem:[#allocation2 + $0x10] sm:$0x1e] %v8416
    %8425 = vst [vmem:[#allocation2 + $0x18] sm:$0x1e] %v8417
    %v8426 = vld [vmem:[#allocation2] sm:$0xf]
    %v8427 = vld [vmem:[#allocation2 + $0x8] sm:$0xf]
    %v8428 = vld [vmem:[#allocation2 + $0x10] sm:$0xf]
    %v8429 = vld [vmem:[#allocation2 + $0x18] sm:$0xf]
    %v8430 = vld [vmem:[#allocation2] sm:$0x3c]
    %v8431 = vld [vmem:[#allocation2 + $0x8] sm:$0x3c]
    %v8432 = vld [vmem:[#allocation2 + $0x10] sm:$0x3c]
    %v8433 = vld [vmem:[#allocation2 + $0x18] sm:$0x3c]
    %v8434 = vsel %vm5585, 0.0, %v8426
    %v8435 = vsel %vm5585, 0.0, %v8427
    %v8436 = vsel %vm5585, 0.0, %v8428
    %v8437 = vsel %vm5585, 0.0, %v8429
    %vm8438 = vcmp.eq.s32.totalorder %v5584, 1
    %v8443 = vrot.slane %v8430, 2
    %v8444 = vrot.slane %v8431, 2
    %v8445 = vrot.slane %v8432, 2
    %v8446 = vrot.slane %v8433, 2
    %v8451 = vsel %vm8438, 0.0, %v8443
    %v8452 = vsel %vm8438, 0.0, %v8444
    %v8453 = vsel %vm8438, 0.0, %v8445
    %v8454 = vsel %vm8438, 0.0, %v8446
    %v8455 = vpack.c.bf16 %v8434, %v8434
    %v8456 = vpack.c.bf16 %v8435, %v8435
    %v8457 = vpack.c.bf16 %v8436, %v8436
    %v8458 = vpack.c.bf16 %v8437, %v8437
    %v8459 = vpack.c.bf16 %v8206, %v8206
    %v8460 = vpack.c.bf16 %v8207, %v8207
    %v8461 = vpack.c.bf16 %v8208, %v8208
    %v8462 = vpack.c.bf16 %v8209, %v8209
    %v8463 = vpack.c.bf16 %v8451, %v8451
    %v8464 = vpack.c.bf16 %v8452, %v8452
    %v8465 = vpack.c.bf16 %v8453, %v8453
    %v8466 = vpack.c.bf16 %v8454, %v8454
    %v8851 = vunpack.c.l.b16 %v5091
    %v8852 = vunpack.c.h.b16 %v5091
    %v8853 = vunpack.c.l.b16 %v5092
    %v8854 = vunpack.c.h.b16 %v5092
    %v8855 = vunpack.c.l.b16 %v5093
    %v8856 = vunpack.c.h.b16 %v5093
    %v8857 = vunpack.c.l.b16 %v5094
    %v8858 = vunpack.c.h.b16 %v5094
    %v8859 = vunpack.c.l.b16 %v5095
    %v8860 = vunpack.c.h.b16 %v5095
    %v8861 = vunpack.c.l.b16 %v5096
    %v8862 = vunpack.c.h.b16 %v5096
    %v8863 = vunpack.c.l.b16 %v5097
    %v8864 = vunpack.c.h.b16 %v5097
    %v8865 = vunpack.c.l.b16 %v5098
    %v8866 = vunpack.c.h.b16 %v5098
    %v8867 = vunpack.c.l.b16 %v5099
    %v8868 = vunpack.c.h.b16 %v5099
    %v8869 = vunpack.c.l.b16 %v5100
    %v8870 = vunpack.c.h.b16 %v5100
    %v8871 = vunpack.c.l.b16 %v5101
    %v8872 = vunpack.c.h.b16 %v5101
    %v8873 = vunpack.c.l.b16 %v5102
    %v8874 = vunpack.c.h.b16 %v5102
    %v8875 = vunpack.c.l.b16 %v5103
    %v8876 = vunpack.c.h.b16 %v5103
    %v8877 = vunpack.c.l.b16 %v5104
    %v8878 = vunpack.c.h.b16 %v5104
    %v8879 = vunpack.c.l.b16 %v5105
    %v8880 = vunpack.c.h.b16 %v5105
    %v8881 = vunpack.c.l.b16 %v5106
    %v8882 = vunpack.c.h.b16 %v5106
    %v8883 = vunpack.c.l.b16 %v5107
    %v8884 = vunpack.c.h.b16 %v5107
    %v8885 = vunpack.c.l.b16 %v5108
    %v8886 = vunpack.c.h.b16 %v5108
    %v8887 = vunpack.c.l.b16 %v5109
    %v8888 = vunpack.c.h.b16 %v5109
    %v8889 = vunpack.c.l.b16 %v5110
    %v8890 = vunpack.c.h.b16 %v5110
    %v8891 = vunpack.c.l.b16 %v5111
    %v8892 = vunpack.c.h.b16 %v5111
    %v8893 = vunpack.c.l.b16 %v5112
    %v8894 = vunpack.c.h.b16 %v5112
    %v8895 = vunpack.c.l.b16 %v5113
    %v8896 = vunpack.c.h.b16 %v5113
    %v8897 = vunpack.c.l.b16 %v5114
    %v8898 = vunpack.c.h.b16 %v5114
    %v8899 = vunpack.c.l.b16 %v5115
    %v8900 = vunpack.c.h.b16 %v5115
    %v8901 = vunpack.c.l.b16 %v5116
    %v8902 = vunpack.c.h.b16 %v5116
    %v8903 = vunpack.c.l.b16 %v5117
    %v8904 = vunpack.c.h.b16 %v5117
    %v8905 = vunpack.c.l.b16 %v5118
    %v8906 = vunpack.c.h.b16 %v5118
    %v8907 = vunpack.c.l.b16 %v5119
    %v8908 = vunpack.c.h.b16 %v5119
    %v8909 = vunpack.c.l.b16 %v5120
    %v8910 = vunpack.c.h.b16 %v5120
    %v8911 = vunpack.c.l.b16 %v5121
    %v8912 = vunpack.c.h.b16 %v5121
    %v8913 = vunpack.c.l.b16 %v5122
    %v8914 = vunpack.c.h.b16 %v5122
    %v8915 = vunpack.c.l.b16 %v5123
    %v8916 = vunpack.c.h.b16 %v5123
    %v8917 = vunpack.c.l.b16 %v5124
    %v8918 = vunpack.c.h.b16 %v5124
    %v8919 = vunpack.c.l.b16 %v5125
    %v8920 = vunpack.c.h.b16 %v5125
    %v8921 = vunpack.c.l.b16 %v5126
    %v8922 = vunpack.c.h.b16 %v5126
    %v8923 = vunpack.c.l.b16 %v5127
    %v8924 = vunpack.c.h.b16 %v5127
    %v8925 = vunpack.c.l.b16 %v5128
    %v8926 = vunpack.c.h.b16 %v5128
    %v8927 = vunpack.c.l.b16 %v5129
    %v8928 = vunpack.c.h.b16 %v5129
    %v8929 = vunpack.c.l.b16 %v5130
    %v8930 = vunpack.c.h.b16 %v5130
    %v8931 = vunpack.c.l.b16 %v5131
    %v8932 = vunpack.c.h.b16 %v5131
    %v8933 = vunpack.c.l.b16 %v5132
    %v8934 = vunpack.c.h.b16 %v5132
    %v8935 = vunpack.c.l.b16 %v5133
    %v8936 = vunpack.c.h.b16 %v5133
    %v8937 = vunpack.c.l.b16 %v5134
    %v8938 = vunpack.c.h.b16 %v5134
    %v8939 = vunpack.c.l.b16 %v5135
    %v8940 = vunpack.c.h.b16 %v5135
    %v8941 = vunpack.c.l.b16 %v5136
    %v8942 = vunpack.c.h.b16 %v5136
    %v8943 = vunpack.c.l.b16 %v5137
    %v8944 = vunpack.c.h.b16 %v5137
    %v8945 = vunpack.c.l.b16 %v5138
    %v8946 = vunpack.c.h.b16 %v5138
    %v8947 = vunpack.c.l.b16 %v5139
    %v8948 = vunpack.c.h.b16 %v5139
    %v8949 = vunpack.c.l.b16 %v5140
    %v8950 = vunpack.c.h.b16 %v5140
    %v8951 = vunpack.c.l.b16 %v5141
    %v8952 = vunpack.c.h.b16 %v5141
    %v8953 = vunpack.c.l.b16 %v5142
    %v8954 = vunpack.c.h.b16 %v5142
    %v8955 = vunpack.c.l.b16 %v5143
    %v8956 = vunpack.c.h.b16 %v5143
    %v8957 = vunpack.c.l.b16 %v5144
    %v8958 = vunpack.c.h.b16 %v5144
    %v8959 = vunpack.c.l.b16 %v5145
    %v8960 = vunpack.c.h.b16 %v5145
    %v8961 = vunpack.c.l.b16 %v5146
    %v8962 = vunpack.c.h.b16 %v5146
    %v8963 = vunpack.c.l.b16 %v5147
    %v8964 = vunpack.c.h.b16 %v5147
    %v8965 = vunpack.c.l.b16 %v5148
    %v8966 = vunpack.c.h.b16 %v5148
    %v8967 = vunpack.c.l.b16 %v5149
    %v8968 = vunpack.c.h.b16 %v5149
    %v8969 = vunpack.c.l.b16 %v5150
    %v8970 = vunpack.c.h.b16 %v5150
    %v8971 = vunpack.c.l.b16 %v5151
    %v8972 = vunpack.c.h.b16 %v5151
    %v8973 = vunpack.c.l.b16 %v5152
    %v8974 = vunpack.c.h.b16 %v5152
    %v8975 = vunpack.c.l.b16 %v5153
    %v8976 = vunpack.c.h.b16 %v5153
    %v8977 = vunpack.c.l.b16 %v5154
    %v8978 = vunpack.c.h.b16 %v5154
    %v8979 = vunpack.c.l.b16 %v5155
    %v8980 = vunpack.c.h.b16 %v5155
    %v8981 = vunpack.c.l.b16 %v5156
    %v8982 = vunpack.c.h.b16 %v5156
    %v8983 = vunpack.c.l.b16 %v5157
    %v8984 = vunpack.c.h.b16 %v5157
    %v8985 = vunpack.c.l.b16 %v5158
    %v8986 = vunpack.c.h.b16 %v5158
    %v8987 = vunpack.c.l.b16 %v5159
    %v8988 = vunpack.c.h.b16 %v5159
    %v8989 = vunpack.c.l.b16 %v5160
    %v8990 = vunpack.c.h.b16 %v5160
    %v8991 = vunpack.c.l.b16 %v5161
    %v8992 = vunpack.c.h.b16 %v5161
    %v8993 = vunpack.c.l.b16 %v5162
    %v8994 = vunpack.c.h.b16 %v5162
    %v8995 = vunpack.c.l.b16 %v5163
    %v8996 = vunpack.c.h.b16 %v5163
    %v8997 = vunpack.c.l.b16 %v5164
    %v8998 = vunpack.c.h.b16 %v5164
    %v8999 = vunpack.c.l.b16 %v5165
    %v9000 = vunpack.c.h.b16 %v5165
    %v9001 = vunpack.c.l.b16 %v5166
    %v9002 = vunpack.c.h.b16 %v5166
    %v9003 = vunpack.c.l.b16 %v5167
    %v9004 = vunpack.c.h.b16 %v5167
    %v9005 = vunpack.c.l.b16 %v5168
    %v9006 = vunpack.c.h.b16 %v5168
    %v9007 = vunpack.c.l.b16 %v5169
    %v9008 = vunpack.c.h.b16 %v5169
    %v9009 = vunpack.c.l.b16 %v5170
    %v9010 = vunpack.c.h.b16 %v5170
    %v9011 = vunpack.c.l.b16 %v5171
    %v9012 = vunpack.c.h.b16 %v5171
    %v9013 = vunpack.c.l.b16 %v5172
    %v9014 = vunpack.c.h.b16 %v5172
    %v9015 = vunpack.c.l.b16 %v5173
    %v9016 = vunpack.c.h.b16 %v5173
    %v9017 = vunpack.c.l.b16 %v5174
    %v9018 = vunpack.c.h.b16 %v5174
    %v9019 = vunpack.c.l.b16 %v5175
    %v9020 = vunpack.c.h.b16 %v5175
    %v9021 = vunpack.c.l.b16 %v5176
    %v9022 = vunpack.c.h.b16 %v5176
    %v9023 = vunpack.c.l.b16 %v5177
    %v9024 = vunpack.c.h.b16 %v5177
    %v9025 = vunpack.c.l.b16 %v5178
    %v9026 = vunpack.c.h.b16 %v5178
    %v9027 = vunpack.c.l.b16 %v5179
    %v9028 = vunpack.c.h.b16 %v5179
    %v9029 = vunpack.c.l.b16 %v5180
    %v9030 = vunpack.c.h.b16 %v5180
    %v9031 = vunpack.c.l.b16 %v5181
    %v9032 = vunpack.c.h.b16 %v5181
    %v9033 = vunpack.c.l.b16 %v5182
    %v9034 = vunpack.c.h.b16 %v5182
    %v9035 = vunpack.c.l.b16 %v5183
    %v9036 = vunpack.c.h.b16 %v5183
    %v9037 = vunpack.c.l.b16 %v5184
    %v9038 = vunpack.c.h.b16 %v5184
    %v9039 = vunpack.c.l.b16 %v5185
    %v9040 = vunpack.c.h.b16 %v5185
    %v9041 = vunpack.c.l.b16 %v5186
    %v9042 = vunpack.c.h.b16 %v5186
    %v9043 = vunpack.c.l.b16 %v5187
    %v9044 = vunpack.c.h.b16 %v5187
    %v9045 = vunpack.c.l.b16 %v5188
    %v9046 = vunpack.c.h.b16 %v5188
    %v9047 = vunpack.c.l.b16 %v5189
    %v9048 = vunpack.c.h.b16 %v5189
    %v9049 = vunpack.c.l.b16 %v5190
    %v9050 = vunpack.c.h.b16 %v5190
    %v9051 = vunpack.c.l.b16 %v5191
    %v9052 = vunpack.c.h.b16 %v5191
    %v9053 = vunpack.c.l.b16 %v5192
    %v9054 = vunpack.c.h.b16 %v5192
    %v9055 = vunpack.c.l.b16 %v5193
    %v9056 = vunpack.c.h.b16 %v5193
    %v9057 = vunpack.c.l.b16 %v5194
    %v9058 = vunpack.c.h.b16 %v5194
    %v9059 = vunpack.c.l.b16 %v5195
    %v9060 = vunpack.c.h.b16 %v5195
    %v9061 = vunpack.c.l.b16 %v5196
    %v9062 = vunpack.c.h.b16 %v5196
    %v9063 = vunpack.c.l.b16 %v5197
    %v9064 = vunpack.c.h.b16 %v5197
    %v9065 = vunpack.c.l.b16 %v5198
    %v9066 = vunpack.c.h.b16 %v5198
    %v9067 = vunpack.c.l.b16 %v5199
    %v9068 = vunpack.c.h.b16 %v5199
    %v9069 = vunpack.c.l.b16 %v5200
    %v9070 = vunpack.c.h.b16 %v5200
    %v9071 = vunpack.c.l.b16 %v5201
    %v9072 = vunpack.c.h.b16 %v5201
    %v9073 = vunpack.c.l.b16 %v5202
    %v9074 = vunpack.c.h.b16 %v5202
    %v9075 = vunpack.c.l.b16 %v5203
    %v9076 = vunpack.c.h.b16 %v5203
    %v9077 = vunpack.c.l.b16 %v5204
    %v9078 = vunpack.c.h.b16 %v5204
    %v9079 = vunpack.c.l.b16 %v5205
    %v9080 = vunpack.c.h.b16 %v5205
    %v9081 = vunpack.c.l.b16 %v5206
    %v9082 = vunpack.c.h.b16 %v5206
    %v9083 = vunpack.c.l.b16 %v5207
    %v9084 = vunpack.c.h.b16 %v5207
    %v9085 = vunpack.c.l.b16 %v5208
    %v9086 = vunpack.c.h.b16 %v5208
    %v9087 = vunpack.c.l.b16 %v5209
    %v9088 = vunpack.c.h.b16 %v5209
    %v9089 = vunpack.c.l.b16 %v5210
    %v9090 = vunpack.c.h.b16 %v5210
    %v9091 = vunpack.c.l.b16 %v5211
    %v9092 = vunpack.c.h.b16 %v5211
    %v9093 = vunpack.c.l.b16 %v5212
    %v9094 = vunpack.c.h.b16 %v5212
    %v9095 = vunpack.c.l.b16 %v5213
    %v9096 = vunpack.c.h.b16 %v5213
    %v9097 = vunpack.c.l.b16 %v5214
    %v9098 = vunpack.c.h.b16 %v5214
    %v9099 = vunpack.c.l.b16 %v5215
    %v9100 = vunpack.c.h.b16 %v5215
    %v9101 = vunpack.c.l.b16 %v5216
    %v9102 = vunpack.c.h.b16 %v5216
    %v9103 = vunpack.c.l.b16 %v5217
    %v9104 = vunpack.c.h.b16 %v5217
    %v9105 = vunpack.c.l.b16 %v5218
    %v9106 = vunpack.c.h.b16 %v5218
    %v9107 = vunpack.c.l.b16 %v5219
    %v9108 = vunpack.c.h.b16 %v5219
    %v9109 = vunpack.c.l.b16 %v5220
    %v9110 = vunpack.c.h.b16 %v5220
    %v9111 = vunpack.c.l.b16 %v5221
    %v9112 = vunpack.c.h.b16 %v5221
    %v9113 = vunpack.c.l.b16 %v5222
    %v9114 = vunpack.c.h.b16 %v5222
    %v9115 = vunpack.c.l.b16 %v5223
    %v9116 = vunpack.c.h.b16 %v5223
    %v9117 = vunpack.c.l.b16 %v5224
    %v9118 = vunpack.c.h.b16 %v5224
    %v9119 = vunpack.c.l.b16 %v5225
    %v9120 = vunpack.c.h.b16 %v5225
    %v9121 = vunpack.c.l.b16 %v5226
    %v9122 = vunpack.c.h.b16 %v5226
    %v9123 = vunpack.c.l.b16 %v5227
    %v9124 = vunpack.c.h.b16 %v5227
    %v9125 = vunpack.c.l.b16 %v5228
    %v9126 = vunpack.c.h.b16 %v5228
    %v9127 = vunpack.c.l.b16 %v5229
    %v9128 = vunpack.c.h.b16 %v5229
    %v9129 = vunpack.c.l.b16 %v5230
    %v9130 = vunpack.c.h.b16 %v5230
    %v9131 = vunpack.c.l.b16 %v5231
    %v9132 = vunpack.c.h.b16 %v5231
    %v9133 = vunpack.c.l.b16 %v5232
    %v9134 = vunpack.c.h.b16 %v5232
    %v9135 = vunpack.c.l.b16 %v5233
    %v9136 = vunpack.c.h.b16 %v5233
    %v9137 = vunpack.c.l.b16 %v5234
    %v9138 = vunpack.c.h.b16 %v5234
    %v9139 = vunpack.c.l.b16 %v5235
    %v9140 = vunpack.c.h.b16 %v5235
    %v9141 = vunpack.c.l.b16 %v5236
    %v9142 = vunpack.c.h.b16 %v5236
    %v9143 = vunpack.c.l.b16 %v5237
    %v9144 = vunpack.c.h.b16 %v5237
    %v9145 = vunpack.c.l.b16 %v5238
    %v9146 = vunpack.c.h.b16 %v5238
    %v9147 = vunpack.c.l.b16 %v5239
    %v9148 = vunpack.c.h.b16 %v5239
    %v9149 = vunpack.c.l.b16 %v5240
    %v9150 = vunpack.c.h.b16 %v5240
    %v9151 = vunpack.c.l.b16 %v5241
    %v9152 = vunpack.c.h.b16 %v5241
    %v9153 = vunpack.c.l.b16 %v5242
    %v9154 = vunpack.c.h.b16 %v5242
    %v9155 = vunpack.c.l.b16 %v5243
    %v9156 = vunpack.c.h.b16 %v5243
    %v9157 = vunpack.c.l.b16 %v5244
    %v9158 = vunpack.c.h.b16 %v5244
    %v9159 = vunpack.c.l.b16 %v5245
    %v9160 = vunpack.c.h.b16 %v5245
    %v9161 = vunpack.c.l.b16 %v5246
    %v9162 = vunpack.c.h.b16 %v5246
    %v9163 = vunpack.c.l.b16 %v5247
    %v9164 = vunpack.c.h.b16 %v5247
    %v9165 = vunpack.c.l.b16 %v5248
    %v9166 = vunpack.c.h.b16 %v5248
    %v9167 = vunpack.c.l.b16 %v5249
    %v9168 = vunpack.c.h.b16 %v5249
    %v9169 = vunpack.c.l.b16 %v5250
    %v9170 = vunpack.c.h.b16 %v5250
    %v9171 = vunpack.c.l.b16 %v5251
    %v9172 = vunpack.c.h.b16 %v5251
    %v9173 = vunpack.c.l.b16 %v5252
    %v9174 = vunpack.c.h.b16 %v5252
    %v9175 = vunpack.c.l.b16 %v5253
    %v9176 = vunpack.c.h.b16 %v5253
    %v9177 = vunpack.c.l.b16 %v5254
    %v9178 = vunpack.c.h.b16 %v5254
    %v9179 = vunpack.c.l.b16 %v5255
    %v9180 = vunpack.c.h.b16 %v5255
    %v9181 = vunpack.c.l.b16 %v5256
    %v9182 = vunpack.c.h.b16 %v5256
    %v9183 = vunpack.c.l.b16 %v5257
    %v9184 = vunpack.c.h.b16 %v5257
    %v9185 = vunpack.c.l.b16 %v5258
    %v9186 = vunpack.c.h.b16 %v5258
    %v9187 = vunpack.c.l.b16 %v5259
    %v9188 = vunpack.c.h.b16 %v5259
    %v9189 = vunpack.c.l.b16 %v5260
    %v9190 = vunpack.c.h.b16 %v5260
    %v9191 = vunpack.c.l.b16 %v5261
    %v9192 = vunpack.c.h.b16 %v5261
    %v9193 = vunpack.c.l.b16 %v5262
    %v9194 = vunpack.c.h.b16 %v5262
    %v9195 = vunpack.c.l.b16 %v5263
    %v9196 = vunpack.c.h.b16 %v5263
    %v9197 = vunpack.c.l.b16 %v5264
    %v9198 = vunpack.c.h.b16 %v5264
    %v9199 = vunpack.c.l.b16 %v5265
    %v9200 = vunpack.c.h.b16 %v5265
    %v9201 = vunpack.c.l.b16 %v5266
    %v9202 = vunpack.c.h.b16 %v5266
    %v9203 = vunpack.c.l.b16 %v5267
    %v9204 = vunpack.c.h.b16 %v5267
    %v9205 = vunpack.c.l.b16 %v5268
    %v9206 = vunpack.c.h.b16 %v5268
    %v9207 = vunpack.c.l.b16 %v5269
    %v9208 = vunpack.c.h.b16 %v5269
    %v9209 = vunpack.c.l.b16 %v5270
    %v9210 = vunpack.c.h.b16 %v5270
    %v9211 = vunpack.c.l.b16 %v5271
    %v9212 = vunpack.c.h.b16 %v5271
    %v9213 = vunpack.c.l.b16 %v5272
    %v9214 = vunpack.c.h.b16 %v5272
    %v9215 = vunpack.c.l.b16 %v5273
    %v9216 = vunpack.c.h.b16 %v5273
    %v9217 = vunpack.c.l.b16 %v5274
    %v9218 = vunpack.c.h.b16 %v5274
    %v9219 = vunpack.c.l.b16 %v5275
    %v9220 = vunpack.c.h.b16 %v5275
    %v9221 = vunpack.c.l.b16 %v5276
    %v9222 = vunpack.c.h.b16 %v5276
    %v9223 = vunpack.c.l.b16 %v5277
    %v9224 = vunpack.c.h.b16 %v5277
    %v9225 = vunpack.c.l.b16 %v5278
    %v9226 = vunpack.c.h.b16 %v5278
    %v9227 = vunpack.c.l.b16 %v5279
    %v9228 = vunpack.c.h.b16 %v5279
    %v9229 = vunpack.c.l.b16 %v5280
    %v9230 = vunpack.c.h.b16 %v5280
    %v9231 = vunpack.c.l.b16 %v5281
    %v9232 = vunpack.c.h.b16 %v5281
    %v9233 = vunpack.c.l.b16 %v5282
    %v9234 = vunpack.c.h.b16 %v5282
    %v9235 = vunpack.c.l.b16 %v5283
    %v9236 = vunpack.c.h.b16 %v5283
    %v9237 = vunpack.c.l.b16 %v5284
    %v9238 = vunpack.c.h.b16 %v5284
    %v9239 = vunpack.c.l.b16 %v5285
    %v9240 = vunpack.c.h.b16 %v5285
    %v9241 = vunpack.c.l.b16 %v5286
    %v9242 = vunpack.c.h.b16 %v5286
    %v9243 = vunpack.c.l.b16 %v5287
    %v9244 = vunpack.c.h.b16 %v5287
    %v9245 = vunpack.c.l.b16 %v5288
    %v9246 = vunpack.c.h.b16 %v5288
    %v9247 = vunpack.c.l.b16 %v5289
    %v9248 = vunpack.c.h.b16 %v5289
    %v9249 = vunpack.c.l.b16 %v5290
    %v9250 = vunpack.c.h.b16 %v5290
    %v9251 = vunpack.c.l.b16 %v5291
    %v9252 = vunpack.c.h.b16 %v5291
    %v9253 = vunpack.c.l.b16 %v5292
    %v9254 = vunpack.c.h.b16 %v5292
    %v9255 = vunpack.c.l.b16 %v5293
    %v9256 = vunpack.c.h.b16 %v5293
    %v9257 = vunpack.c.l.b16 %v5294
    %v9258 = vunpack.c.h.b16 %v5294
    %v9259 = vunpack.c.l.b16 %v5295
    %v9260 = vunpack.c.h.b16 %v5295
    %v9261 = vunpack.c.l.b16 %v5296
    %v9262 = vunpack.c.h.b16 %v5296
    %v9263 = vunpack.c.l.b16 %v5297
    %v9264 = vunpack.c.h.b16 %v5297
    %v9265 = vunpack.c.l.b16 %v5298
    %v9266 = vunpack.c.h.b16 %v5298
    %v9267 = vunpack.c.l.b16 %v5299
    %v9268 = vunpack.c.h.b16 %v5299
    %v9269 = vunpack.c.l.b16 %v5300
    %v9270 = vunpack.c.h.b16 %v5300
    %v9271 = vunpack.c.l.b16 %v5301
    %v9272 = vunpack.c.h.b16 %v5301
    %v9273 = vunpack.c.l.b16 %v5302
    %v9274 = vunpack.c.h.b16 %v5302
    %v9275 = vunpack.c.l.b16 %v5303
    %v9276 = vunpack.c.h.b16 %v5303
    %v9277 = vunpack.c.l.b16 %v5304
    %v9278 = vunpack.c.h.b16 %v5304
    %v9279 = vunpack.c.l.b16 %v5305
    %v9280 = vunpack.c.h.b16 %v5305
    %v9281 = vunpack.c.l.b16 %v5306
    %v9282 = vunpack.c.h.b16 %v5306
    %v9283 = vunpack.c.l.b16 %v5307
    %v9284 = vunpack.c.h.b16 %v5307
    %v9285 = vunpack.c.l.b16 %v5308
    %v9286 = vunpack.c.h.b16 %v5308
    %v9287 = vunpack.c.l.b16 %v5309
    %v9288 = vunpack.c.h.b16 %v5309
    %v9289 = vunpack.c.l.b16 %v5310
    %v9290 = vunpack.c.h.b16 %v5310
    %v9291 = vunpack.c.l.b16 %v5311
    %v9292 = vunpack.c.h.b16 %v5311
    %v9293 = vunpack.c.l.b16 %v5312
    %v9294 = vunpack.c.h.b16 %v5312
    %v9295 = vunpack.c.l.b16 %v5313
    %v9296 = vunpack.c.h.b16 %v5313
    %v9297 = vunpack.c.l.b16 %v5314
    %v9298 = vunpack.c.h.b16 %v5314
    %v9299 = vunpack.c.l.b16 %v5315
    %v9300 = vunpack.c.h.b16 %v5315
    %v9301 = vunpack.c.l.b16 %v5316
    %v9302 = vunpack.c.h.b16 %v5316
    %v9303 = vunpack.c.l.b16 %v5317
    %v9304 = vunpack.c.h.b16 %v5317
    %v9305 = vunpack.c.l.b16 %v5318
    %v9306 = vunpack.c.h.b16 %v5318
    %v9307 = vunpack.c.l.b16 %v5319
    %v9308 = vunpack.c.h.b16 %v5319
    %v9309 = vunpack.c.l.b16 %v5320
    %v9310 = vunpack.c.h.b16 %v5320
    %v9311 = vunpack.c.l.b16 %v5321
    %v9312 = vunpack.c.h.b16 %v5321
    %v9313 = vunpack.c.l.b16 %v5322
    %v9314 = vunpack.c.h.b16 %v5322
    %v9315 = vunpack.c.l.b16 %v5323
    %v9316 = vunpack.c.h.b16 %v5323
    %v9317 = vunpack.c.l.b16 %v5324
    %v9318 = vunpack.c.h.b16 %v5324
    %v9319 = vunpack.c.l.b16 %v5325
    %v9320 = vunpack.c.h.b16 %v5325
    %v9321 = vunpack.c.l.b16 %v5326
    %v9322 = vunpack.c.h.b16 %v5326
    %v9323 = vunpack.c.l.b16 %v5327
    %v9324 = vunpack.c.h.b16 %v5327
    %v9325 = vunpack.c.l.b16 %v5328
    %v9326 = vunpack.c.h.b16 %v5328
    %v9327 = vunpack.c.l.b16 %v5329
    %v9328 = vunpack.c.h.b16 %v5329
    %v9329 = vunpack.c.l.b16 %v5330
    %v9330 = vunpack.c.h.b16 %v5330
    %v9331 = vunpack.c.l.b16 %v5331
    %v9332 = vunpack.c.h.b16 %v5331
    %v9333 = vunpack.c.l.b16 %v5332
    %v9334 = vunpack.c.h.b16 %v5332
    %v9335 = vunpack.c.l.b16 %v5333
    %v9336 = vunpack.c.h.b16 %v5333
    %v9337 = vunpack.c.l.b16 %v5334
    %v9338 = vunpack.c.h.b16 %v5334
    %v9339 = vunpack.c.l.b16 %v5335
    %v9340 = vunpack.c.h.b16 %v5335
    %v9341 = vunpack.c.l.b16 %v5336
    %v9342 = vunpack.c.h.b16 %v5336
    %v9343 = vunpack.c.l.b16 %v5337
    %v9344 = vunpack.c.h.b16 %v5337
    %v9345 = vunpack.c.l.b16 %v5338
    %v9346 = vunpack.c.h.b16 %v5338
    %v9347 = vunpack.c.l.b16 %v5339
    %v9348 = vunpack.c.h.b16 %v5339
    %v9349 = vunpack.c.l.b16 %v5340
    %v9350 = vunpack.c.h.b16 %v5340
    %v9351 = vunpack.c.l.b16 %v5341
    %v9352 = vunpack.c.h.b16 %v5341
    %v9353 = vunpack.c.l.b16 %v5342
    %v9354 = vunpack.c.h.b16 %v5342
    %v9355 = vunpack.c.l.b16 %v5343
    %v9356 = vunpack.c.h.b16 %v5343
    %v9357 = vunpack.c.l.b16 %v5344
    %v9358 = vunpack.c.h.b16 %v5344
    %v9359 = vunpack.c.l.b16 %v5345
    %v9360 = vunpack.c.h.b16 %v5345
    %v9361 = vunpack.c.l.b16 %v5346
    %v9362 = vunpack.c.h.b16 %v5346
    %v9363 = vunpack.c.l.b16 %v5347
    %v9364 = vunpack.c.h.b16 %v5347
    %v9365 = vunpack.c.l.b16 %v5348
    %v9366 = vunpack.c.h.b16 %v5348
    %v9367 = vunpack.c.l.b16 %v5349
    %v9368 = vunpack.c.h.b16 %v5349
    %v9369 = vunpack.c.l.b16 %v5350
    %v9370 = vunpack.c.h.b16 %v5350
    %v9371 = vunpack.c.l.b16 %v5351
    %v9372 = vunpack.c.h.b16 %v5351
    %v9373 = vunpack.c.l.b16 %v5352
    %v9374 = vunpack.c.h.b16 %v5352
    %v9375 = vunpack.c.l.b16 %v5353
    %v9376 = vunpack.c.h.b16 %v5353
    %v9377 = vunpack.c.l.b16 %v5354
    %v9378 = vunpack.c.h.b16 %v5354
    %v9379 = vunpack.c.l.b16 %v5355
    %v9380 = vunpack.c.h.b16 %v5355
    %v9381 = vunpack.c.l.b16 %v5356
    %v9382 = vunpack.c.h.b16 %v5356
    %v9383 = vunpack.c.l.b16 %v5357
    %v9384 = vunpack.c.h.b16 %v5357
    %v9385 = vunpack.c.l.b16 %v5358
    %v9386 = vunpack.c.h.b16 %v5358
    %v9387 = vunpack.c.l.b16 %v5359
    %v9388 = vunpack.c.h.b16 %v5359
    %v9389 = vunpack.c.l.b16 %v5360
    %v9390 = vunpack.c.h.b16 %v5360
    %v9391 = vunpack.c.l.b16 %v5361
    %v9392 = vunpack.c.h.b16 %v5361
    %v9393 = vunpack.c.l.b16 %v5362
    %v9394 = vunpack.c.h.b16 %v5362
    %v9395 = vunpack.c.l.b16 %v5363
    %v9396 = vunpack.c.h.b16 %v5363
    %v9397 = vunpack.c.l.b16 %v5364
    %v9398 = vunpack.c.h.b16 %v5364
    %v9399 = vunpack.c.l.b16 %v5365
    %v9400 = vunpack.c.h.b16 %v5365
    %v9401 = vunpack.c.l.b16 %v5366
    %v9402 = vunpack.c.h.b16 %v5366
    %v9403 = vunpack.c.l.b16 %v5367
    %v9404 = vunpack.c.h.b16 %v5367
    %v9405 = vunpack.c.l.b16 %v5368
    %v9406 = vunpack.c.h.b16 %v5368
    %v9407 = vunpack.c.l.b16 %v5369
    %v9408 = vunpack.c.h.b16 %v5369
    %v9409 = vunpack.c.l.b16 %v5370
    %v9410 = vunpack.c.h.b16 %v5370
    %v9411 = vunpack.c.l.b16 %v5371
    %v9412 = vunpack.c.h.b16 %v5371
    %v9413 = vunpack.c.l.b16 %v5372
    %v9414 = vunpack.c.h.b16 %v5372
    %v9415 = vunpack.c.l.b16 %v5373
    %v9416 = vunpack.c.h.b16 %v5373
    %v9417 = vunpack.c.l.b16 %v5374
    %v9418 = vunpack.c.h.b16 %v5374
    %v9419 = vunpack.c.l.b16 %v5375
    %v9420 = vunpack.c.h.b16 %v5375
    %v9421 = vunpack.c.l.b16 %v5376
    %v9422 = vunpack.c.h.b16 %v5376
    %v9423 = vunpack.c.l.b16 %v5377
    %v9424 = vunpack.c.h.b16 %v5377
    %v9425 = vunpack.c.l.b16 %v5378
    %v9426 = vunpack.c.h.b16 %v5378
    %v9427 = vunpack.c.l.b16 %v5379
    %v9428 = vunpack.c.h.b16 %v5379
    %v9429 = vunpack.c.l.b16 %v5380
    %v9430 = vunpack.c.h.b16 %v5380
    %v9431 = vunpack.c.l.b16 %v5381
    %v9432 = vunpack.c.h.b16 %v5381
    %v9433 = vunpack.c.l.b16 %v5382
    %v9434 = vunpack.c.h.b16 %v5382
    %v9435 = vunpack.c.l.b16 %v5383
    %v9436 = vunpack.c.h.b16 %v5383
    %v9437 = vunpack.c.l.b16 %v5384
    %v9438 = vunpack.c.h.b16 %v5384
    %v9439 = vunpack.c.l.b16 %v5385
    %v9440 = vunpack.c.h.b16 %v5385
    %v9441 = vunpack.c.l.b16 %v5386
    %v9442 = vunpack.c.h.b16 %v5386
    %v9443 = vunpack.c.l.b16 %v5387
    %v9444 = vunpack.c.h.b16 %v5387
    %v9445 = vunpack.c.l.b16 %v5388
    %v9446 = vunpack.c.h.b16 %v5388
    %v9447 = vunpack.c.l.b16 %v5389
    %v9448 = vunpack.c.h.b16 %v5389
    %v9449 = vunpack.c.l.b16 %v5390
    %v9450 = vunpack.c.h.b16 %v5390
    %v9451 = vunpack.c.l.b16 %v5391
    %v9452 = vunpack.c.h.b16 %v5391
    %v9453 = vunpack.c.l.b16 %v5392
    %v9454 = vunpack.c.h.b16 %v5392
    %v9455 = vunpack.c.l.b16 %v5393
    %v9456 = vunpack.c.h.b16 %v5393
    %v9457 = vunpack.c.l.b16 %v5394
    %v9458 = vunpack.c.h.b16 %v5394
    %v9459 = vunpack.c.l.b16 %v5395
    %v9460 = vunpack.c.h.b16 %v5395
    %v9461 = vunpack.c.l.b16 %v5396
    %v9462 = vunpack.c.h.b16 %v5396
    %v9463 = vunpack.c.l.b16 %v5397
    %v9464 = vunpack.c.h.b16 %v5397
    %v9465 = vunpack.c.l.b16 %v5398
    %v9466 = vunpack.c.h.b16 %v5398
    %v9467 = vunpack.c.l.b16 %v5399
    %v9468 = vunpack.c.h.b16 %v5399
    %v9469 = vunpack.c.l.b16 %v5400
    %v9470 = vunpack.c.h.b16 %v5400
    %v9471 = vunpack.c.l.b16 %v5401
    %v9472 = vunpack.c.h.b16 %v5401
    %v9473 = vunpack.c.l.b16 %v5402
    %v9474 = vunpack.c.h.b16 %v5402
    %v9475 = vunpack.c.l.b16 %v5403
    %v9476 = vunpack.c.h.b16 %v5403
    %v9477 = vunpack.c.l.b16 %v5404
    %v9478 = vunpack.c.h.b16 %v5404
    %v9479 = vunpack.c.l.b16 %v5405
    %v9480 = vunpack.c.h.b16 %v5405
    %v9481 = vunpack.c.l.b16 %v5406
    %v9482 = vunpack.c.h.b16 %v5406
    %v9483 = vunpack.c.l.b16 %v5407
    %v9484 = vunpack.c.h.b16 %v5407
    %v9485 = vunpack.c.l.b16 %v5408
    %v9486 = vunpack.c.h.b16 %v5408
    %v9487 = vunpack.c.l.b16 %v5409
    %v9488 = vunpack.c.h.b16 %v5409
    %v9489 = vunpack.c.l.b16 %v5410
    %v9490 = vunpack.c.h.b16 %v5410
    %v9491 = vunpack.c.l.b16 %v5411
    %v9492 = vunpack.c.h.b16 %v5411
    %v9493 = vunpack.c.l.b16 %v5412
    %v9494 = vunpack.c.h.b16 %v5412
    %v9495 = vunpack.c.l.b16 %v5413
    %v9496 = vunpack.c.h.b16 %v5413
    %v9497 = vunpack.c.l.b16 %v5414
    %v9498 = vunpack.c.h.b16 %v5414
    %v9499 = vunpack.c.l.b16 %v5415
    %v9500 = vunpack.c.h.b16 %v5415
    %v9501 = vunpack.c.l.b16 %v5416
    %v9502 = vunpack.c.h.b16 %v5416
    %v9503 = vunpack.c.l.b16 %v5417
    %v9504 = vunpack.c.h.b16 %v5417
    %v9505 = vunpack.c.l.b16 %v5418
    %v9506 = vunpack.c.h.b16 %v5418
    %v9507 = vunpack.c.l.b16 %v5419
    %v9508 = vunpack.c.h.b16 %v5419
    %v9509 = vunpack.c.l.b16 %v5420
    %v9510 = vunpack.c.h.b16 %v5420
    %v9511 = vunpack.c.l.b16 %v5421
    %v9512 = vunpack.c.h.b16 %v5421
    %v9513 = vunpack.c.l.b16 %v5422
    %v9514 = vunpack.c.h.b16 %v5422
    %v9515 = vunpack.c.l.b16 %v5423
    %v9516 = vunpack.c.h.b16 %v5423
    %v9517 = vunpack.c.l.b16 %v5424
    %v9518 = vunpack.c.h.b16 %v5424
    %v9519 = vunpack.c.l.b16 %v5425
    %v9520 = vunpack.c.h.b16 %v5425
    %v9521 = vunpack.c.l.b16 %v5426
    %v9522 = vunpack.c.h.b16 %v5426
    %v9523 = vunpack.c.l.b16 %v5427
    %v9524 = vunpack.c.h.b16 %v5427
    %v9525 = vunpack.c.l.b16 %v5428
    %v9526 = vunpack.c.h.b16 %v5428
    %v9527 = vunpack.c.l.b16 %v5429
    %v9528 = vunpack.c.h.b16 %v5429
    %v9529 = vunpack.c.l.b16 %v5430
    %v9530 = vunpack.c.h.b16 %v5430
    %v9531 = vunpack.c.l.b16 %v5431
    %v9532 = vunpack.c.h.b16 %v5431
    %v9533 = vunpack.c.l.b16 %v5432
    %v9534 = vunpack.c.h.b16 %v5432
    %v9535 = vunpack.c.l.b16 %v5433
    %v9536 = vunpack.c.h.b16 %v5433
    %v9537 = vunpack.c.l.b16 %v5434
    %v9538 = vunpack.c.h.b16 %v5434
    %v9539 = vunpack.c.l.b16 %v5435
    %v9540 = vunpack.c.h.b16 %v5435
    %v9541 = vunpack.c.l.b16 %v5436
    %v9542 = vunpack.c.h.b16 %v5436
    %v9543 = vunpack.c.l.b16 %v5437
    %v9544 = vunpack.c.h.b16 %v5437
    %v9545 = vunpack.c.l.b16 %v5438
    %v9546 = vunpack.c.h.b16 %v5438
    %v9547 = vunpack.c.l.b16 %v5439
    %v9548 = vunpack.c.h.b16 %v5439
    %v9549 = vunpack.c.l.b16 %v5440
    %v9550 = vunpack.c.h.b16 %v5440
    %v9551 = vunpack.c.l.b16 %v5441
    %v9552 = vunpack.c.h.b16 %v5441
    %v9553 = vunpack.c.l.b16 %v5442
    %v9554 = vunpack.c.h.b16 %v5442
    %v9555 = vunpack.c.l.b16 %v5443
    %v9556 = vunpack.c.h.b16 %v5443
    %v9557 = vunpack.c.l.b16 %v5444
    %v9558 = vunpack.c.h.b16 %v5444
    %v9559 = vunpack.c.l.b16 %v5445
    %v9560 = vunpack.c.h.b16 %v5445
    %v9561 = vunpack.c.l.b16 %v5446
    %v9562 = vunpack.c.h.b16 %v5446
    %v9563 = vunpack.c.l.b16 %v5447
    %v9564 = vunpack.c.h.b16 %v5447
    %v9565 = vunpack.c.l.b16 %v5448
    %v9566 = vunpack.c.h.b16 %v5448
    %v9567 = vunpack.c.l.b16 %v5449
    %v9568 = vunpack.c.h.b16 %v5449
    %v9569 = vunpack.c.l.b16 %v5450
    %v9570 = vunpack.c.h.b16 %v5450
    %v9571 = vunpack.c.l.b16 %v5451
    %v9572 = vunpack.c.h.b16 %v5451
    %v9573 = vunpack.c.l.b16 %v5452
    %v9574 = vunpack.c.h.b16 %v5452
    %v9575 = vunpack.c.l.b16 %v5453
    %v9576 = vunpack.c.h.b16 %v5453
    %v9577 = vunpack.c.l.b16 %v5454
    %v9578 = vunpack.c.h.b16 %v5454
    %v9579 = vunpack.c.l.b16 %v5455
    %v9580 = vunpack.c.h.b16 %v5455
    %v9581 = vunpack.c.l.b16 %v5456
    %v9582 = vunpack.c.h.b16 %v5456
    %v9583 = vunpack.c.l.b16 %v5457
    %v9584 = vunpack.c.h.b16 %v5457
    %v9585 = vunpack.c.l.b16 %v5458
    %v9586 = vunpack.c.h.b16 %v5458
    %v9587 = vunpack.c.l.b16 %v5459
    %v9588 = vunpack.c.h.b16 %v5459
    %v9589 = vunpack.c.l.b16 %v5460
    %v9590 = vunpack.c.h.b16 %v5460
    %v9591 = vunpack.c.l.b16 %v5461
    %v9592 = vunpack.c.h.b16 %v5461
    %v9593 = vunpack.c.l.b16 %v5462
    %v9594 = vunpack.c.h.b16 %v5462
    %v9595 = vunpack.c.l.b16 %v5463
    %v9596 = vunpack.c.h.b16 %v5463
    %v9597 = vunpack.c.l.b16 %v5464
    %v9598 = vunpack.c.h.b16 %v5464
    %v9599 = vunpack.c.l.b16 %v5465
    %v9600 = vunpack.c.h.b16 %v5465
    %v9601 = vunpack.c.l.b16 %v5466
    %v9602 = vunpack.c.h.b16 %v5466
    %v9603 = vunpack.c.l.b16 %v5467
    %v9604 = vunpack.c.h.b16 %v5467
    %v9605 = vunpack.c.l.b16 %v5468
    %v9606 = vunpack.c.h.b16 %v5468
    %v9607 = vunpack.c.l.b16 %v5469
    %v9608 = vunpack.c.h.b16 %v5469
    %v9609 = vunpack.c.l.b16 %v5470
    %v9610 = vunpack.c.h.b16 %v5470
    %v9611 = vunpack.c.l.b16 %v5471
    %v9612 = vunpack.c.h.b16 %v5471
    %v9613 = vunpack.c.l.b16 %v5472
    %v9614 = vunpack.c.h.b16 %v5472
    %v9615 = vunpack.c.l.b16 %v5473
    %v9616 = vunpack.c.h.b16 %v5473
    %v9617 = vunpack.c.l.b16 %v5474
    %v9618 = vunpack.c.h.b16 %v5474
    %v9619 = vpack.c.b16 %v8855, %v8851
    %v9620 = vpack.c.b16 %v8856, %v8852
    %v9621 = vpack.c.b16 %v8857, %v8853
    %v9622 = vpack.c.b16 %v8858, %v8854
    %v9623 = vpack.c.b16 %v8863, %v8859
    %v9624 = vpack.c.b16 %v8864, %v8860
    %v9625 = vpack.c.b16 %v8865, %v8861
    %v9626 = vpack.c.b16 %v8866, %v8862
    %v9627 = vpack.c.b16 %v8871, %v8867
    %v9628 = vpack.c.b16 %v8872, %v8868
    %v9629 = vpack.c.b16 %v8873, %v8869
    %v9630 = vpack.c.b16 %v8874, %v8870
    %v9631 = vpack.c.b16 %v8879, %v8875
    %v9632 = vpack.c.b16 %v8880, %v8876
    %v9633 = vpack.c.b16 %v8881, %v8877
    %v9634 = vpack.c.b16 %v8882, %v8878
    %v9635 = vpack.c.b16 %v8887, %v8883
    %v9636 = vpack.c.b16 %v8888, %v8884
    %v9637 = vpack.c.b16 %v8889, %v8885
    %v9638 = vpack.c.b16 %v8890, %v8886
    %v9639 = vpack.c.b16 %v8895, %v8891
    %v9640 = vpack.c.b16 %v8896, %v8892
    %v9641 = vpack.c.b16 %v8897, %v8893
    %v9642 = vpack.c.b16 %v8898, %v8894
    %v9643 = vpack.c.b16 %v8903, %v8899
    %v9644 = vpack.c.b16 %v8904, %v8900
    %v9645 = vpack.c.b16 %v8905, %v8901
    %v9646 = vpack.c.b16 %v8906, %v8902
    %v9647 = vpack.c.b16 %v8911, %v8907
    %v9648 = vpack.c.b16 %v8912, %v8908
    %v9649 = vpack.c.b16 %v8913, %v8909
    %v9650 = vpack.c.b16 %v8914, %v8910
    %v9651 = vpack.c.b16 %v8919, %v8915
    %v9652 = vpack.c.b16 %v8920, %v8916
    %v9653 = vpack.c.b16 %v8921, %v8917
    %v9654 = vpack.c.b16 %v8922, %v8918
    %v9655 = vpack.c.b16 %v8927, %v8923
    %v9656 = vpack.c.b16 %v8928, %v8924
    %v9657 = vpack.c.b16 %v8929, %v8925
    %v9658 = vpack.c.b16 %v8930, %v8926
    %v9659 = vpack.c.b16 %v8935, %v8931
    %v9660 = vpack.c.b16 %v8936, %v8932
    %v9661 = vpack.c.b16 %v8937, %v8933
    %v9662 = vpack.c.b16 %v8938, %v8934
    %v9663 = vpack.c.b16 %v8943, %v8939
    %v9664 = vpack.c.b16 %v8944, %v8940
    %v9665 = vpack.c.b16 %v8945, %v8941
    %v9666 = vpack.c.b16 %v8946, %v8942
    %v9667 = vpack.c.b16 %v8951, %v8947
    %v9668 = vpack.c.b16 %v8952, %v8948
    %v9669 = vpack.c.b16 %v8953, %v8949
    %v9670 = vpack.c.b16 %v8954, %v8950
    %v9671 = vpack.c.b16 %v8959, %v8955
    %v9672 = vpack.c.b16 %v8960, %v8956
    %v9673 = vpack.c.b16 %v8961, %v8957
    %v9674 = vpack.c.b16 %v8962, %v8958
    %v9675 = vpack.c.b16 %v8967, %v8963
    %v9676 = vpack.c.b16 %v8968, %v8964
    %v9677 = vpack.c.b16 %v8969, %v8965
    %v9678 = vpack.c.b16 %v8970, %v8966
    %v9679 = vpack.c.b16 %v8975, %v8971
    %v9680 = vpack.c.b16 %v8976, %v8972
    %v9681 = vpack.c.b16 %v8977, %v8973
    %v9682 = vpack.c.b16 %v8978, %v8974
    %v9683 = vpack.c.b16 %v8983, %v8979
    %v9684 = vpack.c.b16 %v8984, %v8980
    %v9685 = vpack.c.b16 %v8985, %v8981
    %v9686 = vpack.c.b16 %v8986, %v8982
    %v9687 = vpack.c.b16 %v8991, %v8987
    %v9688 = vpack.c.b16 %v8992, %v8988
    %v9689 = vpack.c.b16 %v8993, %v8989
    %v9690 = vpack.c.b16 %v8994, %v8990
    %v9691 = vpack.c.b16 %v8999, %v8995
    %v9692 = vpack.c.b16 %v9000, %v8996
    %v9693 = vpack.c.b16 %v9001, %v8997
    %v9694 = vpack.c.b16 %v9002, %v8998
    %v9695 = vpack.c.b16 %v9007, %v9003
    %v9696 = vpack.c.b16 %v9008, %v9004
    %v9697 = vpack.c.b16 %v9009, %v9005
    %v9698 = vpack.c.b16 %v9010, %v9006
    %v9699 = vpack.c.b16 %v9015, %v9011
    %v9700 = vpack.c.b16 %v9016, %v9012
    %v9701 = vpack.c.b16 %v9017, %v9013
    %v9702 = vpack.c.b16 %v9018, %v9014
    %v9703 = vpack.c.b16 %v9023, %v9019
    %v9704 = vpack.c.b16 %v9024, %v9020
    %v9705 = vpack.c.b16 %v9025, %v9021
    %v9706 = vpack.c.b16 %v9026, %v9022
    %v9707 = vpack.c.b16 %v9031, %v9027
    %v9708 = vpack.c.b16 %v9032, %v9028
    %v9709 = vpack.c.b16 %v9033, %v9029
    %v9710 = vpack.c.b16 %v9034, %v9030
    %v9711 = vpack.c.b16 %v9039, %v9035
    %v9712 = vpack.c.b16 %v9040, %v9036
    %v9713 = vpack.c.b16 %v9041, %v9037
    %v9714 = vpack.c.b16 %v9042, %v9038
    %v9715 = vpack.c.b16 %v9047, %v9043
    %v9716 = vpack.c.b16 %v9048, %v9044
    %v9717 = vpack.c.b16 %v9049, %v9045
    %v9718 = vpack.c.b16 %v9050, %v9046
    %v9719 = vpack.c.b16 %v9055, %v9051
    %v9720 = vpack.c.b16 %v9056, %v9052
    %v9721 = vpack.c.b16 %v9057, %v9053
    %v9722 = vpack.c.b16 %v9058, %v9054
    %v9723 = vpack.c.b16 %v9063, %v9059
    %v9724 = vpack.c.b16 %v9064, %v9060
    %v9725 = vpack.c.b16 %v9065, %v9061
    %v9726 = vpack.c.b16 %v9066, %v9062
    %v9727 = vpack.c.b16 %v9071, %v9067
    %v9728 = vpack.c.b16 %v9072, %v9068
    %v9729 = vpack.c.b16 %v9073, %v9069
    %v9730 = vpack.c.b16 %v9074, %v9070
    %v9731 = vpack.c.b16 %v9079, %v9075
    %v9732 = vpack.c.b16 %v9080, %v9076
    %v9733 = vpack.c.b16 %v9081, %v9077
    %v9734 = vpack.c.b16 %v9082, %v9078
    %v9735 = vpack.c.b16 %v9087, %v9083
    %v9736 = vpack.c.b16 %v9088, %v9084
    %v9737 = vpack.c.b16 %v9089, %v9085
    %v9738 = vpack.c.b16 %v9090, %v9086
    %v9739 = vpack.c.b16 %v9095, %v9091
    %v9740 = vpack.c.b16 %v9096, %v9092
    %v9741 = vpack.c.b16 %v9097, %v9093
    %v9742 = vpack.c.b16 %v9098, %v9094
    %v9743 = vpack.c.b16 %v9103, %v9099
    %v9744 = vpack.c.b16 %v9104, %v9100
    %v9745 = vpack.c.b16 %v9105, %v9101
    %v9746 = vpack.c.b16 %v9106, %v9102
    %v9747 = vpack.c.b16 %v9111, %v9107
    %v9748 = vpack.c.b16 %v9112, %v9108
    %v9749 = vpack.c.b16 %v9113, %v9109
    %v9750 = vpack.c.b16 %v9114, %v9110
    %v9751 = vpack.c.b16 %v9119, %v9115
    %v9752 = vpack.c.b16 %v9120, %v9116
    %v9753 = vpack.c.b16 %v9121, %v9117
    %v9754 = vpack.c.b16 %v9122, %v9118
    %v9755 = vpack.c.b16 %v9127, %v9123
    %v9756 = vpack.c.b16 %v9128, %v9124
    %v9757 = vpack.c.b16 %v9129, %v9125
    %v9758 = vpack.c.b16 %v9130, %v9126
    %v9759 = vpack.c.b16 %v9135, %v9131
    %v9760 = vpack.c.b16 %v9136, %v9132
    %v9761 = vpack.c.b16 %v9137, %v9133
    %v9762 = vpack.c.b16 %v9138, %v9134
    %v9763 = vpack.c.b16 %v9143, %v9139
    %v9764 = vpack.c.b16 %v9144, %v9140
    %v9765 = vpack.c.b16 %v9145, %v9141
    %v9766 = vpack.c.b16 %v9146, %v9142
    %v9767 = vpack.c.b16 %v9151, %v9147
    %v9768 = vpack.c.b16 %v9152, %v9148
    %v9769 = vpack.c.b16 %v9153, %v9149
    %v9770 = vpack.c.b16 %v9154, %v9150
    %v9771 = vpack.c.b16 %v9159, %v9155
    %v9772 = vpack.c.b16 %v9160, %v9156
    %v9773 = vpack.c.b16 %v9161, %v9157
    %v9774 = vpack.c.b16 %v9162, %v9158
    %v9775 = vpack.c.b16 %v9167, %v9163
    %v9776 = vpack.c.b16 %v9168, %v9164
    %v9777 = vpack.c.b16 %v9169, %v9165
    %v9778 = vpack.c.b16 %v9170, %v9166
    %v9779 = vpack.c.b16 %v9175, %v9171
    %v9780 = vpack.c.b16 %v9176, %v9172
    %v9781 = vpack.c.b16 %v9177, %v9173
    %v9782 = vpack.c.b16 %v9178, %v9174
    %v9783 = vpack.c.b16 %v9183, %v9179
    %v9784 = vpack.c.b16 %v9184, %v9180
    %v9785 = vpack.c.b16 %v9185, %v9181
    %v9786 = vpack.c.b16 %v9186, %v9182
    %v9787 = vpack.c.b16 %v9191, %v9187
    %v9788 = vpack.c.b16 %v9192, %v9188
    %v9789 = vpack.c.b16 %v9193, %v9189
    %v9790 = vpack.c.b16 %v9194, %v9190
    %v9791 = vpack.c.b16 %v9199, %v9195
    %v9792 = vpack.c.b16 %v9200, %v9196
    %v9793 = vpack.c.b16 %v9201, %v9197
    %v9794 = vpack.c.b16 %v9202, %v9198
    %v9795 = vpack.c.b16 %v9207, %v9203
    %v9796 = vpack.c.b16 %v9208, %v9204
    %v9797 = vpack.c.b16 %v9209, %v9205
    %v9798 = vpack.c.b16 %v9210, %v9206
    %v9799 = vpack.c.b16 %v9215, %v9211
    %v9800 = vpack.c.b16 %v9216, %v9212
    %v9801 = vpack.c.b16 %v9217, %v9213
    %v9802 = vpack.c.b16 %v9218, %v9214
    %v9803 = vpack.c.b16 %v9223, %v9219
    %v9804 = vpack.c.b16 %v9224, %v9220
    %v9805 = vpack.c.b16 %v9225, %v9221
    %v9806 = vpack.c.b16 %v9226, %v9222
    %v9807 = vpack.c.b16 %v9231, %v9227
    %v9808 = vpack.c.b16 %v9232, %v9228
    %v9809 = vpack.c.b16 %v9233, %v9229
    %v9810 = vpack.c.b16 %v9234, %v9230
    %v9811 = vpack.c.b16 %v9239, %v9235
    %v9812 = vpack.c.b16 %v9240, %v9236
    %v9813 = vpack.c.b16 %v9241, %v9237
    %v9814 = vpack.c.b16 %v9242, %v9238
    %v9815 = vpack.c.b16 %v9247, %v9243
    %v9816 = vpack.c.b16 %v9248, %v9244
    %v9817 = vpack.c.b16 %v9249, %v9245
    %v9818 = vpack.c.b16 %v9250, %v9246
    %v9819 = vpack.c.b16 %v9255, %v9251
    %v9820 = vpack.c.b16 %v9256, %v9252
    %v9821 = vpack.c.b16 %v9257, %v9253
    %v9822 = vpack.c.b16 %v9258, %v9254
    %v9823 = vpack.c.b16 %v9263, %v9259
    %v9824 = vpack.c.b16 %v9264, %v9260
    %v9825 = vpack.c.b16 %v9265, %v9261
    %v9826 = vpack.c.b16 %v9266, %v9262
    %v9827 = vpack.c.b16 %v9271, %v9267
    %v9828 = vpack.c.b16 %v9272, %v9268
    %v9829 = vpack.c.b16 %v9273, %v9269
    %v9830 = vpack.c.b16 %v9274, %v9270
    %v9831 = vpack.c.b16 %v9279, %v9275
    %v9832 = vpack.c.b16 %v9280, %v9276
    %v9833 = vpack.c.b16 %v9281, %v9277
    %v9834 = vpack.c.b16 %v9282, %v9278
    %v9835 = vpack.c.b16 %v9287, %v9283
    %v9836 = vpack.c.b16 %v9288, %v9284
    %v9837 = vpack.c.b16 %v9289, %v9285
    %v9838 = vpack.c.b16 %v9290, %v9286
    %v9839 = vpack.c.b16 %v9295, %v9291
    %v9840 = vpack.c.b16 %v9296, %v9292
    %v9841 = vpack.c.b16 %v9297, %v9293
    %v9842 = vpack.c.b16 %v9298, %v9294
    %v9843 = vpack.c.b16 %v9303, %v9299
    %v9844 = vpack.c.b16 %v9304, %v9300
    %v9845 = vpack.c.b16 %v9305, %v9301
    %v9846 = vpack.c.b16 %v9306, %v9302
    %v9847 = vpack.c.b16 %v9311, %v9307
    %v9848 = vpack.c.b16 %v9312, %v9308
    %v9849 = vpack.c.b16 %v9313, %v9309
    %v9850 = vpack.c.b16 %v9314, %v9310
    %v9851 = vpack.c.b16 %v9319, %v9315
    %v9852 = vpack.c.b16 %v9320, %v9316
    %v9853 = vpack.c.b16 %v9321, %v9317
    %v9854 = vpack.c.b16 %v9322, %v9318
    %v9855 = vpack.c.b16 %v9327, %v9323
    %v9856 = vpack.c.b16 %v9328, %v9324
    %v9857 = vpack.c.b16 %v9329, %v9325
    %v9858 = vpack.c.b16 %v9330, %v9326
    %v9859 = vpack.c.b16 %v9335, %v9331
    %v9860 = vpack.c.b16 %v9336, %v9332
    %v9861 = vpack.c.b16 %v9337, %v9333
    %v9862 = vpack.c.b16 %v9338, %v9334
    %v9863 = vpack.c.b16 %v9343, %v9339
    %v9864 = vpack.c.b16 %v9344, %v9340
    %v9865 = vpack.c.b16 %v9345, %v9341
    %v9866 = vpack.c.b16 %v9346, %v9342
    %v9867 = vpack.c.b16 %v9351, %v9347
    %v9868 = vpack.c.b16 %v9352, %v9348
    %v9869 = vpack.c.b16 %v9353, %v9349
    %v9870 = vpack.c.b16 %v9354, %v9350
    %v9871 = vpack.c.b16 %v9359, %v9355
    %v9872 = vpack.c.b16 %v9360, %v9356
    %v9873 = vpack.c.b16 %v9361, %v9357
    %v9874 = vpack.c.b16 %v9362, %v9358
    %v9875 = vpack.c.b16 %v9367, %v9363
    %v9876 = vpack.c.b16 %v9368, %v9364
    %v9877 = vpack.c.b16 %v9369, %v9365
    %v9878 = vpack.c.b16 %v9370, %v9366
    %v9879 = vpack.c.b16 %v9375, %v9371
    %v9880 = vpack.c.b16 %v9376, %v9372
    %v9881 = vpack.c.b16 %v9377, %v9373
    %v9882 = vpack.c.b16 %v9378, %v9374
    %v9883 = vpack.c.b16 %v9383, %v9379
    %v9884 = vpack.c.b16 %v9384, %v9380
    %v9885 = vpack.c.b16 %v9385, %v9381
    %v9886 = vpack.c.b16 %v9386, %v9382
    %v9887 = vpack.c.b16 %v9391, %v9387
    %v9888 = vpack.c.b16 %v9392, %v9388
    %v9889 = vpack.c.b16 %v9393, %v9389
    %v9890 = vpack.c.b16 %v9394, %v9390
    %v9891 = vpack.c.b16 %v9399, %v9395
    %v9892 = vpack.c.b16 %v9400, %v9396
    %v9893 = vpack.c.b16 %v9401, %v9397
    %v9894 = vpack.c.b16 %v9402, %v9398
    %v9895 = vpack.c.b16 %v9407, %v9403
    %v9896 = vpack.c.b16 %v9408, %v9404
    %v9897 = vpack.c.b16 %v9409, %v9405
    %v9898 = vpack.c.b16 %v9410, %v9406
    %v9899 = vpack.c.b16 %v9415, %v9411
    %v9900 = vpack.c.b16 %v9416, %v9412
    %v9901 = vpack.c.b16 %v9417, %v9413
    %v9902 = vpack.c.b16 %v9418, %v9414
    %v9903 = vpack.c.b16 %v9423, %v9419
    %v9904 = vpack.c.b16 %v9424, %v9420
    %v9905 = vpack.c.b16 %v9425, %v9421
    %v9906 = vpack.c.b16 %v9426, %v9422
    %v9907 = vpack.c.b16 %v9431, %v9427
    %v9908 = vpack.c.b16 %v9432, %v9428
    %v9909 = vpack.c.b16 %v9433, %v9429
    %v9910 = vpack.c.b16 %v9434, %v9430
    %v9911 = vpack.c.b16 %v9439, %v9435
    %v9912 = vpack.c.b16 %v9440, %v9436
    %v9913 = vpack.c.b16 %v9441, %v9437
    %v9914 = vpack.c.b16 %v9442, %v9438
    %v9915 = vpack.c.b16 %v9447, %v9443
    %v9916 = vpack.c.b16 %v9448, %v9444
    %v9917 = vpack.c.b16 %v9449, %v9445
    %v9918 = vpack.c.b16 %v9450, %v9446
    %v9919 = vpack.c.b16 %v9455, %v9451
    %v9920 = vpack.c.b16 %v9456, %v9452
    %v9921 = vpack.c.b16 %v9457, %v9453
    %v9922 = vpack.c.b16 %v9458, %v9454
    %v9923 = vpack.c.b16 %v9463, %v9459
    %v9924 = vpack.c.b16 %v9464, %v9460
    %v9925 = vpack.c.b16 %v9465, %v9461
    %v9926 = vpack.c.b16 %v9466, %v9462
    %v9927 = vpack.c.b16 %v9471, %v9467
    %v9928 = vpack.c.b16 %v9472, %v9468
    %v9929 = vpack.c.b16 %v9473, %v9469
    %v9930 = vpack.c.b16 %v9474, %v9470
    %v9931 = vpack.c.b16 %v9479, %v9475
    %v9932 = vpack.c.b16 %v9480, %v9476
    %v9933 = vpack.c.b16 %v9481, %v9477
    %v9934 = vpack.c.b16 %v9482, %v9478
    %v9935 = vpack.c.b16 %v9487, %v9483
    %v9936 = vpack.c.b16 %v9488, %v9484
    %v9937 = vpack.c.b16 %v9489, %v9485
    %v9938 = vpack.c.b16 %v9490, %v9486
    %v9939 = vpack.c.b16 %v9495, %v9491
    %v9940 = vpack.c.b16 %v9496, %v9492
    %v9941 = vpack.c.b16 %v9497, %v9493
    %v9942 = vpack.c.b16 %v9498, %v9494
    %v9943 = vpack.c.b16 %v9503, %v9499
    %v9944 = vpack.c.b16 %v9504, %v9500
    %v9945 = vpack.c.b16 %v9505, %v9501
    %v9946 = vpack.c.b16 %v9506, %v9502
    %v9947 = vpack.c.b16 %v9511, %v9507
    %v9948 = vpack.c.b16 %v9512, %v9508
    %v9949 = vpack.c.b16 %v9513, %v9509
    %v9950 = vpack.c.b16 %v9514, %v9510
    %v9951 = vpack.c.b16 %v9519, %v9515
    %v9952 = vpack.c.b16 %v9520, %v9516
    %v9953 = vpack.c.b16 %v9521, %v9517
    %v9954 = vpack.c.b16 %v9522, %v9518
    %v9955 = vpack.c.b16 %v9527, %v9523
    %v9956 = vpack.c.b16 %v9528, %v9524
    %v9957 = vpack.c.b16 %v9529, %v9525
    %v9958 = vpack.c.b16 %v9530, %v9526
    %v9959 = vpack.c.b16 %v9535, %v9531
    %v9960 = vpack.c.b16 %v9536, %v9532
    %v9961 = vpack.c.b16 %v9537, %v9533
    %v9962 = vpack.c.b16 %v9538, %v9534
    %v9963 = vpack.c.b16 %v9543, %v9539
    %v9964 = vpack.c.b16 %v9544, %v9540
    %v9965 = vpack.c.b16 %v9545, %v9541
    %v9966 = vpack.c.b16 %v9546, %v9542
    %v9967 = vpack.c.b16 %v9551, %v9547
    %v9968 = vpack.c.b16 %v9552, %v9548
    %v9969 = vpack.c.b16 %v9553, %v9549
    %v9970 = vpack.c.b16 %v9554, %v9550
    %v9971 = vpack.c.b16 %v9559, %v9555
    %v9972 = vpack.c.b16 %v9560, %v9556
    %v9973 = vpack.c.b16 %v9561, %v9557
    %v9974 = vpack.c.b16 %v9562, %v9558
    %v9975 = vpack.c.b16 %v9567, %v9563
    %v9976 = vpack.c.b16 %v9568, %v9564
    %v9977 = vpack.c.b16 %v9569, %v9565
    %v9978 = vpack.c.b16 %v9570, %v9566
    %v9979 = vpack.c.b16 %v9575, %v9571
    %v9980 = vpack.c.b16 %v9576, %v9572
    %v9981 = vpack.c.b16 %v9577, %v9573
    %v9982 = vpack.c.b16 %v9578, %v9574
    %v9983 = vpack.c.b16 %v9583, %v9579
    %v9984 = vpack.c.b16 %v9584, %v9580
    %v9985 = vpack.c.b16 %v9585, %v9581
    %v9986 = vpack.c.b16 %v9586, %v9582
    %v9987 = vpack.c.b16 %v9591, %v9587
    %v9988 = vpack.c.b16 %v9592, %v9588
    %v9989 = vpack.c.b16 %v9593, %v9589
    %v9990 = vpack.c.b16 %v9594, %v9590
    %v9991 = vpack.c.b16 %v9599, %v9595
    %v9992 = vpack.c.b16 %v9600, %v9596
    %v9993 = vpack.c.b16 %v9601, %v9597
    %v9994 = vpack.c.b16 %v9602, %v9598
    %v9995 = vpack.c.b16 %v9607, %v9603
    %v9996 = vpack.c.b16 %v9608, %v9604
    %v9997 = vpack.c.b16 %v9609, %v9605
    %v9998 = vpack.c.b16 %v9610, %v9606
    %v9999 = vpack.c.b16 %v9615, %v9611
    %v10000 = vpack.c.b16 %v9616, %v9612
    %v10001 = vpack.c.b16 %v9617, %v9613
    %v10002 = vpack.c.b16 %v9618, %v9614
    %10387 = vmatprep.subr.bf16.mxu0 %v9648
    %10388 = vmatpush1.bf16.msra.mxu0 %v9647
    %10389 = vmatprep.subr.bf16.mxu0 %v9644
    %10390 = vmatpush1.bf16.msra.mxu0 %v9643
    %10391 = vmatprep.subr.bf16.mxu0 %v9640
    %10392 = vmatpush1.bf16.msra.mxu0 %v9639
    %10393 = vmatprep.subr.bf16.mxu0 %v9636
    %10394 = vmatpush1.bf16.msra.mxu0 %v9635
    %10395 = vmatprep.subr.bf16.mxu0 %v9632
    %10396 = vmatpush1.bf16.msra.mxu0 %v9631
    %10397 = vmatprep.subr.bf16.mxu0 %v9628
    %10398 = vmatpush1.bf16.msra.mxu0 %v9627
    %10399 = vmatprep.subr.bf16.mxu0 %v9624
    %10400 = vmatpush1.bf16.msra.mxu0 %v9623
    %10401 = vmatprep.subr.bf16.mxu0 %v9620
    %10402 = vmatpush1.bf16.msra.mxu0 %v9619
    %10403 = vmatprep.subr.bf16.mxu0 %v9680
    %10404 = vmatpush2.bf16.msra.mxu0 %v9679
    %10405 = vmatprep.subr.bf16.mxu0 %v9676
    %10406 = vmatpush2.bf16.msra.mxu0 %v9675
    %10407 = vmatprep.subr.bf16.mxu0 %v9672
    %10408 = vmatpush2.bf16.msra.mxu0 %v9671
    %10409 = vmatprep.subr.bf16.mxu0 %v9668
    %10410 = vmatpush2.bf16.msra.mxu0 %v9667
    %10411 = vmatprep.subr.bf16.mxu0 %v9664
    %10412 = vmatpush2.bf16.msra.mxu0 %v9663
    %10413 = vmatprep.subr.bf16.mxu0 %v9660
    %10414 = vmatpush2.bf16.msra.mxu0 %v9659
    %10415 = vmatprep.subr.bf16.mxu0 %v9656
    %10416 = vmatpush2.bf16.msra.mxu0 %v9655
    %10417 = vmatprep.subr.bf16.mxu0 %v9652
    %10418 = vmatpush2.bf16.msra.mxu0 %v9651
    %10419 = vmatprep.mubr.bf16.mxu0 %v8456
    %10420 = vmatmul.mubr.bf16.gmra.mxu0 %v8455
    %v10421 = vpop.f32.mrf.mxu0
    %v10422 = vadd.f32 0.0, %v10421
    %v10423 = vpop.f32.mrf.mxu0
    %v10424 = vadd.f32 0.0, %v10423
    %v10425 = vpop.f32.mrf.mxu0
    %v10426 = vpop.f32.mrf.mxu0
    %10427 = vdwg.mxu0
    %10428 = vmatprep.subr.bf16.mxu0 %v9712
    %10429 = vmatpush1.bf16.msra.mxu0 %v9711
    %10430 = vmatprep.subr.bf16.mxu0 %v9708
    %10431 = vmatpush1.bf16.msra.mxu0 %v9707
    %10432 = vmatprep.subr.bf16.mxu0 %v9704
    %10433 = vmatpush1.bf16.msra.mxu0 %v9703
    %10434 = vmatprep.subr.bf16.mxu0 %v9700
    %10435 = vmatpush1.bf16.msra.mxu0 %v9699
    %10436 = vmatprep.subr.bf16.mxu0 %v9696
    %10437 = vmatpush1.bf16.msra.mxu0 %v9695
    %10438 = vmatprep.subr.bf16.mxu0 %v9692
    %10439 = vmatpush1.bf16.msra.mxu0 %v9691
    %10440 = vmatprep.subr.bf16.mxu0 %v9688
    %10441 = vmatpush1.bf16.msra.mxu0 %v9687
    %10442 = vmatprep.subr.bf16.mxu0 %v9684
    %10443 = vmatpush1.bf16.msra.mxu0 %v9683
    %10444 = vmatprep.subr.bf16.mxu0 %v9744
    %10445 = vmatpush2.bf16.msra.mxu0 %v9743
    %10446 = vmatprep.subr.bf16.mxu0 %v9740
    %10447 = vmatpush2.bf16.msra.mxu0 %v9739
    %10448 = vmatprep.subr.bf16.mxu0 %v9736
    %10449 = vmatpush2.bf16.msra.mxu0 %v9735
    %10450 = vmatprep.subr.bf16.mxu0 %v9732
    %10451 = vmatpush2.bf16.msra.mxu0 %v9731
    %10452 = vmatprep.subr.bf16.mxu0 %v9728
    %10453 = vmatpush2.bf16.msra.mxu0 %v9727
    %10454 = vmatprep.subr.bf16.mxu0 %v9724
    %10455 = vmatpush2.bf16.msra.mxu0 %v9723
    %10456 = vmatprep.subr.bf16.mxu0 %v9720
    %10457 = vmatpush2.bf16.msra.mxu0 %v9719
    %10458 = vmatprep.subr.bf16.mxu0 %v9716
    %10459 = vmatpush2.bf16.msra.mxu0 %v9715
    %10460 = vmatprep.mubr.bf16.mxu0 %v8458
    %10461 = vmatmul.mubr.bf16.gmra.mxu0 %v8457
    %v10462 = vpop.f32.mrf.mxu0
    %v10463 = vadd.f32 %v10422, %v10462
    %v10464 = vpop.f32.mrf.mxu0
    %v10465 = vadd.f32 %v10424, %v10464
    %v10466 = vpop.f32.mrf.mxu0
    %v10467 = vpop.f32.mrf.mxu0
    %10468 = vdwg.mxu0
    %10469 = vmatprep.subr.bf16.mxu0 %v9776
    %10470 = vmatpush1.bf16.msra.mxu0 %v9775
    %10471 = vmatprep.subr.bf16.mxu0 %v9772
    %10472 = vmatpush1.bf16.msra.mxu0 %v9771
    %10473 = vmatprep.subr.bf16.mxu0 %v9768
    %10474 = vmatpush1.bf16.msra.mxu0 %v9767
    %10475 = vmatprep.subr.bf16.mxu0 %v9764
    %10476 = vmatpush1.bf16.msra.mxu0 %v9763
    %10477 = vmatprep.subr.bf16.mxu0 %v9760
    %10478 = vmatpush1.bf16.msra.mxu0 %v9759
    %10479 = vmatprep.subr.bf16.mxu0 %v9756
    %10480 = vmatpush1.bf16.msra.mxu0 %v9755
    %10481 = vmatprep.subr.bf16.mxu0 %v9752
    %10482 = vmatpush1.bf16.msra.mxu0 %v9751
    %10483 = vmatprep.subr.bf16.mxu0 %v9748
    %10484 = vmatpush1.bf16.msra.mxu0 %v9747
    %10485 = vmatprep.subr.bf16.mxu0 %v9808
    %10486 = vmatpush2.bf16.msra.mxu0 %v9807
    %10487 = vmatprep.subr.bf16.mxu0 %v9804
    %10488 = vmatpush2.bf16.msra.mxu0 %v9803
    %10489 = vmatprep.subr.bf16.mxu0 %v9800
    %10490 = vmatpush2.bf16.msra.mxu0 %v9799
    %10491 = vmatprep.subr.bf16.mxu0 %v9796
    %10492 = vmatpush2.bf16.msra.mxu0 %v9795
    %10493 = vmatprep.subr.bf16.mxu0 %v9792
    %10494 = vmatpush2.bf16.msra.mxu0 %v9791
    %10495 = vmatprep.subr.bf16.mxu0 %v9788
    %10496 = vmatpush2.bf16.msra.mxu0 %v9787
    %10497 = vmatprep.subr.bf16.mxu0 %v9784
    %10498 = vmatpush2.bf16.msra.mxu0 %v9783
    %10499 = vmatprep.subr.bf16.mxu0 %v9780
    %10500 = vmatpush2.bf16.msra.mxu0 %v9779
    %10501 = vmatprep.mubr.bf16.mxu0 %v8460
    %10502 = vmatmul.mubr.bf16.gmra.mxu0 %v8459
    %v10503 = vpop.f32.mrf.mxu0
    %v10504 = vadd.f32 %v10463, %v10503
    %v10505 = vpop.f32.mrf.mxu0
    %v10506 = vadd.f32 %v10465, %v10505
    %v10507 = vpop.f32.mrf.mxu0
    %v10508 = vpop.f32.mrf.mxu0
    %10509 = vdwg.mxu0
    %10510 = vmatprep.subr.bf16.mxu0 %v9840
    %10511 = vmatpush1.bf16.msra.mxu0 %v9839
    %10512 = vmatprep.subr.bf16.mxu0 %v9836
    %10513 = vmatpush1.bf16.msra.mxu0 %v9835
    %10514 = vmatprep.subr.bf16.mxu0 %v9832
    %10515 = vmatpush1.bf16.msra.mxu0 %v9831
    %10516 = vmatprep.subr.bf16.mxu0 %v9828
    %10517 = vmatpush1.bf16.msra.mxu0 %v9827
    %10518 = vmatprep.subr.bf16.mxu0 %v9824
    %10519 = vmatpush1.bf16.msra.mxu0 %v9823
    %10520 = vmatprep.subr.bf16.mxu0 %v9820
    %10521 = vmatpush1.bf16.msra.mxu0 %v9819
    %10522 = vmatprep.subr.bf16.mxu0 %v9816
    %10523 = vmatpush1.bf16.msra.mxu0 %v9815
    %10524 = vmatprep.subr.bf16.mxu0 %v9812
    %10525 = vmatpush1.bf16.msra.mxu0 %v9811
    %10526 = vmatprep.subr.bf16.mxu0 %v9872
    %10527 = vmatpush2.bf16.msra.mxu0 %v9871
    %10528 = vmatprep.subr.bf16.mxu0 %v9868
    %10529 = vmatpush2.bf16.msra.mxu0 %v9867
    %10530 = vmatprep.subr.bf16.mxu0 %v9864
    %10531 = vmatpush2.bf16.msra.mxu0 %v9863
    %10532 = vmatprep.subr.bf16.mxu0 %v9860
    %10533 = vmatpush2.bf16.msra.mxu0 %v9859
    %10534 = vmatprep.subr.bf16.mxu0 %v9856
    %10535 = vmatpush2.bf16.msra.mxu0 %v9855
    %10536 = vmatprep.subr.bf16.mxu0 %v9852
    %10537 = vmatpush2.bf16.msra.mxu0 %v9851
    %10538 = vmatprep.subr.bf16.mxu0 %v9848
    %10539 = vmatpush2.bf16.msra.mxu0 %v9847
    %10540 = vmatprep.subr.bf16.mxu0 %v9844
    %10541 = vmatpush2.bf16.msra.mxu0 %v9843
    %10542 = vmatprep.mubr.bf16.mxu0 %v8462
    %10543 = vmatmul.mubr.bf16.gmra.mxu0 %v8461
    %v10544 = vpop.f32.mrf.mxu0
    %v10545 = vadd.f32 %v10504, %v10544
    %v10546 = vpop.f32.mrf.mxu0
    %v10547 = vadd.f32 %v10506, %v10546
    %v10548 = vpop.f32.mrf.mxu0
    %v10549 = vpop.f32.mrf.mxu0
    %10550 = vdwg.mxu0
    %10551 = vmatprep.subr.bf16.mxu0 %v9904
    %10552 = vmatpush1.bf16.msra.mxu0 %v9903
    %10553 = vmatprep.subr.bf16.mxu0 %v9900
    %10554 = vmatpush1.bf16.msra.mxu0 %v9899
    %10555 = vmatprep.subr.bf16.mxu0 %v9896
    %10556 = vmatpush1.bf16.msra.mxu0 %v9895
    %10557 = vmatprep.subr.bf16.mxu0 %v9892
    %10558 = vmatpush1.bf16.msra.mxu0 %v9891
    %10559 = vmatprep.subr.bf16.mxu0 %v9888
    %10560 = vmatpush1.bf16.msra.mxu0 %v9887
    %10561 = vmatprep.subr.bf16.mxu0 %v9884
    %10562 = vmatpush1.bf16.msra.mxu0 %v9883
    %10563 = vmatprep.subr.bf16.mxu0 %v9880
    %10564 = vmatpush1.bf16.msra.mxu0 %v9879
    %10565 = vmatprep.subr.bf16.mxu0 %v9876
    %10566 = vmatpush1.bf16.msra.mxu0 %v9875
    %10567 = vmatprep.subr.bf16.mxu0 %v9936
    %10568 = vmatpush2.bf16.msra.mxu0 %v9935
    %10569 = vmatprep.subr.bf16.mxu0 %v9932
    %10570 = vmatpush2.bf16.msra.mxu0 %v9931
    %10571 = vmatprep.subr.bf16.mxu0 %v9928
    %10572 = vmatpush2.bf16.msra.mxu0 %v9927
    %10573 = vmatprep.subr.bf16.mxu0 %v9924
    %10574 = vmatpush2.bf16.msra.mxu0 %v9923
    %10575 = vmatprep.subr.bf16.mxu0 %v9920
    %10576 = vmatpush2.bf16.msra.mxu0 %v9919
    %10577 = vmatprep.subr.bf16.mxu0 %v9916
    %10578 = vmatpush2.bf16.msra.mxu0 %v9915
    %10579 = vmatprep.subr.bf16.mxu0 %v9912
    %10580 = vmatpush2.bf16.msra.mxu0 %v9911
    %10581 = vmatprep.subr.bf16.mxu0 %v9908
    %10582 = vmatpush2.bf16.msra.mxu0 %v9907
    %10583 = vmatprep.mubr.bf16.mxu0 %v8464
    %10584 = vmatmul.mubr.bf16.gmra.mxu0 %v8463
    %v10585 = vpop.f32.mrf.mxu0
    %v10586 = vadd.f32 %v10545, %v10585
    %v10587 = vpop.f32.mrf.mxu0
    %v10588 = vadd.f32 %v10547, %v10587
    %v10589 = vpop.f32.mrf.mxu0
    %v10590 = vpop.f32.mrf.mxu0
    %10591 = vdwg.mxu0
    %10592 = vmatprep.subr.bf16.mxu0 %v9968
    %10593 = vmatpush1.bf16.msra.mxu0 %v9967
    %10594 = vmatprep.subr.bf16.mxu0 %v9964
    %10595 = vmatpush1.bf16.msra.mxu0 %v9963
    %10596 = vmatprep.subr.bf16.mxu0 %v9960
    %10597 = vmatpush1.bf16.msra.mxu0 %v9959
    %10598 = vmatprep.subr.bf16.mxu0 %v9956
    %10599 = vmatpush1.bf16.msra.mxu0 %v9955
    %10600 = vmatprep.subr.bf16.mxu0 %v9952
    %10601 = vmatpush1.bf16.msra.mxu0 %v9951
    %10602 = vmatprep.subr.bf16.mxu0 %v9948
    %10603 = vmatpush1.bf16.msra.mxu0 %v9947
    %10604 = vmatprep.subr.bf16.mxu0 %v9944
    %10605 = vmatpush1.bf16.msra.mxu0 %v9943
    %10606 = vmatprep.subr.bf16.mxu0 %v9940
    %10607 = vmatpush1.bf16.msra.mxu0 %v9939
    %10608 = vmatprep.subr.bf16.mxu0 %v10000
    %10609 = vmatpush2.bf16.msra.mxu0 %v9999
    %10610 = vmatprep.subr.bf16.mxu0 %v9996
    %10611 = vmatpush2.bf16.msra.mxu0 %v9995
    %10612 = vmatprep.subr.bf16.mxu0 %v9992
    %10613 = vmatpush2.bf16.msra.mxu0 %v9991
    %10614 = vmatprep.subr.bf16.mxu0 %v9988
    %10615 = vmatpush2.bf16.msra.mxu0 %v9987
    %10616 = vmatprep.subr.bf16.mxu0 %v9984
    %10617 = vmatpush2.bf16.msra.mxu0 %v9983
    %10618 = vmatprep.subr.bf16.mxu0 %v9980
    %10619 = vmatpush2.bf16.msra.mxu0 %v9979
    %10620 = vmatprep.subr.bf16.mxu0 %v9976
    %10621 = vmatpush2.bf16.msra.mxu0 %v9975
    %10622 = vmatprep.subr.bf16.mxu0 %v9972
    %10623 = vmatpush2.bf16.msra.mxu0 %v9971
    %10624 = vmatprep.mubr.bf16.mxu0 %v8466
    %10625 = vmatmul.mubr.bf16.gmra.mxu0 %v8465
    %v10626 = vpop.f32.mrf.mxu0
    %v10627 = vadd.f32 %v10586, %v10626
    %v10628 = vpop.f32.mrf.mxu0
    %v10629 = vadd.f32 %v10588, %v10628
    %v10630 = vpop.f32.mrf.mxu0
    %v10631 = vpop.f32.mrf.mxu0
    %10632 = vdwg.mxu0
    %10633 = vmatprep.subr.bf16.mxu0 %v9650
    %10634 = vmatpush1.bf16.msra.mxu0 %v9649
    %10635 = vmatprep.subr.bf16.mxu0 %v9646
    %10636 = vmatpush1.bf16.msra.mxu0 %v9645
    %10637 = vmatprep.subr.bf16.mxu0 %v9642
    %10638 = vmatpush1.bf16.msra.mxu0 %v9641
    %10639 = vmatprep.subr.bf16.mxu0 %v9638
    %10640 = vmatpush1.bf16.msra.mxu0 %v9637
    %10641 = vmatprep.subr.bf16.mxu0 %v9634
    %10642 = vmatpush1.bf16.msra.mxu0 %v9633
    %10643 = vmatprep.subr.bf16.mxu0 %v9630
    %10644 = vmatpush1.bf16.msra.mxu0 %v9629
    %10645 = vmatprep.subr.bf16.mxu0 %v9626
    %10646 = vmatpush1.bf16.msra.mxu0 %v9625
    %10647 = vmatprep.subr.bf16.mxu0 %v9622
    %10648 = vmatpush1.bf16.msra.mxu0 %v9621
    %10649 = vmatprep.subr.bf16.mxu0 %v9682
    %10650 = vmatpush2.bf16.msra.mxu0 %v9681
    %10651 = vmatprep.subr.bf16.mxu0 %v9678
    %10652 = vmatpush2.bf16.msra.mxu0 %v9677
    %10653 = vmatprep.subr.bf16.mxu0 %v9674
    %10654 = vmatpush2.bf16.msra.mxu0 %v9673
    %10655 = vmatprep.subr.bf16.mxu0 %v9670
    %10656 = vmatpush2.bf16.msra.mxu0 %v9669
    %10657 = vmatprep.subr.bf16.mxu0 %v9666
    %10658 = vmatpush2.bf16.msra.mxu0 %v9665
    %10659 = vmatprep.subr.bf16.mxu0 %v9662
    %10660 = vmatpush2.bf16.msra.mxu0 %v9661
    %10661 = vmatprep.subr.bf16.mxu0 %v9658
    %10662 = vmatpush2.bf16.msra.mxu0 %v9657
    %10663 = vmatprep.subr.bf16.mxu0 %v9654
    %10664 = vmatpush2.bf16.msra.mxu0 %v9653
    %10665 = vmatprep.mubr.bf16.mxu0 %v8456
    %10666 = vmatmul.mubr.bf16.gmra.mxu0 %v8455
    %v10667 = vpop.f32.mrf.mxu0
    %v10668 = vadd.f32 0.0, %v10667
    %v10669 = vpop.f32.mrf.mxu0
    %v10670 = vadd.f32 0.0, %v10669
    %v10671 = vpop.f32.mrf.mxu0
    %v10672 = vpop.f32.mrf.mxu0
    %10673 = vdwg.mxu0
    %10674 = vmatprep.subr.bf16.mxu0 %v9714
    %10675 = vmatpush1.bf16.msra.mxu0 %v9713
    %10676 = vmatprep.subr.bf16.mxu0 %v9710
    %10677 = vmatpush1.bf16.msra.mxu0 %v9709
    %10678 = vmatprep.subr.bf16.mxu0 %v9706
    %10679 = vmatpush1.bf16.msra.mxu0 %v9705
    %10680 = vmatprep.subr.bf16.mxu0 %v9702
    %10681 = vmatpush1.bf16.msra.mxu0 %v9701
    %10682 = vmatprep.subr.bf16.mxu0 %v9698
    %10683 = vmatpush1.bf16.msra.mxu0 %v9697
    %10684 = vmatprep.subr.bf16.mxu0 %v9694
    %10685 = vmatpush1.bf16.msra.mxu0 %v9693
    %10686 = vmatprep.subr.bf16.mxu0 %v9690
    %10687 = vmatpush1.bf16.msra.mxu0 %v9689
    %10688 = vmatprep.subr.bf16.mxu0 %v9686
    %10689 = vmatpush1.bf16.msra.mxu0 %v9685
    %10690 = vmatprep.subr.bf16.mxu0 %v9746
    %10691 = vmatpush2.bf16.msra.mxu0 %v9745
    %10692 = vmatprep.subr.bf16.mxu0 %v9742
    %10693 = vmatpush2.bf16.msra.mxu0 %v9741
    %10694 = vmatprep.subr.bf16.mxu0 %v9738
    %10695 = vmatpush2.bf16.msra.mxu0 %v9737
    %10696 = vmatprep.subr.bf16.mxu0 %v9734
    %10697 = vmatpush2.bf16.msra.mxu0 %v9733
    %10698 = vmatprep.subr.bf16.mxu0 %v9730
    %10699 = vmatpush2.bf16.msra.mxu0 %v9729
    %10700 = vmatprep.subr.bf16.mxu0 %v9726
    %10701 = vmatpush2.bf16.msra.mxu0 %v9725
    %10702 = vmatprep.subr.bf16.mxu0 %v9722
    %10703 = vmatpush2.bf16.msra.mxu0 %v9721
    %10704 = vmatprep.subr.bf16.mxu0 %v9718
    %10705 = vmatpush2.bf16.msra.mxu0 %v9717
    %10706 = vmatprep.mubr.bf16.mxu0 %v8458
    %10707 = vmatmul.mubr.bf16.gmra.mxu0 %v8457
    %v10708 = vpop.f32.mrf.mxu0
    %v10709 = vadd.f32 %v10668, %v10708
    %v10710 = vpop.f32.mrf.mxu0
    %v10711 = vadd.f32 %v10670, %v10710
    %v10712 = vpop.f32.mrf.mxu0
    %v10713 = vpop.f32.mrf.mxu0
    %10714 = vdwg.mxu0
    %10715 = vmatprep.subr.bf16.mxu0 %v9778
    %10716 = vmatpush1.bf16.msra.mxu0 %v9777
    %10717 = vmatprep.subr.bf16.mxu0 %v9774
    %10718 = vmatpush1.bf16.msra.mxu0 %v9773
    %10719 = vmatprep.subr.bf16.mxu0 %v9770
    %10720 = vmatpush1.bf16.msra.mxu0 %v9769
    %10721 = vmatprep.subr.bf16.mxu0 %v9766
    %10722 = vmatpush1.bf16.msra.mxu0 %v9765
    %10723 = vmatprep.subr.bf16.mxu0 %v9762
    %10724 = vmatpush1.bf16.msra.mxu0 %v9761
    %10725 = vmatprep.subr.bf16.mxu0 %v9758
    %10726 = vmatpush1.bf16.msra.mxu0 %v9757
    %10727 = vmatprep.subr.bf16.mxu0 %v9754
    %10728 = vmatpush1.bf16.msra.mxu0 %v9753
    %10729 = vmatprep.subr.bf16.mxu0 %v9750
    %10730 = vmatpush1.bf16.msra.mxu0 %v9749
    %10731 = vmatprep.subr.bf16.mxu0 %v9810
    %10732 = vmatpush2.bf16.msra.mxu0 %v9809
    %10733 = vmatprep.subr.bf16.mxu0 %v9806
    %10734 = vmatpush2.bf16.msra.mxu0 %v9805
    %10735 = vmatprep.subr.bf16.mxu0 %v9802
    %10736 = vmatpush2.bf16.msra.mxu0 %v9801
    %10737 = vmatprep.subr.bf16.mxu0 %v9798
    %10738 = vmatpush2.bf16.msra.mxu0 %v9797
    %10739 = vmatprep.subr.bf16.mxu0 %v9794
    %10740 = vmatpush2.bf16.msra.mxu0 %v9793
    %10741 = vmatprep.subr.bf16.mxu0 %v9790
    %10742 = vmatpush2.bf16.msra.mxu0 %v9789
    %10743 = vmatprep.subr.bf16.mxu0 %v9786
    %10744 = vmatpush2.bf16.msra.mxu0 %v9785
    %10745 = vmatprep.subr.bf16.mxu0 %v9782
    %10746 = vmatpush2.bf16.msra.mxu0 %v9781
    %10747 = vmatprep.mubr.bf16.mxu0 %v8460
    %10748 = vmatmul.mubr.bf16.gmra.mxu0 %v8459
    %v10749 = vpop.f32.mrf.mxu0
    %v10750 = vadd.f32 %v10709, %v10749
    %v10751 = vpop.f32.mrf.mxu0
    %v10752 = vadd.f32 %v10711, %v10751
    %v10753 = vpop.f32.mrf.mxu0
    %v10754 = vpop.f32.mrf.mxu0
    %10755 = vdwg.mxu0
    %10756 = vmatprep.subr.bf16.mxu0 %v9842
    %10757 = vmatpush1.bf16.msra.mxu0 %v9841
    %10758 = vmatprep.subr.bf16.mxu0 %v9838
    %10759 = vmatpush1.bf16.msra.mxu0 %v9837
    %10760 = vmatprep.subr.bf16.mxu0 %v9834
    %10761 = vmatpush1.bf16.msra.mxu0 %v9833
    %10762 = vmatprep.subr.bf16.mxu0 %v9830
    %10763 = vmatpush1.bf16.msra.mxu0 %v9829
    %10764 = vmatprep.subr.bf16.mxu0 %v9826
    %10765 = vmatpush1.bf16.msra.mxu0 %v9825
    %10766 = vmatprep.subr.bf16.mxu0 %v9822
    %10767 = vmatpush1.bf16.msra.mxu0 %v9821
    %10768 = vmatprep.subr.bf16.mxu0 %v9818
    %10769 = vmatpush1.bf16.msra.mxu0 %v9817
    %10770 = vmatprep.subr.bf16.mxu0 %v9814
    %10771 = vmatpush1.bf16.msra.mxu0 %v9813
    %10772 = vmatprep.subr.bf16.mxu0 %v9874
    %10773 = vmatpush2.bf16.msra.mxu0 %v9873
    %10774 = vmatprep.subr.bf16.mxu0 %v9870
    %10775 = vmatpush2.bf16.msra.mxu0 %v9869
    %10776 = vmatprep.subr.bf16.mxu0 %v9866
    %10777 = vmatpush2.bf16.msra.mxu0 %v9865
    %10778 = vmatprep.subr.bf16.mxu0 %v9862
    %10779 = vmatpush2.bf16.msra.mxu0 %v9861
    %10780 = vmatprep.subr.bf16.mxu0 %v9858
    %10781 = vmatpush2.bf16.msra.mxu0 %v9857
    %10782 = vmatprep.subr.bf16.mxu0 %v9854
    %10783 = vmatpush2.bf16.msra.mxu0 %v9853
    %10784 = vmatprep.subr.bf16.mxu0 %v9850
    %10785 = vmatpush2.bf16.msra.mxu0 %v9849
    %10786 = vmatprep.subr.bf16.mxu0 %v9846
    %10787 = vmatpush2.bf16.msra.mxu0 %v9845
    %10788 = vmatprep.mubr.bf16.mxu0 %v8462
    %10789 = vmatmul.mubr.bf16.gmra.mxu0 %v8461
    %v10790 = vpop.f32.mrf.mxu0
    %v10791 = vadd.f32 %v10750, %v10790
    %v10792 = vpop.f32.mrf.mxu0
    %v10793 = vadd.f32 %v10752, %v10792
    %v10794 = vpop.f32.mrf.mxu0
    %v10795 = vpop.f32.mrf.mxu0
    %10796 = vdwg.mxu0
    %10797 = vmatprep.subr.bf16.mxu0 %v9906
    %10798 = vmatpush1.bf16.msra.mxu0 %v9905
    %10799 = vmatprep.subr.bf16.mxu0 %v9902
    %10800 = vmatpush1.bf16.msra.mxu0 %v9901
    %10801 = vmatprep.subr.bf16.mxu0 %v9898
    %10802 = vmatpush1.bf16.msra.mxu0 %v9897
    %10803 = vmatprep.subr.bf16.mxu0 %v9894
    %10804 = vmatpush1.bf16.msra.mxu0 %v9893
    %10805 = vmatprep.subr.bf16.mxu0 %v9890
    %10806 = vmatpush1.bf16.msra.mxu0 %v9889
    %10807 = vmatprep.subr.bf16.mxu0 %v9886
    %10808 = vmatpush1.bf16.msra.mxu0 %v9885
    %10809 = vmatprep.subr.bf16.mxu0 %v9882
    %10810 = vmatpush1.bf16.msra.mxu0 %v9881
    %10811 = vmatprep.subr.bf16.mxu0 %v9878
    %10812 = vmatpush1.bf16.msra.mxu0 %v9877
    %10813 = vmatprep.subr.bf16.mxu0 %v9938
    %10814 = vmatpush2.bf16.msra.mxu0 %v9937
    %10815 = vmatprep.subr.bf16.mxu0 %v9934
    %10816 = vmatpush2.bf16.msra.mxu0 %v9933
    %10817 = vmatprep.subr.bf16.mxu0 %v9930
    %10818 = vmatpush2.bf16.msra.mxu0 %v9929
    %10819 = vmatprep.subr.bf16.mxu0 %v9926
    %10820 = vmatpush2.bf16.msra.mxu0 %v9925
    %10821 = vmatprep.subr.bf16.mxu0 %v9922
    %10822 = vmatpush2.bf16.msra.mxu0 %v9921
    %10823 = vmatprep.subr.bf16.mxu0 %v9918
    %10824 = vmatpush2.bf16.msra.mxu0 %v9917
    %10825 = vmatprep.subr.bf16.mxu0 %v9914
    %10826 = vmatpush2.bf16.msra.mxu0 %v9913
    %10827 = vmatprep.subr.bf16.mxu0 %v9910
    %10828 = vmatpush2.bf16.msra.mxu0 %v9909
    %10829 = vmatprep.mubr.bf16.mxu0 %v8464
    %10830 = vmatmul.mubr.bf16.gmra.mxu0 %v8463
    %v10831 = vpop.f32.mrf.mxu0
    %v10832 = vadd.f32 %v10791, %v10831
    %v10833 = vpop.f32.mrf.mxu0
    %v10834 = vadd.f32 %v10793, %v10833
    %v10835 = vpop.f32.mrf.mxu0
    %v10836 = vpop.f32.mrf.mxu0
    %10837 = vdwg.mxu0
    %10838 = vmatprep.subr.bf16.mxu0 %v9970
    %10839 = vmatpush1.bf16.msra.mxu0 %v9969
    %10840 = vmatprep.subr.bf16.mxu0 %v9966
    %10841 = vmatpush1.bf16.msra.mxu0 %v9965
    %10842 = vmatprep.subr.bf16.mxu0 %v9962
    %10843 = vmatpush1.bf16.msra.mxu0 %v9961
    %10844 = vmatprep.subr.bf16.mxu0 %v9958
    %10845 = vmatpush1.bf16.msra.mxu0 %v9957
    %10846 = vmatprep.subr.bf16.mxu0 %v9954
    %10847 = vmatpush1.bf16.msra.mxu0 %v9953
    %10848 = vmatprep.subr.bf16.mxu0 %v9950
    %10849 = vmatpush1.bf16.msra.mxu0 %v9949
    %10850 = vmatprep.subr.bf16.mxu0 %v9946
    %10851 = vmatpush1.bf16.msra.mxu0 %v9945
    %10852 = vmatprep.subr.bf16.mxu0 %v9942
    %10853 = vmatpush1.bf16.msra.mxu0 %v9941
    %10854 = vmatprep.subr.bf16.mxu0 %v10002
    %10855 = vmatpush2.bf16.msra.mxu0 %v10001
    %10856 = vmatprep.subr.bf16.mxu0 %v9998
    %10857 = vmatpush2.bf16.msra.mxu0 %v9997
    %10858 = vmatprep.subr.bf16.mxu0 %v9994
    %10859 = vmatpush2.bf16.msra.mxu0 %v9993
    %10860 = vmatprep.subr.bf16.mxu0 %v9990
    %10861 = vmatpush2.bf16.msra.mxu0 %v9989
    %10862 = vmatprep.subr.bf16.mxu0 %v9986
    %10863 = vmatpush2.bf16.msra.mxu0 %v9985
    %10864 = vmatprep.subr.bf16.mxu0 %v9982
    %10865 = vmatpush2.bf16.msra.mxu0 %v9981
    %10866 = vmatprep.subr.bf16.mxu0 %v9978
    %10867 = vmatpush2.bf16.msra.mxu0 %v9977
    %10868 = vmatprep.subr.bf16.mxu0 %v9974
    %10869 = vmatpush2.bf16.msra.mxu0 %v9973
    %10870 = vmatprep.mubr.bf16.mxu0 %v8466
    %10871 = vmatmul.mubr.bf16.gmra.mxu0 %v8465
    %v10872 = vpop.f32.mrf.mxu0
    %v10873 = vadd.f32 %v10832, %v10872
    %v10874 = vpop.f32.mrf.mxu0
    %v10875 = vadd.f32 %v10834, %v10874
    %v10876 = vpop.f32.mrf.mxu0
    %v10877 = vpop.f32.mrf.mxu0
    %10878 = vdwg.mxu0
    %v10879 = vld [vmem:[#allocation60] sm:$0xf]
    %v10880 = vld [vmem:[#allocation62] sm:$0xf]
    %v10881 = vsel %vm5481, %v10627, 0.0
    %v10882 = vrot.slane %v10881, 4
    %v10883 = vadd.f32 %v10881, %v10882
    %v10884 = vrot.slane %v10883, 2
    %v10885 = vadd.f32 %v10883, %v10884
    %v10886 = vrot.slane %v10885, 1
    %v10887 = vadd.f32 %v10885, %v10886
    %v10888 = vsel %vm5481, %v10629, 0.0
    %v10889 = vrot.slane %v10888, 4
    %v10890 = vadd.f32 %v10888, %v10889
    %v10891 = vrot.slane %v10890, 2
    %v10892 = vadd.f32 %v10890, %v10891
    %v10893 = vrot.slane %v10892, 1
    %v10894 = vadd.f32 %v10892, %v10893
    %v10895 = vsel %vm5481, %v10873, 0.0
    %v10896 = vrot.slane %v10895, 4
    %v10897 = vadd.f32 %v10895, %v10896
    %v10898 = vrot.slane %v10897, 2
    %v10899 = vadd.f32 %v10897, %v10898
    %v10900 = vrot.slane %v10899, 1
    %v10901 = vadd.f32 %v10899, %v10900
    %v10902 = vsel %vm5481, %v10875, 0.0
    %v10903 = vrot.slane %v10902, 4
    %v10904 = vadd.f32 %v10902, %v10903
    %v10905 = vrot.slane %v10904, 2
    %v10906 = vadd.f32 %v10904, %v10905
    %v10907 = vrot.slane %v10906, 1
    %v10908 = vadd.f32 %v10906, %v10907
    %v10909 = vmul.f32 %v10627, %v10627
    %v10910 = vmul.f32 %v10629, %v10629
    %v10911 = vmul.f32 %v10873, %v10873
    %v10912 = vmul.f32 %v10875, %v10875
    %v10913 = vsel %vm5481, %v10909, 0.0
    %v10914 = vrot.slane %v10913, 4
    %v10915 = vadd.f32 %v10913, %v10914
    %v10916 = vrot.slane %v10915, 2
    %v10917 = vadd.f32 %v10915, %v10916
    %v10918 = vrot.slane %v10917, 1
    %v10919 = vadd.f32 %v10917, %v10918
    %v10920 = vsel %vm5481, %v10910, 0.0
    %v10921 = vrot.slane %v10920, 4
    %v10922 = vadd.f32 %v10920, %v10921
    %v10923 = vrot.slane %v10922, 2
    %v10924 = vadd.f32 %v10922, %v10923
    %v10925 = vrot.slane %v10924, 1
    %v10926 = vadd.f32 %v10924, %v10925
    %v10927 = vsel %vm5481, %v10911, 0.0
    %v10928 = vrot.slane %v10927, 4
    %v10929 = vadd.f32 %v10927, %v10928
    %v10930 = vrot.slane %v10929, 2
    %v10931 = vadd.f32 %v10929, %v10930
    %v10932 = vrot.slane %v10931, 1
    %v10933 = vadd.f32 %v10931, %v10932
    %v10934 = vsel %vm5481, %v10912, 0.0
    %v10935 = vrot.slane %v10934, 4
    %v10936 = vadd.f32 %v10934, %v10935
    %v10937 = vrot.slane %v10936, 2
    %v10938 = vadd.f32 %v10936, %v10937
    %v10939 = vrot.slane %v10938, 1
    %v10940 = vadd.f32 %v10938, %v10939
    %v10941 = vmul.f32 %v10887, 0.25
    %v10942 = vmul.f32 %v10894, 0.25
    %v10943 = vmul.f32 %v10901, 0.25
    %v10944 = vmul.f32 %v10908, 0.25
    %v10945 = vmul.f32 %v10919, 0.25
    %v10946 = vmul.f32 %v10926, 0.25
    %v10947 = vmul.f32 %v10933, 0.25
    %v10948 = vmul.f32 %v10940, 0.25
    %v10949 = vmul.f32 %v10941, %v10941
    %v10950 = vmul.f32 %v10942, %v10942
    %v10951 = vmul.f32 %v10943, %v10943
    %v10952 = vmul.f32 %v10944, %v10944
    %v10953 = vsub.f32 %v10945, %v10949
    %v10954 = vsub.f32 %v10946, %v10950
    %v10955 = vsub.f32 %v10947, %v10951
    %v10956 = vsub.f32 %v10948, %v10952
    %v10957 = vadd.f32 %v10953, 1e-05
    %v10958 = vadd.f32 %v10954, 1e-05
    %v10959 = vadd.f32 %v10955, 1e-05
    %v10960 = vadd.f32 %v10956, 1e-05
    %v10961 = vrsqrt.pop %v10957
    %v10962 = vrsqrt.pop %v10958
    %v10963 = vrsqrt.pop %v10959
    %v10964 = vrsqrt.pop %v10960
    %v10969 = vcombine.low %v10961, %v10962
    %v10970 = vcombine.low %v10963, %v10964
    %v10972 = vunpack.c.l.s4 1966171168
    %v10973 = vunpack.c.0.s8 %v10972
    %v10974 = vlaneseq
    %v10975 = vshrl.u32 %v10974, 7
    %v10976 = vsub.s32 %v10973, %v10975
    %v10977 = vrot.slane %v10969, %v10976
    %v10979 = vunpack.c.l.s4 1966171168
    %v10980 = vunpack.c.0.s8 %v10979
    %v10981 = vlaneseq
    %v10982 = vshrl.u32 %v10981, 7
    %v10983 = vsub.s32 %v10980, %v10982
    %v10984 = vrot.slane %v10970, %v10983
    %v10985 = vcombine.low %v10977, %v10984
    %v10987 = vunpack.c.l.s4 1966171168
    %v10988 = vunpack.c.0.s8 %v10987
    %v10989 = vlaneseq
    %v10990 = vshrl.u32 %v10989, 7
    %v10991 = vsub.s32 %v10988, %v10990
    %v10992 = vrot.slane %v10985, %v10991
    %v10994 = vmul.f32 %v10879, %v10992
    %v10996 = vlaneseq
    %v10997 = vshrl.u32 %v10996, 7
    %v10998 = vsub.s32 0, %v10997
    %v10999 = vrot.slane %v10994, %v10998
    %v11000 = vlaneseq
    %v11001 = vshrl.u32 %v11000, 7
    %v11002 = vsub.s32 1, %v11001
    %v11003 = vrot.slane %v10994, %v11002
    %v11004 = vlaneseq
    %v11005 = vshrl.u32 %v11004, 7
    %v11006 = vsub.s32 2, %v11005
    %v11007 = vrot.slane %v10994, %v11006
    %v11008 = vlaneseq
    %v11009 = vshrl.u32 %v11008, 7
    %v11010 = vsub.s32 3, %v11009
    %v11011 = vrot.slane %v10994, %v11010
    %v11016 = vmul.f32 %v10627, %v10999
    %v11017 = vmul.f32 %v10629, %v11003
    %v11018 = vmul.f32 %v10873, %v11007
    %v11019 = vmul.f32 %v10875, %v11011
    %v11020 = vmul.f32 %v10941, %v10999
    %v11021 = vmul.f32 %v10942, %v11003
    %v11022 = vmul.f32 %v10943, %v11007
    %v11023 = vmul.f32 %v10944, %v11011
    %v11028 = vcombine.low %v11020, %v11021
    %v11029 = vcombine.low %v11022, %v11023
    %v11031 = vunpack.c.l.s4 1966171168
    %v11032 = vunpack.c.0.s8 %v11031
    %v11033 = vlaneseq
    %v11034 = vshrl.u32 %v11033, 7
    %v11035 = vsub.s32 %v11032, %v11034
    %v11036 = vrot.slane %v11028, %v11035
    %v11038 = vunpack.c.l.s4 1966171168
    %v11039 = vunpack.c.0.s8 %v11038
    %v11040 = vlaneseq
    %v11041 = vshrl.u32 %v11040, 7
    %v11042 = vsub.s32 %v11039, %v11041
    %v11043 = vrot.slane %v11029, %v11042
    %v11044 = vcombine.low %v11036, %v11043
    %v11046 = vunpack.c.l.s4 1966171168
    %v11047 = vunpack.c.0.s8 %v11046
    %v11048 = vlaneseq
    %v11049 = vshrl.u32 %v11048, 7
    %v11050 = vsub.s32 %v11047, %v11049
    %v11051 = vrot.slane %v11044, %v11050
    %v11053 = vsub.f32 %v10880, %v11051
    %v11055 = vlaneseq
    %v11056 = vshrl.u32 %v11055, 7
    %v11057 = vsub.s32 0, %v11056
    %v11058 = vrot.slane %v11053, %v11057
    %v11059 = vlaneseq
    %v11060 = vshrl.u32 %v11059, 7
    %v11061 = vsub.s32 1, %v11060
    %v11062 = vrot.slane %v11053, %v11061
    %v11063 = vlaneseq
    %v11064 = vshrl.u32 %v11063, 7
    %v11065 = vsub.s32 2, %v11064
    %v11066 = vrot.slane %v11053, %v11065
    %v11067 = vlaneseq
    %v11068 = vshrl.u32 %v11067, 7
    %v11069 = vsub.s32 3, %v11068
    %v11070 = vrot.slane %v11053, %v11069
    %v11075 = vadd.f32 %v11016, %v11058
    %v11076 = vadd.f32 %v11017, %v11062
    %v11077 = vadd.f32 %v11018, %v11066
    %v11078 = vadd.f32 %v11019, %v11070
    %v11079 = vadd.f32 %v11075, %v8406
    %v11080 = vadd.f32 %v11076, %v8407
    %v11081 = vadd.f32 %v11077, %v8408
    %v11082 = vadd.f32 %v11078, %v8409
    %v11083 = vmax.f32 %v11079, 0.0
    %v11084 = vmax.f32 %v11080, 0.0
    %v11085 = vmax.f32 %v11081, 0.0
    %v11086 = vmax.f32 %v11082, 0.0
    %v11087 = vld [vmem:[#allocation63] sm:$0x3]
    %vm11088 = vcmask 31744
    %v11090 = vsel %vm11088, %v11087, 0
    %v11093 = vsel %vm5481, %v11083, 0
    %v11096 = vsel %vm5481, %v11084, 0
    %v11099 = vsel %vm5481, %v11085, 0
    %v11102 = vsel %vm5481, %v11086, 0
    %11104 = vmatprep.subr.mxu0 0.0
    %11105 = vmatpush1.msra.mxu0 0.0
    %11106 = vmatprep.subr.mxu0 0.0
    %11107 = vmatpush1.msra.mxu0 0.0
    %11108 = vmatprep.subr.mxu0 0.0
    %11109 = vmatpush1.msra.mxu0 0.0
    %11110 = vmatprep.subr.mxu0 0.0
    %11111 = vmatpush1.msra.mxu0 0.0
    %11112 = vmatprep.subr.mxu0 0.0
    %11113 = vmatpush1.msra.mxu0 0.0
    %11114 = vmatprep.subr.mxu0 0.0
    %11115 = vmatpush1.msra.mxu0 0.0
    %11116 = vmatprep.subr.mxu0 0.0
    %11117 = vmatpush1.msra.mxu0 0.0
    %11118 = vmatprep.subr.mxu0 0.0
    %11119 = vmatpush1.msra.mxu0 0.0
    %11120 = vmatprep.subr.mxu0 0.0
    %11121 = vmatpush1.msra.mxu0 0.0
    %11122 = vmatprep.subr.mxu0 0.0
    %11123 = vmatpush1.msra.mxu0 0.0
    %11124 = vmatprep.subr.mxu0 0.0
    %11125 = vmatpush1.msra.mxu0 0.0
    %11126 = vmatprep.subr.mxu0 0.0
    %11127 = vmatpush1.msra.mxu0 0.0
    %11128 = vmatprep.subr.mxu0 0.0
    %11129 = vmatpush1.msra.mxu0 0.0
    %11130 = vmatprep.subr.mxu0 0.0
    %11131 = vmatpush1.msra.mxu0 0.0
    %11132 = vmatprep.subr.mxu0 0.0
    %11133 = vmatpush1.msra.mxu0 0.0
    %11134 = vmatprep.subr.mxu0 %v11096
    %11135 = vmatpush1.msra.mxu0 %v11093
    %11136 = vmatprep.subr.mxu0 0.0
    %11137 = vmatpush2.msra.mxu0 0.0
    %11138 = vmatprep.subr.mxu0 0.0
    %11139 = vmatpush2.msra.mxu0 0.0
    %11140 = vmatprep.subr.mxu0 0.0
    %11141 = vmatpush2.msra.mxu0 0.0
    %11142 = vmatprep.subr.mxu0 0.0
    %11143 = vmatpush2.msra.mxu0 0.0
    %11144 = vmatprep.subr.mxu0 0.0
    %11145 = vmatpush2.msra.mxu0 0.0
    %11146 = vmatprep.subr.mxu0 0.0
    %11147 = vmatpush2.msra.mxu0 0.0
    %11148 = vmatprep.subr.mxu0 0.0
    %11149 = vmatpush2.msra.mxu0 0.0
    %11150 = vmatprep.subr.mxu0 0.0
    %11151 = vmatpush2.msra.mxu0 0.0
    %11152 = vmatprep.subr.mxu0 0.0
    %11153 = vmatpush2.msra.mxu0 0.0
    %11154 = vmatprep.subr.mxu0 0.0
    %11155 = vmatpush2.msra.mxu0 0.0
    %11156 = vmatprep.subr.mxu0 0.0
    %11157 = vmatpush2.msra.mxu0 0.0
    %11158 = vmatprep.subr.mxu0 0.0
    %11159 = vmatpush2.msra.mxu0 0.0
    %11160 = vmatprep.subr.mxu0 0.0
    %11161 = vmatpush2.msra.mxu0 0.0
    %11162 = vmatprep.subr.mxu0 0.0
    %11163 = vmatpush2.msra.mxu0 0.0
    %11164 = vmatprep.subr.mxu0 0.0
    %11165 = vmatpush2.msra.mxu0 0.0
    %11166 = vmatprep.subr.mxu0 0.0
    %11167 = vmatpush2.msra.mxu0 0.0
    %11168 = vmatprep.mubr.f32.mxu0 0.0
    %11169 = vmatmul.mubr.f32.gmra.mxu0 %v11090
    %v11170 = vpop.f32.mrf.mxu0
    %v11171 = vadd.f32 0.0, %v11170
    %v11172 = vpop.f32.mrf.mxu0
    %v11173 = vadd.f32 0.0, %v11172
    %11174 = vdwg.mxu0
    %11175 = vmatprep.subr.mxu0 0.0
    %11176 = vmatpush1.msra.mxu0 0.0
    %11177 = vmatprep.subr.mxu0 0.0
    %11178 = vmatpush1.msra.mxu0 0.0
    %11179 = vmatprep.subr.mxu0 0.0
    %11180 = vmatpush1.msra.mxu0 0.0
    %11181 = vmatprep.subr.mxu0 0.0
    %11182 = vmatpush1.msra.mxu0 0.0
    %11183 = vmatprep.subr.mxu0 0.0
    %11184 = vmatpush1.msra.mxu0 0.0
    %11185 = vmatprep.subr.mxu0 0.0
    %11186 = vmatpush1.msra.mxu0 0.0
    %11187 = vmatprep.subr.mxu0 0.0
    %11188 = vmatpush1.msra.mxu0 0.0
    %11189 = vmatprep.subr.mxu0 0.0
    %11190 = vmatpush1.msra.mxu0 0.0
    %11191 = vmatprep.subr.mxu0 0.0
    %11192 = vmatpush1.msra.mxu0 0.0
    %11193 = vmatprep.subr.mxu0 0.0
    %11194 = vmatpush1.msra.mxu0 0.0
    %11195 = vmatprep.subr.mxu0 0.0
    %11196 = vmatpush1.msra.mxu0 0.0
    %11197 = vmatprep.subr.mxu0 0.0
    %11198 = vmatpush1.msra.mxu0 0.0
    %11199 = vmatprep.subr.mxu0 0.0
    %11200 = vmatpush1.msra.mxu0 0.0
    %11201 = vmatprep.subr.mxu0 0.0
    %11202 = vmatpush1.msra.mxu0 0.0
    %11203 = vmatprep.subr.mxu0 0.0
    %11204 = vmatpush1.msra.mxu0 0.0
    %11205 = vmatprep.subr.mxu0 %v11102
    %11206 = vmatpush1.msra.mxu0 %v11099
    %11207 = vmatprep.subr.mxu0 0.0
    %11208 = vmatpush2.msra.mxu0 0.0
    %11209 = vmatprep.subr.mxu0 0.0
    %11210 = vmatpush2.msra.mxu0 0.0
    %11211 = vmatprep.subr.mxu0 0.0
    %11212 = vmatpush2.msra.mxu0 0.0
    %11213 = vmatprep.subr.mxu0 0.0
    %11214 = vmatpush2.msra.mxu0 0.0
    %11215 = vmatprep.subr.mxu0 0.0
    %11216 = vmatpush2.msra.mxu0 0.0
    %11217 = vmatprep.subr.mxu0 0.0
    %11218 = vmatpush2.msra.mxu0 0.0
    %11219 = vmatprep.subr.mxu0 0.0
    %11220 = vmatpush2.msra.mxu0 0.0
    %11221 = vmatprep.subr.mxu0 0.0
    %11222 = vmatpush2.msra.mxu0 0.0
    %11223 = vmatprep.subr.mxu0 0.0
    %11224 = vmatpush2.msra.mxu0 0.0
    %11225 = vmatprep.subr.mxu0 0.0
    %11226 = vmatpush2.msra.mxu0 0.0
    %11227 = vmatprep.subr.mxu0 0.0
    %11228 = vmatpush2.msra.mxu0 0.0
    %11229 = vmatprep.subr.mxu0 0.0
    %11230 = vmatpush2.msra.mxu0 0.0
    %11231 = vmatprep.subr.mxu0 0.0
    %11232 = vmatpush2.msra.mxu0 0.0
    %11233 = vmatprep.subr.mxu0 0.0
    %11234 = vmatpush2.msra.mxu0 0.0
    %11235 = vmatprep.subr.mxu0 0.0
    %11236 = vmatpush2.msra.mxu0 0.0
    %11237 = vmatprep.subr.mxu0 0.0
    %11238 = vmatpush2.msra.mxu0 0.0
    %11239 = vmatprep.mubr.f32.mxu0 0.0
    %11240 = vmatmul.mubr.f32.gmra.mxu0 %v11090
    %v11241 = vpop.f32.mrf.mxu0
    %v11242 = vadd.f32 0.0, %v11241
    %v11243 = vpop.f32.mrf.mxu0
    %v11244 = vadd.f32 0.0, %v11243
    %11245 = vdwg.mxu0
    %v11246 = vld [vmem:[#allocation65] sm:$0xff]
    %v11247 = vld [vmem:[#allocation65 + $0x8] sm:$0xff]
    %v11248 = vld [vmem:[#allocation65 + $0x10] sm:$0xff]
    %v11249 = vld [vmem:[#allocation65 + $0x18] sm:$0xff]
    %v11250 = vld [vmem:[#allocation65 + $0x20] sm:$0xff]
    %v11251 = vld [vmem:[#allocation65 + $0x28] sm:$0xff]
    %v11252 = vld [vmem:[#allocation65 + $0x30] sm:$0xff]
    %v11253 = vld [vmem:[#allocation65 + $0x38] sm:$0xff]
    %v11254 = vld [vmem:[#allocation65 + $0x40] sm:$0xff]
    %v11255 = vld [vmem:[#allocation65 + $0x48] sm:$0xff]
    %v11256 = vld [vmem:[#allocation65 + $0x50] sm:$0xff]
    %v11257 = vld [vmem:[#allocation65 + $0x58] sm:$0xff]
    %v11258 = vld [vmem:[#allocation65 + $0x60] sm:$0xff]
    %v11259 = vld [vmem:[#allocation65 + $0x68] sm:$0xff]
    %v11260 = vld [vmem:[#allocation65 + $0x70] sm:$0xff]
    %v11261 = vld [vmem:[#allocation65 + $0x78] sm:$0xff]
    %v11262 = vld [vmem:[#allocation65 + $0x80] sm:$0xff]
    %v11263 = vld [vmem:[#allocation65 + $0x88] sm:$0xff]
    %v11264 = vld [vmem:[#allocation65 + $0x90] sm:$0xff]
    %v11265 = vld [vmem:[#allocation65 + $0x98] sm:$0xff]
    %v11266 = vld [vmem:[#allocation65 + $0xa0] sm:$0xff]
    %v11267 = vld [vmem:[#allocation65 + $0xa8] sm:$0xff]
    %v11268 = vld [vmem:[#allocation65 + $0xb0] sm:$0xff]
    %v11269 = vld [vmem:[#allocation65 + $0xb8] sm:$0xff]
    %v11270 = vld [vmem:[#allocation65 + $0xc0] sm:$0xff]
    %v11271 = vld [vmem:[#allocation65 + $0xc8] sm:$0xff]
    %v11272 = vld [vmem:[#allocation65 + $0xd0] sm:$0xff]
    %v11273 = vld [vmem:[#allocation65 + $0xd8] sm:$0xff]
    %v11274 = vld [vmem:[#allocation65 + $0xe0] sm:$0xff]
    %v11275 = vld [vmem:[#allocation65 + $0xe8] sm:$0xff]
    %v11276 = vld [vmem:[#allocation65 + $0xf0] sm:$0xff]
    %v11277 = vld [vmem:[#allocation65 + $0xf8] sm:$0xff]
    %v11278 = vld [vmem:[#allocation65 + $0x100] sm:$0xff]
    %v11279 = vld [vmem:[#allocation65 + $0x108] sm:$0xff]
    %v11280 = vld [vmem:[#allocation65 + $0x110] sm:$0xff]
    %v11281 = vld [vmem:[#allocation65 + $0x118] sm:$0xff]
    %v11282 = vld [vmem:[#allocation65 + $0x120] sm:$0xff]
    %v11283 = vld [vmem:[#allocation65 + $0x128] sm:$0xff]
    %v11284 = vld [vmem:[#allocation65 + $0x130] sm:$0xff]
    %v11285 = vld [vmem:[#allocation65 + $0x138] sm:$0xff]
    %v11286 = vld [vmem:[#allocation65 + $0x140] sm:$0xff]
    %v11287 = vld [vmem:[#allocation65 + $0x148] sm:$0xff]
    %v11288 = vld [vmem:[#allocation65 + $0x150] sm:$0xff]
    %v11289 = vld [vmem:[#allocation65 + $0x158] sm:$0xff]
    %v11290 = vld [vmem:[#allocation65 + $0x160] sm:$0xff]
    %v11291 = vld [vmem:[#allocation65 + $0x168] sm:$0xff]
    %v11292 = vld [vmem:[#allocation65 + $0x170] sm:$0xff]
    %v11293 = vld [vmem:[#allocation65 + $0x178] sm:$0xff]
    %v11294 = vld [vmem:[#allocation65 + $0x180] sm:$0xff]
    %v11295 = vld [vmem:[#allocation65 + $0x188] sm:$0xff]
    %v11296 = vld [vmem:[#allocation65 + $0x190] sm:$0xff]
    %v11297 = vld [vmem:[#allocation65 + $0x198] sm:$0xff]
    %v11298 = vld [vmem:[#allocation65 + $0x1a0] sm:$0xff]
    %v11299 = vld [vmem:[#allocation65 + $0x1a8] sm:$0xff]
    %v11300 = vld [vmem:[#allocation65 + $0x1b0] sm:$0xff]
    %v11301 = vld [vmem:[#allocation65 + $0x1b8] sm:$0xff]
    %v11302 = vld [vmem:[#allocation65 + $0x1c0] sm:$0xff]
    %v11303 = vld [vmem:[#allocation65 + $0x1c8] sm:$0xff]
    %v11304 = vld [vmem:[#allocation65 + $0x1d0] sm:$0xff]
    %v11305 = vld [vmem:[#allocation65 + $0x1d8] sm:$0xff]
    %v11306 = vld [vmem:[#allocation65 + $0x1e0] sm:$0xff]
    %v11307 = vld [vmem:[#allocation65 + $0x1e8] sm:$0xff]
    %v11308 = vld [vmem:[#allocation65 + $0x1f0] sm:$0xff]
    %v11309 = vld [vmem:[#allocation65 + $0x1f8] sm:$0xff]
    %v11310 = vld [vmem:[#allocation66] sm:$0x1]
    %v11312 = vlaneseq
    %v11313 = vshrl.u32 %v11312, 7
    %v11314 = vsub.s32 0, %v11313
    %v11315 = vrot.slane %v11310, %v11314
    %11317 = vmatprep.subr.mxu0 0.0
    %11318 = vmatpush1.msra.mxu0 %v11261
    %11319 = vmatprep.subr.mxu0 0.0
    %11320 = vmatpush1.msra.mxu0 %v11260
    %11321 = vmatprep.subr.mxu0 0.0
    %11322 = vmatpush1.msra.mxu0 %v11259
    %11323 = vmatprep.subr.mxu0 0.0
    %11324 = vmatpush1.msra.mxu0 %v11258
    %11325 = vmatprep.subr.mxu0 0.0
    %11326 = vmatpush1.msra.mxu0 %v11257
    %11327 = vmatprep.subr.mxu0 0.0
    %11328 = vmatpush1.msra.mxu0 %v11256
    %11329 = vmatprep.subr.mxu0 0.0
    %11330 = vmatpush1.msra.mxu0 %v11255
    %11331 = vmatprep.subr.mxu0 0.0
    %11332 = vmatpush1.msra.mxu0 %v11254
    %11333 = vmatprep.subr.mxu0 0.0
    %11334 = vmatpush1.msra.mxu0 %v11253
    %11335 = vmatprep.subr.mxu0 0.0
    %11336 = vmatpush1.msra.mxu0 %v11252
    %11337 = vmatprep.subr.mxu0 0.0
    %11338 = vmatpush1.msra.mxu0 %v11251
    %11339 = vmatprep.subr.mxu0 0.0
    %11340 = vmatpush1.msra.mxu0 %v11250
    %11341 = vmatprep.subr.mxu0 0.0
    %11342 = vmatpush1.msra.mxu0 %v11249
    %11343 = vmatprep.subr.mxu0 0.0
    %11344 = vmatpush1.msra.mxu0 %v11248
    %11345 = vmatprep.subr.mxu0 0.0
    %11346 = vmatpush1.msra.mxu0 %v11247
    %11347 = vmatprep.subr.mxu0 0.0
    %11348 = vmatpush1.msra.mxu0 %v11246
    %11349 = vmatprep.subr.mxu0 0.0
    %11350 = vmatpush2.msra.mxu0 %v11277
    %11351 = vmatprep.subr.mxu0 0.0
    %11352 = vmatpush2.msra.mxu0 %v11276
    %11353 = vmatprep.subr.mxu0 0.0
    %11354 = vmatpush2.msra.mxu0 %v11275
    %11355 = vmatprep.subr.mxu0 0.0
    %11356 = vmatpush2.msra.mxu0 %v11274
    %11357 = vmatprep.subr.mxu0 0.0
    %11358 = vmatpush2.msra.mxu0 %v11273
    %11359 = vmatprep.subr.mxu0 0.0
    %11360 = vmatpush2.msra.mxu0 %v11272
    %11361 = vmatprep.subr.mxu0 0.0
    %11362 = vmatpush2.msra.mxu0 %v11271
    %11363 = vmatprep.subr.mxu0 0.0
    %11364 = vmatpush2.msra.mxu0 %v11270
    %11365 = vmatprep.subr.mxu0 0.0
    %11366 = vmatpush2.msra.mxu0 %v11269
    %11367 = vmatprep.subr.mxu0 0.0
    %11368 = vmatpush2.msra.mxu0 %v11268
    %11369 = vmatprep.subr.mxu0 0.0
    %11370 = vmatpush2.msra.mxu0 %v11267
    %11371 = vmatprep.subr.mxu0 0.0
    %11372 = vmatpush2.msra.mxu0 %v11266
    %11373 = vmatprep.subr.mxu0 0.0
    %11374 = vmatpush2.msra.mxu0 %v11265
    %11375 = vmatprep.subr.mxu0 0.0
    %11376 = vmatpush2.msra.mxu0 %v11264
    %11377 = vmatprep.subr.mxu0 0.0
    %11378 = vmatpush2.msra.mxu0 %v11263
    %11379 = vmatprep.subr.mxu0 0.0
    %11380 = vmatpush2.msra.mxu0 %v11262
    %11381 = vmatprep.mubr.f32.mxu0 %v11173
    %11382 = vmatmul.mubr.f32.gmra.mxu0 %v11171
    %v11383 = vpop.f32.mrf.mxu0
    %v11384 = vadd.f32 %v11315, %v11383
    %v11385 = vpop.f32.mrf.mxu0
    %11386 = vdwg.mxu0
    %11387 = vmatprep.subr.mxu0 0.0
    %11388 = vmatpush1.msra.mxu0 %v11293
    %11389 = vmatprep.subr.mxu0 0.0
    %11390 = vmatpush1.msra.mxu0 %v11292
    %11391 = vmatprep.subr.mxu0 0.0
    %11392 = vmatpush1.msra.mxu0 %v11291
    %11393 = vmatprep.subr.mxu0 0.0
    %11394 = vmatpush1.msra.mxu0 %v11290
    %11395 = vmatprep.subr.mxu0 0.0
    %11396 = vmatpush1.msra.mxu0 %v11289
    %11397 = vmatprep.subr.mxu0 0.0
    %11398 = vmatpush1.msra.mxu0 %v11288
    %11399 = vmatprep.subr.mxu0 0.0
    %11400 = vmatpush1.msra.mxu0 %v11287
    %11401 = vmatprep.subr.mxu0 0.0
    %11402 = vmatpush1.msra.mxu0 %v11286
    %11403 = vmatprep.subr.mxu0 0.0
    %11404 = vmatpush1.msra.mxu0 %v11285
    %11405 = vmatprep.subr.mxu0 0.0
    %11406 = vmatpush1.msra.mxu0 %v11284
    %11407 = vmatprep.subr.mxu0 0.0
    %11408 = vmatpush1.msra.mxu0 %v11283
    %11409 = vmatprep.subr.mxu0 0.0
    %11410 = vmatpush1.msra.mxu0 %v11282
    %11411 = vmatprep.subr.mxu0 0.0
    %11412 = vmatpush1.msra.mxu0 %v11281
    %11413 = vmatprep.subr.mxu0 0.0
    %11414 = vmatpush1.msra.mxu0 %v11280
    %11415 = vmatprep.subr.mxu0 0.0
    %11416 = vmatpush1.msra.mxu0 %v11279
    %11417 = vmatprep.subr.mxu0 0.0
    %11418 = vmatpush1.msra.mxu0 %v11278
    %11419 = vmatprep.subr.mxu0 0.0
    %11420 = vmatpush2.msra.mxu0 %v11309
    %11421 = vmatprep.subr.mxu0 0.0
    %11422 = vmatpush2.msra.mxu0 %v11308
    %11423 = vmatprep.subr.mxu0 0.0
    %11424 = vmatpush2.msra.mxu0 %v11307
    %11425 = vmatprep.subr.mxu0 0.0
    %11426 = vmatpush2.msra.mxu0 %v11306
    %11427 = vmatprep.subr.mxu0 0.0
    %11428 = vmatpush2.msra.mxu0 %v11305
    %11429 = vmatprep.subr.mxu0 0.0
    %11430 = vmatpush2.msra.mxu0 %v11304
    %11431 = vmatprep.subr.mxu0 0.0
    %11432 = vmatpush2.msra.mxu0 %v11303
    %11433 = vmatprep.subr.mxu0 0.0
    %11434 = vmatpush2.msra.mxu0 %v11302
    %11435 = vmatprep.subr.mxu0 0.0
    %11436 = vmatpush2.msra.mxu0 %v11301
    %11437 = vmatprep.subr.mxu0 0.0
    %11438 = vmatpush2.msra.mxu0 %v11300
    %11439 = vmatprep.subr.mxu0 0.0
    %11440 = vmatpush2.msra.mxu0 %v11299
    %11441 = vmatprep.subr.mxu0 0.0
    %11442 = vmatpush2.msra.mxu0 %v11298
    %11443 = vmatprep.subr.mxu0 0.0
    %11444 = vmatpush2.msra.mxu0 %v11297
    %11445 = vmatprep.subr.mxu0 0.0
    %11446 = vmatpush2.msra.mxu0 %v11296
    %11447 = vmatprep.subr.mxu0 0.0
    %11448 = vmatpush2.msra.mxu0 %v11295
    %11449 = vmatprep.subr.mxu0 0.0
    %11450 = vmatpush2.msra.mxu0 %v11294
    %11451 = vmatprep.mubr.f32.mxu0 %v11244
    %11452 = vmatmul.mubr.f32.gmra.mxu0 %v11242
    %v11453 = vpop.f32.mrf.mxu0
    %v11454 = vadd.f32 %v11384, %v11453
    %v11455 = vpop.f32.mrf.mxu0
    %11456 = vdwg.mxu0
    %11457 = vst [vmem:[#allocation68] sm:$0x3] %v11454
    // Predicated region
    $region338: #{forward.1} parent=1 // pred_check
      _
    $region339: #{forward.1} parent=1 // pred_check_branch
      %11459 = sbr.rel (0) target = $region341
    $region340: #{forward.1} parent=1 // pred_region
      %s11461 = ssub.s32 32, 32
      %11462 = vsyncadd [#allocation8], %s11461
      %s11464 = sshll.u32 [#allocation68], 4
      %s11465 = int_to_ptr.vmem [resolvable:$true] %s11464
      %11467 = dma.vmem_to_hbm [thread:$0]  %s11465, 32, %s89, [#allocation8]
    $region341: #{forward.1} parent=1 // pred_fallthru
      _
    // Predicated region
    $region342: #{forward.1} parent=1 // pred_check
      _
    $region343: #{forward.1} parent=1 // pred_check_branch
      %11469 = sbr.rel (0) target = $region345
    $region344: #{forward.1} parent=1 // pred_region
      %11470 = dma.done [#allocation8], 32
    $region345: #{forward.1} parent=1 // pred_fallthru
      _
    %11471 = vsyncpa [#allocation7], 1
    %11472 = vsyncpa [#allocation10], 1
    %11473 = vsyncpa [#allocation13], 1
    %11474 = vsyncpa [#allocation16], 1
    %11475 = vsyncpa [#allocation19], 1
    %11476 = vsyncpa [#allocation22], 1
    %11477 = vsyncpa [#allocation25], 1
    %11478 = vsyncpa [#allocation28], 1
    %11479 = vsyncpa [#allocation31], 1
    %11480 = vsyncpa [#allocation34], 1
    %11481 = vsyncpa [#allocation37], 1
    %11482 = vsyncpa [#allocation40], 1
    %11483 = vsyncpa [#allocation43], 1
    %11484 = vsyncpa [#allocation46], 1
    %11485 = vsyncpa [#allocation49], 1
    %11486 = vsyncpa [#allocation52], 1
    %11487 = vsyncpa [#allocation55], 1
    %11488 = vsyncpa [#allocation58], 1
    %11489 = vsyncpa [#allocation61], 1
    %11490 = vsyncpa [#allocation64], 1
    %11491 = vsyncpa [#allocation67], 1
    %11492 = vsyncpa [#allocation8], 1
  %11493 = vsyncmov [#allocation5]
  %s11494 = vpop.sfrf %11493
  %p11495 = scmp.eq.s32.totalorder %s11494, 0
  %p11496 = pneg %p11495
  %11498 = shalt.err (%p11496)
  %s11499 = scalar_lea.sflag [#allocation5], 1
  %11500 = vsyncmov %s11499
  %s11501 = vpop.sfrf %11500
  %p11502 = scmp.eq.s32.totalorder %s11501, 0
  %p11503 = pneg %p11502
  %11505 = shalt.err (%p11503)

</llo_original>
